<compile_context>
chip_gen: v5e
topology: v5e:2x2
jax: 0.10.0
libtpu: 0.0.40
codegen_flags: <defaults>
</compile_context>

<pallas_src>
import functools

import jax
import jax.numpy as jnp
from jax.experimental import pallas as pl
from jax.experimental.pallas import tpu as pltpu

PAD_IDX = 0


def _round_up(x, m):
    return (x + m - 1) // m * m


def _vmem_limit_bytes():
    """Derive the scoped-VMEM limit from the actual chip (v5e/v6e: ~100 MiB,
    v7x: ~51 MiB) instead of hard-coding the 32 MiB v6e default."""
    try:
        cap = int(pltpu.get_tpu_info().vmem_capacity_bytes)
    except Exception:
        cap = 128 * 1024 * 1024
    return min(100 * 1024 * 1024, int(cap * 0.8))


# ============================== kernels =====================================

def _decoder_steps_kernel(n_layers, hidden, fused, *refs):
    """grid=(T,) 'arbitrary'. One decode step per grid point; weights / encoder
    state / mask have constant index maps (DMA'd once, VMEM-resident); the
    LSTM h/c state and attention context are carried in VMEM scratch."""
    H = hidden
    f32 = jnp.float32
    n_w = 4 + 3 * (n_layers - 1) + 3
    n_in = 6 + n_w
    emb_ref, ctx0_ref, h0_ref, c0_ref, enc_ref, mask_ref = refs[:6]
    w = refs[6:n_in]
    out_ref, attn_ref, hN_ref, cN_ref = refs[n_in:n_in + 4]
    h_s, c_s, ctx_s = refs[n_in + 4:]

    t = pl.program_id(0)

    @pl.when(t == 0)
    def _():
        h_s[...] = h0_ref[...]
        c_s[...] = c0_ref[...]
        ctx_s[...] = ctx0_ref[...]

    emb = emb_ref[0]                                  # (Bp, E) f32
    ctx = ctx_s[...]                                  # (Bp, H) f32 (prev step attn out)

    # ---- LSTMCell stack (PyTorch gate order i, f, g, o). Weights are bf16 in
    #      VMEM, upcast to f32 for the matmul (f32 accumulation). The layer-0
    #      [emb ; ctx] concat is replaced by split matmuls. ----
    p = 0
    x = None
    for layer in range(n_layers):
        if layer == 0:
            w_a, w_b, w_hh, b = w[p], w[p + 1], w[p + 2], w[p + 3]
            in_a, in_b = emb, ctx
            p += 4
        else:
            w_a, w_hh, b = w[p], w[p + 1], w[p + 2]
            w_b, in_b = None, None
            in_a = x
            p += 3
        h_prev = h_s[layer]
        c_prev = c_s[layer]

        if fused:
            # one (in, 4H) matmul per operand; width-H slices are lane-tile
            # aligned because H % 128 == 0.
            g = (jnp.dot(in_a, w_a[...].astype(f32), preferred_element_type=f32)
                 + jnp.dot(h_prev, w_hh[...].astype(f32), preferred_element_type=f32)
                 + b[...])
            if in_b is not None:
                g = g + jnp.dot(in_b, w_b[...].astype(f32), preferred_element_type=f32)
            i_g = jax.nn.sigmoid(g[:, 0 * H:1 * H])
            f_g = jax.nn.sigmoid(g[:, 1 * H:2 * H])
            g_g = jnp.tanh(g[:, 2 * H:3 * H])
            o_g = jax.nn.sigmoid(g[:, 3 * H:4 * H])
        else:
            # H < 128: per-gate pre-split weights, each gate lands as a full
            # (Bp, H) tile (no sub-128 lane slicing).
            gates = []
            for k in range(4):
                gk = (jnp.dot(in_a, w_a[k].astype(f32), preferred_element_type=f32)
                      + jnp.dot(h_prev, w_hh[k].astype(f32), preferred_element_type=f32)
                      + b[k])
                if in_b is not None:
                    gk = gk + jnp.dot(in_b, w_b[k].astype(f32),
                                      preferred_element_type=f32)
                gates.append(gk)
            i_g = jax.nn.sigmoid(gates[0])
            f_g = jax.nn.sigmoid(gates[1])
            g_g = jnp.tanh(gates[2])
            o_g = jax.nn.sigmoid(gates[3])

        c_new = f_g * c_prev + i_g * g_g
        h_new = o_g * jnp.tanh(c_new)
        h_s[layer] = h_new
        c_s[layer] = c_new
        x = h_new                                     # dropout == identity (eval)

    hid = x                                           # (Bp, H)

    # ---- Attention_Module ----
    l1_wT, l2_a, l2_b = w[p], w[p + 1], w[p + 2]
    enc = enc_ref[...].astype(f32)                    # (Bp, Sp, H), shipped bf16
    mask = mask_ref[...]                              # (Bp, Sp) f32, hoisted

    x1 = jnp.dot(hid, l1_wT[...].astype(f32), preferred_element_type=f32)   # (Bp, H)
    # scores: VPU multiply + lane reduce (avoids Bp serialized M=1 MXU pushes)
    att = jnp.sum(x1[:, None, :] * enc, axis=2)                             # (Bp, Sp)
    masked = mask * att
    # reproduce the torch quirk: masked_att[masked_att == 0] = -1e10
    # (note: this also clobbers genuinely-zero in-range scores; it is safe here
    #  because encoder padding is exactly zero)
    masked = jnp.where(masked == 0.0, jnp.float32(-1e10), masked)
    m = jnp.max(masked, axis=1, keepdims=True)
    e = jnp.exp(masked - m)
    denom = jnp.sum(e, axis=1, keepdims=True)
    attn = e * pl.reciprocal(denom, approx=True)      # EUP slot -> ~free        (Bp, Sp)
    # context: VPU multiply + sublane reduce
    ctx_new = jnp.sum(attn[:, :, None] * enc, axis=1)                       # (Bp, H)
    out = jnp.tanh(jnp.dot(ctx_new, l2_a[...].astype(f32), preferred_element_type=f32)
                   + jnp.dot(hid, l2_b[...].astype(f32), preferred_element_type=f32))

    ctx_s[...] = out                                  # feeds the next decode step
    out_ref[0] = out
    attn_ref[0] = attn

    @pl.when(t == pl.num_programs(0) - 1)
    def _():
        hN_ref[...] = h_s[...]
        cN_ref[...] = c_s[...]


def _fc_logits_kernel(x_ref, w_ref, b_ref, o_ref):
    """grid=(Vp // TILE_V,) 'parallel'.  Raw logits per vocab tile; the (tiny)
    log-softmax normalization lives in the wrapper so tiles are independent."""
    o_ref[...] = (jnp.dot(x_ref[...], w_ref[...].astype(jnp.float32),
                          preferred_element_type=jnp.float32) + b_ref[...])


# ========================= one-time (hoisted) prep ==========================

def prepare_params(params, *, n_layers, hidden, embed_dim,
                   dtype=jnp.bfloat16, tile_v=2048):
    """One-time parameter prep hoisted out of the decode loop: transposes,
    b_ih+b_hh fusion, gate packing (fused (in,4H) layout when H%128==0, else
    per-gate (4,in,H)), vocab lane padding/tiling, bf16 weight storage."""
    H = hidden
    fused = (H % 128 == 0)
    prep = {"embedding": params["embedding"].astype(jnp.float32),
            "fused": fused, "hidden": H, "n_layers": n_layers,
            "embed_dim": embed_dim}

    def per_gate(wm):                                 # (4H, in) -> (4, in, H)
        return jnp.stack([wm[k * H:(k + 1) * H, :].T for k in range(4)],
                         axis=0).astype(dtype)

    def fused_w(wm):                                  # (4H, in) -> (in, 4H)
        return wm.T.astype(dtype)

    for layer in range(n_layers):
        w_ih = params[f"w_ih{layer}"]
        w_hh = params[f"w_hh{layer}"]
        b = (params[f"b_ih{layer}"] + params[f"b_hh{layer}"]).astype(jnp.float32)
        pack = fused_w if fused else per_gate
        if layer == 0:
            prep["w_a0"] = pack(w_ih[:, :embed_dim])      # multiplies emb
            prep["w_b0"] = pack(w_ih[:, embed_dim:])      # multiplies context
        else:
            prep[f"w_a{layer}"] = pack(w_ih)
        prep[f"w_hh{layer}"] = pack(w_hh)
        if fused:
            prep[f"b{layer}"] = b.reshape(1, 4 * H)
        else:
            prep[f"b{layer}"] = jnp.stack(
                [b[k * H:(k + 1) * H].reshape(1, H) for k in range(4)], axis=0)

    prep["l1_wT"] = params["l1_w"].T.astype(dtype)
    l2T = params["l2_w"].T                            # (2H, H)
    prep["l2_a"] = l2T[:H].astype(dtype)              # rows multiplying ctx_new
    prep["l2_b"] = l2T[H:].astype(dtype)              # rows multiplying hid

    V = params["fc_w"].shape[0]
    tile_v = max(128, min(_round_up(tile_v, 128), _round_up(V, 128)))
    Vp = _round_up(V, tile_v)
    prep["fc_wT"] = jnp.zeros((H, Vp), dtype).at[:, :V].set(
        params["fc_w"].T.astype(dtype))
    prep["fc_b"] = jnp.zeros((1, Vp), jnp.float32).at[0, :V].set(
        params["fc_b"].astype(jnp.float32))
    prep["vocab_size"] = V
    prep["tile_v"] = tile_v
    return prep


def prepare_encoder(encoder_outputs, src_len, *, batch_pad=8, seq_pad=128,
                    dtype=jnp.bfloat16):
    """Pad encoder state (bf16) and precompute the sequence mask once per
    source sequence (both are invariant across decode steps)."""
    B, S, H = encoder_outputs.shape
    Bp = _round_up(B, batch_pad)
    Sp = _round_up(S, seq_pad)
    enc = jnp.zeros((Bp, Sp, H), dtype).at[:B, :S, :].set(
        encoder_outputs.astype(dtype))
    lens = jnp.zeros((Bp,), jnp.int32).at[:B].set(src_len.astype(jnp.int32))
    mask = (jnp.arange(Sp)[None, :] < lens[:, None]).astype(jnp.float32)
    return enc, mask


# ============================== wrappers ====================================

def _pad_dim(x, axis, target):
    if x.shape[axis] == target:
        return x
    pad = [(0, 0)] * x.ndim
    pad[axis] = (0, target - x.shape[axis])
    return jnp.pad(x, pad)


def _const_spec(shape):
    nd = len(shape)
    return pl.BlockSpec(shape, lambda t, nd=nd: (0,) * nd)


def _run_decoder_steps(emb_seq, ctx0, h0, c0, enc_p, mask_p, prep):
    """T teacher-forced decode steps in one pallas_call; weights / encoder state
    / mask are DMA'd once (constant index maps) and stay VMEM-resident."""
    NL, H, fused = prep["n_layers"], prep["hidden"], prep["fused"]
    T, Bp, E = emb_seq.shape
    Sp = enc_p.shape[1]

    weights, w_specs = [], []

    def add_w(arr):
        weights.append(arr)
        w_specs.append(_const_spec(arr.shape))

    for layer in range(NL):
        if layer == 0:
            add_w(prep["w_a0"]); add_w(prep["w_b0"])
        else:
            add_w(prep[f"w_a{layer}"])
        add_w(prep[f"w_hh{layer}"]); add_w(prep[f"b{layer}"])
    add_w(prep["l1_wT"]); add_w(prep["l2_a"]); add_w(prep["l2_b"])

    in_specs = [
        pl.BlockSpec((1, Bp, E), lambda t: (t, 0, 0)),      # per-step embeddings
        _const_spec((Bp, H)),                               # ctx0
        _const_spec((NL, Bp, H)),                           # h0
        _const_spec((NL, Bp, H)),                           # c0
        _const_spec((Bp, Sp, H)),                           # encoder state (bf16)
        _const_spec((Bp, Sp)),                              # hoisted seq mask
    ] + w_specs

    out_shapes = (
        jax.ShapeDtypeStruct((T, Bp, H), jnp.float32),      # attention out / ctx per step
        jax.ShapeDtypeStruct((T, Bp, Sp), jnp.float32),     # attn scores per step
        jax.ShapeDtypeStruct((NL, Bp, H), jnp.float32),     # final h
        jax.ShapeDtypeStruct((NL, Bp, H), jnp.float32),     # final c
    )
    out_specs = (
        pl.BlockSpec((1, Bp, H), lambda t: (t, 0, 0)),
        pl.BlockSpec((1, Bp, Sp), lambda t: (t, 0, 0)),
        _const_spec((NL, Bp, H)),
        _const_spec((NL, Bp, H)),
    )
    scratch = [pltpu.VMEM((NL, Bp, H), jnp.float32),        # h state carry
               pltpu.VMEM((NL, Bp, H), jnp.float32),        # c state carry
               pltpu.VMEM((Bp, H), jnp.float32)]            # context carry

    return pl.pallas_call(
        functools.partial(_decoder_steps_kernel, NL, H, fused),
        out_shape=out_shapes,
        grid=(T,),
        in_specs=in_specs,
        out_specs=out_specs,
        scratch_shapes=scratch,
        compiler_params=pltpu.CompilerParams(
            dimension_semantics=("arbitrary",),             # sequential state carry
            vmem_limit_bytes=_vmem_limit_bytes()),
    )(emb_seq, ctx0, h0, c0, enc_p, mask_p, *weights)


def _run_fc_logits(x, prep, *, fc_buffers=3):
    """fc_out over a 'parallel' vocab-tile grid.  x: (M, H) f32; returns raw
    logits (M, Vp) f32 (log-softmax is applied in the caller)."""
    M, H = x.shape
    fc_wT, fc_b = prep["fc_wT"], prep["fc_b"]
    Vp = fc_wT.shape[1]
    tile_v = prep["tile_v"]
    nv = Vp // tile_v

    w_spec = pl.BlockSpec((H, tile_v), lambda j: (0, j))
    if nv >= 3:
        # deeper buffering hides fc_wT DMA on v5e/v6e (falls back gracefully).
        try:
            w_spec = pl.BlockSpec((H, tile_v), lambda j: (0, j),
                                  pipeline_mode=pl.Buffered(min(fc_buffers, nv)))
        except Exception:
            pass

    return pl.pallas_call(
        _fc_logits_kernel,
        out_shape=jax.ShapeDtypeStruct((M, Vp), jnp.float32),
        grid=(nv,),
        in_specs=[pl.BlockSpec((M, H), lambda j: (0, 0)),
                  w_spec,
                  pl.BlockSpec((1, tile_v), lambda j: (0, j))],
        out_specs=pl.BlockSpec((M, tile_v), lambda j: (0, j)),
        compiler_params=pltpu.CompilerParams(
            dimension_semantics=("parallel",),               # independent vocab tiles
            vmem_limit_bytes=_vmem_limit_bytes()),
    )(x, fc_wT, fc_b)


def decoder_rnn_forward(dec_input, context_vector, prev_hiddens, prev_cs,
                        enc_p, mask_p, prep, *, seq_len):
    """One decoder step (module-equivalent forward). dec_input: (B, 1) int32."""
    NL, H = prep["n_layers"], prep["hidden"]
    V = prep["vocab_size"]
    B = dec_input.shape[0]
    Bp = enc_p.shape[0]

    emb = prep["embedding"][dec_input[:, 0]]                 # gather = wrapper glue
    emb_seq = _pad_dim(emb.astype(jnp.float32), 0, Bp)[None]  # (1, Bp, E)
    ctx0 = _pad_dim(context_vector.astype(jnp.float32), 0, Bp)
    h0 = _pad_dim(prev_hiddens.astype(jnp.float32), 1, Bp)
    c0 = _pad_dim(prev_cs.astype(jnp.float32), 1, Bp)

    out_seq, attn_seq, new_h, new_c = _run_decoder_steps(
        emb_seq, ctx0, h0, c0, enc_p, mask_p, prep)

    logits = _run_fc_logits(out_seq.reshape(Bp, H), prep)    # (Bp, Vp) raw
    out_vocab = jax.nn.log_softmax(logits[:B, :V], axis=-1)  # tiny, wrapper-side
    context_vec = out_seq[0, :B]
    attn = attn_seq[0, :B, :seq_len].T                       # torch returns (seq_len, bsz)
    return out_vocab, context_vec, new_h[:, :B], new_c[:, :B], attn


def decoder_rnn_decode_steps(tokens, context_vector, prev_hiddens, prev_cs,
                             enc_p, mask_p, prep, *, seq_len):
    """T fused teacher-forced decode steps: weights/encoder state DMA'd once for
    all steps; fc_wT streamed once over the whole (T*Bp, H) activation matrix.
    tokens: (T, B) int32."""
    NL, H = prep["n_layers"], prep["hidden"]
    V = prep["vocab_size"]
    T, B = tokens.shape
    Bp = enc_p.shape[0]

    emb_seq = _pad_dim(prep["embedding"][tokens].astype(jnp.float32), 1, Bp)  # (T,Bp,E)
    ctx0 = _pad_dim(context_vector.astype(jnp.float32), 0, Bp)
    h0 = _pad_dim(prev_hiddens.astype(jnp.float32), 1, Bp)
    c0 = _pad_dim(prev_cs.astype(jnp.float32), 1, Bp)

    out_seq, attn_seq, new_h, new_c = _run_decoder_steps(
        emb_seq, ctx0, h0, c0, enc_p, mask_p, prep)

    logits = _run_fc_logits(out_seq.reshape(T * Bp, H), prep)
    logits = logits.reshape(T, Bp, -1)[:, :B, :V]
    out_vocab = jax.nn.log_softmax(logits, axis=-1)           # (T, B, V)
    ctx_seq = out_seq[:, :B]                                  # (T, B, H)
    attn = attn_seq[:, :B, :seq_len].transpose(0, 2, 1)       # (T, seq_len, B)
    return out_vocab, ctx_seq, new_h[:, :B], new_c[:, :B], attn


# ===================== init + pure-JAX reference + test =====================

def _init_params(key, vocab, embed_dim, hidden, n_layers):
    """Deterministic uniform(-0.1, 0.1) init mirroring the module's __init__."""
    def u(k, shape):
        return jax.random.uniform(k, shape, jnp.float32, -0.1, 0.1)

    keys = iter(jax.random.split(key, 64))
    params = {}
    emb = u(next(keys), (vocab, embed_dim))
    params["embedding"] = emb.at[PAD_IDX].set(0.0)
    for layer in range(n_layers):
        in_dim = hidden + embed_dim if layer == 0 else hidden
        params[f"w_ih{layer}"] = u(next(keys), (4 * hidden, in_dim))
        params[f"w_hh{layer}"] = u(next(keys), (4 * hidden, hidden))
        params[f"b_ih{layer}"] = u(next(keys), (4 * hidden,))
        params[f"b_hh{layer}"] = u(next(keys), (4 * hidden,))
    params["l1_w"] = u(next(keys), (hidden, hidden))
    params["l2_w"] = u(next(keys), (hidden, 2 * hidden))
    params["fc_w"] = u(next(keys), (vocab, hidden))
    params["fc_b"] = u(next(keys), (vocab,))
    return params


def _reference(dec_input, context_vector, prev_h, prev_c, enc, src_len, params,
               n_layers, hidden):
    """Pure-JAX reference of the PyTorch forward (eval mode, one step)."""
    emb = params["embedding"][dec_input[:, 0]]
    x = jnp.concatenate([emb, context_vector], axis=1)
    new_h, new_c = [], []
    for layer in range(n_layers):
        g = (x @ params[f"w_ih{layer}"].T + params[f"b_ih{layer}"]
             + prev_h[layer] @ params[f"w_hh{layer}"].T + params[f"b_hh{layer}"])
        H = hidden
        i = jax.nn.sigmoid(g[:, :H]); f = jax.nn.sigmoid(g[:, H:2 * H])
        gg = jnp.tanh(g[:, 2 * H:3 * H]); o = jax.nn.sigmoid(g[:, 3 * H:])
        c = f * prev_c[layer] + i * gg
        h = o * jnp.tanh(c)
        new_h.append(h); new_c.append(c); x = h
    hid = x
    x1 = hid @ params["l1_w"].T
    att = jnp.sum(jnp.transpose(enc, (1, 0, 2)) * x1[None], axis=2)   # (S, B)
    S, B = att.shape
    mask = (jnp.arange(S)[:, None] < src_len[None, :]).astype(jnp.float32)
    masked = mask * att
    masked = jnp.where(masked == 0.0, -1e10, masked)
    attn = jax.nn.softmax(masked, axis=0)
    ctx = jnp.sum(attn[:, :, None] * jnp.transpose(enc, (1, 0, 2)), axis=0)
    out = jnp.tanh(jnp.concatenate([ctx, hid], axis=1) @ params["l2_w"].T)
    logits = out @ params["fc_w"].T + params["fc_b"]
    out_vocab = jax.nn.log_softmax(logits, axis=1)
    return out_vocab, out, jnp.stack(new_h), jnp.stack(new_c), attn


def _check(name, got, want, atol, rtol):
    assert got.shape == want.shape, (name, got.shape, want.shape)
    err = float(jnp.max(jnp.abs(got - want)))
    assert jnp.allclose(got, want, atol=atol, rtol=rtol), (name, err)


if __name__ == "__main__":
    # high-precision f32 matmuls in the reference so it is an exact yardstick
    jax.config.update("jax_default_matmul_precision", "highest")

    configs = [
        # (name,           B, E,  H,  S, V,   NL, tile_v, test multi-step)
        ("per_gate_H32",   (4, 32, 32, 8, 50, 2, 2048, False)),
        ("fused_H128",     (4, 32, 128, 8, 300, 2, 128, True)),   # 3 vocab tiles
    ]

    for name, (B, E, H, S, V, NL, tile_v, multi) in configs:
        key = jax.random.PRNGKey(0)
        kp, k1, k2, k3, k4, k5, k6 = jax.random.split(key, 7)
        params = _init_params(kp, V, E, H, NL)
        # round params / encoder state to bf16-representable values so the f32
        # reference and the bf16-weight kernel consume identical numbers
        params = {k: v.astype(jnp.bfloat16).astype(jnp.float32)
                  for k, v in params.items()}

        dec_input = jax.random.randint(k1, (B, 1), 1, V, dtype=jnp.int32)
        context_vector = jax.random.normal(k2, (B, H), jnp.float32)
        prev_h = jax.random.normal(k3, (NL, B, H), jnp.float32)
        prev_c = jax.random.normal(k4, (NL, B, H), jnp.float32)
        enc = jax.random.normal(k5, (B, S, H), jnp.float32)
        enc = enc.astype(jnp.bfloat16).astype(jnp.float32)
        src_len = jnp.array([S, 5, 3, S], dtype=jnp.int32)

        prep = prepare_params(params, n_layers=NL, hidden=H, embed_dim=E,
                              tile_v=tile_v)
        enc_p, mask_p = prepare_encoder(enc, src_len)

        # ---- single step (module-equivalent forward) ----
        outs = decoder_rnn_forward(dec_input, context_vector, prev_h, prev_c,
                                   enc_p, mask_p, prep, seq_len=S)
        outs = jax.block_until_ready(outs)
        refs = _reference(dec_input, context_vector, prev_h, prev_c, enc,
                          src_len, params, NL, H)
        for nm, got, want in zip(("out_vocab", "ctx", "h", "c", "attn"), outs, refs):
            _check(f"{name}:{nm}", got, want, atol=2e-3, rtol=2e-3)

        # ---- fused multi-step (teacher-forced) decode ----
        if multi:
            T = 3
            tokens = jax.random.randint(k6, (T, B), 1, V, dtype=jnp.int32)
            m_out = decoder_rnn_decode_steps(tokens, context_vector, prev_h,
                                             prev_c, enc_p, mask_p, prep,
                                             seq_len=S)
            m_out = jax.block_until_ready(m_out)
            ctx_r, h_r, c_r = context_vector, prev_h, prev_c
            for t in range(T):
                ov, cv, h_r, c_r, at = _reference(tokens[t][:, None], ctx_r, h_r,
                                                  c_r, enc, src_len, params, NL, H)
                _check(f"{name}:ms_vocab{t}", m_out[0][t], ov, 5e-3, 5e-3)
                _check(f"{name}:ms_ctx{t}", m_out[1][t], cv, 5e-3, 5e-3)
                _check(f"{name}:ms_attn{t}", m_out[4][t], at, 5e-3, 5e-3)
                ctx_r = cv
            _check(f"{name}:ms_h", m_out[2], h_r, 5e-3, 5e-3)
            _check(f"{name}:ms_c", m_out[3], c_r, 5e-3, 5e-3)

    print("KERNEL_OK")
</pallas_src>

<mosaic_0001>
module attributes {stable_mosaic.version = 11 : i64} {
  func.func @_decoder_steps_kernel(%arg0: i32, %arg1: memref<1x8x32xf32, #tpu.memory_space<vmem>>, %arg2: memref<8x32xf32, #tpu.memory_space<vmem>>, %arg3: memref<2x8x32xf32, #tpu.memory_space<vmem>>, %arg4: memref<2x8x32xf32, #tpu.memory_space<vmem>>, %arg5: memref<8x128x32xbf16, #tpu.memory_space<vmem>>, %arg6: memref<8x128xf32, #tpu.memory_space<vmem>>, %arg7: memref<4x32x32xbf16, #tpu.memory_space<vmem>>, %arg8: memref<4x32x32xbf16, #tpu.memory_space<vmem>>, %arg9: memref<4x32x32xbf16, #tpu.memory_space<vmem>>, %arg10: memref<4x1x32xf32, #tpu.memory_space<vmem>>, %arg11: memref<4x32x32xbf16, #tpu.memory_space<vmem>>, %arg12: memref<4x32x32xbf16, #tpu.memory_space<vmem>>, %arg13: memref<4x1x32xf32, #tpu.memory_space<vmem>>, %arg14: memref<32x32xbf16, #tpu.memory_space<vmem>>, %arg15: memref<32x32xbf16, #tpu.memory_space<vmem>>, %arg16: memref<32x32xbf16, #tpu.memory_space<vmem>>, %arg17: memref<1x8x32xf32, #tpu.memory_space<vmem>>, %arg18: memref<1x8x128xf32, #tpu.memory_space<vmem>>, %arg19: memref<2x8x32xf32, #tpu.memory_space<vmem>>, %arg20: memref<2x8x32xf32, #tpu.memory_space<vmem>>, %arg21: memref<2x8x32xf32, #tpu.memory_space<vmem>>, %arg22: memref<2x8x32xf32, #tpu.memory_space<vmem>>, %arg23: memref<8x32xf32, #tpu.memory_space<vmem>>) attributes {dimension_semantics = [#tpu.dimension_semantics<arbitrary>], iteration_bounds = array<i64: 1>, scalar_prefetch = 0 : i64, scratch_operands = 3 : i64, tpu.core_type = #tpu.core_type<tc>, window_params = [{transform_indices = @transform_0, window_bounds = array<i64: 1, 8, 32>}, {pipeline_mode = #tpu.pipeline_mode<synchronous>, transform_indices = @transform_1, window_bounds = array<i64: 8, 32>}, {pipeline_mode = #tpu.pipeline_mode<synchronous>, transform_indices = @transform_2, window_bounds = array<i64: 2, 8, 32>}, {pipeline_mode = #tpu.pipeline_mode<synchronous>, transform_indices = @transform_3, window_bounds = array<i64: 2, 8, 32>}, {pipeline_mode = #tpu.pipeline_mode<synchronous>, transform_indices = @transform_4, window_bounds = array<i64: 8, 128, 32>}, {pipeline_mode = #tpu.pipeline_mode<synchronous>, transform_indices = @transform_5, window_bounds = array<i64: 8, 128>}, {pipeline_mode = #tpu.pipeline_mode<synchronous>, transform_indices = @transform_6, window_bounds = array<i64: 4, 32, 32>}, {pipeline_mode = #tpu.pipeline_mode<synchronous>, transform_indices = @transform_7, window_bounds = array<i64: 4, 32, 32>}, {pipeline_mode = #tpu.pipeline_mode<synchronous>, transform_indices = @transform_8, window_bounds = array<i64: 4, 32, 32>}, {pipeline_mode = #tpu.pipeline_mode<synchronous>, transform_indices = @transform_9, window_bounds = array<i64: 4, 1, 32>}, {pipeline_mode = #tpu.pipeline_mode<synchronous>, transform_indices = @transform_10, window_bounds = array<i64: 4, 32, 32>}, {pipeline_mode = #tpu.pipeline_mode<synchronous>, transform_indices = @transform_11, window_bounds = array<i64: 4, 32, 32>}, {pipeline_mode = #tpu.pipeline_mode<synchronous>, transform_indices = @transform_12, window_bounds = array<i64: 4, 1, 32>}, {pipeline_mode = #tpu.pipeline_mode<synchronous>, transform_indices = @transform_13, window_bounds = array<i64: 32, 32>}, {pipeline_mode = #tpu.pipeline_mode<synchronous>, transform_indices = @transform_14, window_bounds = array<i64: 32, 32>}, {pipeline_mode = #tpu.pipeline_mode<synchronous>, transform_indices = @transform_15, window_bounds = array<i64: 32, 32>}, {transform_indices = @transform_16, window_bounds = array<i64: 1, 8, 32>}, {transform_indices = @transform_17, window_bounds = array<i64: 1, 8, 128>}, {pipeline_mode = #tpu.pipeline_mode<synchronous>, transform_indices = @transform_18, window_bounds = array<i64: 2, 8, 32>}, {pipeline_mode = #tpu.pipeline_mode<synchronous>, transform_indices = @transform_19, window_bounds = array<i64: 2, 8, 32>}]} {
    %c0_i32 = arith.constant 0 : i32
    %0 = arith.cmpi eq, %arg0, %c0_i32 : i32
    %1 = arith.extui %0 : i1 to i32
    %c0_i32_0 = arith.constant 0 : i32
    %2 = arith.cmpi ne, %1, %c0_i32_0 : i32
    scf.if %2 {
      %c0_165 = arith.constant 0 : index
      %c0_166 = arith.constant 0 : index
      %c0_167 = arith.constant 0 : index
      %239 = vector.load %arg3[%c0_165, %c0_166, %c0_167] : memref<2x8x32xf32, #tpu.memory_space<vmem>>, vector<2x8x32xf32>
      %c0_168 = arith.constant 0 : index
      %c0_169 = arith.constant 0 : index
      %c0_170 = arith.constant 0 : index
      %240 = vector.load %arg21[%c0_168, %c0_169, %c0_170] : memref<2x8x32xf32, #tpu.memory_space<vmem>>, vector<2x8x32xf32>
      tpu.vector_store %arg21[%c0_168, %c0_169, %c0_170], %239 {strides = array<i32>} : memref<2x8x32xf32, #tpu.memory_space<vmem>>, vector<2x8x32xf32>,
      %c0_171 = arith.constant 0 : index
      %c0_172 = arith.constant 0 : index
      %c0_173 = arith.constant 0 : index
      %241 = vector.load %arg4[%c0_171, %c0_172, %c0_173] : memref<2x8x32xf32, #tpu.memory_space<vmem>>, vector<2x8x32xf32>
      %c0_174 = arith.constant 0 : index
      %c0_175 = arith.constant 0 : index
      %c0_176 = arith.constant 0 : index
      %242 = vector.load %arg22[%c0_174, %c0_175, %c0_176] : memref<2x8x32xf32, #tpu.memory_space<vmem>>, vector<2x8x32xf32>
      tpu.vector_store %arg22[%c0_174, %c0_175, %c0_176], %241 {strides = array<i32>} : memref<2x8x32xf32, #tpu.memory_space<vmem>>, vector<2x8x32xf32>,
      %c0_177 = arith.constant 0 : index
      %c0_178 = arith.constant 0 : index
      %243 = vector.load %arg2[%c0_177, %c0_178] : memref<8x32xf32, #tpu.memory_space<vmem>>, vector<8x32xf32>
      %c0_179 = arith.constant 0 : index
      %c0_180 = arith.constant 0 : index
      %244 = vector.load %arg23[%c0_179, %c0_180] : memref<8x32xf32, #tpu.memory_space<vmem>>, vector<8x32xf32>
      tpu.vector_store %arg23[%c0_179, %c0_180], %243 {strides = array<i32>} : memref<8x32xf32, #tpu.memory_space<vmem>>, vector<8x32xf32>,
    } else {
    }
    %c0 = arith.constant 0 : index
    %c0_1 = arith.constant 0 : index
    %c0_2 = arith.constant 0 : index
    %3 = vector.load %arg1[%c0, %c0_1, %c0_2] : memref<1x8x32xf32, #tpu.memory_space<vmem>>, vector<1x8x32xf32>
    %4 = vector.shape_cast %3 : vector<1x8x32xf32> to vector<8x32xf32>
    %c0_3 = arith.constant 0 : index
    %c0_4 = arith.constant 0 : index
    %5 = vector.load %arg23[%c0_3, %c0_4] : memref<8x32xf32, #tpu.memory_space<vmem>>, vector<8x32xf32>
    %c0_5 = arith.constant 0 : index
    %c0_6 = arith.constant 0 : index
    %c0_7 = arith.constant 0 : index
    %6 = vector.load %arg21[%c0_5, %c0_6, %c0_7] : memref<2x8x32xf32, #tpu.memory_space<vmem>>, vector<1x8x32xf32>
    %7 = vector.shape_cast %6 : vector<1x8x32xf32> to vector<8x32xf32>
    %c0_8 = arith.constant 0 : index
    %c0_9 = arith.constant 0 : index
    %c0_10 = arith.constant 0 : index
    %8 = vector.load %arg22[%c0_8, %c0_9, %c0_10] : memref<2x8x32xf32, #tpu.memory_space<vmem>>, vector<1x8x32xf32>
    %9 = vector.shape_cast %8 : vector<1x8x32xf32> to vector<8x32xf32>
    %c0_11 = arith.constant 0 : index
    %c0_12 = arith.constant 0 : index
    %c0_13 = arith.constant 0 : index
    %10 = vector.load %arg7[%c0_11, %c0_12, %c0_13] : memref<4x32x32xbf16, #tpu.memory_space<vmem>>, vector<1x32x32xbf16>
    %11 = vector.shape_cast %10 : vector<1x32x32xbf16> to vector<32x32xbf16>
    %12 = arith.extf %11 : vector<32x32xbf16> to vector<32x32xf32>
    %cst = arith.constant dense<0.000000e+00> : vector<8x32xf32>
    %13 = tpu.matmul %4, %12, %cst {dimension_numbers = #tpu.dot_dimension_numbers<[1], [0], [0], [1], [0, 0, 1, 1], [], []>, precision = #tpu.contract_precision<fp32>} : vector<8x32xf32>, vector<32x32xf32>, vector<8x32xf32> -> vector<8x32xf32>
    %c0_14 = arith.constant 0 : index
    %c0_15 = arith.constant 0 : index
    %c0_16 = arith.constant 0 : index
    %14 = vector.load %arg9[%c0_14, %c0_15, %c0_16] : memref<4x32x32xbf16, #tpu.memory_space<vmem>>, vector<1x32x32xbf16>
    %15 = vector.shape_cast %14 : vector<1x32x32xbf16> to vector<32x32xbf16>
    %16 = arith.extf %15 : vector<32x32xbf16> to vector<32x32xf32>
    %cst_17 = arith.constant dense<0.000000e+00> : vector<8x32xf32>
    %17 = tpu.matmul %7, %16, %cst_17 {dimension_numbers = #tpu.dot_dimension_numbers<[1], [0], [0], [1], [0, 0, 1, 1], [], []>, precision = #tpu.contract_precision<fp32>} : vector<8x32xf32>, vector<32x32xf32>, vector<8x32xf32> -> vector<8x32xf32>
    %18 = arith.addf %13, %17 : vector<8x32xf32>
    %c0_18 = arith.constant 0 : index
    %c0_19 = arith.constant 0 : index
    %c0_20 = arith.constant 0 : index
    %19 = vector.load %arg10[%c0_18, %c0_19, %c0_20] : memref<4x1x32xf32, #tpu.memory_space<vmem>>, vector<1x1x32xf32>
    %20 = vector.shape_cast %19 : vector<1x1x32xf32> to vector<1x32xf32>
    %21 = vector.broadcast %20 : vector<1x32xf32> to vector<8x32xf32>
    %22 = arith.addf %18, %21 : vector<8x32xf32>
    %c0_21 = arith.constant 0 : index
    %c0_22 = arith.constant 0 : index
    %c0_23 = arith.constant 0 : index
    %23 = vector.load %arg8[%c0_21, %c0_22, %c0_23] : memref<4x32x32xbf16, #tpu.memory_space<vmem>>, vector<1x32x32xbf16>
    %24 = vector.shape_cast %23 : vector<1x32x32xbf16> to vector<32x32xbf16>
    %25 = arith.extf %24 : vector<32x32xbf16> to vector<32x32xf32>
    %cst_24 = arith.constant dense<0.000000e+00> : vector<8x32xf32>
    %26 = tpu.matmul %5, %25, %cst_24 {dimension_numbers = #tpu.dot_dimension_numbers<[1], [0], [0], [1], [0, 0, 1, 1], [], []>, precision = #tpu.contract_precision<fp32>} : vector<8x32xf32>, vector<32x32xf32>, vector<8x32xf32> -> vector<8x32xf32>
    %27 = arith.addf %22, %26 : vector<8x32xf32>
    %c1 = arith.constant 1 : index
    %c0_25 = arith.constant 0 : index
    %c0_26 = arith.constant 0 : index
    %28 = vector.load %arg7[%c1, %c0_25, %c0_26] : memref<4x32x32xbf16, #tpu.memory_space<vmem>>, vector<1x32x32xbf16>
    %29 = vector.shape_cast %28 : vector<1x32x32xbf16> to vector<32x32xbf16>
    %30 = arith.extf %29 : vector<32x32xbf16> to vector<32x32xf32>
    %cst_27 = arith.constant dense<0.000000e+00> : vector<8x32xf32>
    %31 = tpu.matmul %4, %30, %cst_27 {dimension_numbers = #tpu.dot_dimension_numbers<[1], [0], [0], [1], [0, 0, 1, 1], [], []>, precision = #tpu.contract_precision<fp32>} : vector<8x32xf32>, vector<32x32xf32>, vector<8x32xf32> -> vector<8x32xf32>
    %c1_28 = arith.constant 1 : index
    %c0_29 = arith.constant 0 : index
    %c0_30 = arith.constant 0 : index
    %32 = vector.load %arg9[%c1_28, %c0_29, %c0_30] : memref<4x32x32xbf16, #tpu.memory_space<vmem>>, vector<1x32x32xbf16>
    %33 = vector.shape_cast %32 : vector<1x32x32xbf16> to vector<32x32xbf16>
    %34 = arith.extf %33 : vector<32x32xbf16> to vector<32x32xf32>
    %cst_31 = arith.constant dense<0.000000e+00> : vector<8x32xf32>
    %35 = tpu.matmul %7, %34, %cst_31 {dimension_numbers = #tpu.dot_dimension_numbers<[1], [0], [0], [1], [0, 0, 1, 1], [], []>, precision = #tpu.contract_precision<fp32>} : vector<8x32xf32>, vector<32x32xf32>, vector<8x32xf32> -> vector<8x32xf32>
    %36 = arith.addf %31, %35 : vector<8x32xf32>
    %c1_32 = arith.constant 1 : index
    %c0_33 = arith.constant 0 : index
    %c0_34 = arith.constant 0 : index
    %37 = vector.load %arg10[%c1_32, %c0_33, %c0_34] : memref<4x1x32xf32, #tpu.memory_space<vmem>>, vector<1x1x32xf32>
    %38 = vector.shape_cast %37 : vector<1x1x32xf32> to vector<1x32xf32>
    %39 = vector.broadcast %38 : vector<1x32xf32> to vector<8x32xf32>
    %40 = arith.addf %36, %39 : vector<8x32xf32>
    %c1_35 = arith.constant 1 : index
    %c0_36 = arith.constant 0 : index
    %c0_37 = arith.constant 0 : index
    %41 = vector.load %arg8[%c1_35, %c0_36, %c0_37] : memref<4x32x32xbf16, #tpu.memory_space<vmem>>, vector<1x32x32xbf16>
    %42 = vector.shape_cast %41 : vector<1x32x32xbf16> to vector<32x32xbf16>
    %43 = arith.extf %42 : vector<32x32xbf16> to vector<32x32xf32>
    %cst_38 = arith.constant dense<0.000000e+00> : vector<8x32xf32>
    %44 = tpu.matmul %5, %43, %cst_38 {dimension_numbers = #tpu.dot_dimension_numbers<[1], [0], [0], [1], [0, 0, 1, 1], [], []>, precision = #tpu.contract_precision<fp32>} : vector<8x32xf32>, vector<32x32xf32>, vector<8x32xf32> -> vector<8x32xf32>
    %45 = arith.addf %40, %44 : vector<8x32xf32>
    %c2 = arith.constant 2 : index
    %c0_39 = arith.constant 0 : index
    %c0_40 = arith.constant 0 : index
    %46 = vector.load %arg7[%c2, %c0_39, %c0_40] : memref<4x32x32xbf16, #tpu.memory_space<vmem>>, vector<1x32x32xbf16>
    %47 = vector.shape_cast %46 : vector<1x32x32xbf16> to vector<32x32xbf16>
    %48 = arith.extf %47 : vector<32x32xbf16> to vector<32x32xf32>
    %cst_41 = arith.constant dense<0.000000e+00> : vector<8x32xf32>
    %49 = tpu.matmul %4, %48, %cst_41 {dimension_numbers = #tpu.dot_dimension_numbers<[1], [0], [0], [1], [0, 0, 1, 1], [], []>, precision = #tpu.contract_precision<fp32>} : vector<8x32xf32>, vector<32x32xf32>, vector<8x32xf32> -> vector<8x32xf32>
    %c2_42 = arith.constant 2 : index
    %c0_43 = arith.constant 0 : index
    %c0_44 = arith.constant 0 : index
    %50 = vector.load %arg9[%c2_42, %c0_43, %c0_44] : memref<4x32x32xbf16, #tpu.memory_space<vmem>>, vector<1x32x32xbf16>
    %51 = vector.shape_cast %50 : vector<1x32x32xbf16> to vector<32x32xbf16>
    %52 = arith.extf %51 : vector<32x32xbf16> to vector<32x32xf32>
    %cst_45 = arith.constant dense<0.000000e+00> : vector<8x32xf32>
    %53 = tpu.matmul %7, %52, %cst_45 {dimension_numbers = #tpu.dot_dimension_numbers<[1], [0], [0], [1], [0, 0, 1, 1], [], []>, precision = #tpu.contract_precision<fp32>} : vector<8x32xf32>, vector<32x32xf32>, vector<8x32xf32> -> vector<8x32xf32>
    %54 = arith.addf %49, %53 : vector<8x32xf32>
    %c2_46 = arith.constant 2 : index
    %c0_47 = arith.constant 0 : index
    %c0_48 = arith.constant 0 : index
    %55 = vector.load %arg10[%c2_46, %c0_47, %c0_48] : memref<4x1x32xf32, #tpu.memory_space<vmem>>, vector<1x1x32xf32>
    %56 = vector.shape_cast %55 : vector<1x1x32xf32> to vector<1x32xf32>
    %57 = vector.broadcast %56 : vector<1x32xf32> to vector<8x32xf32>
    %58 = arith.addf %54, %57 : vector<8x32xf32>
    %c2_49 = arith.constant 2 : index
    %c0_50 = arith.constant 0 : index
    %c0_51 = arith.constant 0 : index
    %59 = vector.load %arg8[%c2_49, %c0_50, %c0_51] : memref<4x32x32xbf16, #tpu.memory_space<vmem>>, vector<1x32x32xbf16>
    %60 = vector.shape_cast %59 : vector<1x32x32xbf16> to vector<32x32xbf16>
    %61 = arith.extf %60 : vector<32x32xbf16> to vector<32x32xf32>
    %cst_52 = arith.constant dense<0.000000e+00> : vector<8x32xf32>
    %62 = tpu.matmul %5, %61, %cst_52 {dimension_numbers = #tpu.dot_dimension_numbers<[1], [0], [0], [1], [0, 0, 1, 1], [], []>, precision = #tpu.contract_precision<fp32>} : vector<8x32xf32>, vector<32x32xf32>, vector<8x32xf32> -> vector<8x32xf32>
    %63 = arith.addf %58, %62 : vector<8x32xf32>
    %c3 = arith.constant 3 : index
    %c0_53 = arith.constant 0 : index
    %c0_54 = arith.constant 0 : index
    %64 = vector.load %arg7[%c3, %c0_53, %c0_54] : memref<4x32x32xbf16, #tpu.memory_space<vmem>>, vector<1x32x32xbf16>
    %65 = vector.shape_cast %64 : vector<1x32x32xbf16> to vector<32x32xbf16>
    %66 = arith.extf %65 : vector<32x32xbf16> to vector<32x32xf32>
    %cst_55 = arith.constant dense<0.000000e+00> : vector<8x32xf32>
    %67 = tpu.matmul %4, %66, %cst_55 {dimension_numbers = #tpu.dot_dimension_numbers<[1], [0], [0], [1], [0, 0, 1, 1], [], []>, precision = #tpu.contract_precision<fp32>} : vector<8x32xf32>, vector<32x32xf32>, vector<8x32xf32> -> vector<8x32xf32>
    %c3_56 = arith.constant 3 : index
    %c0_57 = arith.constant 0 : index
    %c0_58 = arith.constant 0 : index
    %68 = vector.load %arg9[%c3_56, %c0_57, %c0_58] : memref<4x32x32xbf16, #tpu.memory_space<vmem>>, vector<1x32x32xbf16>
    %69 = vector.shape_cast %68 : vector<1x32x32xbf16> to vector<32x32xbf16>
    %70 = arith.extf %69 : vector<32x32xbf16> to vector<32x32xf32>
    %cst_59 = arith.constant dense<0.000000e+00> : vector<8x32xf32>
    %71 = tpu.matmul %7, %70, %cst_59 {dimension_numbers = #tpu.dot_dimension_numbers<[1], [0], [0], [1], [0, 0, 1, 1], [], []>, precision = #tpu.contract_precision<fp32>} : vector<8x32xf32>, vector<32x32xf32>, vector<8x32xf32> -> vector<8x32xf32>
    %72 = arith.addf %67, %71 : vector<8x32xf32>
    %c3_60 = arith.constant 3 : index
    %c0_61 = arith.constant 0 : index
    %c0_62 = arith.constant 0 : index
    %73 = vector.load %arg10[%c3_60, %c0_61, %c0_62] : memref<4x1x32xf32, #tpu.memory_space<vmem>>, vector<1x1x32xf32>
    %74 = vector.shape_cast %73 : vector<1x1x32xf32> to vector<1x32xf32>
    %75 = vector.broadcast %74 : vector<1x32xf32> to vector<8x32xf32>
    %76 = arith.addf %72, %75 : vector<8x32xf32>
    %c3_63 = arith.constant 3 : index
    %c0_64 = arith.constant 0 : index
    %c0_65 = arith.constant 0 : index
    %77 = vector.load %arg8[%c3_63, %c0_64, %c0_65] : memref<4x32x32xbf16, #tpu.memory_space<vmem>>, vector<1x32x32xbf16>
    %78 = vector.shape_cast %77 : vector<1x32x32xbf16> to vector<32x32xbf16>
    %79 = arith.extf %78 : vector<32x32xbf16> to vector<32x32xf32>
    %cst_66 = arith.constant dense<0.000000e+00> : vector<8x32xf32>
    %80 = tpu.matmul %5, %79, %cst_66 {dimension_numbers = #tpu.dot_dimension_numbers<[1], [0], [0], [1], [0, 0, 1, 1], [], []>, precision = #tpu.contract_precision<fp32>} : vector<8x32xf32>, vector<32x32xf32>, vector<8x32xf32> -> vector<8x32xf32>
    %81 = arith.addf %76, %80 : vector<8x32xf32>
    %82 = arith.negf %27 : vector<8x32xf32>
    %83 = math.exp %82 : vector<8x32xf32>
    %cst_67 = arith.constant 1.000000e+00 : f32
    %84 = vector.broadcast %cst_67 : f32 to vector<8x32xf32>
    %85 = arith.addf %84, %83 : vector<8x32xf32>
    %86 = arith.divf %84, %85 : vector<8x32xf32>
    %87 = arith.negf %45 : vector<8x32xf32>
    %88 = math.exp %87 : vector<8x32xf32>
    %cst_68 = arith.constant 1.000000e+00 : f32
    %89 = vector.broadcast %cst_68 : f32 to vector<8x32xf32>
    %90 = arith.addf %89, %88 : vector<8x32xf32>
    %91 = arith.divf %89, %90 : vector<8x32xf32>
    %92 = math.tanh %63 : vector<8x32xf32>
    %93 = arith.negf %81 : vector<8x32xf32>
    %94 = math.exp %93 : vector<8x32xf32>
    %cst_69 = arith.constant 1.000000e+00 : f32
    %95 = vector.broadcast %cst_69 : f32 to vector<8x32xf32>
    %96 = arith.addf %95, %94 : vector<8x32xf32>
    %97 = arith.divf %95, %96 : vector<8x32xf32>
    %98 = arith.mulf %91, %9 : vector<8x32xf32>
    %99 = arith.mulf %86, %92 : vector<8x32xf32>
    %100 = arith.addf %98, %99 : vector<8x32xf32>
    %101 = math.tanh %100 : vector<8x32xf32>
    %102 = arith.mulf %97, %101 : vector<8x32xf32>
    %c0_70 = arith.constant 0 : index
    %c0_71 = arith.constant 0 : index
    %c0_72 = arith.constant 0 : index
    %103 = vector.load %arg21[%c0_70, %c0_71, %c0_72] : memref<2x8x32xf32, #tpu.memory_space<vmem>>, vector<1x8x32xf32>
    %104 = vector.shape_cast %103 : vector<1x8x32xf32> to vector<8x32xf32>
    %105 = vector.shape_cast %102 : vector<8x32xf32> to vector<1x8x32xf32>
    tpu.vector_store %arg21[%c0_70, %c0_71, %c0_72], %105 {strides = array<i32>} : memref<2x8x32xf32, #tpu.memory_space<vmem>>, vector<1x8x32xf32>,
    %c0_73 = arith.constant 0 : index
    %c0_74 = arith.constant 0 : index
    %c0_75 = arith.constant 0 : index
    %106 = vector.load %arg22[%c0_73, %c0_74, %c0_75] : memref<2x8x32xf32, #tpu.memory_space<vmem>>, vector<1x8x32xf32>
    %107 = vector.shape_cast %106 : vector<1x8x32xf32> to vector<8x32xf32>
    %108 = vector.shape_cast %100 : vector<8x32xf32> to vector<1x8x32xf32>
    tpu.vector_store %arg22[%c0_73, %c0_74, %c0_75], %108 {strides = array<i32>} : memref<2x8x32xf32, #tpu.memory_space<vmem>>, vector<1x8x32xf32>,
    %c1_76 = arith.constant 1 : index
    %c0_77 = arith.constant 0 : index
    %c0_78 = arith.constant 0 : index
    %109 = vector.load %arg21[%c1_76, %c0_77, %c0_78] : memref<2x8x32xf32, #tpu.memory_space<vmem>>, vector<1x8x32xf32>
    %110 = vector.shape_cast %109 : vector<1x8x32xf32> to vector<8x32xf32>
    %c1_79 = arith.constant 1 : index
    %c0_80 = arith.constant 0 : index
    %c0_81 = arith.constant 0 : index
    %111 = vector.load %arg22[%c1_79, %c0_80, %c0_81] : memref<2x8x32xf32, #tpu.memory_space<vmem>>, vector<1x8x32xf32>
    %112 = vector.shape_cast %111 : vector<1x8x32xf32> to vector<8x32xf32>
    %c0_82 = arith.constant 0 : index
    %c0_83 = arith.constant 0 : index
    %c0_84 = arith.constant 0 : index
    %113 = vector.load %arg11[%c0_82, %c0_83, %c0_84] : memref<4x32x32xbf16, #tpu.memory_space<vmem>>, vector<1x32x32xbf16>
    %114 = vector.shape_cast %113 : vector<1x32x32xbf16> to vector<32x32xbf16>
    %115 = arith.extf %114 : vector<32x32xbf16> to vector<32x32xf32>
    %cst_85 = arith.constant dense<0.000000e+00> : vector<8x32xf32>
    %116 = tpu.matmul %102, %115, %cst_85 {dimension_numbers = #tpu.dot_dimension_numbers<[1], [0], [0], [1], [0, 0, 1, 1], [], []>, precision = #tpu.contract_precision<fp32>} : vector<8x32xf32>, vector<32x32xf32>, vector<8x32xf32> -> vector<8x32xf32>
    %c0_86 = arith.constant 0 : index
    %c0_87 = arith.constant 0 : index
    %c0_88 = arith.constant 0 : index
    %117 = vector.load %arg12[%c0_86, %c0_87, %c0_88] : memref<4x32x32xbf16, #tpu.memory_space<vmem>>, vector<1x32x32xbf16>
    %118 = vector.shape_cast %117 : vector<1x32x32xbf16> to vector<32x32xbf16>
    %119 = arith.extf %118 : vector<32x32xbf16> to vector<32x32xf32>
    %cst_89 = arith.constant dense<0.000000e+00> : vector<8x32xf32>
    %120 = tpu.matmul %110, %119, %cst_89 {dimension_numbers = #tpu.dot_dimension_numbers<[1], [0], [0], [1], [0, 0, 1, 1], [], []>, precision = #tpu.contract_precision<fp32>} : vector<8x32xf32>, vector<32x32xf32>, vector<8x32xf32> -> vector<8x32xf32>
    %121 = arith.addf %116, %120 : vector<8x32xf32>
    %c0_90 = arith.constant 0 : index
    %c0_91 = arith.constant 0 : index
    %c0_92 = arith.constant 0 : index
    %122 = vector.load %arg13[%c0_90, %c0_91, %c0_92] : memref<4x1x32xf32, #tpu.memory_space<vmem>>, vector<1x1x32xf32>
    %123 = vector.shape_cast %122 : vector<1x1x32xf32> to vector<1x32xf32>
    %124 = vector.broadcast %123 : vector<1x32xf32> to vector<8x32xf32>
    %125 = arith.addf %121, %124 : vector<8x32xf32>
    %c1_93 = arith.constant 1 : index
    %c0_94 = arith.constant 0 : index
    %c0_95 = arith.constant 0 : index
    %126 = vector.load %arg11[%c1_93, %c0_94, %c0_95] : memref<4x32x32xbf16, #tpu.memory_space<vmem>>, vector<1x32x32xbf16>
    %127 = vector.shape_cast %126 : vector<1x32x32xbf16> to vector<32x32xbf16>
    %128 = arith.extf %127 : vector<32x32xbf16> to vector<32x32xf32>
    %cst_96 = arith.constant dense<0.000000e+00> : vector<8x32xf32>
    %129 = tpu.matmul %102, %128, %cst_96 {dimension_numbers = #tpu.dot_dimension_numbers<[1], [0], [0], [1], [0, 0, 1, 1], [], []>, precision = #tpu.contract_precision<fp32>} : vector<8x32xf32>, vector<32x32xf32>, vector<8x32xf32> -> vector<8x32xf32>
    %c1_97 = arith.constant 1 : index
    %c0_98 = arith.constant 0 : index
    %c0_99 = arith.constant 0 : index
    %130 = vector.load %arg12[%c1_97, %c0_98, %c0_99] : memref<4x32x32xbf16, #tpu.memory_space<vmem>>, vector<1x32x32xbf16>
    %131 = vector.shape_cast %130 : vector<1x32x32xbf16> to vector<32x32xbf16>
    %132 = arith.extf %131 : vector<32x32xbf16> to vector<32x32xf32>
    %cst_100 = arith.constant dense<0.000000e+00> : vector<8x32xf32>
    %133 = tpu.matmul %110, %132, %cst_100 {dimension_numbers = #tpu.dot_dimension_numbers<[1], [0], [0], [1], [0, 0, 1, 1], [], []>, precision = #tpu.contract_precision<fp32>} : vector<8x32xf32>, vector<32x32xf32>, vector<8x32xf32> -> vector<8x32xf32>
    %134 = arith.addf %129, %133 : vector<8x32xf32>
    %c1_101 = arith.constant 1 : index
    %c0_102 = arith.constant 0 : index
    %c0_103 = arith.constant 0 : index
    %135 = vector.load %arg13[%c1_101, %c0_102, %c0_103] : memref<4x1x32xf32, #tpu.memory_space<vmem>>, vector<1x1x32xf32>
    %136 = vector.shape_cast %135 : vector<1x1x32xf32> to vector<1x32xf32>
    %137 = vector.broadcast %136 : vector<1x32xf32> to vector<8x32xf32>
    %138 = arith.addf %134, %137 : vector<8x32xf32>
    %c2_104 = arith.constant 2 : index
    %c0_105 = arith.constant 0 : index
    %c0_106 = arith.constant 0 : index
    %139 = vector.load %arg11[%c2_104, %c0_105, %c0_106] : memref<4x32x32xbf16, #tpu.memory_space<vmem>>, vector<1x32x32xbf16>
    %140 = vector.shape_cast %139 : vector<1x32x32xbf16> to vector<32x32xbf16>
    %141 = arith.extf %140 : vector<32x32xbf16> to vector<32x32xf32>
    %cst_107 = arith.constant dense<0.000000e+00> : vector<8x32xf32>
    %142 = tpu.matmul %102, %141, %cst_107 {dimension_numbers = #tpu.dot_dimension_numbers<[1], [0], [0], [1], [0, 0, 1, 1], [], []>, precision = #tpu.contract_precision<fp32>} : vector<8x32xf32>, vector<32x32xf32>, vector<8x32xf32> -> vector<8x32xf32>
    %c2_108 = arith.constant 2 : index
    %c0_109 = arith.constant 0 : index
    %c0_110 = arith.constant 0 : index
    %143 = vector.load %arg12[%c2_108, %c0_109, %c0_110] : memref<4x32x32xbf16, #tpu.memory_space<vmem>>, vector<1x32x32xbf16>
    %144 = vector.shape_cast %143 : vector<1x32x32xbf16> to vector<32x32xbf16>
    %145 = arith.extf %144 : vector<32x32xbf16> to vector<32x32xf32>
    %cst_111 = arith.constant dense<0.000000e+00> : vector<8x32xf32>
    %146 = tpu.matmul %110, %145, %cst_111 {dimension_numbers = #tpu.dot_dimension_numbers<[1], [0], [0], [1], [0, 0, 1, 1], [], []>, precision = #tpu.contract_precision<fp32>} : vector<8x32xf32>, vector<32x32xf32>, vector<8x32xf32> -> vector<8x32xf32>
    %147 = arith.addf %142, %146 : vector<8x32xf32>
    %c2_112 = arith.constant 2 : index
    %c0_113 = arith.constant 0 : index
    %c0_114 = arith.constant 0 : index
    %148 = vector.load %arg13[%c2_112, %c0_113, %c0_114] : memref<4x1x32xf32, #tpu.memory_space<vmem>>, vector<1x1x32xf32>
    %149 = vector.shape_cast %148 : vector<1x1x32xf32> to vector<1x32xf32>
    %150 = vector.broadcast %149 : vector<1x32xf32> to vector<8x32xf32>
    %151 = arith.addf %147, %150 : vector<8x32xf32>
    %c3_115 = arith.constant 3 : index
    %c0_116 = arith.constant 0 : index
    %c0_117 = arith.constant 0 : index
    %152 = vector.load %arg11[%c3_115, %c0_116, %c0_117] : memref<4x32x32xbf16, #tpu.memory_space<vmem>>, vector<1x32x32xbf16>
    %153 = vector.shape_cast %152 : vector<1x32x32xbf16> to vector<32x32xbf16>
    %154 = arith.extf %153 : vector<32x32xbf16> to vector<32x32xf32>
    %cst_118 = arith.constant dense<0.000000e+00> : vector<8x32xf32>
    %155 = tpu.matmul %102, %154, %cst_118 {dimension_numbers = #tpu.dot_dimension_numbers<[1], [0], [0], [1], [0, 0, 1, 1], [], []>, precision = #tpu.contract_precision<fp32>} : vector<8x32xf32>, vector<32x32xf32>, vector<8x32xf32> -> vector<8x32xf32>
    %c3_119 = arith.constant 3 : index
    %c0_120 = arith.constant 0 : index
    %c0_121 = arith.constant 0 : index
    %156 = vector.load %arg12[%c3_119, %c0_120, %c0_121] : memref<4x32x32xbf16, #tpu.memory_space<vmem>>, vector<1x32x32xbf16>
    %157 = vector.shape_cast %156 : vector<1x32x32xbf16> to vector<32x32xbf16>
    %158 = arith.extf %157 : vector<32x32xbf16> to vector<32x32xf32>
    %cst_122 = arith.constant dense<0.000000e+00> : vector<8x32xf32>
    %159 = tpu.matmul %110, %158, %cst_122 {dimension_numbers = #tpu.dot_dimension_numbers<[1], [0], [0], [1], [0, 0, 1, 1], [], []>, precision = #tpu.contract_precision<fp32>} : vector<8x32xf32>, vector<32x32xf32>, vector<8x32xf32> -> vector<8x32xf32>
    %160 = arith.addf %155, %159 : vector<8x32xf32>
    %c3_123 = arith.constant 3 : index
    %c0_124 = arith.constant 0 : index
    %c0_125 = arith.constant 0 : index
    %161 = vector.load %arg13[%c3_123, %c0_124, %c0_125] : memref<4x1x32xf32, #tpu.memory_space<vmem>>, vector<1x1x32xf32>
    %162 = vector.shape_cast %161 : vector<1x1x32xf32> to vector<1x32xf32>
    %163 = vector.broadcast %162 : vector<1x32xf32> to vector<8x32xf32>
    %164 = arith.addf %160, %163 : vector<8x32xf32>
    %165 = arith.negf %125 : vector<8x32xf32>
    %166 = math.exp %165 : vector<8x32xf32>
    %cst_126 = arith.constant 1.000000e+00 : f32
    %167 = vector.broadcast %cst_126 : f32 to vector<8x32xf32>
    %168 = arith.addf %167, %166 : vector<8x32xf32>
    %169 = arith.divf %167, %168 : vector<8x32xf32>
    %170 = arith.negf %138 : vector<8x32xf32>
    %171 = math.exp %170 : vector<8x32xf32>
    %cst_127 = arith.constant 1.000000e+00 : f32
    %172 = vector.broadcast %cst_127 : f32 to vector<8x32xf32>
    %173 = arith.addf %172, %171 : vector<8x32xf32>
    %174 = arith.divf %172, %173 : vector<8x32xf32>
    %175 = math.tanh %151 : vector<8x32xf32>
    %176 = arith.negf %164 : vector<8x32xf32>
    %177 = math.exp %176 : vector<8x32xf32>
    %cst_128 = arith.constant 1.000000e+00 : f32
    %178 = vector.broadcast %cst_128 : f32 to vector<8x32xf32>
    %179 = arith.addf %178, %177 : vector<8x32xf32>
    %180 = arith.divf %178, %179 : vector<8x32xf32>
    %181 = arith.mulf %174, %112 : vector<8x32xf32>
    %182 = arith.mulf %169, %175 : vector<8x32xf32>
    %183 = arith.addf %181, %182 : vector<8x32xf32>
    %184 = math.tanh %183 : vector<8x32xf32>
    %185 = arith.mulf %180, %184 : vector<8x32xf32>
    %c1_129 = arith.constant 1 : index
    %c0_130 = arith.constant 0 : index
    %c0_131 = arith.constant 0 : index
    %186 = vector.load %arg21[%c1_129, %c0_130, %c0_131] : memref<2x8x32xf32, #tpu.memory_space<vmem>>, vector<1x8x32xf32>
    %187 = vector.shape_cast %186 : vector<1x8x32xf32> to vector<8x32xf32>
    %188 = vector.shape_cast %185 : vector<8x32xf32> to vector<1x8x32xf32>
    tpu.vector_store %arg21[%c1_129, %c0_130, %c0_131], %188 {strides = array<i32>} : memref<2x8x32xf32, #tpu.memory_space<vmem>>, vector<1x8x32xf32>,
    %c1_132 = arith.constant 1 : index
    %c0_133 = arith.constant 0 : index
    %c0_134 = arith.constant 0 : index
    %189 = vector.load %arg22[%c1_132, %c0_133, %c0_134] : memref<2x8x32xf32, #tpu.memory_space<vmem>>, vector<1x8x32xf32>
    %190 = vector.shape_cast %189 : vector<1x8x32xf32> to vector<8x32xf32>
    %191 = vector.shape_cast %183 : vector<8x32xf32> to vector<1x8x32xf32>
    tpu.vector_store %arg22[%c1_132, %c0_133, %c0_134], %191 {strides = array<i32>} : memref<2x8x32xf32, #tpu.memory_space<vmem>>, vector<1x8x32xf32>,
    %c0_135 = arith.constant 0 : index
    %c0_136 = arith.constant 0 : index
    %c0_137 = arith.constant 0 : index
    %192 = vector.load %arg5[%c0_135, %c0_136, %c0_137] : memref<8x128x32xbf16, #tpu.memory_space<vmem>>, vector<8x128x32xbf16>
    %193 = arith.extf %192 : vector<8x128x32xbf16> to vector<8x128x32xf32>
    %c0_138 = arith.constant 0 : index
    %c0_139 = arith.constant 0 : index
    %194 = vector.load %arg6[%c0_138, %c0_139] : memref<8x128xf32, #tpu.memory_space<vmem>>, vector<8x128xf32>
    %c0_140 = arith.constant 0 : index
    %c0_141 = arith.constant 0 : index
    %195 = vector.load %arg14[%c0_140, %c0_141] : memref<32x32xbf16, #tpu.memory_space<vmem>>, vector<32x32xbf16>
    %196 = arith.extf %195 : vector<32x32xbf16> to vector<32x32xf32>
    %cst_142 = arith.constant dense<0.000000e+00> : vector<8x32xf32>
    %197 = tpu.matmul %185, %196, %cst_142 {dimension_numbers = #tpu.dot_dimension_numbers<[1], [0], [0], [1], [0, 0, 1, 1], [], []>, precision = #tpu.contract_precision<fp32>} : vector<8x32xf32>, vector<32x32xf32>, vector<8x32xf32> -> vector<8x32xf32>
    %198 = vector.shape_cast %197 : vector<8x32xf32> to vector<8x1x32xf32>
    %199 = vector.broadcast %198 : vector<8x1x32xf32> to vector<8x128x32xf32>
    %200 = arith.mulf %199, %193 : vector<8x128x32xf32>
    %cst_143 = arith.constant dense<0.000000e+00> : vector<8x128xf32>
    %201 = vector.multi_reduction <add>, %200, %cst_143 [2] : vector<8x128x32xf32> to vector<8x128xf32>
    %202 = arith.mulf %194, %201 : vector<8x128xf32>
    %cst_144 = arith.constant 0.000000e+00 : f32
    %203 = vector.broadcast %cst_144 : f32 to vector<8x128xf32>
    %204 = arith.cmpf oeq, %202, %203 : vector<8x128xf32>
    %cst_145 = arith.constant -1.000000e+10 : f32
    %205 = vector.broadcast %cst_145 : f32 to vector<8x128xf32>
    %206 = arith.select %204, %205, %202 : vector<8x128xi1>, vector<8x128xf32>
    %cst_146 = arith.constant dense<0xFF800000> : vector<8xf32>
    %207 = vector.multi_reduction <maximumf>, %206, %cst_146 [1] : vector<8x128xf32> to vector<8xf32>
    %208 = vector.shape_cast %207 : vector<8xf32> to vector<8x1xf32>
    %209 = vector.broadcast %208 : vector<8x1xf32> to vector<8x128xf32>
    %210 = arith.subf %206, %209 : vector<8x128xf32>
    %211 = math.exp %210 : vector<8x128xf32>
    %cst_147 = arith.constant dense<0.000000e+00> : vector<8xf32>
    %212 = vector.multi_reduction <add>, %211, %cst_147 [1] : vector<8x128xf32> to vector<8xf32>
    %213 = vector.shape_cast %212 : vector<8xf32> to vector<8x1xf32>
    %214 = tpu.reciprocal %213 {approx = true} : vector<8x1xf32> -> vector<8x1xf32>
    %215 = vector.broadcast %214 : vector<8x1xf32> to vector<8x128xf32>
    %216 = arith.mulf %211, %215 : vector<8x128xf32>
    %217 = vector.shape_cast %216 : vector<8x128xf32> to vector<8x128x1xf32>
    %218 = vector.broadcast %217 : vector<8x128x1xf32> to vector<8x128x32xf32>
    %219 = arith.mulf %218, %193 : vector<8x128x32xf32>
    %cst_148 = arith.constant dense<0.000000e+00> : vector<8x32xf32>
    %220 = vector.multi_reduction <add>, %219, %cst_148 [1] : vector<8x128x32xf32> to vector<8x32xf32>
    %c0_149 = arith.constant 0 : index
    %c0_150 = arith.constant 0 : index
    %221 = vector.load %arg15[%c0_149, %c0_150] : memref<32x32xbf16, #tpu.memory_space<vmem>>, vector<32x32xbf16>
    %222 = arith.extf %221 : vector<32x32xbf16> to vector<32x32xf32>
    %cst_151 = arith.constant dense<0.000000e+00> : vector<8x32xf32>
    %223 = tpu.matmul %220, %222, %cst_151 {dimension_numbers = #tpu.dot_dimension_numbers<[1], [0], [0], [1], [0, 0, 1, 1], [], []>, precision = #tpu.contract_precision<fp32>} : vector<8x32xf32>, vector<32x32xf32>, vector<8x32xf32> -> vector<8x32xf32>
    %c0_152 = arith.constant 0 : index
    %c0_153 = arith.constant 0 : index
    %224 = vector.load %arg16[%c0_152, %c0_153] : memref<32x32xbf16, #tpu.memory_space<vmem>>, vector<32x32xbf16>
    %225 = arith.extf %224 : vector<32x32xbf16> to vector<32x32xf32>
    %cst_154 = arith.constant dense<0.000000e+00> : vector<8x32xf32>
    %226 = tpu.matmul %185, %225, %cst_154 {dimension_numbers = #tpu.dot_dimension_numbers<[1], [0], [0], [1], [0, 0, 1, 1], [], []>, precision = #tpu.contract_precision<fp32>} : vector<8x32xf32>, vector<32x32xf32>, vector<8x32xf32> -> vector<8x32xf32>
    %227 = arith.addf %223, %226 : vector<8x32xf32>
    %228 = math.tanh %227 : vector<8x32xf32>
    %c0_155 = arith.constant 0 : index
    %c0_156 = arith.constant 0 : index
    %229 = vector.load %arg23[%c0_155, %c0_156] : memref<8x32xf32, #tpu.memory_space<vmem>>, vector<8x32xf32>
    tpu.vector_store %arg23[%c0_155, %c0_156], %228 {strides = array<i32>} : memref<8x32xf32, #tpu.memory_space<vmem>>, vector<8x32xf32>,
    %c0_157 = arith.constant 0 : index
    %c0_158 = arith.constant 0 : index
    %c0_159 = arith.constant 0 : index
    %230 = vector.load %arg17[%c0_157, %c0_158, %c0_159] : memref<1x8x32xf32, #tpu.memory_space<vmem>>, vector<1x8x32xf32>
    %231 = vector.shape_cast %230 : vector<1x8x32xf32> to vector<8x32xf32>
    %232 = vector.shape_cast %228 : vector<8x32xf32> to vector<1x8x32xf32>
    tpu.vector_store %arg17[%c0_157, %c0_158, %c0_159], %232 {strides = array<i32>} : memref<1x8x32xf32, #tpu.memory_space<vmem>>, vector<1x8x32xf32>,
    %c0_160 = arith.constant 0 : index
    %c0_161 = arith.constant 0 : index
    %c0_162 = arith.constant 0 : index
    %233 = vector.load %arg18[%c0_160, %c0_161, %c0_162] : memref<1x8x128xf32, #tpu.memory_space<vmem>>, vector<1x8x128xf32>
    %234 = vector.shape_cast %233 : vector<1x8x128xf32> to vector<8x128xf32>
    %235 = vector.shape_cast %216 : vector<8x128xf32> to vector<1x8x128xf32>
    tpu.vector_store %arg18[%c0_160, %c0_161, %c0_162], %235 {strides = array<i32>} : memref<1x8x128xf32, #tpu.memory_space<vmem>>, vector<1x8x128xf32>,
    %c0_i32_163 = arith.constant 0 : i32
    %236 = arith.cmpi eq, %arg0, %c0_i32_163 : i32
    %237 = arith.extui %236 : i1 to i32
    %c0_i32_164 = arith.constant 0 : i32
    %238 = arith.cmpi ne, %237, %c0_i32_164 : i32
    scf.if %238 {
      %c0_165 = arith.constant 0 : index
      %c0_166 = arith.constant 0 : index
      %c0_167 = arith.constant 0 : index
      %239 = vector.load %arg21[%c0_165, %c0_166, %c0_167] : memref<2x8x32xf32, #tpu.memory_space<vmem>>, vector<2x8x32xf32>
      %c0_168 = arith.constant 0 : index
      %c0_169 = arith.constant 0 : index
      %c0_170 = arith.constant 0 : index
      %240 = vector.load %arg19[%c0_168, %c0_169, %c0_170] : memref<2x8x32xf32, #tpu.memory_space<vmem>>, vector<2x8x32xf32>
      tpu.vector_store %arg19[%c0_168, %c0_169, %c0_170], %239 {strides = array<i32>} : memref<2x8x32xf32, #tpu.memory_space<vmem>>, vector<2x8x32xf32>,
      %c0_171 = arith.constant 0 : index
      %c0_172 = arith.constant 0 : index
      %c0_173 = arith.constant 0 : index
      %241 = vector.load %arg22[%c0_171, %c0_172, %c0_173] : memref<2x8x32xf32, #tpu.memory_space<vmem>>, vector<2x8x32xf32>
      %c0_174 = arith.constant 0 : index
      %c0_175 = arith.constant 0 : index
      %c0_176 = arith.constant 0 : index
      %242 = vector.load %arg20[%c0_174, %c0_175, %c0_176] : memref<2x8x32xf32, #tpu.memory_space<vmem>>, vector<2x8x32xf32>
      tpu.vector_store %arg20[%c0_174, %c0_175, %c0_176], %241 {strides = array<i32>} : memref<2x8x32xf32, #tpu.memory_space<vmem>>, vector<2x8x32xf32>,
    } else {
    }
    return
  }
  func.func @transform_0(%arg0: i32) -> (i32, i32, i32) {
    %c0_i32 = arith.constant 0 : i32
    %c0_i32_0 = arith.constant 0 : i32
    %c0_i32_1 = arith.constant 0 : i32
    return %arg0, %c0_i32, %c0_i32_0 : i32, i32, i32
  }
  func.func @transform_1(%arg0: i32) -> (i32, i32) {
    %c0_i32 = arith.constant 0 : i32
    %c0_i32_0 = arith.constant 0 : i32
    %c0_i32_1 = arith.constant 0 : i32
    return %c0_i32, %c0_i32_0 : i32, i32
  }
  func.func @transform_2(%arg0: i32) -> (i32, i32, i32) {
    %c0_i32 = arith.constant 0 : i32
    %c0_i32_0 = arith.constant 0 : i32
    %c0_i32_1 = arith.constant 0 : i32
    %c0_i32_2 = arith.constant 0 : i32
    return %c0_i32, %c0_i32_0, %c0_i32_1 : i32, i32, i32
  }
  func.func @transform_3(%arg0: i32) -> (i32, i32, i32) {
    %c0_i32 = arith.constant 0 : i32
    %c0_i32_0 = arith.constant 0 : i32
    %c0_i32_1 = arith.constant 0 : i32
    %c0_i32_2 = arith.constant 0 : i32
    return %c0_i32, %c0_i32_0, %c0_i32_1 : i32, i32, i32
  }
  func.func @transform_4(%arg0: i32) -> (i32, i32, i32) {
    %c0_i32 = arith.constant 0 : i32
    %c0_i32_0 = arith.constant 0 : i32
    %c0_i32_1 = arith.constant 0 : i32
    %c0_i32_2 = arith.constant 0 : i32
    return %c0_i32, %c0_i32_0, %c0_i32_1 : i32, i32, i32
  }
  func.func @transform_5(%arg0: i32) -> (i32, i32) {
    %c0_i32 = arith.constant 0 : i32
    %c0_i32_0 = arith.constant 0 : i32
    %c0_i32_1 = arith.constant 0 : i32
    return %c0_i32, %c0_i32_0 : i32, i32
  }
  func.func @transform_6(%arg0: i32) -> (i32, i32, i32) {
    %c0_i32 = arith.constant 0 : i32
    %c0_i32_0 = arith.constant 0 : i32
    %c0_i32_1 = arith.constant 0 : i32
    %c0_i32_2 = arith.constant 0 : i32
    return %c0_i32, %c0_i32_0, %c0_i32_1 : i32, i32, i32
  }
  func.func @transform_7(%arg0: i32) -> (i32, i32, i32) {
    %c0_i32 = arith.constant 0 : i32
    %c0_i32_0 = arith.constant 0 : i32
    %c0_i32_1 = arith.constant 0 : i32
    %c0_i32_2 = arith.constant 0 : i32
    return %c0_i32, %c0_i32_0, %c0_i32_1 : i32, i32, i32
  }
  func.func @transform_8(%arg0: i32) -> (i32, i32, i32) {
    %c0_i32 = arith.constant 0 : i32
    %c0_i32_0 = arith.constant 0 : i32
    %c0_i32_1 = arith.constant 0 : i32
    %c0_i32_2 = arith.constant 0 : i32
    return %c0_i32, %c0_i32_0, %c0_i32_1 : i32, i32, i32
  }
  func.func @transform_9(%arg0: i32) -> (i32, i32, i32) {
    %c0_i32 = arith.constant 0 : i32
    %c0_i32_0 = arith.constant 0 : i32
    %c0_i32_1 = arith.constant 0 : i32
    %c0_i32_2 = arith.constant 0 : i32
    return %c0_i32, %c0_i32_0, %c0_i32_1 : i32, i32, i32
  }
  func.func @transform_10(%arg0: i32) -> (i32, i32, i32) {
    %c0_i32 = arith.constant 0 : i32
    %c0_i32_0 = arith.constant 0 : i32
    %c0_i32_1 = arith.constant 0 : i32
    %c0_i32_2 = arith.constant 0 : i32
    return %c0_i32, %c0_i32_0, %c0_i32_1 : i32, i32, i32
  }
  func.func @transform_11(%arg0: i32) -> (i32, i32, i32) {
    %c0_i32 = arith.constant 0 : i32
    %c0_i32_0 = arith.constant 0 : i32
    %c0_i32_1 = arith.constant 0 : i32
    %c0_i32_2 = arith.constant 0 : i32
    return %c0_i32, %c0_i32_0, %c0_i32_1 : i32, i32, i32
  }
  func.func @transform_12(%arg0: i32) -> (i32, i32, i32) {
    %c0_i32 = arith.constant 0 : i32
    %c0_i32_0 = arith.constant 0 : i32
    %c0_i32_1 = arith.constant 0 : i32
    %c0_i32_2 = arith.constant 0 : i32
    return %c0_i32, %c0_i32_0, %c0_i32_1 : i32, i32, i32
  }
  func.func @transform_13(%arg0: i32) -> (i32, i32) {
    %c0_i32 = arith.constant 0 : i32
    %c0_i32_0 = arith.constant 0 : i32
    %c0_i32_1 = arith.constant 0 : i32
    return %c0_i32, %c0_i32_0 : i32, i32
  }
  func.func @transform_14(%arg0: i32) -> (i32, i32) {
    %c0_i32 = arith.constant 0 : i32
    %c0_i32_0 = arith.constant 0 : i32
    %c0_i32_1 = arith.constant 0 : i32
    return %c0_i32, %c0_i32_0 : i32, i32
  }
  func.func @transform_15(%arg0: i32) -> (i32, i32) {
    %c0_i32 = arith.constant 0 : i32
    %c0_i32_0 = arith.constant 0 : i32
    %c0_i32_1 = arith.constant 0 : i32
    return %c0_i32, %c0_i32_0 : i32, i32
  }
  func.func @transform_16(%arg0: i32) -> (i32, i32, i32) {
    %c0_i32 = arith.constant 0 : i32
    %c0_i32_0 = arith.constant 0 : i32
    %c0_i32_1 = arith.constant 0 : i32
    return %arg0, %c0_i32, %c0_i32_0 : i32, i32, i32
  }
  func.func @transform_17(%arg0: i32) -> (i32, i32, i32) {
    %c0_i32 = arith.constant 0 : i32
    %c0_i32_0 = arith.constant 0 : i32
    %c0_i32_1 = arith.constant 0 : i32
    return %arg0, %c0_i32, %c0_i32_0 : i32, i32, i32
  }
  func.func @transform_18(%arg0: i32) -> (i32, i32, i32) {
    %c0_i32 = arith.constant 0 : i32
    %c0_i32_0 = arith.constant 0 : i32
    %c0_i32_1 = arith.constant 0 : i32
    %c0_i32_2 = arith.constant 0 : i32
    return %c0_i32, %c0_i32_0, %c0_i32_1 : i32, i32, i32
  }
  func.func @transform_19(%arg0: i32) -> (i32, i32, i32) {
    %c0_i32 = arith.constant 0 : i32
    %c0_i32_0 = arith.constant 0 : i32
    %c0_i32_1 = arith.constant 0 : i32
    %c0_i32_2 = arith.constant 0 : i32
    return %c0_i32, %c0_i32_0, %c0_i32_1 : i32, i32, i32
  }
}

</mosaic_0001>

<llo_original>
// kernel: tpu_custom_call.1
$region0: #{tpu_custom_call.1}
  #allocation0 [shape = 'u32[]', space=smem, size = 0x4, offset = 0x4, fixed_abs, tag = 'smem constant byte address 0x4 - core index']
  #allocation1 [shape = 'u32[72,128]{1,0:T(1,128)}', space=vmem, size = 0x9000, scoped, tag = 'internal scratch']
  #allocation2 [shape = 'f32[2,8,32]{2,1,0:T(8,128)}', space=vmem, size = 0x2000, scoped, tag = 'scratch operand']
  #allocation3 [shape = 'f32[2,8,32]{2,1,0:T(8,128)}', space=vmem, size = 0x2000, scoped, tag = 'scratch operand']
  #allocation4 [shape = 'f32[8,32]{1,0:T(8,128)}', space=vmem, size = 0x1000, scoped, tag = 'scratch operand']
  %s0 = inlined_call_operand.vmem [shape: f32[1,8,32], index: 0, kind: input, shape index: {}]
  %s1 = inlined_call_operand.vmem [shape: f32[8,32], index: 1, kind: input, shape index: {}]
  %s2 = inlined_call_operand.vmem [shape: f32[2,8,32], index: 2, kind: input, shape index: {}]
  %s3 = inlined_call_operand.vmem [shape: f32[2,8,32], index: 3, kind: input, shape index: {}]
  %s4 = inlined_call_operand.vmem [shape: bf16[8,128,32], index: 4, kind: input, shape index: {}]
  %s5 = inlined_call_operand.vmem [shape: f32[8,128], index: 5, kind: input, shape index: {}]
  %s6 = inlined_call_operand.vmem [shape: bf16[4,32,32], index: 6, kind: input, shape index: {}]
  %s7 = inlined_call_operand.vmem [shape: bf16[4,32,32], index: 7, kind: input, shape index: {}]
  %s8 = inlined_call_operand.vmem [shape: bf16[4,32,32], index: 8, kind: input, shape index: {}]
  %s9 = inlined_call_operand.vmem [shape: f32[4,1,32], index: 9, kind: input, shape index: {}]
  %s10 = inlined_call_operand.vmem [shape: bf16[4,32,32], index: 10, kind: input, shape index: {}]
  %s11 = inlined_call_operand.vmem [shape: bf16[4,32,32], index: 11, kind: input, shape index: {}]
  %s12 = inlined_call_operand.vmem [shape: f32[4,1,32], index: 12, kind: input, shape index: {}]
  %s13 = inlined_call_operand.vmem [shape: bf16[32,32], index: 13, kind: input, shape index: {}]
  %s14 = inlined_call_operand.vmem [shape: bf16[32,32], index: 14, kind: input, shape index: {}]
  %s15 = inlined_call_operand.vmem [shape: bf16[32,32], index: 15, kind: input, shape index: {}]
  %s16 = inlined_call_operand.hbm [shape: f32[1,8,32], index: 16, kind: output, shape index: {0}]
  %s17 = inlined_call_operand.hbm [shape: f32[1,8,128], index: 17, kind: output, shape index: {1}]
  %s18 = inlined_call_operand.hbm [shape: f32[2,8,32], index: 18, kind: output, shape index: {2}]
  %s19 = inlined_call_operand.hbm [shape: f32[2,8,32], index: 19, kind: output, shape index: {3}]
  %20 = xla_tuple %s16, %s17, %s18, %s19
  %s21 = sld [smem:[#allocation0]]
  $region106: #{tpu_custom_call.1} parent=0
    _
  %s23 = ssub.s32 1, %s21
  %s24 = scalar_select 0, %s23, %s21
  $region1: #{tpu_custom_call.1} parent=0
    #allocation5 [shape = 'u8[4096]{0}', space=vmem, size = 0x1000, scoped, tag = 'output window, operand 0, single buffered']
    #allocation6 [shape = 's32[1]{0}', space=sflag, size = 0x4, scoped, tag = 'scoped memory for tpu_custom_call.1']
    #allocation7 [shape = 'u8[4096]{0}', space=vmem, size = 0x1000, scoped, tag = 'output window, operand 1, single buffered']
    #allocation8 [shape = 's32[1]{0}', space=sflag, size = 0x4, scoped, tag = 'scoped memory for tpu_custom_call.1']
    #allocation9 [shape = 'u8[8192]{0}', space=vmem, size = 0x2000, scoped, tag = 'output window, operand 2, single buffered']
    #allocation10 [shape = 'u8[8192]{0}', space=vmem, size = 0x2000, scoped, tag = 'output window, operand 3, single buffered']
    #allocation11 [shape = 's32[1]{0}', space=sflag, size = 0x4, scoped, tag = 'scoped memory for tpu_custom_call.1']
    %25 = vsyncpa [#allocation6], 0
    %26 = vsyncpa [#allocation8], 0
    %27 = vsyncpa [#allocation11], 0
    // Predicated region
    $region2: #{tpu_custom_call.1} parent=1 // pred_check
      _
    $region3: #{tpu_custom_call.1} parent=1 // pred_check_branch
      %29 = sbr.rel (0) target = $region5
    $region4: #{tpu_custom_call.1} parent=1 // pred_region
      _
    $region5: #{tpu_custom_call.1} parent=1 // pred_fallthru
      _
    // Predicated region
    $region6: #{tpu_custom_call.1} parent=1 // pred_check
      _
    $region7: #{tpu_custom_call.1} parent=1 // pred_check_branch
      %31 = sbr.rel (0) target = $region9
    $region8: #{tpu_custom_call.1} parent=1 // pred_region
      _
    $region9: #{tpu_custom_call.1} parent=1 // pred_fallthru
      _
    // Predicated region
    $region10: #{tpu_custom_call.1} parent=1 // pred_check
      _
    $region11: #{tpu_custom_call.1} parent=1 // pred_check_branch
      %33 = sbr.rel (0) target = $region13
    $region12: #{tpu_custom_call.1} parent=1 // pred_region
      _
    $region13: #{tpu_custom_call.1} parent=1 // pred_fallthru
      _
    // Predicated region
    $region14: #{tpu_custom_call.1} parent=1 // pred_check
      _
    $region15: #{tpu_custom_call.1} parent=1 // pred_check_branch
      %35 = sbr.rel (0) target = $region17
    $region16: #{tpu_custom_call.1} parent=1 // pred_region
      _
    $region17: #{tpu_custom_call.1} parent=1 // pred_fallthru
      _
    // Predicated region
    $region18: #{tpu_custom_call.1} parent=1 // pred_check
      _
    $region19: #{tpu_custom_call.1} parent=1 // pred_check_branch
      %37 = sbr.rel (0) target = $region21
    $region20: #{tpu_custom_call.1} parent=1 // pred_region
      _
    $region21: #{tpu_custom_call.1} parent=1 // pred_fallthru
      _
    // Predicated region
    $region22: #{tpu_custom_call.1} parent=1 // pred_check
      _
    $region23: #{tpu_custom_call.1} parent=1 // pred_check_branch
      %39 = sbr.rel (0) target = $region25
    $region24: #{tpu_custom_call.1} parent=1 // pred_region
      _
    $region25: #{tpu_custom_call.1} parent=1 // pred_fallthru
      _
    // Predicated region
    $region26: #{tpu_custom_call.1} parent=1 // pred_check
      _
    $region27: #{tpu_custom_call.1} parent=1 // pred_check_branch
      %41 = sbr.rel (0) target = $region29
    $region28: #{tpu_custom_call.1} parent=1 // pred_region
      _
    $region29: #{tpu_custom_call.1} parent=1 // pred_fallthru
      _
    // Predicated region
    $region30: #{tpu_custom_call.1} parent=1 // pred_check
      _
    $region31: #{tpu_custom_call.1} parent=1 // pred_check_branch
      %43 = sbr.rel (0) target = $region33
    $region32: #{tpu_custom_call.1} parent=1 // pred_region
      _
    $region33: #{tpu_custom_call.1} parent=1 // pred_fallthru
      _
    // Predicated region
    $region34: #{tpu_custom_call.1} parent=1 // pred_check
      _
    $region35: #{tpu_custom_call.1} parent=1 // pred_check_branch
      %45 = sbr.rel (0) target = $region37
    $region36: #{tpu_custom_call.1} parent=1 // pred_region
      _
    $region37: #{tpu_custom_call.1} parent=1 // pred_fallthru
      _
    // Predicated region
    $region38: #{tpu_custom_call.1} parent=1 // pred_check
      _
    $region39: #{tpu_custom_call.1} parent=1 // pred_check_branch
      %47 = sbr.rel (0) target = $region41
    $region40: #{tpu_custom_call.1} parent=1 // pred_region
      _
    $region41: #{tpu_custom_call.1} parent=1 // pred_fallthru
      _
    // Predicated region
    $region42: #{tpu_custom_call.1} parent=1 // pred_check
      _
    $region43: #{tpu_custom_call.1} parent=1 // pred_check_branch
      %49 = sbr.rel (0) target = $region45
    $region44: #{tpu_custom_call.1} parent=1 // pred_region
      _
    $region45: #{tpu_custom_call.1} parent=1 // pred_fallthru
      _
    // Predicated region
    $region46: #{tpu_custom_call.1} parent=1 // pred_check
      _
    $region47: #{tpu_custom_call.1} parent=1 // pred_check_branch
      %51 = sbr.rel (0) target = $region49
    $region48: #{tpu_custom_call.1} parent=1 // pred_region
      _
    $region49: #{tpu_custom_call.1} parent=1 // pred_fallthru
      _
    // Predicated region
    $region50: #{tpu_custom_call.1} parent=1 // pred_check
      _
    $region51: #{tpu_custom_call.1} parent=1 // pred_check_branch
      %53 = sbr.rel (0) target = $region53
    $region52: #{tpu_custom_call.1} parent=1 // pred_region
      _
    $region53: #{tpu_custom_call.1} parent=1 // pred_fallthru
      _
    // Predicated region
    $region54: #{tpu_custom_call.1} parent=1 // pred_check
      _
    $region55: #{tpu_custom_call.1} parent=1 // pred_check_branch
      %55 = sbr.rel (0) target = $region57
    $region56: #{tpu_custom_call.1} parent=1 // pred_region
      _
    $region57: #{tpu_custom_call.1} parent=1 // pred_fallthru
      _
    // Predicated region
    $region58: #{tpu_custom_call.1} parent=1 // pred_check
      _
    $region59: #{tpu_custom_call.1} parent=1 // pred_check_branch
      %57 = sbr.rel (0) target = $region61
    $region60: #{tpu_custom_call.1} parent=1 // pred_region
      _
    $region61: #{tpu_custom_call.1} parent=1 // pred_fallthru
      _
    // Predicated region
    $region62: #{tpu_custom_call.1} parent=1 // pred_check
      _
    $region63: #{tpu_custom_call.1} parent=1 // pred_check_branch
      %59 = sbr.rel (0) target = $region65
    $region64: #{tpu_custom_call.1} parent=1 // pred_region
      _
    $region65: #{tpu_custom_call.1} parent=1 // pred_fallthru
      _
    %p60 = scmp.eq.s32.totalorder 0, 0
    // Predicated region
    $region66: #{tpu_custom_call.1} parent=1 // pred_check
      %p61 = pneg %p60
    $region67: #{tpu_custom_call.1} parent=1 // pred_check_branch
      %63 = sbr.rel (%p61) target = $region69
    $region68: #{tpu_custom_call.1} parent=1 // pred_region
      %v64 = vld [vmem:[%s2] sm:$0xff]
      %v65 = vld [vmem:[%s2 + $0x8] sm:$0xff]
      %vm66 = vcmask 261120
      %67 = vst.msk [vmem:[#allocation2] sm:$0xff] %vm66, %v64
      %68 = vst.msk [vmem:[#allocation2 + $0x8] sm:$0xff] %vm66, %v65
      %v69 = vld [vmem:[%s3] sm:$0xff]
      %v70 = vld [vmem:[%s3 + $0x8] sm:$0xff]
      %71 = vst.msk [vmem:[#allocation3] sm:$0xff] %vm66, %v69
      %72 = vst.msk [vmem:[#allocation3 + $0x8] sm:$0xff] %vm66, %v70
      %v73 = vld [vmem:[%s1] sm:$0xff]
      %74 = vst.msk [vmem:[#allocation4] sm:$0xff] %vm66, %v73
    $region69: #{tpu_custom_call.1} parent=1 // pred_fallthru
      _
    %v75 = vld [vmem:[%s0] sm:$0xff]
    %v76 = vld [vmem:[#allocation4] sm:$0xff]
    %v77 = vld [vmem:[#allocation2] sm:$0xff]
    %v78 = vld [vmem:[#allocation3] sm:$0xff]
    %v79 = vld [vmem:[%s6] sm:$0xf]
    %v80 = vld [vmem:[%s6 + $0x4] sm:$0xf]
    %v81 = vld [vmem:[%s6 + $0x8] sm:$0xf]
    %v82 = vld [vmem:[%s6 + $0xc] sm:$0xf]
    %v83 = vunpack.c.l.bf16 %v79
    %v84 = vunpack.c.l.bf16 %v80
    %v85 = vunpack.c.l.bf16 %v81
    %v86 = vunpack.c.l.bf16 %v82
    %v87 = vld [vmem:[%s8] sm:$0xf]
    %v88 = vld [vmem:[%s8 + $0x4] sm:$0xf]
    %v89 = vld [vmem:[%s8 + $0x8] sm:$0xf]
    %v90 = vld [vmem:[%s8 + $0xc] sm:$0xf]
    %v91 = vunpack.c.l.bf16 %v87
    %v92 = vunpack.c.l.bf16 %v88
    %v93 = vunpack.c.l.bf16 %v89
    %v94 = vunpack.c.l.bf16 %v90
    %vm95 = vcmask 261120
    %v97 = vsel %vm95, %v77, 0
    %99 = vmatpush.msra.mxu0 0.0
    %100 = vmatpush.msra.mxu0 0.0
    %101 = vmatpush.msra.mxu0 0.0
    %102 = vmatpush.msra.mxu0 0.0
    %103 = vmatpush.msra.mxu0 0.0
    %104 = vmatpush.msra.mxu0 0.0
    %105 = vmatpush.msra.mxu0 0.0
    %106 = vmatpush.msra.mxu0 0.0
    %107 = vmatpush.msra.mxu0 0.0
    %108 = vmatpush.msra.mxu0 0.0
    %109 = vmatpush.msra.mxu0 0.0
    %110 = vmatpush.msra.mxu0 0.0
    %111 = vmatpush.msra.mxu0 %v94
    %112 = vmatpush.msra.mxu0 %v93
    %113 = vmatpush.msra.mxu0 %v92
    %114 = vmatpush.msra.mxu0 %v91
    %v115 = vand.u32 %v97, 4294901760
    %v116 = vsub.f32 %v97, %v115
    %v117 = vand.u32 %v116, 4294901760
    %v118 = vsub.f32 %v116, %v117
    %v119 = vand.u32 %v118, 4294901760
    %120 = vmatmul.f32.gmra.mxu0 %v119
    %v121 = vpop.f32.mrf.mxu0
    %v122 = vadd.f32 0.0, %v121
    %123 = vdwg.mxu0
    %124 = vmatpush.msra.mxu0 0.0
    %125 = vmatpush.msra.mxu0 0.0
    %126 = vmatpush.msra.mxu0 0.0
    %127 = vmatpush.msra.mxu0 0.0
    %128 = vmatpush.msra.mxu0 0.0
    %129 = vmatpush.msra.mxu0 0.0
    %130 = vmatpush.msra.mxu0 0.0
    %131 = vmatpush.msra.mxu0 0.0
    %132 = vmatpush.msra.mxu0 0.0
    %133 = vmatpush.msra.mxu0 0.0
    %134 = vmatpush.msra.mxu0 0.0
    %135 = vmatpush.msra.mxu0 0.0
    %v136 = vsub.f32 %v94, %v94
    %v137 = vand.u32 %v136, 4294901760
    %v138 = vsub.f32 %v136, %v137
    %v139 = vand.u32 %v138, 4294901760
    %140 = vmatpush.msra.mxu0 %v139
    %v141 = vsub.f32 %v93, %v93
    %v142 = vand.u32 %v141, 4294901760
    %v143 = vsub.f32 %v141, %v142
    %v144 = vand.u32 %v143, 4294901760
    %145 = vmatpush.msra.mxu0 %v144
    %v146 = vsub.f32 %v92, %v92
    %v147 = vand.u32 %v146, 4294901760
    %v148 = vsub.f32 %v146, %v147
    %v149 = vand.u32 %v148, 4294901760
    %150 = vmatpush.msra.mxu0 %v149
    %v151 = vsub.f32 %v91, %v91
    %v152 = vand.u32 %v151, 4294901760
    %v153 = vsub.f32 %v151, %v152
    %v154 = vand.u32 %v153, 4294901760
    %155 = vmatpush.msra.mxu0 %v154
    %v156 = vand.u32 %v97, 4294901760
    %157 = vmatmul.f32.gmra.mxu0 %v156
    %v158 = vpop.f32.mrf.mxu0
    %v159 = vadd.f32 %v122, %v158
    %160 = vdwg.mxu0
    %161 = vmatpush.msra.mxu0 0.0
    %162 = vmatpush.msra.mxu0 0.0
    %163 = vmatpush.msra.mxu0 0.0
    %164 = vmatpush.msra.mxu0 0.0
    %165 = vmatpush.msra.mxu0 0.0
    %166 = vmatpush.msra.mxu0 0.0
    %167 = vmatpush.msra.mxu0 0.0
    %168 = vmatpush.msra.mxu0 0.0
    %169 = vmatpush.msra.mxu0 0.0
    %170 = vmatpush.msra.mxu0 0.0
    %171 = vmatpush.msra.mxu0 0.0
    %172 = vmatpush.msra.mxu0 0.0
    %v173 = vsub.f32 %v94, %v94
    %174 = vmatpush.msra.mxu0 %v173
    %v175 = vsub.f32 %v93, %v93
    %176 = vmatpush.msra.mxu0 %v175
    %v177 = vsub.f32 %v92, %v92
    %178 = vmatpush.msra.mxu0 %v177
    %v179 = vsub.f32 %v91, %v91
    %180 = vmatpush.msra.mxu0 %v179
    %v181 = vand.u32 %v97, 4294901760
    %v182 = vsub.f32 %v97, %v181
    %183 = vmatmul.f32.gmra.mxu0 %v182
    %v184 = vpop.f32.mrf.mxu0
    %v185 = vadd.f32 %v159, %v184
    %186 = vdwg.mxu0
    %187 = vmatpush.msra.mxu0 0.0
    %188 = vmatpush.msra.mxu0 0.0
    %189 = vmatpush.msra.mxu0 0.0
    %190 = vmatpush.msra.mxu0 0.0
    %191 = vmatpush.msra.mxu0 0.0
    %192 = vmatpush.msra.mxu0 0.0
    %193 = vmatpush.msra.mxu0 0.0
    %194 = vmatpush.msra.mxu0 0.0
    %195 = vmatpush.msra.mxu0 0.0
    %196 = vmatpush.msra.mxu0 0.0
    %197 = vmatpush.msra.mxu0 0.0
    %198 = vmatpush.msra.mxu0 0.0
    %199 = vmatpush.msra.mxu0 %v94
    %200 = vmatpush.msra.mxu0 %v93
    %201 = vmatpush.msra.mxu0 %v92
    %202 = vmatpush.msra.mxu0 %v91
    %v203 = vand.u32 %v97, 4294901760
    %v204 = vsub.f32 %v97, %v203
    %v205 = vand.u32 %v204, 4294901760
    %206 = vmatmul.f32.gmra.mxu0 %v205
    %v207 = vpop.f32.mrf.mxu0
    %v208 = vadd.f32 %v185, %v207
    %209 = vdwg.mxu0
    %210 = vmatpush.msra.mxu0 0.0
    %211 = vmatpush.msra.mxu0 0.0
    %212 = vmatpush.msra.mxu0 0.0
    %213 = vmatpush.msra.mxu0 0.0
    %214 = vmatpush.msra.mxu0 0.0
    %215 = vmatpush.msra.mxu0 0.0
    %216 = vmatpush.msra.mxu0 0.0
    %217 = vmatpush.msra.mxu0 0.0
    %218 = vmatpush.msra.mxu0 0.0
    %219 = vmatpush.msra.mxu0 0.0
    %220 = vmatpush.msra.mxu0 0.0
    %221 = vmatpush.msra.mxu0 0.0
    %v222 = vsub.f32 %v94, %v94
    %v223 = vand.u32 %v222, 4294901760
    %224 = vmatpush.msra.mxu0 %v223
    %v225 = vsub.f32 %v93, %v93
    %v226 = vand.u32 %v225, 4294901760
    %227 = vmatpush.msra.mxu0 %v226
    %v228 = vsub.f32 %v92, %v92
    %v229 = vand.u32 %v228, 4294901760
    %230 = vmatpush.msra.mxu0 %v229
    %v231 = vsub.f32 %v91, %v91
    %v232 = vand.u32 %v231, 4294901760
    %233 = vmatpush.msra.mxu0 %v232
    %v234 = vand.u32 %v97, 4294901760
    %235 = vmatmul.f32.gmra.mxu0 %v234
    %v236 = vpop.f32.mrf.mxu0
    %v237 = vadd.f32 %v208, %v236
    %238 = vdwg.mxu0
    %239 = vmatpush.msra.mxu0 0.0
    %240 = vmatpush.msra.mxu0 0.0
    %241 = vmatpush.msra.mxu0 0.0
    %242 = vmatpush.msra.mxu0 0.0
    %243 = vmatpush.msra.mxu0 0.0
    %244 = vmatpush.msra.mxu0 0.0
    %245 = vmatpush.msra.mxu0 0.0
    %246 = vmatpush.msra.mxu0 0.0
    %247 = vmatpush.msra.mxu0 0.0
    %248 = vmatpush.msra.mxu0 0.0
    %249 = vmatpush.msra.mxu0 0.0
    %250 = vmatpush.msra.mxu0 0.0
    %251 = vmatpush.msra.mxu0 %v94
    %252 = vmatpush.msra.mxu0 %v93
    %253 = vmatpush.msra.mxu0 %v92
    %254 = vmatpush.msra.mxu0 %v91
    %v255 = vand.u32 %v97, 4294901760
    %256 = vmatmul.f32.gmra.mxu0 %v255
    %v257 = vpop.f32.mrf.mxu0
    %v258 = vadd.f32 %v237, %v257
    %259 = vdwg.mxu0
    %v261 = vsel %vm95, %v75, 0
    %263 = vmatpush.msra.mxu0 0.0
    %264 = vmatpush.msra.mxu0 0.0
    %265 = vmatpush.msra.mxu0 0.0
    %266 = vmatpush.msra.mxu0 0.0
    %267 = vmatpush.msra.mxu0 0.0
    %268 = vmatpush.msra.mxu0 0.0
    %269 = vmatpush.msra.mxu0 0.0
    %270 = vmatpush.msra.mxu0 0.0
    %271 = vmatpush.msra.mxu0 0.0
    %272 = vmatpush.msra.mxu0 0.0
    %273 = vmatpush.msra.mxu0 0.0
    %274 = vmatpush.msra.mxu0 0.0
    %275 = vmatpush.msra.mxu0 %v86
    %276 = vmatpush.msra.mxu0 %v85
    %277 = vmatpush.msra.mxu0 %v84
    %278 = vmatpush.msra.mxu0 %v83
    %v279 = vand.u32 %v261, 4294901760
    %v280 = vsub.f32 %v261, %v279
    %v281 = vand.u32 %v280, 4294901760
    %v282 = vsub.f32 %v280, %v281
    %v283 = vand.u32 %v282, 4294901760
    %284 = vmatmul.f32.gmra.mxu0 %v283
    %v285 = vpop.f32.mrf.mxu0
    %v286 = vadd.f32 %v258, %v285
    %287 = vdwg.mxu0
    %288 = vmatpush.msra.mxu0 0.0
    %289 = vmatpush.msra.mxu0 0.0
    %290 = vmatpush.msra.mxu0 0.0
    %291 = vmatpush.msra.mxu0 0.0
    %292 = vmatpush.msra.mxu0 0.0
    %293 = vmatpush.msra.mxu0 0.0
    %294 = vmatpush.msra.mxu0 0.0
    %295 = vmatpush.msra.mxu0 0.0
    %296 = vmatpush.msra.mxu0 0.0
    %297 = vmatpush.msra.mxu0 0.0
    %298 = vmatpush.msra.mxu0 0.0
    %299 = vmatpush.msra.mxu0 0.0
    %v300 = vsub.f32 %v86, %v86
    %v301 = vand.u32 %v300, 4294901760
    %v302 = vsub.f32 %v300, %v301
    %v303 = vand.u32 %v302, 4294901760
    %304 = vmatpush.msra.mxu0 %v303
    %v305 = vsub.f32 %v85, %v85
    %v306 = vand.u32 %v305, 4294901760
    %v307 = vsub.f32 %v305, %v306
    %v308 = vand.u32 %v307, 4294901760
    %309 = vmatpush.msra.mxu0 %v308
    %v310 = vsub.f32 %v84, %v84
    %v311 = vand.u32 %v310, 4294901760
    %v312 = vsub.f32 %v310, %v311
    %v313 = vand.u32 %v312, 4294901760
    %314 = vmatpush.msra.mxu0 %v313
    %v315 = vsub.f32 %v83, %v83
    %v316 = vand.u32 %v315, 4294901760
    %v317 = vsub.f32 %v315, %v316
    %v318 = vand.u32 %v317, 4294901760
    %319 = vmatpush.msra.mxu0 %v318
    %v320 = vand.u32 %v261, 4294901760
    %321 = vmatmul.f32.gmra.mxu0 %v320
    %v322 = vpop.f32.mrf.mxu0
    %v323 = vadd.f32 %v286, %v322
    %324 = vdwg.mxu0
    %325 = vmatpush.msra.mxu0 0.0
    %326 = vmatpush.msra.mxu0 0.0
    %327 = vmatpush.msra.mxu0 0.0
    %328 = vmatpush.msra.mxu0 0.0
    %329 = vmatpush.msra.mxu0 0.0
    %330 = vmatpush.msra.mxu0 0.0
    %331 = vmatpush.msra.mxu0 0.0
    %332 = vmatpush.msra.mxu0 0.0
    %333 = vmatpush.msra.mxu0 0.0
    %334 = vmatpush.msra.mxu0 0.0
    %335 = vmatpush.msra.mxu0 0.0
    %336 = vmatpush.msra.mxu0 0.0
    %v337 = vsub.f32 %v86, %v86
    %338 = vmatpush.msra.mxu0 %v337
    %v339 = vsub.f32 %v85, %v85
    %340 = vmatpush.msra.mxu0 %v339
    %v341 = vsub.f32 %v84, %v84
    %342 = vmatpush.msra.mxu0 %v341
    %v343 = vsub.f32 %v83, %v83
    %344 = vmatpush.msra.mxu0 %v343
    %v345 = vand.u32 %v261, 4294901760
    %v346 = vsub.f32 %v261, %v345
    %347 = vmatmul.f32.gmra.mxu0 %v346
    %v348 = vpop.f32.mrf.mxu0
    %v349 = vadd.f32 %v323, %v348
    %350 = vdwg.mxu0
    %351 = vmatpush.msra.mxu0 0.0
    %352 = vmatpush.msra.mxu0 0.0
    %353 = vmatpush.msra.mxu0 0.0
    %354 = vmatpush.msra.mxu0 0.0
    %355 = vmatpush.msra.mxu0 0.0
    %356 = vmatpush.msra.mxu0 0.0
    %357 = vmatpush.msra.mxu0 0.0
    %358 = vmatpush.msra.mxu0 0.0
    %359 = vmatpush.msra.mxu0 0.0
    %360 = vmatpush.msra.mxu0 0.0
    %361 = vmatpush.msra.mxu0 0.0
    %362 = vmatpush.msra.mxu0 0.0
    %363 = vmatpush.msra.mxu0 %v86
    %364 = vmatpush.msra.mxu0 %v85
    %365 = vmatpush.msra.mxu0 %v84
    %366 = vmatpush.msra.mxu0 %v83
    %v367 = vand.u32 %v261, 4294901760
    %v368 = vsub.f32 %v261, %v367
    %v369 = vand.u32 %v368, 4294901760
    %370 = vmatmul.f32.gmra.mxu0 %v369
    %v371 = vpop.f32.mrf.mxu0
    %v372 = vadd.f32 %v349, %v371
    %373 = vdwg.mxu0
    %374 = vmatpush.msra.mxu0 0.0
    %375 = vmatpush.msra.mxu0 0.0
    %376 = vmatpush.msra.mxu0 0.0
    %377 = vmatpush.msra.mxu0 0.0
    %378 = vmatpush.msra.mxu0 0.0
    %379 = vmatpush.msra.mxu0 0.0
    %380 = vmatpush.msra.mxu0 0.0
    %381 = vmatpush.msra.mxu0 0.0
    %382 = vmatpush.msra.mxu0 0.0
    %383 = vmatpush.msra.mxu0 0.0
    %384 = vmatpush.msra.mxu0 0.0
    %385 = vmatpush.msra.mxu0 0.0
    %v386 = vsub.f32 %v86, %v86
    %v387 = vand.u32 %v386, 4294901760
    %388 = vmatpush.msra.mxu0 %v387
    %v389 = vsub.f32 %v85, %v85
    %v390 = vand.u32 %v389, 4294901760
    %391 = vmatpush.msra.mxu0 %v390
    %v392 = vsub.f32 %v84, %v84
    %v393 = vand.u32 %v392, 4294901760
    %394 = vmatpush.msra.mxu0 %v393
    %v395 = vsub.f32 %v83, %v83
    %v396 = vand.u32 %v395, 4294901760
    %397 = vmatpush.msra.mxu0 %v396
    %v398 = vand.u32 %v261, 4294901760
    %399 = vmatmul.f32.gmra.mxu0 %v398
    %v400 = vpop.f32.mrf.mxu0
    %v401 = vadd.f32 %v372, %v400
    %402 = vdwg.mxu0
    %403 = vmatpush.msra.mxu0 0.0
    %404 = vmatpush.msra.mxu0 0.0
    %405 = vmatpush.msra.mxu0 0.0
    %406 = vmatpush.msra.mxu0 0.0
    %407 = vmatpush.msra.mxu0 0.0
    %408 = vmatpush.msra.mxu0 0.0
    %409 = vmatpush.msra.mxu0 0.0
    %410 = vmatpush.msra.mxu0 0.0
    %411 = vmatpush.msra.mxu0 0.0
    %412 = vmatpush.msra.mxu0 0.0
    %413 = vmatpush.msra.mxu0 0.0
    %414 = vmatpush.msra.mxu0 0.0
    %415 = vmatpush.msra.mxu0 %v86
    %416 = vmatpush.msra.mxu0 %v85
    %417 = vmatpush.msra.mxu0 %v84
    %418 = vmatpush.msra.mxu0 %v83
    %v419 = vand.u32 %v261, 4294901760
    %420 = vmatmul.f32.gmra.mxu0 %v419
    %v421 = vpop.f32.mrf.mxu0
    %v422 = vadd.f32 %v401, %v421
    %423 = vdwg.mxu0
    %v424 = vld [vmem:[%s9] sm:$0x1]
    %v426 = vperm.slane %v424, 0
    %v428 = vadd.f32 %v422, %v426
    %v429 = vld [vmem:[%s7] sm:$0xf]
    %v430 = vld [vmem:[%s7 + $0x4] sm:$0xf]
    %v431 = vld [vmem:[%s7 + $0x8] sm:$0xf]
    %v432 = vld [vmem:[%s7 + $0xc] sm:$0xf]
    %v433 = vunpack.c.l.bf16 %v429
    %v434 = vunpack.c.l.bf16 %v430
    %v435 = vunpack.c.l.bf16 %v431
    %v436 = vunpack.c.l.bf16 %v432
    %v438 = vsel %vm95, %v76, 0
    %440 = vmatpush.msra.mxu0 0.0
    %441 = vmatpush.msra.mxu0 0.0
    %442 = vmatpush.msra.mxu0 0.0
    %443 = vmatpush.msra.mxu0 0.0
    %444 = vmatpush.msra.mxu0 0.0
    %445 = vmatpush.msra.mxu0 0.0
    %446 = vmatpush.msra.mxu0 0.0
    %447 = vmatpush.msra.mxu0 0.0
    %448 = vmatpush.msra.mxu0 0.0
    %449 = vmatpush.msra.mxu0 0.0
    %450 = vmatpush.msra.mxu0 0.0
    %451 = vmatpush.msra.mxu0 0.0
    %452 = vmatpush.msra.mxu0 %v436
    %453 = vmatpush.msra.mxu0 %v435
    %454 = vmatpush.msra.mxu0 %v434
    %455 = vmatpush.msra.mxu0 %v433
    %v456 = vand.u32 %v438, 4294901760
    %v457 = vsub.f32 %v438, %v456
    %v458 = vand.u32 %v457, 4294901760
    %v459 = vsub.f32 %v457, %v458
    %v460 = vand.u32 %v459, 4294901760
    %461 = vmatmul.f32.gmra.mxu0 %v460
    %v462 = vpop.f32.mrf.mxu0
    %v463 = vadd.f32 0.0, %v462
    %464 = vdwg.mxu0
    %465 = vmatpush.msra.mxu0 0.0
    %466 = vmatpush.msra.mxu0 0.0
    %467 = vmatpush.msra.mxu0 0.0
    %468 = vmatpush.msra.mxu0 0.0
    %469 = vmatpush.msra.mxu0 0.0
    %470 = vmatpush.msra.mxu0 0.0
    %471 = vmatpush.msra.mxu0 0.0
    %472 = vmatpush.msra.mxu0 0.0
    %473 = vmatpush.msra.mxu0 0.0
    %474 = vmatpush.msra.mxu0 0.0
    %475 = vmatpush.msra.mxu0 0.0
    %476 = vmatpush.msra.mxu0 0.0
    %v477 = vsub.f32 %v436, %v436
    %v478 = vand.u32 %v477, 4294901760
    %v479 = vsub.f32 %v477, %v478
    %v480 = vand.u32 %v479, 4294901760
    %481 = vmatpush.msra.mxu0 %v480
    %v482 = vsub.f32 %v435, %v435
    %v483 = vand.u32 %v482, 4294901760
    %v484 = vsub.f32 %v482, %v483
    %v485 = vand.u32 %v484, 4294901760
    %486 = vmatpush.msra.mxu0 %v485
    %v487 = vsub.f32 %v434, %v434
    %v488 = vand.u32 %v487, 4294901760
    %v489 = vsub.f32 %v487, %v488
    %v490 = vand.u32 %v489, 4294901760
    %491 = vmatpush.msra.mxu0 %v490
    %v492 = vsub.f32 %v433, %v433
    %v493 = vand.u32 %v492, 4294901760
    %v494 = vsub.f32 %v492, %v493
    %v495 = vand.u32 %v494, 4294901760
    %496 = vmatpush.msra.mxu0 %v495
    %v497 = vand.u32 %v438, 4294901760
    %498 = vmatmul.f32.gmra.mxu0 %v497
    %v499 = vpop.f32.mrf.mxu0
    %v500 = vadd.f32 %v463, %v499
    %501 = vdwg.mxu0
    %502 = vmatpush.msra.mxu0 0.0
    %503 = vmatpush.msra.mxu0 0.0
    %504 = vmatpush.msra.mxu0 0.0
    %505 = vmatpush.msra.mxu0 0.0
    %506 = vmatpush.msra.mxu0 0.0
    %507 = vmatpush.msra.mxu0 0.0
    %508 = vmatpush.msra.mxu0 0.0
    %509 = vmatpush.msra.mxu0 0.0
    %510 = vmatpush.msra.mxu0 0.0
    %511 = vmatpush.msra.mxu0 0.0
    %512 = vmatpush.msra.mxu0 0.0
    %513 = vmatpush.msra.mxu0 0.0
    %v514 = vsub.f32 %v436, %v436
    %515 = vmatpush.msra.mxu0 %v514
    %v516 = vsub.f32 %v435, %v435
    %517 = vmatpush.msra.mxu0 %v516
    %v518 = vsub.f32 %v434, %v434
    %519 = vmatpush.msra.mxu0 %v518
    %v520 = vsub.f32 %v433, %v433
    %521 = vmatpush.msra.mxu0 %v520
    %v522 = vand.u32 %v438, 4294901760
    %v523 = vsub.f32 %v438, %v522
    %524 = vmatmul.f32.gmra.mxu0 %v523
    %v525 = vpop.f32.mrf.mxu0
    %v526 = vadd.f32 %v500, %v525
    %527 = vdwg.mxu0
    %528 = vmatpush.msra.mxu0 0.0
    %529 = vmatpush.msra.mxu0 0.0
    %530 = vmatpush.msra.mxu0 0.0
    %531 = vmatpush.msra.mxu0 0.0
    %532 = vmatpush.msra.mxu0 0.0
    %533 = vmatpush.msra.mxu0 0.0
    %534 = vmatpush.msra.mxu0 0.0
    %535 = vmatpush.msra.mxu0 0.0
    %536 = vmatpush.msra.mxu0 0.0
    %537 = vmatpush.msra.mxu0 0.0
    %538 = vmatpush.msra.mxu0 0.0
    %539 = vmatpush.msra.mxu0 0.0
    %540 = vmatpush.msra.mxu0 %v436
    %541 = vmatpush.msra.mxu0 %v435
    %542 = vmatpush.msra.mxu0 %v434
    %543 = vmatpush.msra.mxu0 %v433
    %v544 = vand.u32 %v438, 4294901760
    %v545 = vsub.f32 %v438, %v544
    %v546 = vand.u32 %v545, 4294901760
    %547 = vmatmul.f32.gmra.mxu0 %v546
    %v548 = vpop.f32.mrf.mxu0
    %v549 = vadd.f32 %v526, %v548
    %550 = vdwg.mxu0
    %551 = vmatpush.msra.mxu0 0.0
    %552 = vmatpush.msra.mxu0 0.0
    %553 = vmatpush.msra.mxu0 0.0
    %554 = vmatpush.msra.mxu0 0.0
    %555 = vmatpush.msra.mxu0 0.0
    %556 = vmatpush.msra.mxu0 0.0
    %557 = vmatpush.msra.mxu0 0.0
    %558 = vmatpush.msra.mxu0 0.0
    %559 = vmatpush.msra.mxu0 0.0
    %560 = vmatpush.msra.mxu0 0.0
    %561 = vmatpush.msra.mxu0 0.0
    %562 = vmatpush.msra.mxu0 0.0
    %v563 = vsub.f32 %v436, %v436
    %v564 = vand.u32 %v563, 4294901760
    %565 = vmatpush.msra.mxu0 %v564
    %v566 = vsub.f32 %v435, %v435
    %v567 = vand.u32 %v566, 4294901760
    %568 = vmatpush.msra.mxu0 %v567
    %v569 = vsub.f32 %v434, %v434
    %v570 = vand.u32 %v569, 4294901760
    %571 = vmatpush.msra.mxu0 %v570
    %v572 = vsub.f32 %v433, %v433
    %v573 = vand.u32 %v572, 4294901760
    %574 = vmatpush.msra.mxu0 %v573
    %v575 = vand.u32 %v438, 4294901760
    %576 = vmatmul.f32.gmra.mxu0 %v575
    %v577 = vpop.f32.mrf.mxu0
    %v578 = vadd.f32 %v549, %v577
    %579 = vdwg.mxu0
    %580 = vmatpush.msra.mxu0 0.0
    %581 = vmatpush.msra.mxu0 0.0
    %582 = vmatpush.msra.mxu0 0.0
    %583 = vmatpush.msra.mxu0 0.0
    %584 = vmatpush.msra.mxu0 0.0
    %585 = vmatpush.msra.mxu0 0.0
    %586 = vmatpush.msra.mxu0 0.0
    %587 = vmatpush.msra.mxu0 0.0
    %588 = vmatpush.msra.mxu0 0.0
    %589 = vmatpush.msra.mxu0 0.0
    %590 = vmatpush.msra.mxu0 0.0
    %591 = vmatpush.msra.mxu0 0.0
    %592 = vmatpush.msra.mxu0 %v436
    %593 = vmatpush.msra.mxu0 %v435
    %594 = vmatpush.msra.mxu0 %v434
    %595 = vmatpush.msra.mxu0 %v433
    %v596 = vand.u32 %v438, 4294901760
    %597 = vmatmul.f32.gmra.mxu0 %v596
    %v598 = vpop.f32.mrf.mxu0
    %v599 = vadd.f32 %v578, %v598
    %600 = vdwg.mxu0
    %v601 = vadd.f32 %v428, %v599
    %s602 = scalar_lea.vmem %s6, 16
    %v603 = vld [vmem:[%s602] sm:$0xf]
    %v604 = vld [vmem:[%s602 + $0x4] sm:$0xf]
    %v605 = vld [vmem:[%s602 + $0x8] sm:$0xf]
    %v606 = vld [vmem:[%s602 + $0xc] sm:$0xf]
    %v607 = vunpack.c.l.bf16 %v603
    %v608 = vunpack.c.l.bf16 %v604
    %v609 = vunpack.c.l.bf16 %v605
    %v610 = vunpack.c.l.bf16 %v606
    %s611 = scalar_lea.vmem %s8, 16
    %v612 = vld [vmem:[%s611] sm:$0xf]
    %v613 = vld [vmem:[%s611 + $0x4] sm:$0xf]
    %v614 = vld [vmem:[%s611 + $0x8] sm:$0xf]
    %v615 = vld [vmem:[%s611 + $0xc] sm:$0xf]
    %v616 = vunpack.c.l.bf16 %v612
    %v617 = vunpack.c.l.bf16 %v613
    %v618 = vunpack.c.l.bf16 %v614
    %v619 = vunpack.c.l.bf16 %v615
    %620 = vmatpush.msra.mxu0 0.0
    %621 = vmatpush.msra.mxu0 0.0
    %622 = vmatpush.msra.mxu0 0.0
    %623 = vmatpush.msra.mxu0 0.0
    %624 = vmatpush.msra.mxu0 0.0
    %625 = vmatpush.msra.mxu0 0.0
    %626 = vmatpush.msra.mxu0 0.0
    %627 = vmatpush.msra.mxu0 0.0
    %628 = vmatpush.msra.mxu0 0.0
    %629 = vmatpush.msra.mxu0 0.0
    %630 = vmatpush.msra.mxu0 0.0
    %631 = vmatpush.msra.mxu0 0.0
    %632 = vmatpush.msra.mxu0 %v619
    %633 = vmatpush.msra.mxu0 %v618
    %634 = vmatpush.msra.mxu0 %v617
    %635 = vmatpush.msra.mxu0 %v616
    %v636 = vand.u32 %v97, 4294901760
    %v637 = vsub.f32 %v97, %v636
    %v638 = vand.u32 %v637, 4294901760
    %v639 = vsub.f32 %v637, %v638
    %v640 = vand.u32 %v639, 4294901760
    %641 = vmatmul.f32.gmra.mxu0 %v640
    %v642 = vpop.f32.mrf.mxu0
    %v643 = vadd.f32 0.0, %v642
    %644 = vdwg.mxu0
    %645 = vmatpush.msra.mxu0 0.0
    %646 = vmatpush.msra.mxu0 0.0
    %647 = vmatpush.msra.mxu0 0.0
    %648 = vmatpush.msra.mxu0 0.0
    %649 = vmatpush.msra.mxu0 0.0
    %650 = vmatpush.msra.mxu0 0.0
    %651 = vmatpush.msra.mxu0 0.0
    %652 = vmatpush.msra.mxu0 0.0
    %653 = vmatpush.msra.mxu0 0.0
    %654 = vmatpush.msra.mxu0 0.0
    %655 = vmatpush.msra.mxu0 0.0
    %656 = vmatpush.msra.mxu0 0.0
    %v657 = vsub.f32 %v619, %v619
    %v658 = vand.u32 %v657, 4294901760
    %v659 = vsub.f32 %v657, %v658
    %v660 = vand.u32 %v659, 4294901760
    %661 = vmatpush.msra.mxu0 %v660
    %v662 = vsub.f32 %v618, %v618
    %v663 = vand.u32 %v662, 4294901760
    %v664 = vsub.f32 %v662, %v663
    %v665 = vand.u32 %v664, 4294901760
    %666 = vmatpush.msra.mxu0 %v665
    %v667 = vsub.f32 %v617, %v617
    %v668 = vand.u32 %v667, 4294901760
    %v669 = vsub.f32 %v667, %v668
    %v670 = vand.u32 %v669, 4294901760
    %671 = vmatpush.msra.mxu0 %v670
    %v672 = vsub.f32 %v616, %v616
    %v673 = vand.u32 %v672, 4294901760
    %v674 = vsub.f32 %v672, %v673
    %v675 = vand.u32 %v674, 4294901760
    %676 = vmatpush.msra.mxu0 %v675
    %v677 = vand.u32 %v97, 4294901760
    %678 = vmatmul.f32.gmra.mxu0 %v677
    %v679 = vpop.f32.mrf.mxu0
    %v680 = vadd.f32 %v643, %v679
    %681 = vdwg.mxu0
    %682 = vmatpush.msra.mxu0 0.0
    %683 = vmatpush.msra.mxu0 0.0
    %684 = vmatpush.msra.mxu0 0.0
    %685 = vmatpush.msra.mxu0 0.0
    %686 = vmatpush.msra.mxu0 0.0
    %687 = vmatpush.msra.mxu0 0.0
    %688 = vmatpush.msra.mxu0 0.0
    %689 = vmatpush.msra.mxu0 0.0
    %690 = vmatpush.msra.mxu0 0.0
    %691 = vmatpush.msra.mxu0 0.0
    %692 = vmatpush.msra.mxu0 0.0
    %693 = vmatpush.msra.mxu0 0.0
    %v694 = vsub.f32 %v619, %v619
    %695 = vmatpush.msra.mxu0 %v694
    %v696 = vsub.f32 %v618, %v618
    %697 = vmatpush.msra.mxu0 %v696
    %v698 = vsub.f32 %v617, %v617
    %699 = vmatpush.msra.mxu0 %v698
    %v700 = vsub.f32 %v616, %v616
    %701 = vmatpush.msra.mxu0 %v700
    %v702 = vand.u32 %v97, 4294901760
    %v703 = vsub.f32 %v97, %v702
    %704 = vmatmul.f32.gmra.mxu0 %v703
    %v705 = vpop.f32.mrf.mxu0
    %v706 = vadd.f32 %v680, %v705
    %707 = vdwg.mxu0
    %708 = vmatpush.msra.mxu0 0.0
    %709 = vmatpush.msra.mxu0 0.0
    %710 = vmatpush.msra.mxu0 0.0
    %711 = vmatpush.msra.mxu0 0.0
    %712 = vmatpush.msra.mxu0 0.0
    %713 = vmatpush.msra.mxu0 0.0
    %714 = vmatpush.msra.mxu0 0.0
    %715 = vmatpush.msra.mxu0 0.0
    %716 = vmatpush.msra.mxu0 0.0
    %717 = vmatpush.msra.mxu0 0.0
    %718 = vmatpush.msra.mxu0 0.0
    %719 = vmatpush.msra.mxu0 0.0
    %720 = vmatpush.msra.mxu0 %v619
    %721 = vmatpush.msra.mxu0 %v618
    %722 = vmatpush.msra.mxu0 %v617
    %723 = vmatpush.msra.mxu0 %v616
    %v724 = vand.u32 %v97, 4294901760
    %v725 = vsub.f32 %v97, %v724
    %v726 = vand.u32 %v725, 4294901760
    %727 = vmatmul.f32.gmra.mxu0 %v726
    %v728 = vpop.f32.mrf.mxu0
    %v729 = vadd.f32 %v706, %v728
    %730 = vdwg.mxu0
    %731 = vmatpush.msra.mxu0 0.0
    %732 = vmatpush.msra.mxu0 0.0
    %733 = vmatpush.msra.mxu0 0.0
    %734 = vmatpush.msra.mxu0 0.0
    %735 = vmatpush.msra.mxu0 0.0
    %736 = vmatpush.msra.mxu0 0.0
    %737 = vmatpush.msra.mxu0 0.0
    %738 = vmatpush.msra.mxu0 0.0
    %739 = vmatpush.msra.mxu0 0.0
    %740 = vmatpush.msra.mxu0 0.0
    %741 = vmatpush.msra.mxu0 0.0
    %742 = vmatpush.msra.mxu0 0.0
    %v743 = vsub.f32 %v619, %v619
    %v744 = vand.u32 %v743, 4294901760
    %745 = vmatpush.msra.mxu0 %v744
    %v746 = vsub.f32 %v618, %v618
    %v747 = vand.u32 %v746, 4294901760
    %748 = vmatpush.msra.mxu0 %v747
    %v749 = vsub.f32 %v617, %v617
    %v750 = vand.u32 %v749, 4294901760
    %751 = vmatpush.msra.mxu0 %v750
    %v752 = vsub.f32 %v616, %v616
    %v753 = vand.u32 %v752, 4294901760
    %754 = vmatpush.msra.mxu0 %v753
    %v755 = vand.u32 %v97, 4294901760
    %756 = vmatmul.f32.gmra.mxu0 %v755
    %v757 = vpop.f32.mrf.mxu0
    %v758 = vadd.f32 %v729, %v757
    %759 = vdwg.mxu0
    %760 = vmatpush.msra.mxu0 0.0
    %761 = vmatpush.msra.mxu0 0.0
    %762 = vmatpush.msra.mxu0 0.0
    %763 = vmatpush.msra.mxu0 0.0
    %764 = vmatpush.msra.mxu0 0.0
    %765 = vmatpush.msra.mxu0 0.0
    %766 = vmatpush.msra.mxu0 0.0
    %767 = vmatpush.msra.mxu0 0.0
    %768 = vmatpush.msra.mxu0 0.0
    %769 = vmatpush.msra.mxu0 0.0
    %770 = vmatpush.msra.mxu0 0.0
    %771 = vmatpush.msra.mxu0 0.0
    %772 = vmatpush.msra.mxu0 %v619
    %773 = vmatpush.msra.mxu0 %v618
    %774 = vmatpush.msra.mxu0 %v617
    %775 = vmatpush.msra.mxu0 %v616
    %v776 = vand.u32 %v97, 4294901760
    %777 = vmatmul.f32.gmra.mxu0 %v776
    %v778 = vpop.f32.mrf.mxu0
    %v779 = vadd.f32 %v758, %v778
    %780 = vdwg.mxu0
    %781 = vmatpush.msra.mxu0 0.0
    %782 = vmatpush.msra.mxu0 0.0
    %783 = vmatpush.msra.mxu0 0.0
    %784 = vmatpush.msra.mxu0 0.0
    %785 = vmatpush.msra.mxu0 0.0
    %786 = vmatpush.msra.mxu0 0.0
    %787 = vmatpush.msra.mxu0 0.0
    %788 = vmatpush.msra.mxu0 0.0
    %789 = vmatpush.msra.mxu0 0.0
    %790 = vmatpush.msra.mxu0 0.0
    %791 = vmatpush.msra.mxu0 0.0
    %792 = vmatpush.msra.mxu0 0.0
    %793 = vmatpush.msra.mxu0 %v610
    %794 = vmatpush.msra.mxu0 %v609
    %795 = vmatpush.msra.mxu0 %v608
    %796 = vmatpush.msra.mxu0 %v607
    %v797 = vand.u32 %v261, 4294901760
    %v798 = vsub.f32 %v261, %v797
    %v799 = vand.u32 %v798, 4294901760
    %v800 = vsub.f32 %v798, %v799
    %v801 = vand.u32 %v800, 4294901760
    %802 = vmatmul.f32.gmra.mxu0 %v801
    %v803 = vpop.f32.mrf.mxu0
    %v804 = vadd.f32 %v779, %v803
    %805 = vdwg.mxu0
    %806 = vmatpush.msra.mxu0 0.0
    %807 = vmatpush.msra.mxu0 0.0
    %808 = vmatpush.msra.mxu0 0.0
    %809 = vmatpush.msra.mxu0 0.0
    %810 = vmatpush.msra.mxu0 0.0
    %811 = vmatpush.msra.mxu0 0.0
    %812 = vmatpush.msra.mxu0 0.0
    %813 = vmatpush.msra.mxu0 0.0
    %814 = vmatpush.msra.mxu0 0.0
    %815 = vmatpush.msra.mxu0 0.0
    %816 = vmatpush.msra.mxu0 0.0
    %817 = vmatpush.msra.mxu0 0.0
    %v818 = vsub.f32 %v610, %v610
    %v819 = vand.u32 %v818, 4294901760
    %v820 = vsub.f32 %v818, %v819
    %v821 = vand.u32 %v820, 4294901760
    %822 = vmatpush.msra.mxu0 %v821
    %v823 = vsub.f32 %v609, %v609
    %v824 = vand.u32 %v823, 4294901760
    %v825 = vsub.f32 %v823, %v824
    %v826 = vand.u32 %v825, 4294901760
    %827 = vmatpush.msra.mxu0 %v826
    %v828 = vsub.f32 %v608, %v608
    %v829 = vand.u32 %v828, 4294901760
    %v830 = vsub.f32 %v828, %v829
    %v831 = vand.u32 %v830, 4294901760
    %832 = vmatpush.msra.mxu0 %v831
    %v833 = vsub.f32 %v607, %v607
    %v834 = vand.u32 %v833, 4294901760
    %v835 = vsub.f32 %v833, %v834
    %v836 = vand.u32 %v835, 4294901760
    %837 = vmatpush.msra.mxu0 %v836
    %v838 = vand.u32 %v261, 4294901760
    %839 = vmatmul.f32.gmra.mxu0 %v838
    %v840 = vpop.f32.mrf.mxu0
    %v841 = vadd.f32 %v804, %v840
    %842 = vdwg.mxu0
    %843 = vmatpush.msra.mxu0 0.0
    %844 = vmatpush.msra.mxu0 0.0
    %845 = vmatpush.msra.mxu0 0.0
    %846 = vmatpush.msra.mxu0 0.0
    %847 = vmatpush.msra.mxu0 0.0
    %848 = vmatpush.msra.mxu0 0.0
    %849 = vmatpush.msra.mxu0 0.0
    %850 = vmatpush.msra.mxu0 0.0
    %851 = vmatpush.msra.mxu0 0.0
    %852 = vmatpush.msra.mxu0 0.0
    %853 = vmatpush.msra.mxu0 0.0
    %854 = vmatpush.msra.mxu0 0.0
    %v855 = vsub.f32 %v610, %v610
    %856 = vmatpush.msra.mxu0 %v855
    %v857 = vsub.f32 %v609, %v609
    %858 = vmatpush.msra.mxu0 %v857
    %v859 = vsub.f32 %v608, %v608
    %860 = vmatpush.msra.mxu0 %v859
    %v861 = vsub.f32 %v607, %v607
    %862 = vmatpush.msra.mxu0 %v861
    %v863 = vand.u32 %v261, 4294901760
    %v864 = vsub.f32 %v261, %v863
    %865 = vmatmul.f32.gmra.mxu0 %v864
    %v866 = vpop.f32.mrf.mxu0
    %v867 = vadd.f32 %v841, %v866
    %868 = vdwg.mxu0
    %869 = vmatpush.msra.mxu0 0.0
    %870 = vmatpush.msra.mxu0 0.0
    %871 = vmatpush.msra.mxu0 0.0
    %872 = vmatpush.msra.mxu0 0.0
    %873 = vmatpush.msra.mxu0 0.0
    %874 = vmatpush.msra.mxu0 0.0
    %875 = vmatpush.msra.mxu0 0.0
    %876 = vmatpush.msra.mxu0 0.0
    %877 = vmatpush.msra.mxu0 0.0
    %878 = vmatpush.msra.mxu0 0.0
    %879 = vmatpush.msra.mxu0 0.0
    %880 = vmatpush.msra.mxu0 0.0
    %881 = vmatpush.msra.mxu0 %v610
    %882 = vmatpush.msra.mxu0 %v609
    %883 = vmatpush.msra.mxu0 %v608
    %884 = vmatpush.msra.mxu0 %v607
    %v885 = vand.u32 %v261, 4294901760
    %v886 = vsub.f32 %v261, %v885
    %v887 = vand.u32 %v886, 4294901760
    %888 = vmatmul.f32.gmra.mxu0 %v887
    %v889 = vpop.f32.mrf.mxu0
    %v890 = vadd.f32 %v867, %v889
    %891 = vdwg.mxu0
    %892 = vmatpush.msra.mxu0 0.0
    %893 = vmatpush.msra.mxu0 0.0
    %894 = vmatpush.msra.mxu0 0.0
    %895 = vmatpush.msra.mxu0 0.0
    %896 = vmatpush.msra.mxu0 0.0
    %897 = vmatpush.msra.mxu0 0.0
    %898 = vmatpush.msra.mxu0 0.0
    %899 = vmatpush.msra.mxu0 0.0
    %900 = vmatpush.msra.mxu0 0.0
    %901 = vmatpush.msra.mxu0 0.0
    %902 = vmatpush.msra.mxu0 0.0
    %903 = vmatpush.msra.mxu0 0.0
    %v904 = vsub.f32 %v610, %v610
    %v905 = vand.u32 %v904, 4294901760
    %906 = vmatpush.msra.mxu0 %v905
    %v907 = vsub.f32 %v609, %v609
    %v908 = vand.u32 %v907, 4294901760
    %909 = vmatpush.msra.mxu0 %v908
    %v910 = vsub.f32 %v608, %v608
    %v911 = vand.u32 %v910, 4294901760
    %912 = vmatpush.msra.mxu0 %v911
    %v913 = vsub.f32 %v607, %v607
    %v914 = vand.u32 %v913, 4294901760
    %915 = vmatpush.msra.mxu0 %v914
    %v916 = vand.u32 %v261, 4294901760
    %917 = vmatmul.f32.gmra.mxu0 %v916
    %v918 = vpop.f32.mrf.mxu0
    %v919 = vadd.f32 %v890, %v918
    %920 = vdwg.mxu0
    %921 = vmatpush.msra.mxu0 0.0
    %922 = vmatpush.msra.mxu0 0.0
    %923 = vmatpush.msra.mxu0 0.0
    %924 = vmatpush.msra.mxu0 0.0
    %925 = vmatpush.msra.mxu0 0.0
    %926 = vmatpush.msra.mxu0 0.0
    %927 = vmatpush.msra.mxu0 0.0
    %928 = vmatpush.msra.mxu0 0.0
    %929 = vmatpush.msra.mxu0 0.0
    %930 = vmatpush.msra.mxu0 0.0
    %931 = vmatpush.msra.mxu0 0.0
    %932 = vmatpush.msra.mxu0 0.0
    %933 = vmatpush.msra.mxu0 %v610
    %934 = vmatpush.msra.mxu0 %v609
    %935 = vmatpush.msra.mxu0 %v608
    %936 = vmatpush.msra.mxu0 %v607
    %v937 = vand.u32 %v261, 4294901760
    %938 = vmatmul.f32.gmra.mxu0 %v937
    %v939 = vpop.f32.mrf.mxu0
    %v940 = vadd.f32 %v919, %v939
    %941 = vdwg.mxu0
    %s942 = scalar_lea.vmem %s9, 1
    %v943 = vld [vmem:[%s942] sm:$0x1]
    %v945 = vperm.slane %v943, 0
    %v947 = vadd.f32 %v940, %v945
    %s948 = scalar_lea.vmem %s7, 16
    %v949 = vld [vmem:[%s948] sm:$0xf]
    %v950 = vld [vmem:[%s948 + $0x4] sm:$0xf]
    %v951 = vld [vmem:[%s948 + $0x8] sm:$0xf]
    %v952 = vld [vmem:[%s948 + $0xc] sm:$0xf]
    %v953 = vunpack.c.l.bf16 %v949
    %v954 = vunpack.c.l.bf16 %v950
    %v955 = vunpack.c.l.bf16 %v951
    %v956 = vunpack.c.l.bf16 %v952
    %957 = vmatpush.msra.mxu0 0.0
    %958 = vmatpush.msra.mxu0 0.0
    %959 = vmatpush.msra.mxu0 0.0
    %960 = vmatpush.msra.mxu0 0.0
    %961 = vmatpush.msra.mxu0 0.0
    %962 = vmatpush.msra.mxu0 0.0
    %963 = vmatpush.msra.mxu0 0.0
    %964 = vmatpush.msra.mxu0 0.0
    %965 = vmatpush.msra.mxu0 0.0
    %966 = vmatpush.msra.mxu0 0.0
    %967 = vmatpush.msra.mxu0 0.0
    %968 = vmatpush.msra.mxu0 0.0
    %969 = vmatpush.msra.mxu0 %v956
    %970 = vmatpush.msra.mxu0 %v955
    %971 = vmatpush.msra.mxu0 %v954
    %972 = vmatpush.msra.mxu0 %v953
    %v973 = vand.u32 %v438, 4294901760
    %v974 = vsub.f32 %v438, %v973
    %v975 = vand.u32 %v974, 4294901760
    %v976 = vsub.f32 %v974, %v975
    %v977 = vand.u32 %v976, 4294901760
    %978 = vmatmul.f32.gmra.mxu0 %v977
    %v979 = vpop.f32.mrf.mxu0
    %v980 = vadd.f32 0.0, %v979
    %981 = vdwg.mxu0
    %982 = vmatpush.msra.mxu0 0.0
    %983 = vmatpush.msra.mxu0 0.0
    %984 = vmatpush.msra.mxu0 0.0
    %985 = vmatpush.msra.mxu0 0.0
    %986 = vmatpush.msra.mxu0 0.0
    %987 = vmatpush.msra.mxu0 0.0
    %988 = vmatpush.msra.mxu0 0.0
    %989 = vmatpush.msra.mxu0 0.0
    %990 = vmatpush.msra.mxu0 0.0
    %991 = vmatpush.msra.mxu0 0.0
    %992 = vmatpush.msra.mxu0 0.0
    %993 = vmatpush.msra.mxu0 0.0
    %v994 = vsub.f32 %v956, %v956
    %v995 = vand.u32 %v994, 4294901760
    %v996 = vsub.f32 %v994, %v995
    %v997 = vand.u32 %v996, 4294901760
    %998 = vmatpush.msra.mxu0 %v997
    %v999 = vsub.f32 %v955, %v955
    %v1000 = vand.u32 %v999, 4294901760
    %v1001 = vsub.f32 %v999, %v1000
    %v1002 = vand.u32 %v1001, 4294901760
    %1003 = vmatpush.msra.mxu0 %v1002
    %v1004 = vsub.f32 %v954, %v954
    %v1005 = vand.u32 %v1004, 4294901760
    %v1006 = vsub.f32 %v1004, %v1005
    %v1007 = vand.u32 %v1006, 4294901760
    %1008 = vmatpush.msra.mxu0 %v1007
    %v1009 = vsub.f32 %v953, %v953
    %v1010 = vand.u32 %v1009, 4294901760
    %v1011 = vsub.f32 %v1009, %v1010
    %v1012 = vand.u32 %v1011, 4294901760
    %1013 = vmatpush.msra.mxu0 %v1012
    %v1014 = vand.u32 %v438, 4294901760
    %1015 = vmatmul.f32.gmra.mxu0 %v1014
    %v1016 = vpop.f32.mrf.mxu0
    %v1017 = vadd.f32 %v980, %v1016
    %1018 = vdwg.mxu0
    %1019 = vmatpush.msra.mxu0 0.0
    %1020 = vmatpush.msra.mxu0 0.0
    %1021 = vmatpush.msra.mxu0 0.0
    %1022 = vmatpush.msra.mxu0 0.0
    %1023 = vmatpush.msra.mxu0 0.0
    %1024 = vmatpush.msra.mxu0 0.0
    %1025 = vmatpush.msra.mxu0 0.0
    %1026 = vmatpush.msra.mxu0 0.0
    %1027 = vmatpush.msra.mxu0 0.0
    %1028 = vmatpush.msra.mxu0 0.0
    %1029 = vmatpush.msra.mxu0 0.0
    %1030 = vmatpush.msra.mxu0 0.0
    %v1031 = vsub.f32 %v956, %v956
    %1032 = vmatpush.msra.mxu0 %v1031
    %v1033 = vsub.f32 %v955, %v955
    %1034 = vmatpush.msra.mxu0 %v1033
    %v1035 = vsub.f32 %v954, %v954
    %1036 = vmatpush.msra.mxu0 %v1035
    %v1037 = vsub.f32 %v953, %v953
    %1038 = vmatpush.msra.mxu0 %v1037
    %v1039 = vand.u32 %v438, 4294901760
    %v1040 = vsub.f32 %v438, %v1039
    %1041 = vmatmul.f32.gmra.mxu0 %v1040
    %v1042 = vpop.f32.mrf.mxu0
    %v1043 = vadd.f32 %v1017, %v1042
    %1044 = vdwg.mxu0
    %1045 = vmatpush.msra.mxu0 0.0
    %1046 = vmatpush.msra.mxu0 0.0
    %1047 = vmatpush.msra.mxu0 0.0
    %1048 = vmatpush.msra.mxu0 0.0
    %1049 = vmatpush.msra.mxu0 0.0
    %1050 = vmatpush.msra.mxu0 0.0
    %1051 = vmatpush.msra.mxu0 0.0
    %1052 = vmatpush.msra.mxu0 0.0
    %1053 = vmatpush.msra.mxu0 0.0
    %1054 = vmatpush.msra.mxu0 0.0
    %1055 = vmatpush.msra.mxu0 0.0
    %1056 = vmatpush.msra.mxu0 0.0
    %1057 = vmatpush.msra.mxu0 %v956
    %1058 = vmatpush.msra.mxu0 %v955
    %1059 = vmatpush.msra.mxu0 %v954
    %1060 = vmatpush.msra.mxu0 %v953
    %v1061 = vand.u32 %v438, 4294901760
    %v1062 = vsub.f32 %v438, %v1061
    %v1063 = vand.u32 %v1062, 4294901760
    %1064 = vmatmul.f32.gmra.mxu0 %v1063
    %v1065 = vpop.f32.mrf.mxu0
    %v1066 = vadd.f32 %v1043, %v1065
    %1067 = vdwg.mxu0
    %1068 = vmatpush.msra.mxu0 0.0
    %1069 = vmatpush.msra.mxu0 0.0
    %1070 = vmatpush.msra.mxu0 0.0
    %1071 = vmatpush.msra.mxu0 0.0
    %1072 = vmatpush.msra.mxu0 0.0
    %1073 = vmatpush.msra.mxu0 0.0
    %1074 = vmatpush.msra.mxu0 0.0
    %1075 = vmatpush.msra.mxu0 0.0
    %1076 = vmatpush.msra.mxu0 0.0
    %1077 = vmatpush.msra.mxu0 0.0
    %1078 = vmatpush.msra.mxu0 0.0
    %1079 = vmatpush.msra.mxu0 0.0
    %v1080 = vsub.f32 %v956, %v956
    %v1081 = vand.u32 %v1080, 4294901760
    %1082 = vmatpush.msra.mxu0 %v1081
    %v1083 = vsub.f32 %v955, %v955
    %v1084 = vand.u32 %v1083, 4294901760
    %1085 = vmatpush.msra.mxu0 %v1084
    %v1086 = vsub.f32 %v954, %v954
    %v1087 = vand.u32 %v1086, 4294901760
    %1088 = vmatpush.msra.mxu0 %v1087
    %v1089 = vsub.f32 %v953, %v953
    %v1090 = vand.u32 %v1089, 4294901760
    %1091 = vmatpush.msra.mxu0 %v1090
    %v1092 = vand.u32 %v438, 4294901760
    %1093 = vmatmul.f32.gmra.mxu0 %v1092
    %v1094 = vpop.f32.mrf.mxu0
    %v1095 = vadd.f32 %v1066, %v1094
    %1096 = vdwg.mxu0
    %1097 = vmatpush.msra.mxu0 0.0
    %1098 = vmatpush.msra.mxu0 0.0
    %1099 = vmatpush.msra.mxu0 0.0
    %1100 = vmatpush.msra.mxu0 0.0
    %1101 = vmatpush.msra.mxu0 0.0
    %1102 = vmatpush.msra.mxu0 0.0
    %1103 = vmatpush.msra.mxu0 0.0
    %1104 = vmatpush.msra.mxu0 0.0
    %1105 = vmatpush.msra.mxu0 0.0
    %1106 = vmatpush.msra.mxu0 0.0
    %1107 = vmatpush.msra.mxu0 0.0
    %1108 = vmatpush.msra.mxu0 0.0
    %1109 = vmatpush.msra.mxu0 %v956
    %1110 = vmatpush.msra.mxu0 %v955
    %1111 = vmatpush.msra.mxu0 %v954
    %1112 = vmatpush.msra.mxu0 %v953
    %v1113 = vand.u32 %v438, 4294901760
    %1114 = vmatmul.f32.gmra.mxu0 %v1113
    %v1115 = vpop.f32.mrf.mxu0
    %v1116 = vadd.f32 %v1095, %v1115
    %1117 = vdwg.mxu0
    %v1118 = vadd.f32 %v947, %v1116
    %s1119 = scalar_lea.vmem %s6, 32
    %v1120 = vld [vmem:[%s1119] sm:$0xf]
    %v1121 = vld [vmem:[%s1119 + $0x4] sm:$0xf]
    %v1122 = vld [vmem:[%s1119 + $0x8] sm:$0xf]
    %v1123 = vld [vmem:[%s1119 + $0xc] sm:$0xf]
    %v1124 = vunpack.c.l.bf16 %v1120
    %v1125 = vunpack.c.l.bf16 %v1121
    %v1126 = vunpack.c.l.bf16 %v1122
    %v1127 = vunpack.c.l.bf16 %v1123
    %s1128 = scalar_lea.vmem %s8, 32
    %v1129 = vld [vmem:[%s1128] sm:$0xf]
    %v1130 = vld [vmem:[%s1128 + $0x4] sm:$0xf]
    %v1131 = vld [vmem:[%s1128 + $0x8] sm:$0xf]
    %v1132 = vld [vmem:[%s1128 + $0xc] sm:$0xf]
    %v1133 = vunpack.c.l.bf16 %v1129
    %v1134 = vunpack.c.l.bf16 %v1130
    %v1135 = vunpack.c.l.bf16 %v1131
    %v1136 = vunpack.c.l.bf16 %v1132
    %1137 = vmatpush.msra.mxu0 0.0
    %1138 = vmatpush.msra.mxu0 0.0
    %1139 = vmatpush.msra.mxu0 0.0
    %1140 = vmatpush.msra.mxu0 0.0
    %1141 = vmatpush.msra.mxu0 0.0
    %1142 = vmatpush.msra.mxu0 0.0
    %1143 = vmatpush.msra.mxu0 0.0
    %1144 = vmatpush.msra.mxu0 0.0
    %1145 = vmatpush.msra.mxu0 0.0
    %1146 = vmatpush.msra.mxu0 0.0
    %1147 = vmatpush.msra.mxu0 0.0
    %1148 = vmatpush.msra.mxu0 0.0
    %1149 = vmatpush.msra.mxu0 %v1136
    %1150 = vmatpush.msra.mxu0 %v1135
    %1151 = vmatpush.msra.mxu0 %v1134
    %1152 = vmatpush.msra.mxu0 %v1133
    %v1153 = vand.u32 %v97, 4294901760
    %v1154 = vsub.f32 %v97, %v1153
    %v1155 = vand.u32 %v1154, 4294901760
    %v1156 = vsub.f32 %v1154, %v1155
    %v1157 = vand.u32 %v1156, 4294901760
    %1158 = vmatmul.f32.gmra.mxu0 %v1157
    %v1159 = vpop.f32.mrf.mxu0
    %v1160 = vadd.f32 0.0, %v1159
    %1161 = vdwg.mxu0
    %1162 = vmatpush.msra.mxu0 0.0
    %1163 = vmatpush.msra.mxu0 0.0
    %1164 = vmatpush.msra.mxu0 0.0
    %1165 = vmatpush.msra.mxu0 0.0
    %1166 = vmatpush.msra.mxu0 0.0
    %1167 = vmatpush.msra.mxu0 0.0
    %1168 = vmatpush.msra.mxu0 0.0
    %1169 = vmatpush.msra.mxu0 0.0
    %1170 = vmatpush.msra.mxu0 0.0
    %1171 = vmatpush.msra.mxu0 0.0
    %1172 = vmatpush.msra.mxu0 0.0
    %1173 = vmatpush.msra.mxu0 0.0
    %v1174 = vsub.f32 %v1136, %v1136
    %v1175 = vand.u32 %v1174, 4294901760
    %v1176 = vsub.f32 %v1174, %v1175
    %v1177 = vand.u32 %v1176, 4294901760
    %1178 = vmatpush.msra.mxu0 %v1177
    %v1179 = vsub.f32 %v1135, %v1135
    %v1180 = vand.u32 %v1179, 4294901760
    %v1181 = vsub.f32 %v1179, %v1180
    %v1182 = vand.u32 %v1181, 4294901760
    %1183 = vmatpush.msra.mxu0 %v1182
    %v1184 = vsub.f32 %v1134, %v1134
    %v1185 = vand.u32 %v1184, 4294901760
    %v1186 = vsub.f32 %v1184, %v1185
    %v1187 = vand.u32 %v1186, 4294901760
    %1188 = vmatpush.msra.mxu0 %v1187
    %v1189 = vsub.f32 %v1133, %v1133
    %v1190 = vand.u32 %v1189, 4294901760
    %v1191 = vsub.f32 %v1189, %v1190
    %v1192 = vand.u32 %v1191, 4294901760
    %1193 = vmatpush.msra.mxu0 %v1192
    %v1194 = vand.u32 %v97, 4294901760
    %1195 = vmatmul.f32.gmra.mxu0 %v1194
    %v1196 = vpop.f32.mrf.mxu0
    %v1197 = vadd.f32 %v1160, %v1196
    %1198 = vdwg.mxu0
    %1199 = vmatpush.msra.mxu0 0.0
    %1200 = vmatpush.msra.mxu0 0.0
    %1201 = vmatpush.msra.mxu0 0.0
    %1202 = vmatpush.msra.mxu0 0.0
    %1203 = vmatpush.msra.mxu0 0.0
    %1204 = vmatpush.msra.mxu0 0.0
    %1205 = vmatpush.msra.mxu0 0.0
    %1206 = vmatpush.msra.mxu0 0.0
    %1207 = vmatpush.msra.mxu0 0.0
    %1208 = vmatpush.msra.mxu0 0.0
    %1209 = vmatpush.msra.mxu0 0.0
    %1210 = vmatpush.msra.mxu0 0.0
    %v1211 = vsub.f32 %v1136, %v1136
    %1212 = vmatpush.msra.mxu0 %v1211
    %v1213 = vsub.f32 %v1135, %v1135
    %1214 = vmatpush.msra.mxu0 %v1213
    %v1215 = vsub.f32 %v1134, %v1134
    %1216 = vmatpush.msra.mxu0 %v1215
    %v1217 = vsub.f32 %v1133, %v1133
    %1218 = vmatpush.msra.mxu0 %v1217
    %v1219 = vand.u32 %v97, 4294901760
    %v1220 = vsub.f32 %v97, %v1219
    %1221 = vmatmul.f32.gmra.mxu0 %v1220
    %v1222 = vpop.f32.mrf.mxu0
    %v1223 = vadd.f32 %v1197, %v1222
    %1224 = vdwg.mxu0
    %1225 = vmatpush.msra.mxu0 0.0
    %1226 = vmatpush.msra.mxu0 0.0
    %1227 = vmatpush.msra.mxu0 0.0
    %1228 = vmatpush.msra.mxu0 0.0
    %1229 = vmatpush.msra.mxu0 0.0
    %1230 = vmatpush.msra.mxu0 0.0
    %1231 = vmatpush.msra.mxu0 0.0
    %1232 = vmatpush.msra.mxu0 0.0
    %1233 = vmatpush.msra.mxu0 0.0
    %1234 = vmatpush.msra.mxu0 0.0
    %1235 = vmatpush.msra.mxu0 0.0
    %1236 = vmatpush.msra.mxu0 0.0
    %1237 = vmatpush.msra.mxu0 %v1136
    %1238 = vmatpush.msra.mxu0 %v1135
    %1239 = vmatpush.msra.mxu0 %v1134
    %1240 = vmatpush.msra.mxu0 %v1133
    %v1241 = vand.u32 %v97, 4294901760
    %v1242 = vsub.f32 %v97, %v1241
    %v1243 = vand.u32 %v1242, 4294901760
    %1244 = vmatmul.f32.gmra.mxu0 %v1243
    %v1245 = vpop.f32.mrf.mxu0
    %v1246 = vadd.f32 %v1223, %v1245
    %1247 = vdwg.mxu0
    %1248 = vmatpush.msra.mxu0 0.0
    %1249 = vmatpush.msra.mxu0 0.0
    %1250 = vmatpush.msra.mxu0 0.0
    %1251 = vmatpush.msra.mxu0 0.0
    %1252 = vmatpush.msra.mxu0 0.0
    %1253 = vmatpush.msra.mxu0 0.0
    %1254 = vmatpush.msra.mxu0 0.0
    %1255 = vmatpush.msra.mxu0 0.0
    %1256 = vmatpush.msra.mxu0 0.0
    %1257 = vmatpush.msra.mxu0 0.0
    %1258 = vmatpush.msra.mxu0 0.0
    %1259 = vmatpush.msra.mxu0 0.0
    %v1260 = vsub.f32 %v1136, %v1136
    %v1261 = vand.u32 %v1260, 4294901760
    %1262 = vmatpush.msra.mxu0 %v1261
    %v1263 = vsub.f32 %v1135, %v1135
    %v1264 = vand.u32 %v1263, 4294901760
    %1265 = vmatpush.msra.mxu0 %v1264
    %v1266 = vsub.f32 %v1134, %v1134
    %v1267 = vand.u32 %v1266, 4294901760
    %1268 = vmatpush.msra.mxu0 %v1267
    %v1269 = vsub.f32 %v1133, %v1133
    %v1270 = vand.u32 %v1269, 4294901760
    %1271 = vmatpush.msra.mxu0 %v1270
    %v1272 = vand.u32 %v97, 4294901760
    %1273 = vmatmul.f32.gmra.mxu0 %v1272
    %v1274 = vpop.f32.mrf.mxu0
    %v1275 = vadd.f32 %v1246, %v1274
    %1276 = vdwg.mxu0
    %1277 = vmatpush.msra.mxu0 0.0
    %1278 = vmatpush.msra.mxu0 0.0
    %1279 = vmatpush.msra.mxu0 0.0
    %1280 = vmatpush.msra.mxu0 0.0
    %1281 = vmatpush.msra.mxu0 0.0
    %1282 = vmatpush.msra.mxu0 0.0
    %1283 = vmatpush.msra.mxu0 0.0
    %1284 = vmatpush.msra.mxu0 0.0
    %1285 = vmatpush.msra.mxu0 0.0
    %1286 = vmatpush.msra.mxu0 0.0
    %1287 = vmatpush.msra.mxu0 0.0
    %1288 = vmatpush.msra.mxu0 0.0
    %1289 = vmatpush.msra.mxu0 %v1136
    %1290 = vmatpush.msra.mxu0 %v1135
    %1291 = vmatpush.msra.mxu0 %v1134
    %1292 = vmatpush.msra.mxu0 %v1133
    %v1293 = vand.u32 %v97, 4294901760
    %1294 = vmatmul.f32.gmra.mxu0 %v1293
    %v1295 = vpop.f32.mrf.mxu0
    %v1296 = vadd.f32 %v1275, %v1295
    %1297 = vdwg.mxu0
    %1298 = vmatpush.msra.mxu0 0.0
    %1299 = vmatpush.msra.mxu0 0.0
    %1300 = vmatpush.msra.mxu0 0.0
    %1301 = vmatpush.msra.mxu0 0.0
    %1302 = vmatpush.msra.mxu0 0.0
    %1303 = vmatpush.msra.mxu0 0.0
    %1304 = vmatpush.msra.mxu0 0.0
    %1305 = vmatpush.msra.mxu0 0.0
    %1306 = vmatpush.msra.mxu0 0.0
    %1307 = vmatpush.msra.mxu0 0.0
    %1308 = vmatpush.msra.mxu0 0.0
    %1309 = vmatpush.msra.mxu0 0.0
    %1310 = vmatpush.msra.mxu0 %v1127
    %1311 = vmatpush.msra.mxu0 %v1126
    %1312 = vmatpush.msra.mxu0 %v1125
    %1313 = vmatpush.msra.mxu0 %v1124
    %v1314 = vand.u32 %v261, 4294901760
    %v1315 = vsub.f32 %v261, %v1314
    %v1316 = vand.u32 %v1315, 4294901760
    %v1317 = vsub.f32 %v1315, %v1316
    %v1318 = vand.u32 %v1317, 4294901760
    %1319 = vmatmul.f32.gmra.mxu0 %v1318
    %v1320 = vpop.f32.mrf.mxu0
    %v1321 = vadd.f32 %v1296, %v1320
    %1322 = vdwg.mxu0
    %1323 = vmatpush.msra.mxu0 0.0
    %1324 = vmatpush.msra.mxu0 0.0
    %1325 = vmatpush.msra.mxu0 0.0
    %1326 = vmatpush.msra.mxu0 0.0
    %1327 = vmatpush.msra.mxu0 0.0
    %1328 = vmatpush.msra.mxu0 0.0
    %1329 = vmatpush.msra.mxu0 0.0
    %1330 = vmatpush.msra.mxu0 0.0
    %1331 = vmatpush.msra.mxu0 0.0
    %1332 = vmatpush.msra.mxu0 0.0
    %1333 = vmatpush.msra.mxu0 0.0
    %1334 = vmatpush.msra.mxu0 0.0
    %v1335 = vsub.f32 %v1127, %v1127
    %v1336 = vand.u32 %v1335, 4294901760
    %v1337 = vsub.f32 %v1335, %v1336
    %v1338 = vand.u32 %v1337, 4294901760
    %1339 = vmatpush.msra.mxu0 %v1338
    %v1340 = vsub.f32 %v1126, %v1126
    %v1341 = vand.u32 %v1340, 4294901760
    %v1342 = vsub.f32 %v1340, %v1341
    %v1343 = vand.u32 %v1342, 4294901760
    %1344 = vmatpush.msra.mxu0 %v1343
    %v1345 = vsub.f32 %v1125, %v1125
    %v1346 = vand.u32 %v1345, 4294901760
    %v1347 = vsub.f32 %v1345, %v1346
    %v1348 = vand.u32 %v1347, 4294901760
    %1349 = vmatpush.msra.mxu0 %v1348
    %v1350 = vsub.f32 %v1124, %v1124
    %v1351 = vand.u32 %v1350, 4294901760
    %v1352 = vsub.f32 %v1350, %v1351
    %v1353 = vand.u32 %v1352, 4294901760
    %1354 = vmatpush.msra.mxu0 %v1353
    %v1355 = vand.u32 %v261, 4294901760
    %1356 = vmatmul.f32.gmra.mxu0 %v1355
    %v1357 = vpop.f32.mrf.mxu0
    %v1358 = vadd.f32 %v1321, %v1357
    %1359 = vdwg.mxu0
    %1360 = vmatpush.msra.mxu0 0.0
    %1361 = vmatpush.msra.mxu0 0.0
    %1362 = vmatpush.msra.mxu0 0.0
    %1363 = vmatpush.msra.mxu0 0.0
    %1364 = vmatpush.msra.mxu0 0.0
    %1365 = vmatpush.msra.mxu0 0.0
    %1366 = vmatpush.msra.mxu0 0.0
    %1367 = vmatpush.msra.mxu0 0.0
    %1368 = vmatpush.msra.mxu0 0.0
    %1369 = vmatpush.msra.mxu0 0.0
    %1370 = vmatpush.msra.mxu0 0.0
    %1371 = vmatpush.msra.mxu0 0.0
    %v1372 = vsub.f32 %v1127, %v1127
    %1373 = vmatpush.msra.mxu0 %v1372
    %v1374 = vsub.f32 %v1126, %v1126
    %1375 = vmatpush.msra.mxu0 %v1374
    %v1376 = vsub.f32 %v1125, %v1125
    %1377 = vmatpush.msra.mxu0 %v1376
    %v1378 = vsub.f32 %v1124, %v1124
    %1379 = vmatpush.msra.mxu0 %v1378
    %v1380 = vand.u32 %v261, 4294901760
    %v1381 = vsub.f32 %v261, %v1380
    %1382 = vmatmul.f32.gmra.mxu0 %v1381
    %v1383 = vpop.f32.mrf.mxu0
    %v1384 = vadd.f32 %v1358, %v1383
    %1385 = vdwg.mxu0
    %1386 = vmatpush.msra.mxu0 0.0
    %1387 = vmatpush.msra.mxu0 0.0
    %1388 = vmatpush.msra.mxu0 0.0
    %1389 = vmatpush.msra.mxu0 0.0
    %1390 = vmatpush.msra.mxu0 0.0
    %1391 = vmatpush.msra.mxu0 0.0
    %1392 = vmatpush.msra.mxu0 0.0
    %1393 = vmatpush.msra.mxu0 0.0
    %1394 = vmatpush.msra.mxu0 0.0
    %1395 = vmatpush.msra.mxu0 0.0
    %1396 = vmatpush.msra.mxu0 0.0
    %1397 = vmatpush.msra.mxu0 0.0
    %1398 = vmatpush.msra.mxu0 %v1127
    %1399 = vmatpush.msra.mxu0 %v1126
    %1400 = vmatpush.msra.mxu0 %v1125
    %1401 = vmatpush.msra.mxu0 %v1124
    %v1402 = vand.u32 %v261, 4294901760
    %v1403 = vsub.f32 %v261, %v1402
    %v1404 = vand.u32 %v1403, 4294901760
    %1405 = vmatmul.f32.gmra.mxu0 %v1404
    %v1406 = vpop.f32.mrf.mxu0
    %v1407 = vadd.f32 %v1384, %v1406
    %1408 = vdwg.mxu0
    %1409 = vmatpush.msra.mxu0 0.0
    %1410 = vmatpush.msra.mxu0 0.0
    %1411 = vmatpush.msra.mxu0 0.0
    %1412 = vmatpush.msra.mxu0 0.0
    %1413 = vmatpush.msra.mxu0 0.0
    %1414 = vmatpush.msra.mxu0 0.0
    %1415 = vmatpush.msra.mxu0 0.0
    %1416 = vmatpush.msra.mxu0 0.0
    %1417 = vmatpush.msra.mxu0 0.0
    %1418 = vmatpush.msra.mxu0 0.0
    %1419 = vmatpush.msra.mxu0 0.0
    %1420 = vmatpush.msra.mxu0 0.0
    %v1421 = vsub.f32 %v1127, %v1127
    %v1422 = vand.u32 %v1421, 4294901760
    %1423 = vmatpush.msra.mxu0 %v1422
    %v1424 = vsub.f32 %v1126, %v1126
    %v1425 = vand.u32 %v1424, 4294901760
    %1426 = vmatpush.msra.mxu0 %v1425
    %v1427 = vsub.f32 %v1125, %v1125
    %v1428 = vand.u32 %v1427, 4294901760
    %1429 = vmatpush.msra.mxu0 %v1428
    %v1430 = vsub.f32 %v1124, %v1124
    %v1431 = vand.u32 %v1430, 4294901760
    %1432 = vmatpush.msra.mxu0 %v1431
    %v1433 = vand.u32 %v261, 4294901760
    %1434 = vmatmul.f32.gmra.mxu0 %v1433
    %v1435 = vpop.f32.mrf.mxu0
    %v1436 = vadd.f32 %v1407, %v1435
    %1437 = vdwg.mxu0
    %1438 = vmatpush.msra.mxu0 0.0
    %1439 = vmatpush.msra.mxu0 0.0
    %1440 = vmatpush.msra.mxu0 0.0
    %1441 = vmatpush.msra.mxu0 0.0
    %1442 = vmatpush.msra.mxu0 0.0
    %1443 = vmatpush.msra.mxu0 0.0
    %1444 = vmatpush.msra.mxu0 0.0
    %1445 = vmatpush.msra.mxu0 0.0
    %1446 = vmatpush.msra.mxu0 0.0
    %1447 = vmatpush.msra.mxu0 0.0
    %1448 = vmatpush.msra.mxu0 0.0
    %1449 = vmatpush.msra.mxu0 0.0
    %1450 = vmatpush.msra.mxu0 %v1127
    %1451 = vmatpush.msra.mxu0 %v1126
    %1452 = vmatpush.msra.mxu0 %v1125
    %1453 = vmatpush.msra.mxu0 %v1124
    %v1454 = vand.u32 %v261, 4294901760
    %1455 = vmatmul.f32.gmra.mxu0 %v1454
    %v1456 = vpop.f32.mrf.mxu0
    %v1457 = vadd.f32 %v1436, %v1456
    %1458 = vdwg.mxu0
    %s1459 = scalar_lea.vmem %s9, 2
    %v1460 = vld [vmem:[%s1459] sm:$0x1]
    %v1462 = vperm.slane %v1460, 0
    %v1464 = vadd.f32 %v1457, %v1462
    %s1465 = scalar_lea.vmem %s7, 32
    %v1466 = vld [vmem:[%s1465] sm:$0xf]
    %v1467 = vld [vmem:[%s1465 + $0x4] sm:$0xf]
    %v1468 = vld [vmem:[%s1465 + $0x8] sm:$0xf]
    %v1469 = vld [vmem:[%s1465 + $0xc] sm:$0xf]
    %v1470 = vunpack.c.l.bf16 %v1466
    %v1471 = vunpack.c.l.bf16 %v1467
    %v1472 = vunpack.c.l.bf16 %v1468
    %v1473 = vunpack.c.l.bf16 %v1469
    %1474 = vmatpush.msra.mxu0 0.0
    %1475 = vmatpush.msra.mxu0 0.0
    %1476 = vmatpush.msra.mxu0 0.0
    %1477 = vmatpush.msra.mxu0 0.0
    %1478 = vmatpush.msra.mxu0 0.0
    %1479 = vmatpush.msra.mxu0 0.0
    %1480 = vmatpush.msra.mxu0 0.0
    %1481 = vmatpush.msra.mxu0 0.0
    %1482 = vmatpush.msra.mxu0 0.0
    %1483 = vmatpush.msra.mxu0 0.0
    %1484 = vmatpush.msra.mxu0 0.0
    %1485 = vmatpush.msra.mxu0 0.0
    %1486 = vmatpush.msra.mxu0 %v1473
    %1487 = vmatpush.msra.mxu0 %v1472
    %1488 = vmatpush.msra.mxu0 %v1471
    %1489 = vmatpush.msra.mxu0 %v1470
    %v1490 = vand.u32 %v438, 4294901760
    %v1491 = vsub.f32 %v438, %v1490
    %v1492 = vand.u32 %v1491, 4294901760
    %v1493 = vsub.f32 %v1491, %v1492
    %v1494 = vand.u32 %v1493, 4294901760
    %1495 = vmatmul.f32.gmra.mxu0 %v1494
    %v1496 = vpop.f32.mrf.mxu0
    %v1497 = vadd.f32 0.0, %v1496
    %1498 = vdwg.mxu0
    %1499 = vmatpush.msra.mxu0 0.0
    %1500 = vmatpush.msra.mxu0 0.0
    %1501 = vmatpush.msra.mxu0 0.0
    %1502 = vmatpush.msra.mxu0 0.0
    %1503 = vmatpush.msra.mxu0 0.0
    %1504 = vmatpush.msra.mxu0 0.0
    %1505 = vmatpush.msra.mxu0 0.0
    %1506 = vmatpush.msra.mxu0 0.0
    %1507 = vmatpush.msra.mxu0 0.0
    %1508 = vmatpush.msra.mxu0 0.0
    %1509 = vmatpush.msra.mxu0 0.0
    %1510 = vmatpush.msra.mxu0 0.0
    %v1511 = vsub.f32 %v1473, %v1473
    %v1512 = vand.u32 %v1511, 4294901760
    %v1513 = vsub.f32 %v1511, %v1512
    %v1514 = vand.u32 %v1513, 4294901760
    %1515 = vmatpush.msra.mxu0 %v1514
    %v1516 = vsub.f32 %v1472, %v1472
    %v1517 = vand.u32 %v1516, 4294901760
    %v1518 = vsub.f32 %v1516, %v1517
    %v1519 = vand.u32 %v1518, 4294901760
    %1520 = vmatpush.msra.mxu0 %v1519
    %v1521 = vsub.f32 %v1471, %v1471
    %v1522 = vand.u32 %v1521, 4294901760
    %v1523 = vsub.f32 %v1521, %v1522
    %v1524 = vand.u32 %v1523, 4294901760
    %1525 = vmatpush.msra.mxu0 %v1524
    %v1526 = vsub.f32 %v1470, %v1470
    %v1527 = vand.u32 %v1526, 4294901760
    %v1528 = vsub.f32 %v1526, %v1527
    %v1529 = vand.u32 %v1528, 4294901760
    %1530 = vmatpush.msra.mxu0 %v1529
    %v1531 = vand.u32 %v438, 4294901760
    %1532 = vmatmul.f32.gmra.mxu0 %v1531
    %v1533 = vpop.f32.mrf.mxu0
    %v1534 = vadd.f32 %v1497, %v1533
    %1535 = vdwg.mxu0
    %1536 = vmatpush.msra.mxu0 0.0
    %1537 = vmatpush.msra.mxu0 0.0
    %1538 = vmatpush.msra.mxu0 0.0
    %1539 = vmatpush.msra.mxu0 0.0
    %1540 = vmatpush.msra.mxu0 0.0
    %1541 = vmatpush.msra.mxu0 0.0
    %1542 = vmatpush.msra.mxu0 0.0
    %1543 = vmatpush.msra.mxu0 0.0
    %1544 = vmatpush.msra.mxu0 0.0
    %1545 = vmatpush.msra.mxu0 0.0
    %1546 = vmatpush.msra.mxu0 0.0
    %1547 = vmatpush.msra.mxu0 0.0
    %v1548 = vsub.f32 %v1473, %v1473
    %1549 = vmatpush.msra.mxu0 %v1548
    %v1550 = vsub.f32 %v1472, %v1472
    %1551 = vmatpush.msra.mxu0 %v1550
    %v1552 = vsub.f32 %v1471, %v1471
    %1553 = vmatpush.msra.mxu0 %v1552
    %v1554 = vsub.f32 %v1470, %v1470
    %1555 = vmatpush.msra.mxu0 %v1554
    %v1556 = vand.u32 %v438, 4294901760
    %v1557 = vsub.f32 %v438, %v1556
    %1558 = vmatmul.f32.gmra.mxu0 %v1557
    %v1559 = vpop.f32.mrf.mxu0
    %v1560 = vadd.f32 %v1534, %v1559
    %1561 = vdwg.mxu0
    %1562 = vmatpush.msra.mxu0 0.0
    %1563 = vmatpush.msra.mxu0 0.0
    %1564 = vmatpush.msra.mxu0 0.0
    %1565 = vmatpush.msra.mxu0 0.0
    %1566 = vmatpush.msra.mxu0 0.0
    %1567 = vmatpush.msra.mxu0 0.0
    %1568 = vmatpush.msra.mxu0 0.0
    %1569 = vmatpush.msra.mxu0 0.0
    %1570 = vmatpush.msra.mxu0 0.0
    %1571 = vmatpush.msra.mxu0 0.0
    %1572 = vmatpush.msra.mxu0 0.0
    %1573 = vmatpush.msra.mxu0 0.0
    %1574 = vmatpush.msra.mxu0 %v1473
    %1575 = vmatpush.msra.mxu0 %v1472
    %1576 = vmatpush.msra.mxu0 %v1471
    %1577 = vmatpush.msra.mxu0 %v1470
    %v1578 = vand.u32 %v438, 4294901760
    %v1579 = vsub.f32 %v438, %v1578
    %v1580 = vand.u32 %v1579, 4294901760
    %1581 = vmatmul.f32.gmra.mxu0 %v1580
    %v1582 = vpop.f32.mrf.mxu0
    %v1583 = vadd.f32 %v1560, %v1582
    %1584 = vdwg.mxu0
    %1585 = vmatpush.msra.mxu0 0.0
    %1586 = vmatpush.msra.mxu0 0.0
    %1587 = vmatpush.msra.mxu0 0.0
    %1588 = vmatpush.msra.mxu0 0.0
    %1589 = vmatpush.msra.mxu0 0.0
    %1590 = vmatpush.msra.mxu0 0.0
    %1591 = vmatpush.msra.mxu0 0.0
    %1592 = vmatpush.msra.mxu0 0.0
    %1593 = vmatpush.msra.mxu0 0.0
    %1594 = vmatpush.msra.mxu0 0.0
    %1595 = vmatpush.msra.mxu0 0.0
    %1596 = vmatpush.msra.mxu0 0.0
    %v1597 = vsub.f32 %v1473, %v1473
    %v1598 = vand.u32 %v1597, 4294901760
    %1599 = vmatpush.msra.mxu0 %v1598
    %v1600 = vsub.f32 %v1472, %v1472
    %v1601 = vand.u32 %v1600, 4294901760
    %1602 = vmatpush.msra.mxu0 %v1601
    %v1603 = vsub.f32 %v1471, %v1471
    %v1604 = vand.u32 %v1603, 4294901760
    %1605 = vmatpush.msra.mxu0 %v1604
    %v1606 = vsub.f32 %v1470, %v1470
    %v1607 = vand.u32 %v1606, 4294901760
    %1608 = vmatpush.msra.mxu0 %v1607
    %v1609 = vand.u32 %v438, 4294901760
    %1610 = vmatmul.f32.gmra.mxu0 %v1609
    %v1611 = vpop.f32.mrf.mxu0
    %v1612 = vadd.f32 %v1583, %v1611
    %1613 = vdwg.mxu0
    %1614 = vmatpush.msra.mxu0 0.0
    %1615 = vmatpush.msra.mxu0 0.0
    %1616 = vmatpush.msra.mxu0 0.0
    %1617 = vmatpush.msra.mxu0 0.0
    %1618 = vmatpush.msra.mxu0 0.0
    %1619 = vmatpush.msra.mxu0 0.0
    %1620 = vmatpush.msra.mxu0 0.0
    %1621 = vmatpush.msra.mxu0 0.0
    %1622 = vmatpush.msra.mxu0 0.0
    %1623 = vmatpush.msra.mxu0 0.0
    %1624 = vmatpush.msra.mxu0 0.0
    %1625 = vmatpush.msra.mxu0 0.0
    %1626 = vmatpush.msra.mxu0 %v1473
    %1627 = vmatpush.msra.mxu0 %v1472
    %1628 = vmatpush.msra.mxu0 %v1471
    %1629 = vmatpush.msra.mxu0 %v1470
    %v1630 = vand.u32 %v438, 4294901760
    %1631 = vmatmul.f32.gmra.mxu0 %v1630
    %v1632 = vpop.f32.mrf.mxu0
    %v1633 = vadd.f32 %v1612, %v1632
    %1634 = vdwg.mxu0
    %v1635 = vadd.f32 %v1464, %v1633
    %s1636 = scalar_lea.vmem %s6, 48
    %v1637 = vld [vmem:[%s1636] sm:$0xf]
    %v1638 = vld [vmem:[%s1636 + $0x4] sm:$0xf]
    %v1639 = vld [vmem:[%s1636 + $0x8] sm:$0xf]
    %v1640 = vld [vmem:[%s1636 + $0xc] sm:$0xf]
    %v1641 = vunpack.c.l.bf16 %v1637
    %v1642 = vunpack.c.l.bf16 %v1638
    %v1643 = vunpack.c.l.bf16 %v1639
    %v1644 = vunpack.c.l.bf16 %v1640
    %s1645 = scalar_lea.vmem %s8, 48
    %v1646 = vld [vmem:[%s1645] sm:$0xf]
    %v1647 = vld [vmem:[%s1645 + $0x4] sm:$0xf]
    %v1648 = vld [vmem:[%s1645 + $0x8] sm:$0xf]
    %v1649 = vld [vmem:[%s1645 + $0xc] sm:$0xf]
    %v1650 = vunpack.c.l.bf16 %v1646
    %v1651 = vunpack.c.l.bf16 %v1647
    %v1652 = vunpack.c.l.bf16 %v1648
    %v1653 = vunpack.c.l.bf16 %v1649
    %1654 = vmatpush.msra.mxu0 0.0
    %1655 = vmatpush.msra.mxu0 0.0
    %1656 = vmatpush.msra.mxu0 0.0
    %1657 = vmatpush.msra.mxu0 0.0
    %1658 = vmatpush.msra.mxu0 0.0
    %1659 = vmatpush.msra.mxu0 0.0
    %1660 = vmatpush.msra.mxu0 0.0
    %1661 = vmatpush.msra.mxu0 0.0
    %1662 = vmatpush.msra.mxu0 0.0
    %1663 = vmatpush.msra.mxu0 0.0
    %1664 = vmatpush.msra.mxu0 0.0
    %1665 = vmatpush.msra.mxu0 0.0
    %1666 = vmatpush.msra.mxu0 %v1653
    %1667 = vmatpush.msra.mxu0 %v1652
    %1668 = vmatpush.msra.mxu0 %v1651
    %1669 = vmatpush.msra.mxu0 %v1650
    %v1670 = vand.u32 %v97, 4294901760
    %v1671 = vsub.f32 %v97, %v1670
    %v1672 = vand.u32 %v1671, 4294901760
    %v1673 = vsub.f32 %v1671, %v1672
    %v1674 = vand.u32 %v1673, 4294901760
    %1675 = vmatmul.f32.gmra.mxu0 %v1674
    %v1676 = vpop.f32.mrf.mxu0
    %v1677 = vadd.f32 0.0, %v1676
    %1678 = vdwg.mxu0
    %1679 = vmatpush.msra.mxu0 0.0
    %1680 = vmatpush.msra.mxu0 0.0
    %1681 = vmatpush.msra.mxu0 0.0
    %1682 = vmatpush.msra.mxu0 0.0
    %1683 = vmatpush.msra.mxu0 0.0
    %1684 = vmatpush.msra.mxu0 0.0
    %1685 = vmatpush.msra.mxu0 0.0
    %1686 = vmatpush.msra.mxu0 0.0
    %1687 = vmatpush.msra.mxu0 0.0
    %1688 = vmatpush.msra.mxu0 0.0
    %1689 = vmatpush.msra.mxu0 0.0
    %1690 = vmatpush.msra.mxu0 0.0
    %v1691 = vsub.f32 %v1653, %v1653
    %v1692 = vand.u32 %v1691, 4294901760
    %v1693 = vsub.f32 %v1691, %v1692
    %v1694 = vand.u32 %v1693, 4294901760
    %1695 = vmatpush.msra.mxu0 %v1694
    %v1696 = vsub.f32 %v1652, %v1652
    %v1697 = vand.u32 %v1696, 4294901760
    %v1698 = vsub.f32 %v1696, %v1697
    %v1699 = vand.u32 %v1698, 4294901760
    %1700 = vmatpush.msra.mxu0 %v1699
    %v1701 = vsub.f32 %v1651, %v1651
    %v1702 = vand.u32 %v1701, 4294901760
    %v1703 = vsub.f32 %v1701, %v1702
    %v1704 = vand.u32 %v1703, 4294901760
    %1705 = vmatpush.msra.mxu0 %v1704
    %v1706 = vsub.f32 %v1650, %v1650
    %v1707 = vand.u32 %v1706, 4294901760
    %v1708 = vsub.f32 %v1706, %v1707
    %v1709 = vand.u32 %v1708, 4294901760
    %1710 = vmatpush.msra.mxu0 %v1709
    %v1711 = vand.u32 %v97, 4294901760
    %1712 = vmatmul.f32.gmra.mxu0 %v1711
    %v1713 = vpop.f32.mrf.mxu0
    %v1714 = vadd.f32 %v1677, %v1713
    %1715 = vdwg.mxu0
    %1716 = vmatpush.msra.mxu0 0.0
    %1717 = vmatpush.msra.mxu0 0.0
    %1718 = vmatpush.msra.mxu0 0.0
    %1719 = vmatpush.msra.mxu0 0.0
    %1720 = vmatpush.msra.mxu0 0.0
    %1721 = vmatpush.msra.mxu0 0.0
    %1722 = vmatpush.msra.mxu0 0.0
    %1723 = vmatpush.msra.mxu0 0.0
    %1724 = vmatpush.msra.mxu0 0.0
    %1725 = vmatpush.msra.mxu0 0.0
    %1726 = vmatpush.msra.mxu0 0.0
    %1727 = vmatpush.msra.mxu0 0.0
    %v1728 = vsub.f32 %v1653, %v1653
    %1729 = vmatpush.msra.mxu0 %v1728
    %v1730 = vsub.f32 %v1652, %v1652
    %1731 = vmatpush.msra.mxu0 %v1730
    %v1732 = vsub.f32 %v1651, %v1651
    %1733 = vmatpush.msra.mxu0 %v1732
    %v1734 = vsub.f32 %v1650, %v1650
    %1735 = vmatpush.msra.mxu0 %v1734
    %v1736 = vand.u32 %v97, 4294901760
    %v1737 = vsub.f32 %v97, %v1736
    %1738 = vmatmul.f32.gmra.mxu0 %v1737
    %v1739 = vpop.f32.mrf.mxu0
    %v1740 = vadd.f32 %v1714, %v1739
    %1741 = vdwg.mxu0
    %1742 = vmatpush.msra.mxu0 0.0
    %1743 = vmatpush.msra.mxu0 0.0
    %1744 = vmatpush.msra.mxu0 0.0
    %1745 = vmatpush.msra.mxu0 0.0
    %1746 = vmatpush.msra.mxu0 0.0
    %1747 = vmatpush.msra.mxu0 0.0
    %1748 = vmatpush.msra.mxu0 0.0
    %1749 = vmatpush.msra.mxu0 0.0
    %1750 = vmatpush.msra.mxu0 0.0
    %1751 = vmatpush.msra.mxu0 0.0
    %1752 = vmatpush.msra.mxu0 0.0
    %1753 = vmatpush.msra.mxu0 0.0
    %1754 = vmatpush.msra.mxu0 %v1653
    %1755 = vmatpush.msra.mxu0 %v1652
    %1756 = vmatpush.msra.mxu0 %v1651
    %1757 = vmatpush.msra.mxu0 %v1650
    %v1758 = vand.u32 %v97, 4294901760
    %v1759 = vsub.f32 %v97, %v1758
    %v1760 = vand.u32 %v1759, 4294901760
    %1761 = vmatmul.f32.gmra.mxu0 %v1760
    %v1762 = vpop.f32.mrf.mxu0
    %v1763 = vadd.f32 %v1740, %v1762
    %1764 = vdwg.mxu0
    %1765 = vmatpush.msra.mxu0 0.0
    %1766 = vmatpush.msra.mxu0 0.0
    %1767 = vmatpush.msra.mxu0 0.0
    %1768 = vmatpush.msra.mxu0 0.0
    %1769 = vmatpush.msra.mxu0 0.0
    %1770 = vmatpush.msra.mxu0 0.0
    %1771 = vmatpush.msra.mxu0 0.0
    %1772 = vmatpush.msra.mxu0 0.0
    %1773 = vmatpush.msra.mxu0 0.0
    %1774 = vmatpush.msra.mxu0 0.0
    %1775 = vmatpush.msra.mxu0 0.0
    %1776 = vmatpush.msra.mxu0 0.0
    %v1777 = vsub.f32 %v1653, %v1653
    %v1778 = vand.u32 %v1777, 4294901760
    %1779 = vmatpush.msra.mxu0 %v1778
    %v1780 = vsub.f32 %v1652, %v1652
    %v1781 = vand.u32 %v1780, 4294901760
    %1782 = vmatpush.msra.mxu0 %v1781
    %v1783 = vsub.f32 %v1651, %v1651
    %v1784 = vand.u32 %v1783, 4294901760
    %1785 = vmatpush.msra.mxu0 %v1784
    %v1786 = vsub.f32 %v1650, %v1650
    %v1787 = vand.u32 %v1786, 4294901760
    %1788 = vmatpush.msra.mxu0 %v1787
    %v1789 = vand.u32 %v97, 4294901760
    %1790 = vmatmul.f32.gmra.mxu0 %v1789
    %v1791 = vpop.f32.mrf.mxu0
    %v1792 = vadd.f32 %v1763, %v1791
    %1793 = vdwg.mxu0
    %1794 = vmatpush.msra.mxu0 0.0
    %1795 = vmatpush.msra.mxu0 0.0
    %1796 = vmatpush.msra.mxu0 0.0
    %1797 = vmatpush.msra.mxu0 0.0
    %1798 = vmatpush.msra.mxu0 0.0
    %1799 = vmatpush.msra.mxu0 0.0
    %1800 = vmatpush.msra.mxu0 0.0
    %1801 = vmatpush.msra.mxu0 0.0
    %1802 = vmatpush.msra.mxu0 0.0
    %1803 = vmatpush.msra.mxu0 0.0
    %1804 = vmatpush.msra.mxu0 0.0
    %1805 = vmatpush.msra.mxu0 0.0
    %1806 = vmatpush.msra.mxu0 %v1653
    %1807 = vmatpush.msra.mxu0 %v1652
    %1808 = vmatpush.msra.mxu0 %v1651
    %1809 = vmatpush.msra.mxu0 %v1650
    %v1810 = vand.u32 %v97, 4294901760
    %1811 = vmatmul.f32.gmra.mxu0 %v1810
    %v1812 = vpop.f32.mrf.mxu0
    %v1813 = vadd.f32 %v1792, %v1812
    %1814 = vdwg.mxu0
    %1815 = vmatpush.msra.mxu0 0.0
    %1816 = vmatpush.msra.mxu0 0.0
    %1817 = vmatpush.msra.mxu0 0.0
    %1818 = vmatpush.msra.mxu0 0.0
    %1819 = vmatpush.msra.mxu0 0.0
    %1820 = vmatpush.msra.mxu0 0.0
    %1821 = vmatpush.msra.mxu0 0.0
    %1822 = vmatpush.msra.mxu0 0.0
    %1823 = vmatpush.msra.mxu0 0.0
    %1824 = vmatpush.msra.mxu0 0.0
    %1825 = vmatpush.msra.mxu0 0.0
    %1826 = vmatpush.msra.mxu0 0.0
    %1827 = vmatpush.msra.mxu0 %v1644
    %1828 = vmatpush.msra.mxu0 %v1643
    %1829 = vmatpush.msra.mxu0 %v1642
    %1830 = vmatpush.msra.mxu0 %v1641
    %v1831 = vand.u32 %v261, 4294901760
    %v1832 = vsub.f32 %v261, %v1831
    %v1833 = vand.u32 %v1832, 4294901760
    %v1834 = vsub.f32 %v1832, %v1833
    %v1835 = vand.u32 %v1834, 4294901760
    %1836 = vmatmul.f32.gmra.mxu0 %v1835
    %v1837 = vpop.f32.mrf.mxu0
    %v1838 = vadd.f32 %v1813, %v1837
    %1839 = vdwg.mxu0
    %1840 = vmatpush.msra.mxu0 0.0
    %1841 = vmatpush.msra.mxu0 0.0
    %1842 = vmatpush.msra.mxu0 0.0
    %1843 = vmatpush.msra.mxu0 0.0
    %1844 = vmatpush.msra.mxu0 0.0
    %1845 = vmatpush.msra.mxu0 0.0
    %1846 = vmatpush.msra.mxu0 0.0
    %1847 = vmatpush.msra.mxu0 0.0
    %1848 = vmatpush.msra.mxu0 0.0
    %1849 = vmatpush.msra.mxu0 0.0
    %1850 = vmatpush.msra.mxu0 0.0
    %1851 = vmatpush.msra.mxu0 0.0
    %v1852 = vsub.f32 %v1644, %v1644
    %v1853 = vand.u32 %v1852, 4294901760
    %v1854 = vsub.f32 %v1852, %v1853
    %v1855 = vand.u32 %v1854, 4294901760
    %1856 = vmatpush.msra.mxu0 %v1855
    %v1857 = vsub.f32 %v1643, %v1643
    %v1858 = vand.u32 %v1857, 4294901760
    %v1859 = vsub.f32 %v1857, %v1858
    %v1860 = vand.u32 %v1859, 4294901760
    %1861 = vmatpush.msra.mxu0 %v1860
    %v1862 = vsub.f32 %v1642, %v1642
    %v1863 = vand.u32 %v1862, 4294901760
    %v1864 = vsub.f32 %v1862, %v1863
    %v1865 = vand.u32 %v1864, 4294901760
    %1866 = vmatpush.msra.mxu0 %v1865
    %v1867 = vsub.f32 %v1641, %v1641
    %v1868 = vand.u32 %v1867, 4294901760
    %v1869 = vsub.f32 %v1867, %v1868
    %v1870 = vand.u32 %v1869, 4294901760
    %1871 = vmatpush.msra.mxu0 %v1870
    %v1872 = vand.u32 %v261, 4294901760
    %1873 = vmatmul.f32.gmra.mxu0 %v1872
    %v1874 = vpop.f32.mrf.mxu0
    %v1875 = vadd.f32 %v1838, %v1874
    %1876 = vdwg.mxu0
    %1877 = vmatpush.msra.mxu0 0.0
    %1878 = vmatpush.msra.mxu0 0.0
    %1879 = vmatpush.msra.mxu0 0.0
    %1880 = vmatpush.msra.mxu0 0.0
    %1881 = vmatpush.msra.mxu0 0.0
    %1882 = vmatpush.msra.mxu0 0.0
    %1883 = vmatpush.msra.mxu0 0.0
    %1884 = vmatpush.msra.mxu0 0.0
    %1885 = vmatpush.msra.mxu0 0.0
    %1886 = vmatpush.msra.mxu0 0.0
    %1887 = vmatpush.msra.mxu0 0.0
    %1888 = vmatpush.msra.mxu0 0.0
    %v1889 = vsub.f32 %v1644, %v1644
    %1890 = vmatpush.msra.mxu0 %v1889
    %v1891 = vsub.f32 %v1643, %v1643
    %1892 = vmatpush.msra.mxu0 %v1891
    %v1893 = vsub.f32 %v1642, %v1642
    %1894 = vmatpush.msra.mxu0 %v1893
    %v1895 = vsub.f32 %v1641, %v1641
    %1896 = vmatpush.msra.mxu0 %v1895
    %v1897 = vand.u32 %v261, 4294901760
    %v1898 = vsub.f32 %v261, %v1897
    %1899 = vmatmul.f32.gmra.mxu0 %v1898
    %v1900 = vpop.f32.mrf.mxu0
    %v1901 = vadd.f32 %v1875, %v1900
    %1902 = vdwg.mxu0
    %1903 = vmatpush.msra.mxu0 0.0
    %1904 = vmatpush.msra.mxu0 0.0
    %1905 = vmatpush.msra.mxu0 0.0
    %1906 = vmatpush.msra.mxu0 0.0
    %1907 = vmatpush.msra.mxu0 0.0
    %1908 = vmatpush.msra.mxu0 0.0
    %1909 = vmatpush.msra.mxu0 0.0
    %1910 = vmatpush.msra.mxu0 0.0
    %1911 = vmatpush.msra.mxu0 0.0
    %1912 = vmatpush.msra.mxu0 0.0
    %1913 = vmatpush.msra.mxu0 0.0
    %1914 = vmatpush.msra.mxu0 0.0
    %1915 = vmatpush.msra.mxu0 %v1644
    %1916 = vmatpush.msra.mxu0 %v1643
    %1917 = vmatpush.msra.mxu0 %v1642
    %1918 = vmatpush.msra.mxu0 %v1641
    %v1919 = vand.u32 %v261, 4294901760
    %v1920 = vsub.f32 %v261, %v1919
    %v1921 = vand.u32 %v1920, 4294901760
    %1922 = vmatmul.f32.gmra.mxu0 %v1921
    %v1923 = vpop.f32.mrf.mxu0
    %v1924 = vadd.f32 %v1901, %v1923
    %1925 = vdwg.mxu0
    %1926 = vmatpush.msra.mxu0 0.0
    %1927 = vmatpush.msra.mxu0 0.0
    %1928 = vmatpush.msra.mxu0 0.0
    %1929 = vmatpush.msra.mxu0 0.0
    %1930 = vmatpush.msra.mxu0 0.0
    %1931 = vmatpush.msra.mxu0 0.0
    %1932 = vmatpush.msra.mxu0 0.0
    %1933 = vmatpush.msra.mxu0 0.0
    %1934 = vmatpush.msra.mxu0 0.0
    %1935 = vmatpush.msra.mxu0 0.0
    %1936 = vmatpush.msra.mxu0 0.0
    %1937 = vmatpush.msra.mxu0 0.0
    %v1938 = vsub.f32 %v1644, %v1644
    %v1939 = vand.u32 %v1938, 4294901760
    %1940 = vmatpush.msra.mxu0 %v1939
    %v1941 = vsub.f32 %v1643, %v1643
    %v1942 = vand.u32 %v1941, 4294901760
    %1943 = vmatpush.msra.mxu0 %v1942
    %v1944 = vsub.f32 %v1642, %v1642
    %v1945 = vand.u32 %v1944, 4294901760
    %1946 = vmatpush.msra.mxu0 %v1945
    %v1947 = vsub.f32 %v1641, %v1641
    %v1948 = vand.u32 %v1947, 4294901760
    %1949 = vmatpush.msra.mxu0 %v1948
    %v1950 = vand.u32 %v261, 4294901760
    %1951 = vmatmul.f32.gmra.mxu0 %v1950
    %v1952 = vpop.f32.mrf.mxu0
    %v1953 = vadd.f32 %v1924, %v1952
    %1954 = vdwg.mxu0
    %1955 = vmatpush.msra.mxu0 0.0
    %1956 = vmatpush.msra.mxu0 0.0
    %1957 = vmatpush.msra.mxu0 0.0
    %1958 = vmatpush.msra.mxu0 0.0
    %1959 = vmatpush.msra.mxu0 0.0
    %1960 = vmatpush.msra.mxu0 0.0
    %1961 = vmatpush.msra.mxu0 0.0
    %1962 = vmatpush.msra.mxu0 0.0
    %1963 = vmatpush.msra.mxu0 0.0
    %1964 = vmatpush.msra.mxu0 0.0
    %1965 = vmatpush.msra.mxu0 0.0
    %1966 = vmatpush.msra.mxu0 0.0
    %1967 = vmatpush.msra.mxu0 %v1644
    %1968 = vmatpush.msra.mxu0 %v1643
    %1969 = vmatpush.msra.mxu0 %v1642
    %1970 = vmatpush.msra.mxu0 %v1641
    %v1971 = vand.u32 %v261, 4294901760
    %1972 = vmatmul.f32.gmra.mxu0 %v1971
    %v1973 = vpop.f32.mrf.mxu0
    %v1974 = vadd.f32 %v1953, %v1973
    %1975 = vdwg.mxu0
    %s1976 = scalar_lea.vmem %s9, 3
    %v1977 = vld [vmem:[%s1976] sm:$0x1]
    %v1979 = vperm.slane %v1977, 0
    %v1981 = vadd.f32 %v1974, %v1979
    %s1982 = scalar_lea.vmem %s7, 48
    %v1983 = vld [vmem:[%s1982] sm:$0xf]
    %v1984 = vld [vmem:[%s1982 + $0x4] sm:$0xf]
    %v1985 = vld [vmem:[%s1982 + $0x8] sm:$0xf]
    %v1986 = vld [vmem:[%s1982 + $0xc] sm:$0xf]
    %v1987 = vunpack.c.l.bf16 %v1983
    %v1988 = vunpack.c.l.bf16 %v1984
    %v1989 = vunpack.c.l.bf16 %v1985
    %v1990 = vunpack.c.l.bf16 %v1986
    %1991 = vmatpush.msra.mxu0 0.0
    %1992 = vmatpush.msra.mxu0 0.0
    %1993 = vmatpush.msra.mxu0 0.0
    %1994 = vmatpush.msra.mxu0 0.0
    %1995 = vmatpush.msra.mxu0 0.0
    %1996 = vmatpush.msra.mxu0 0.0
    %1997 = vmatpush.msra.mxu0 0.0
    %1998 = vmatpush.msra.mxu0 0.0
    %1999 = vmatpush.msra.mxu0 0.0
    %2000 = vmatpush.msra.mxu0 0.0
    %2001 = vmatpush.msra.mxu0 0.0
    %2002 = vmatpush.msra.mxu0 0.0
    %2003 = vmatpush.msra.mxu0 %v1990
    %2004 = vmatpush.msra.mxu0 %v1989
    %2005 = vmatpush.msra.mxu0 %v1988
    %2006 = vmatpush.msra.mxu0 %v1987
    %v2007 = vand.u32 %v438, 4294901760
    %v2008 = vsub.f32 %v438, %v2007
    %v2009 = vand.u32 %v2008, 4294901760
    %v2010 = vsub.f32 %v2008, %v2009
    %v2011 = vand.u32 %v2010, 4294901760
    %2012 = vmatmul.f32.gmra.mxu0 %v2011
    %v2013 = vpop.f32.mrf.mxu0
    %v2014 = vadd.f32 0.0, %v2013
    %2015 = vdwg.mxu0
    %2016 = vmatpush.msra.mxu0 0.0
    %2017 = vmatpush.msra.mxu0 0.0
    %2018 = vmatpush.msra.mxu0 0.0
    %2019 = vmatpush.msra.mxu0 0.0
    %2020 = vmatpush.msra.mxu0 0.0
    %2021 = vmatpush.msra.mxu0 0.0
    %2022 = vmatpush.msra.mxu0 0.0
    %2023 = vmatpush.msra.mxu0 0.0
    %2024 = vmatpush.msra.mxu0 0.0
    %2025 = vmatpush.msra.mxu0 0.0
    %2026 = vmatpush.msra.mxu0 0.0
    %2027 = vmatpush.msra.mxu0 0.0
    %v2028 = vsub.f32 %v1990, %v1990
    %v2029 = vand.u32 %v2028, 4294901760
    %v2030 = vsub.f32 %v2028, %v2029
    %v2031 = vand.u32 %v2030, 4294901760
    %2032 = vmatpush.msra.mxu0 %v2031
    %v2033 = vsub.f32 %v1989, %v1989
    %v2034 = vand.u32 %v2033, 4294901760
    %v2035 = vsub.f32 %v2033, %v2034
    %v2036 = vand.u32 %v2035, 4294901760
    %2037 = vmatpush.msra.mxu0 %v2036
    %v2038 = vsub.f32 %v1988, %v1988
    %v2039 = vand.u32 %v2038, 4294901760
    %v2040 = vsub.f32 %v2038, %v2039
    %v2041 = vand.u32 %v2040, 4294901760
    %2042 = vmatpush.msra.mxu0 %v2041
    %v2043 = vsub.f32 %v1987, %v1987
    %v2044 = vand.u32 %v2043, 4294901760
    %v2045 = vsub.f32 %v2043, %v2044
    %v2046 = vand.u32 %v2045, 4294901760
    %2047 = vmatpush.msra.mxu0 %v2046
    %v2048 = vand.u32 %v438, 4294901760
    %2049 = vmatmul.f32.gmra.mxu0 %v2048
    %v2050 = vpop.f32.mrf.mxu0
    %v2051 = vadd.f32 %v2014, %v2050
    %2052 = vdwg.mxu0
    %2053 = vmatpush.msra.mxu0 0.0
    %2054 = vmatpush.msra.mxu0 0.0
    %2055 = vmatpush.msra.mxu0 0.0
    %2056 = vmatpush.msra.mxu0 0.0
    %2057 = vmatpush.msra.mxu0 0.0
    %2058 = vmatpush.msra.mxu0 0.0
    %2059 = vmatpush.msra.mxu0 0.0
    %2060 = vmatpush.msra.mxu0 0.0
    %2061 = vmatpush.msra.mxu0 0.0
    %2062 = vmatpush.msra.mxu0 0.0
    %2063 = vmatpush.msra.mxu0 0.0
    %2064 = vmatpush.msra.mxu0 0.0
    %v2065 = vsub.f32 %v1990, %v1990
    %2066 = vmatpush.msra.mxu0 %v2065
    %v2067 = vsub.f32 %v1989, %v1989
    %2068 = vmatpush.msra.mxu0 %v2067
    %v2069 = vsub.f32 %v1988, %v1988
    %2070 = vmatpush.msra.mxu0 %v2069
    %v2071 = vsub.f32 %v1987, %v1987
    %2072 = vmatpush.msra.mxu0 %v2071
    %v2073 = vand.u32 %v438, 4294901760
    %v2074 = vsub.f32 %v438, %v2073
    %2075 = vmatmul.f32.gmra.mxu0 %v2074
    %v2076 = vpop.f32.mrf.mxu0
    %v2077 = vadd.f32 %v2051, %v2076
    %2078 = vdwg.mxu0
    %2079 = vmatpush.msra.mxu0 0.0
    %2080 = vmatpush.msra.mxu0 0.0
    %2081 = vmatpush.msra.mxu0 0.0
    %2082 = vmatpush.msra.mxu0 0.0
    %2083 = vmatpush.msra.mxu0 0.0
    %2084 = vmatpush.msra.mxu0 0.0
    %2085 = vmatpush.msra.mxu0 0.0
    %2086 = vmatpush.msra.mxu0 0.0
    %2087 = vmatpush.msra.mxu0 0.0
    %2088 = vmatpush.msra.mxu0 0.0
    %2089 = vmatpush.msra.mxu0 0.0
    %2090 = vmatpush.msra.mxu0 0.0
    %2091 = vmatpush.msra.mxu0 %v1990
    %2092 = vmatpush.msra.mxu0 %v1989
    %2093 = vmatpush.msra.mxu0 %v1988
    %2094 = vmatpush.msra.mxu0 %v1987
    %v2095 = vand.u32 %v438, 4294901760
    %v2096 = vsub.f32 %v438, %v2095
    %v2097 = vand.u32 %v2096, 4294901760
    %2098 = vmatmul.f32.gmra.mxu0 %v2097
    %v2099 = vpop.f32.mrf.mxu0
    %v2100 = vadd.f32 %v2077, %v2099
    %2101 = vdwg.mxu0
    %2102 = vmatpush.msra.mxu0 0.0
    %2103 = vmatpush.msra.mxu0 0.0
    %2104 = vmatpush.msra.mxu0 0.0
    %2105 = vmatpush.msra.mxu0 0.0
    %2106 = vmatpush.msra.mxu0 0.0
    %2107 = vmatpush.msra.mxu0 0.0
    %2108 = vmatpush.msra.mxu0 0.0
    %2109 = vmatpush.msra.mxu0 0.0
    %2110 = vmatpush.msra.mxu0 0.0
    %2111 = vmatpush.msra.mxu0 0.0
    %2112 = vmatpush.msra.mxu0 0.0
    %2113 = vmatpush.msra.mxu0 0.0
    %v2114 = vsub.f32 %v1990, %v1990
    %v2115 = vand.u32 %v2114, 4294901760
    %2116 = vmatpush.msra.mxu0 %v2115
    %v2117 = vsub.f32 %v1989, %v1989
    %v2118 = vand.u32 %v2117, 4294901760
    %2119 = vmatpush.msra.mxu0 %v2118
    %v2120 = vsub.f32 %v1988, %v1988
    %v2121 = vand.u32 %v2120, 4294901760
    %2122 = vmatpush.msra.mxu0 %v2121
    %v2123 = vsub.f32 %v1987, %v1987
    %v2124 = vand.u32 %v2123, 4294901760
    %2125 = vmatpush.msra.mxu0 %v2124
    %v2126 = vand.u32 %v438, 4294901760
    %2127 = vmatmul.f32.gmra.mxu0 %v2126
    %v2128 = vpop.f32.mrf.mxu0
    %v2129 = vadd.f32 %v2100, %v2128
    %2130 = vdwg.mxu0
    %2131 = vmatpush.msra.mxu0 0.0
    %2132 = vmatpush.msra.mxu0 0.0
    %2133 = vmatpush.msra.mxu0 0.0
    %2134 = vmatpush.msra.mxu0 0.0
    %2135 = vmatpush.msra.mxu0 0.0
    %2136 = vmatpush.msra.mxu0 0.0
    %2137 = vmatpush.msra.mxu0 0.0
    %2138 = vmatpush.msra.mxu0 0.0
    %2139 = vmatpush.msra.mxu0 0.0
    %2140 = vmatpush.msra.mxu0 0.0
    %2141 = vmatpush.msra.mxu0 0.0
    %2142 = vmatpush.msra.mxu0 0.0
    %2143 = vmatpush.msra.mxu0 %v1990
    %2144 = vmatpush.msra.mxu0 %v1989
    %2145 = vmatpush.msra.mxu0 %v1988
    %2146 = vmatpush.msra.mxu0 %v1987
    %v2147 = vand.u32 %v438, 4294901760
    %2148 = vmatmul.f32.gmra.mxu0 %v2147
    %v2149 = vpop.f32.mrf.mxu0
    %v2150 = vadd.f32 %v2129, %v2149
    %2151 = vdwg.mxu0
    %v2152 = vadd.f32 %v1981, %v2150
    %v2153 = vxor.u32 %v601, 2147483648
    %v2154 = vmul.f32 %v2153, 1.442695
    %v2155 = vpow.pop %v2154
    %v2156 = vadd.f32 %v2155, 1.0
    %v2157 = vrcp.pop %v2156
    %v2158 = vmul.f32 %v2156, %v2157
    %v2159 = vsub.f32 1.0, %v2158
    %v2160 = vmul.f32 %v2157, %v2159
    %v2161 = vadd.f32 %v2157, %v2160
    %vm2162 = vweird.f32 %v2156
    %vm2163 = vweird.f32 %v2157
    %vm2164 = vmor %vm2162, %vm2163
    %v2165 = vsel %vm2164, %v2157, %v2161
    %v2166 = vand.u32 2147483647, %v2156
    %vm2167 = vcmp.eq.f32.partialorder %v2166, 8.507059e+37
    %v2168 = vand.u32 %v2156, 2147483648
    %v2169 = vor.u32 1.1754944e-38, %v2168
    %v2170 = vsel %vm2167, %v2169, %v2165
    %v2171 = vmul.f32 1.0, %v2170
    %v2172 = vxor.u32 %v1118, 2147483648
    %v2173 = vmul.f32 %v2172, 1.442695
    %v2174 = vpow.pop %v2173
    %v2175 = vadd.f32 %v2174, 1.0
    %v2176 = vrcp.pop %v2175
    %v2177 = vmul.f32 %v2175, %v2176
    %v2178 = vsub.f32 1.0, %v2177
    %v2179 = vmul.f32 %v2176, %v2178
    %v2180 = vadd.f32 %v2176, %v2179
    %vm2181 = vweird.f32 %v2175
    %vm2182 = vweird.f32 %v2176
    %vm2183 = vmor %vm2181, %vm2182
    %v2184 = vsel %vm2183, %v2176, %v2180
    %v2185 = vand.u32 2147483647, %v2175
    %vm2186 = vcmp.eq.f32.partialorder %v2185, 8.507059e+37
    %v2187 = vand.u32 %v2175, 2147483648
    %v2188 = vor.u32 1.1754944e-38, %v2187
    %v2189 = vsel %vm2186, %v2188, %v2184
    %v2190 = vmul.f32 1.0, %v2189
    %v2191 = vtanh.pop %v1635
    %v2192 = vxor.u32 %v2152, 2147483648
    %v2193 = vmul.f32 %v2192, 1.442695
    %v2194 = vpow.pop %v2193
    %v2195 = vadd.f32 %v2194, 1.0
    %v2196 = vrcp.pop %v2195
    %v2197 = vmul.f32 %v2195, %v2196
    %v2198 = vsub.f32 1.0, %v2197
    %v2199 = vmul.f32 %v2196, %v2198
    %v2200 = vadd.f32 %v2196, %v2199
    %vm2201 = vweird.f32 %v2195
    %vm2202 = vweird.f32 %v2196
    %vm2203 = vmor %vm2201, %vm2202
    %v2204 = vsel %vm2203, %v2196, %v2200
    %v2205 = vand.u32 2147483647, %v2195
    %vm2206 = vcmp.eq.f32.partialorder %v2205, 8.507059e+37
    %v2207 = vand.u32 %v2195, 2147483648
    %v2208 = vor.u32 1.1754944e-38, %v2207
    %v2209 = vsel %vm2206, %v2208, %v2204
    %v2210 = vmul.f32 1.0, %v2209
    %v2211 = vmul.f32 %v2190, %v78
    %v2212 = vmul.f32 %v2171, %v2191
    %v2213 = vadd.f32 %v2211, %v2212
    %v2214 = vtanh.pop %v2213
    %v2215 = vmul.f32 %v2210, %v2214
    %2216 = vst.msk [vmem:[#allocation2] sm:$0xff] %vm95, %v2215
    %2217 = vst.msk [vmem:[#allocation3] sm:$0xff] %vm95, %v2213
    %s2218 = scalar_lea.vmem [#allocation2], 8
    %v2219 = vld [vmem:[%s2218] sm:$0xff]
    %s2220 = scalar_lea.vmem [#allocation3], 8
    %v2221 = vld [vmem:[%s2220] sm:$0xff]
    %v2222 = vld [vmem:[%s10] sm:$0xf]
    %v2223 = vld [vmem:[%s10 + $0x4] sm:$0xf]
    %v2224 = vld [vmem:[%s10 + $0x8] sm:$0xf]
    %v2225 = vld [vmem:[%s10 + $0xc] sm:$0xf]
    %v2226 = vunpack.c.l.bf16 %v2222
    %v2227 = vunpack.c.l.bf16 %v2223
    %v2228 = vunpack.c.l.bf16 %v2224
    %v2229 = vunpack.c.l.bf16 %v2225
    %v2230 = vld [vmem:[%s11] sm:$0xf]
    %v2231 = vld [vmem:[%s11 + $0x4] sm:$0xf]
    %v2232 = vld [vmem:[%s11 + $0x8] sm:$0xf]
    %v2233 = vld [vmem:[%s11 + $0xc] sm:$0xf]
    %v2234 = vunpack.c.l.bf16 %v2230
    %v2235 = vunpack.c.l.bf16 %v2231
    %v2236 = vunpack.c.l.bf16 %v2232
    %v2237 = vunpack.c.l.bf16 %v2233
    %v2239 = vsel %vm95, %v2219, 0
    %2241 = vmatpush.msra.mxu0 0.0
    %2242 = vmatpush.msra.mxu0 0.0
    %2243 = vmatpush.msra.mxu0 0.0
    %2244 = vmatpush.msra.mxu0 0.0
    %2245 = vmatpush.msra.mxu0 0.0
    %2246 = vmatpush.msra.mxu0 0.0
    %2247 = vmatpush.msra.mxu0 0.0
    %2248 = vmatpush.msra.mxu0 0.0
    %2249 = vmatpush.msra.mxu0 0.0
    %2250 = vmatpush.msra.mxu0 0.0
    %2251 = vmatpush.msra.mxu0 0.0
    %2252 = vmatpush.msra.mxu0 0.0
    %2253 = vmatpush.msra.mxu0 %v2237
    %2254 = vmatpush.msra.mxu0 %v2236
    %2255 = vmatpush.msra.mxu0 %v2235
    %2256 = vmatpush.msra.mxu0 %v2234
    %v2257 = vand.u32 %v2239, 4294901760
    %v2258 = vsub.f32 %v2239, %v2257
    %v2259 = vand.u32 %v2258, 4294901760
    %v2260 = vsub.f32 %v2258, %v2259
    %v2261 = vand.u32 %v2260, 4294901760
    %2262 = vmatmul.f32.gmra.mxu0 %v2261
    %v2263 = vpop.f32.mrf.mxu0
    %v2264 = vadd.f32 0.0, %v2263
    %2265 = vdwg.mxu0
    %2266 = vmatpush.msra.mxu0 0.0
    %2267 = vmatpush.msra.mxu0 0.0
    %2268 = vmatpush.msra.mxu0 0.0
    %2269 = vmatpush.msra.mxu0 0.0
    %2270 = vmatpush.msra.mxu0 0.0
    %2271 = vmatpush.msra.mxu0 0.0
    %2272 = vmatpush.msra.mxu0 0.0
    %2273 = vmatpush.msra.mxu0 0.0
    %2274 = vmatpush.msra.mxu0 0.0
    %2275 = vmatpush.msra.mxu0 0.0
    %2276 = vmatpush.msra.mxu0 0.0
    %2277 = vmatpush.msra.mxu0 0.0
    %v2278 = vsub.f32 %v2237, %v2237
    %v2279 = vand.u32 %v2278, 4294901760
    %v2280 = vsub.f32 %v2278, %v2279
    %v2281 = vand.u32 %v2280, 4294901760
    %2282 = vmatpush.msra.mxu0 %v2281
    %v2283 = vsub.f32 %v2236, %v2236
    %v2284 = vand.u32 %v2283, 4294901760
    %v2285 = vsub.f32 %v2283, %v2284
    %v2286 = vand.u32 %v2285, 4294901760
    %2287 = vmatpush.msra.mxu0 %v2286
    %v2288 = vsub.f32 %v2235, %v2235
    %v2289 = vand.u32 %v2288, 4294901760
    %v2290 = vsub.f32 %v2288, %v2289
    %v2291 = vand.u32 %v2290, 4294901760
    %2292 = vmatpush.msra.mxu0 %v2291
    %v2293 = vsub.f32 %v2234, %v2234
    %v2294 = vand.u32 %v2293, 4294901760
    %v2295 = vsub.f32 %v2293, %v2294
    %v2296 = vand.u32 %v2295, 4294901760
    %2297 = vmatpush.msra.mxu0 %v2296
    %v2298 = vand.u32 %v2239, 4294901760
    %2299 = vmatmul.f32.gmra.mxu0 %v2298
    %v2300 = vpop.f32.mrf.mxu0
    %v2301 = vadd.f32 %v2264, %v2300
    %2302 = vdwg.mxu0
    %2303 = vmatpush.msra.mxu0 0.0
    %2304 = vmatpush.msra.mxu0 0.0
    %2305 = vmatpush.msra.mxu0 0.0
    %2306 = vmatpush.msra.mxu0 0.0
    %2307 = vmatpush.msra.mxu0 0.0
    %2308 = vmatpush.msra.mxu0 0.0
    %2309 = vmatpush.msra.mxu0 0.0
    %2310 = vmatpush.msra.mxu0 0.0
    %2311 = vmatpush.msra.mxu0 0.0
    %2312 = vmatpush.msra.mxu0 0.0
    %2313 = vmatpush.msra.mxu0 0.0
    %2314 = vmatpush.msra.mxu0 0.0
    %v2315 = vsub.f32 %v2237, %v2237
    %2316 = vmatpush.msra.mxu0 %v2315
    %v2317 = vsub.f32 %v2236, %v2236
    %2318 = vmatpush.msra.mxu0 %v2317
    %v2319 = vsub.f32 %v2235, %v2235
    %2320 = vmatpush.msra.mxu0 %v2319
    %v2321 = vsub.f32 %v2234, %v2234
    %2322 = vmatpush.msra.mxu0 %v2321
    %v2323 = vand.u32 %v2239, 4294901760
    %v2324 = vsub.f32 %v2239, %v2323
    %2325 = vmatmul.f32.gmra.mxu0 %v2324
    %v2326 = vpop.f32.mrf.mxu0
    %v2327 = vadd.f32 %v2301, %v2326
    %2328 = vdwg.mxu0
    %2329 = vmatpush.msra.mxu0 0.0
    %2330 = vmatpush.msra.mxu0 0.0
    %2331 = vmatpush.msra.mxu0 0.0
    %2332 = vmatpush.msra.mxu0 0.0
    %2333 = vmatpush.msra.mxu0 0.0
    %2334 = vmatpush.msra.mxu0 0.0
    %2335 = vmatpush.msra.mxu0 0.0
    %2336 = vmatpush.msra.mxu0 0.0
    %2337 = vmatpush.msra.mxu0 0.0
    %2338 = vmatpush.msra.mxu0 0.0
    %2339 = vmatpush.msra.mxu0 0.0
    %2340 = vmatpush.msra.mxu0 0.0
    %2341 = vmatpush.msra.mxu0 %v2237
    %2342 = vmatpush.msra.mxu0 %v2236
    %2343 = vmatpush.msra.mxu0 %v2235
    %2344 = vmatpush.msra.mxu0 %v2234
    %v2345 = vand.u32 %v2239, 4294901760
    %v2346 = vsub.f32 %v2239, %v2345
    %v2347 = vand.u32 %v2346, 4294901760
    %2348 = vmatmul.f32.gmra.mxu0 %v2347
    %v2349 = vpop.f32.mrf.mxu0
    %v2350 = vadd.f32 %v2327, %v2349
    %2351 = vdwg.mxu0
    %2352 = vmatpush.msra.mxu0 0.0
    %2353 = vmatpush.msra.mxu0 0.0
    %2354 = vmatpush.msra.mxu0 0.0
    %2355 = vmatpush.msra.mxu0 0.0
    %2356 = vmatpush.msra.mxu0 0.0
    %2357 = vmatpush.msra.mxu0 0.0
    %2358 = vmatpush.msra.mxu0 0.0
    %2359 = vmatpush.msra.mxu0 0.0
    %2360 = vmatpush.msra.mxu0 0.0
    %2361 = vmatpush.msra.mxu0 0.0
    %2362 = vmatpush.msra.mxu0 0.0
    %2363 = vmatpush.msra.mxu0 0.0
    %v2364 = vsub.f32 %v2237, %v2237
    %v2365 = vand.u32 %v2364, 4294901760
    %2366 = vmatpush.msra.mxu0 %v2365
    %v2367 = vsub.f32 %v2236, %v2236
    %v2368 = vand.u32 %v2367, 4294901760
    %2369 = vmatpush.msra.mxu0 %v2368
    %v2370 = vsub.f32 %v2235, %v2235
    %v2371 = vand.u32 %v2370, 4294901760
    %2372 = vmatpush.msra.mxu0 %v2371
    %v2373 = vsub.f32 %v2234, %v2234
    %v2374 = vand.u32 %v2373, 4294901760
    %2375 = vmatpush.msra.mxu0 %v2374
    %v2376 = vand.u32 %v2239, 4294901760
    %2377 = vmatmul.f32.gmra.mxu0 %v2376
    %v2378 = vpop.f32.mrf.mxu0
    %v2379 = vadd.f32 %v2350, %v2378
    %2380 = vdwg.mxu0
    %2381 = vmatpush.msra.mxu0 0.0
    %2382 = vmatpush.msra.mxu0 0.0
    %2383 = vmatpush.msra.mxu0 0.0
    %2384 = vmatpush.msra.mxu0 0.0
    %2385 = vmatpush.msra.mxu0 0.0
    %2386 = vmatpush.msra.mxu0 0.0
    %2387 = vmatpush.msra.mxu0 0.0
    %2388 = vmatpush.msra.mxu0 0.0
    %2389 = vmatpush.msra.mxu0 0.0
    %2390 = vmatpush.msra.mxu0 0.0
    %2391 = vmatpush.msra.mxu0 0.0
    %2392 = vmatpush.msra.mxu0 0.0
    %2393 = vmatpush.msra.mxu0 %v2237
    %2394 = vmatpush.msra.mxu0 %v2236
    %2395 = vmatpush.msra.mxu0 %v2235
    %2396 = vmatpush.msra.mxu0 %v2234
    %v2397 = vand.u32 %v2239, 4294901760
    %2398 = vmatmul.f32.gmra.mxu0 %v2397
    %v2399 = vpop.f32.mrf.mxu0
    %v2400 = vadd.f32 %v2379, %v2399
    %2401 = vdwg.mxu0
    %v2403 = vsel %vm95, %v2215, 0
    %2405 = vmatpush.msra.mxu0 0.0
    %2406 = vmatpush.msra.mxu0 0.0
    %2407 = vmatpush.msra.mxu0 0.0
    %2408 = vmatpush.msra.mxu0 0.0
    %2409 = vmatpush.msra.mxu0 0.0
    %2410 = vmatpush.msra.mxu0 0.0
    %2411 = vmatpush.msra.mxu0 0.0
    %2412 = vmatpush.msra.mxu0 0.0
    %2413 = vmatpush.msra.mxu0 0.0
    %2414 = vmatpush.msra.mxu0 0.0
    %2415 = vmatpush.msra.mxu0 0.0
    %2416 = vmatpush.msra.mxu0 0.0
    %2417 = vmatpush.msra.mxu0 %v2229
    %2418 = vmatpush.msra.mxu0 %v2228
    %2419 = vmatpush.msra.mxu0 %v2227
    %2420 = vmatpush.msra.mxu0 %v2226
    %v2421 = vand.u32 %v2403, 4294901760
    %v2422 = vsub.f32 %v2403, %v2421
    %v2423 = vand.u32 %v2422, 4294901760
    %v2424 = vsub.f32 %v2422, %v2423
    %v2425 = vand.u32 %v2424, 4294901760
    %2426 = vmatmul.f32.gmra.mxu0 %v2425
    %v2427 = vpop.f32.mrf.mxu0
    %v2428 = vadd.f32 %v2400, %v2427
    %2429 = vdwg.mxu0
    %2430 = vmatpush.msra.mxu0 0.0
    %2431 = vmatpush.msra.mxu0 0.0
    %2432 = vmatpush.msra.mxu0 0.0
    %2433 = vmatpush.msra.mxu0 0.0
    %2434 = vmatpush.msra.mxu0 0.0
    %2435 = vmatpush.msra.mxu0 0.0
    %2436 = vmatpush.msra.mxu0 0.0
    %2437 = vmatpush.msra.mxu0 0.0
    %2438 = vmatpush.msra.mxu0 0.0
    %2439 = vmatpush.msra.mxu0 0.0
    %2440 = vmatpush.msra.mxu0 0.0
    %2441 = vmatpush.msra.mxu0 0.0
    %v2442 = vsub.f32 %v2229, %v2229
    %v2443 = vand.u32 %v2442, 4294901760
    %v2444 = vsub.f32 %v2442, %v2443
    %v2445 = vand.u32 %v2444, 4294901760
    %2446 = vmatpush.msra.mxu0 %v2445
    %v2447 = vsub.f32 %v2228, %v2228
    %v2448 = vand.u32 %v2447, 4294901760
    %v2449 = vsub.f32 %v2447, %v2448
    %v2450 = vand.u32 %v2449, 4294901760
    %2451 = vmatpush.msra.mxu0 %v2450
    %v2452 = vsub.f32 %v2227, %v2227
    %v2453 = vand.u32 %v2452, 4294901760
    %v2454 = vsub.f32 %v2452, %v2453
    %v2455 = vand.u32 %v2454, 4294901760
    %2456 = vmatpush.msra.mxu0 %v2455
    %v2457 = vsub.f32 %v2226, %v2226
    %v2458 = vand.u32 %v2457, 4294901760
    %v2459 = vsub.f32 %v2457, %v2458
    %v2460 = vand.u32 %v2459, 4294901760
    %2461 = vmatpush.msra.mxu0 %v2460
    %v2462 = vand.u32 %v2403, 4294901760
    %2463 = vmatmul.f32.gmra.mxu0 %v2462
    %v2464 = vpop.f32.mrf.mxu0
    %v2465 = vadd.f32 %v2428, %v2464
    %2466 = vdwg.mxu0
    %2467 = vmatpush.msra.mxu0 0.0
    %2468 = vmatpush.msra.mxu0 0.0
    %2469 = vmatpush.msra.mxu0 0.0
    %2470 = vmatpush.msra.mxu0 0.0
    %2471 = vmatpush.msra.mxu0 0.0
    %2472 = vmatpush.msra.mxu0 0.0
    %2473 = vmatpush.msra.mxu0 0.0
    %2474 = vmatpush.msra.mxu0 0.0
    %2475 = vmatpush.msra.mxu0 0.0
    %2476 = vmatpush.msra.mxu0 0.0
    %2477 = vmatpush.msra.mxu0 0.0
    %2478 = vmatpush.msra.mxu0 0.0
    %v2479 = vsub.f32 %v2229, %v2229
    %2480 = vmatpush.msra.mxu0 %v2479
    %v2481 = vsub.f32 %v2228, %v2228
    %2482 = vmatpush.msra.mxu0 %v2481
    %v2483 = vsub.f32 %v2227, %v2227
    %2484 = vmatpush.msra.mxu0 %v2483
    %v2485 = vsub.f32 %v2226, %v2226
    %2486 = vmatpush.msra.mxu0 %v2485
    %v2487 = vand.u32 %v2403, 4294901760
    %v2488 = vsub.f32 %v2403, %v2487
    %2489 = vmatmul.f32.gmra.mxu0 %v2488
    %v2490 = vpop.f32.mrf.mxu0
    %v2491 = vadd.f32 %v2465, %v2490
    %2492 = vdwg.mxu0
    %2493 = vmatpush.msra.mxu0 0.0
    %2494 = vmatpush.msra.mxu0 0.0
    %2495 = vmatpush.msra.mxu0 0.0
    %2496 = vmatpush.msra.mxu0 0.0
    %2497 = vmatpush.msra.mxu0 0.0
    %2498 = vmatpush.msra.mxu0 0.0
    %2499 = vmatpush.msra.mxu0 0.0
    %2500 = vmatpush.msra.mxu0 0.0
    %2501 = vmatpush.msra.mxu0 0.0
    %2502 = vmatpush.msra.mxu0 0.0
    %2503 = vmatpush.msra.mxu0 0.0
    %2504 = vmatpush.msra.mxu0 0.0
    %2505 = vmatpush.msra.mxu0 %v2229
    %2506 = vmatpush.msra.mxu0 %v2228
    %2507 = vmatpush.msra.mxu0 %v2227
    %2508 = vmatpush.msra.mxu0 %v2226
    %v2509 = vand.u32 %v2403, 4294901760
    %v2510 = vsub.f32 %v2403, %v2509
    %v2511 = vand.u32 %v2510, 4294901760
    %2512 = vmatmul.f32.gmra.mxu0 %v2511
    %v2513 = vpop.f32.mrf.mxu0
    %v2514 = vadd.f32 %v2491, %v2513
    %2515 = vdwg.mxu0
    %2516 = vmatpush.msra.mxu0 0.0
    %2517 = vmatpush.msra.mxu0 0.0
    %2518 = vmatpush.msra.mxu0 0.0
    %2519 = vmatpush.msra.mxu0 0.0
    %2520 = vmatpush.msra.mxu0 0.0
    %2521 = vmatpush.msra.mxu0 0.0
    %2522 = vmatpush.msra.mxu0 0.0
    %2523 = vmatpush.msra.mxu0 0.0
    %2524 = vmatpush.msra.mxu0 0.0
    %2525 = vmatpush.msra.mxu0 0.0
    %2526 = vmatpush.msra.mxu0 0.0
    %2527 = vmatpush.msra.mxu0 0.0
    %v2528 = vsub.f32 %v2229, %v2229
    %v2529 = vand.u32 %v2528, 4294901760
    %2530 = vmatpush.msra.mxu0 %v2529
    %v2531 = vsub.f32 %v2228, %v2228
    %v2532 = vand.u32 %v2531, 4294901760
    %2533 = vmatpush.msra.mxu0 %v2532
    %v2534 = vsub.f32 %v2227, %v2227
    %v2535 = vand.u32 %v2534, 4294901760
    %2536 = vmatpush.msra.mxu0 %v2535
    %v2537 = vsub.f32 %v2226, %v2226
    %v2538 = vand.u32 %v2537, 4294901760
    %2539 = vmatpush.msra.mxu0 %v2538
    %v2540 = vand.u32 %v2403, 4294901760
    %2541 = vmatmul.f32.gmra.mxu0 %v2540
    %v2542 = vpop.f32.mrf.mxu0
    %v2543 = vadd.f32 %v2514, %v2542
    %2544 = vdwg.mxu0
    %2545 = vmatpush.msra.mxu0 0.0
    %2546 = vmatpush.msra.mxu0 0.0
    %2547 = vmatpush.msra.mxu0 0.0
    %2548 = vmatpush.msra.mxu0 0.0
    %2549 = vmatpush.msra.mxu0 0.0
    %2550 = vmatpush.msra.mxu0 0.0
    %2551 = vmatpush.msra.mxu0 0.0
    %2552 = vmatpush.msra.mxu0 0.0
    %2553 = vmatpush.msra.mxu0 0.0
    %2554 = vmatpush.msra.mxu0 0.0
    %2555 = vmatpush.msra.mxu0 0.0
    %2556 = vmatpush.msra.mxu0 0.0
    %2557 = vmatpush.msra.mxu0 %v2229
    %2558 = vmatpush.msra.mxu0 %v2228
    %2559 = vmatpush.msra.mxu0 %v2227
    %2560 = vmatpush.msra.mxu0 %v2226
    %v2561 = vand.u32 %v2403, 4294901760
    %2562 = vmatmul.f32.gmra.mxu0 %v2561
    %v2563 = vpop.f32.mrf.mxu0
    %v2564 = vadd.f32 %v2543, %v2563
    %2565 = vdwg.mxu0
    %v2566 = vld [vmem:[%s12] sm:$0x1]
    %v2568 = vperm.slane %v2566, 0
    %v2570 = vadd.f32 %v2564, %v2568
    %s2571 = scalar_lea.vmem %s10, 16
    %v2572 = vld [vmem:[%s2571] sm:$0xf]
    %v2573 = vld [vmem:[%s2571 + $0x4] sm:$0xf]
    %v2574 = vld [vmem:[%s2571 + $0x8] sm:$0xf]
    %v2575 = vld [vmem:[%s2571 + $0xc] sm:$0xf]
    %v2576 = vunpack.c.l.bf16 %v2572
    %v2577 = vunpack.c.l.bf16 %v2573
    %v2578 = vunpack.c.l.bf16 %v2574
    %v2579 = vunpack.c.l.bf16 %v2575
    %s2580 = scalar_lea.vmem %s11, 16
    %v2581 = vld [vmem:[%s2580] sm:$0xf]
    %v2582 = vld [vmem:[%s2580 + $0x4] sm:$0xf]
    %v2583 = vld [vmem:[%s2580 + $0x8] sm:$0xf]
    %v2584 = vld [vmem:[%s2580 + $0xc] sm:$0xf]
    %v2585 = vunpack.c.l.bf16 %v2581
    %v2586 = vunpack.c.l.bf16 %v2582
    %v2587 = vunpack.c.l.bf16 %v2583
    %v2588 = vunpack.c.l.bf16 %v2584
    %2589 = vmatpush.msra.mxu0 0.0
    %2590 = vmatpush.msra.mxu0 0.0
    %2591 = vmatpush.msra.mxu0 0.0
    %2592 = vmatpush.msra.mxu0 0.0
    %2593 = vmatpush.msra.mxu0 0.0
    %2594 = vmatpush.msra.mxu0 0.0
    %2595 = vmatpush.msra.mxu0 0.0
    %2596 = vmatpush.msra.mxu0 0.0
    %2597 = vmatpush.msra.mxu0 0.0
    %2598 = vmatpush.msra.mxu0 0.0
    %2599 = vmatpush.msra.mxu0 0.0
    %2600 = vmatpush.msra.mxu0 0.0
    %2601 = vmatpush.msra.mxu0 %v2588
    %2602 = vmatpush.msra.mxu0 %v2587
    %2603 = vmatpush.msra.mxu0 %v2586
    %2604 = vmatpush.msra.mxu0 %v2585
    %v2605 = vand.u32 %v2239, 4294901760
    %v2606 = vsub.f32 %v2239, %v2605
    %v2607 = vand.u32 %v2606, 4294901760
    %v2608 = vsub.f32 %v2606, %v2607
    %v2609 = vand.u32 %v2608, 4294901760
    %2610 = vmatmul.f32.gmra.mxu0 %v2609
    %v2611 = vpop.f32.mrf.mxu0
    %v2612 = vadd.f32 0.0, %v2611
    %2613 = vdwg.mxu0
    %2614 = vmatpush.msra.mxu0 0.0
    %2615 = vmatpush.msra.mxu0 0.0
    %2616 = vmatpush.msra.mxu0 0.0
    %2617 = vmatpush.msra.mxu0 0.0
    %2618 = vmatpush.msra.mxu0 0.0
    %2619 = vmatpush.msra.mxu0 0.0
    %2620 = vmatpush.msra.mxu0 0.0
    %2621 = vmatpush.msra.mxu0 0.0
    %2622 = vmatpush.msra.mxu0 0.0
    %2623 = vmatpush.msra.mxu0 0.0
    %2624 = vmatpush.msra.mxu0 0.0
    %2625 = vmatpush.msra.mxu0 0.0
    %v2626 = vsub.f32 %v2588, %v2588
    %v2627 = vand.u32 %v2626, 4294901760
    %v2628 = vsub.f32 %v2626, %v2627
    %v2629 = vand.u32 %v2628, 4294901760
    %2630 = vmatpush.msra.mxu0 %v2629
    %v2631 = vsub.f32 %v2587, %v2587
    %v2632 = vand.u32 %v2631, 4294901760
    %v2633 = vsub.f32 %v2631, %v2632
    %v2634 = vand.u32 %v2633, 4294901760
    %2635 = vmatpush.msra.mxu0 %v2634
    %v2636 = vsub.f32 %v2586, %v2586
    %v2637 = vand.u32 %v2636, 4294901760
    %v2638 = vsub.f32 %v2636, %v2637
    %v2639 = vand.u32 %v2638, 4294901760
    %2640 = vmatpush.msra.mxu0 %v2639
    %v2641 = vsub.f32 %v2585, %v2585
    %v2642 = vand.u32 %v2641, 4294901760
    %v2643 = vsub.f32 %v2641, %v2642
    %v2644 = vand.u32 %v2643, 4294901760
    %2645 = vmatpush.msra.mxu0 %v2644
    %v2646 = vand.u32 %v2239, 4294901760
    %2647 = vmatmul.f32.gmra.mxu0 %v2646
    %v2648 = vpop.f32.mrf.mxu0
    %v2649 = vadd.f32 %v2612, %v2648
    %2650 = vdwg.mxu0
    %2651 = vmatpush.msra.mxu0 0.0
    %2652 = vmatpush.msra.mxu0 0.0
    %2653 = vmatpush.msra.mxu0 0.0
    %2654 = vmatpush.msra.mxu0 0.0
    %2655 = vmatpush.msra.mxu0 0.0
    %2656 = vmatpush.msra.mxu0 0.0
    %2657 = vmatpush.msra.mxu0 0.0
    %2658 = vmatpush.msra.mxu0 0.0
    %2659 = vmatpush.msra.mxu0 0.0
    %2660 = vmatpush.msra.mxu0 0.0
    %2661 = vmatpush.msra.mxu0 0.0
    %2662 = vmatpush.msra.mxu0 0.0
    %v2663 = vsub.f32 %v2588, %v2588
    %2664 = vmatpush.msra.mxu0 %v2663
    %v2665 = vsub.f32 %v2587, %v2587
    %2666 = vmatpush.msra.mxu0 %v2665
    %v2667 = vsub.f32 %v2586, %v2586
    %2668 = vmatpush.msra.mxu0 %v2667
    %v2669 = vsub.f32 %v2585, %v2585
    %2670 = vmatpush.msra.mxu0 %v2669
    %v2671 = vand.u32 %v2239, 4294901760
    %v2672 = vsub.f32 %v2239, %v2671
    %2673 = vmatmul.f32.gmra.mxu0 %v2672
    %v2674 = vpop.f32.mrf.mxu0
    %v2675 = vadd.f32 %v2649, %v2674
    %2676 = vdwg.mxu0
    %2677 = vmatpush.msra.mxu0 0.0
    %2678 = vmatpush.msra.mxu0 0.0
    %2679 = vmatpush.msra.mxu0 0.0
    %2680 = vmatpush.msra.mxu0 0.0
    %2681 = vmatpush.msra.mxu0 0.0
    %2682 = vmatpush.msra.mxu0 0.0
    %2683 = vmatpush.msra.mxu0 0.0
    %2684 = vmatpush.msra.mxu0 0.0
    %2685 = vmatpush.msra.mxu0 0.0
    %2686 = vmatpush.msra.mxu0 0.0
    %2687 = vmatpush.msra.mxu0 0.0
    %2688 = vmatpush.msra.mxu0 0.0
    %2689 = vmatpush.msra.mxu0 %v2588
    %2690 = vmatpush.msra.mxu0 %v2587
    %2691 = vmatpush.msra.mxu0 %v2586
    %2692 = vmatpush.msra.mxu0 %v2585
    %v2693 = vand.u32 %v2239, 4294901760
    %v2694 = vsub.f32 %v2239, %v2693
    %v2695 = vand.u32 %v2694, 4294901760
    %2696 = vmatmul.f32.gmra.mxu0 %v2695
    %v2697 = vpop.f32.mrf.mxu0
    %v2698 = vadd.f32 %v2675, %v2697
    %2699 = vdwg.mxu0
    %2700 = vmatpush.msra.mxu0 0.0
    %2701 = vmatpush.msra.mxu0 0.0
    %2702 = vmatpush.msra.mxu0 0.0
    %2703 = vmatpush.msra.mxu0 0.0
    %2704 = vmatpush.msra.mxu0 0.0
    %2705 = vmatpush.msra.mxu0 0.0
    %2706 = vmatpush.msra.mxu0 0.0
    %2707 = vmatpush.msra.mxu0 0.0
    %2708 = vmatpush.msra.mxu0 0.0
    %2709 = vmatpush.msra.mxu0 0.0
    %2710 = vmatpush.msra.mxu0 0.0
    %2711 = vmatpush.msra.mxu0 0.0
    %v2712 = vsub.f32 %v2588, %v2588
    %v2713 = vand.u32 %v2712, 4294901760
    %2714 = vmatpush.msra.mxu0 %v2713
    %v2715 = vsub.f32 %v2587, %v2587
    %v2716 = vand.u32 %v2715, 4294901760
    %2717 = vmatpush.msra.mxu0 %v2716
    %v2718 = vsub.f32 %v2586, %v2586
    %v2719 = vand.u32 %v2718, 4294901760
    %2720 = vmatpush.msra.mxu0 %v2719
    %v2721 = vsub.f32 %v2585, %v2585
    %v2722 = vand.u32 %v2721, 4294901760
    %2723 = vmatpush.msra.mxu0 %v2722
    %v2724 = vand.u32 %v2239, 4294901760
    %2725 = vmatmul.f32.gmra.mxu0 %v2724
    %v2726 = vpop.f32.mrf.mxu0
    %v2727 = vadd.f32 %v2698, %v2726
    %2728 = vdwg.mxu0
    %2729 = vmatpush.msra.mxu0 0.0
    %2730 = vmatpush.msra.mxu0 0.0
    %2731 = vmatpush.msra.mxu0 0.0
    %2732 = vmatpush.msra.mxu0 0.0
    %2733 = vmatpush.msra.mxu0 0.0
    %2734 = vmatpush.msra.mxu0 0.0
    %2735 = vmatpush.msra.mxu0 0.0
    %2736 = vmatpush.msra.mxu0 0.0
    %2737 = vmatpush.msra.mxu0 0.0
    %2738 = vmatpush.msra.mxu0 0.0
    %2739 = vmatpush.msra.mxu0 0.0
    %2740 = vmatpush.msra.mxu0 0.0
    %2741 = vmatpush.msra.mxu0 %v2588
    %2742 = vmatpush.msra.mxu0 %v2587
    %2743 = vmatpush.msra.mxu0 %v2586
    %2744 = vmatpush.msra.mxu0 %v2585
    %v2745 = vand.u32 %v2239, 4294901760
    %2746 = vmatmul.f32.gmra.mxu0 %v2745
    %v2747 = vpop.f32.mrf.mxu0
    %v2748 = vadd.f32 %v2727, %v2747
    %2749 = vdwg.mxu0
    %2750 = vmatpush.msra.mxu0 0.0
    %2751 = vmatpush.msra.mxu0 0.0
    %2752 = vmatpush.msra.mxu0 0.0
    %2753 = vmatpush.msra.mxu0 0.0
    %2754 = vmatpush.msra.mxu0 0.0
    %2755 = vmatpush.msra.mxu0 0.0
    %2756 = vmatpush.msra.mxu0 0.0
    %2757 = vmatpush.msra.mxu0 0.0
    %2758 = vmatpush.msra.mxu0 0.0
    %2759 = vmatpush.msra.mxu0 0.0
    %2760 = vmatpush.msra.mxu0 0.0
    %2761 = vmatpush.msra.mxu0 0.0
    %2762 = vmatpush.msra.mxu0 %v2579
    %2763 = vmatpush.msra.mxu0 %v2578
    %2764 = vmatpush.msra.mxu0 %v2577
    %2765 = vmatpush.msra.mxu0 %v2576
    %v2766 = vand.u32 %v2403, 4294901760
    %v2767 = vsub.f32 %v2403, %v2766
    %v2768 = vand.u32 %v2767, 4294901760
    %v2769 = vsub.f32 %v2767, %v2768
    %v2770 = vand.u32 %v2769, 4294901760
    %2771 = vmatmul.f32.gmra.mxu0 %v2770
    %v2772 = vpop.f32.mrf.mxu0
    %v2773 = vadd.f32 %v2748, %v2772
    %2774 = vdwg.mxu0
    %2775 = vmatpush.msra.mxu0 0.0
    %2776 = vmatpush.msra.mxu0 0.0
    %2777 = vmatpush.msra.mxu0 0.0
    %2778 = vmatpush.msra.mxu0 0.0
    %2779 = vmatpush.msra.mxu0 0.0
    %2780 = vmatpush.msra.mxu0 0.0
    %2781 = vmatpush.msra.mxu0 0.0
    %2782 = vmatpush.msra.mxu0 0.0
    %2783 = vmatpush.msra.mxu0 0.0
    %2784 = vmatpush.msra.mxu0 0.0
    %2785 = vmatpush.msra.mxu0 0.0
    %2786 = vmatpush.msra.mxu0 0.0
    %v2787 = vsub.f32 %v2579, %v2579
    %v2788 = vand.u32 %v2787, 4294901760
    %v2789 = vsub.f32 %v2787, %v2788
    %v2790 = vand.u32 %v2789, 4294901760
    %2791 = vmatpush.msra.mxu0 %v2790
    %v2792 = vsub.f32 %v2578, %v2578
    %v2793 = vand.u32 %v2792, 4294901760
    %v2794 = vsub.f32 %v2792, %v2793
    %v2795 = vand.u32 %v2794, 4294901760
    %2796 = vmatpush.msra.mxu0 %v2795
    %v2797 = vsub.f32 %v2577, %v2577
    %v2798 = vand.u32 %v2797, 4294901760
    %v2799 = vsub.f32 %v2797, %v2798
    %v2800 = vand.u32 %v2799, 4294901760
    %2801 = vmatpush.msra.mxu0 %v2800
    %v2802 = vsub.f32 %v2576, %v2576
    %v2803 = vand.u32 %v2802, 4294901760
    %v2804 = vsub.f32 %v2802, %v2803
    %v2805 = vand.u32 %v2804, 4294901760
    %2806 = vmatpush.msra.mxu0 %v2805
    %v2807 = vand.u32 %v2403, 4294901760
    %2808 = vmatmul.f32.gmra.mxu0 %v2807
    %v2809 = vpop.f32.mrf.mxu0
    %v2810 = vadd.f32 %v2773, %v2809
    %2811 = vdwg.mxu0
    %2812 = vmatpush.msra.mxu0 0.0
    %2813 = vmatpush.msra.mxu0 0.0
    %2814 = vmatpush.msra.mxu0 0.0
    %2815 = vmatpush.msra.mxu0 0.0
    %2816 = vmatpush.msra.mxu0 0.0
    %2817 = vmatpush.msra.mxu0 0.0
    %2818 = vmatpush.msra.mxu0 0.0
    %2819 = vmatpush.msra.mxu0 0.0
    %2820 = vmatpush.msra.mxu0 0.0
    %2821 = vmatpush.msra.mxu0 0.0
    %2822 = vmatpush.msra.mxu0 0.0
    %2823 = vmatpush.msra.mxu0 0.0
    %v2824 = vsub.f32 %v2579, %v2579
    %2825 = vmatpush.msra.mxu0 %v2824
    %v2826 = vsub.f32 %v2578, %v2578
    %2827 = vmatpush.msra.mxu0 %v2826
    %v2828 = vsub.f32 %v2577, %v2577
    %2829 = vmatpush.msra.mxu0 %v2828
    %v2830 = vsub.f32 %v2576, %v2576
    %2831 = vmatpush.msra.mxu0 %v2830
    %v2832 = vand.u32 %v2403, 4294901760
    %v2833 = vsub.f32 %v2403, %v2832
    %2834 = vmatmul.f32.gmra.mxu0 %v2833
    %v2835 = vpop.f32.mrf.mxu0
    %v2836 = vadd.f32 %v2810, %v2835
    %2837 = vdwg.mxu0
    %2838 = vmatpush.msra.mxu0 0.0
    %2839 = vmatpush.msra.mxu0 0.0
    %2840 = vmatpush.msra.mxu0 0.0
    %2841 = vmatpush.msra.mxu0 0.0
    %2842 = vmatpush.msra.mxu0 0.0
    %2843 = vmatpush.msra.mxu0 0.0
    %2844 = vmatpush.msra.mxu0 0.0
    %2845 = vmatpush.msra.mxu0 0.0
    %2846 = vmatpush.msra.mxu0 0.0
    %2847 = vmatpush.msra.mxu0 0.0
    %2848 = vmatpush.msra.mxu0 0.0
    %2849 = vmatpush.msra.mxu0 0.0
    %2850 = vmatpush.msra.mxu0 %v2579
    %2851 = vmatpush.msra.mxu0 %v2578
    %2852 = vmatpush.msra.mxu0 %v2577
    %2853 = vmatpush.msra.mxu0 %v2576
    %v2854 = vand.u32 %v2403, 4294901760
    %v2855 = vsub.f32 %v2403, %v2854
    %v2856 = vand.u32 %v2855, 4294901760
    %2857 = vmatmul.f32.gmra.mxu0 %v2856
    %v2858 = vpop.f32.mrf.mxu0
    %v2859 = vadd.f32 %v2836, %v2858
    %2860 = vdwg.mxu0
    %2861 = vmatpush.msra.mxu0 0.0
    %2862 = vmatpush.msra.mxu0 0.0
    %2863 = vmatpush.msra.mxu0 0.0
    %2864 = vmatpush.msra.mxu0 0.0
    %2865 = vmatpush.msra.mxu0 0.0
    %2866 = vmatpush.msra.mxu0 0.0
    %2867 = vmatpush.msra.mxu0 0.0
    %2868 = vmatpush.msra.mxu0 0.0
    %2869 = vmatpush.msra.mxu0 0.0
    %2870 = vmatpush.msra.mxu0 0.0
    %2871 = vmatpush.msra.mxu0 0.0
    %2872 = vmatpush.msra.mxu0 0.0
    %v2873 = vsub.f32 %v2579, %v2579
    %v2874 = vand.u32 %v2873, 4294901760
    %2875 = vmatpush.msra.mxu0 %v2874
    %v2876 = vsub.f32 %v2578, %v2578
    %v2877 = vand.u32 %v2876, 4294901760
    %2878 = vmatpush.msra.mxu0 %v2877
    %v2879 = vsub.f32 %v2577, %v2577
    %v2880 = vand.u32 %v2879, 4294901760
    %2881 = vmatpush.msra.mxu0 %v2880
    %v2882 = vsub.f32 %v2576, %v2576
    %v2883 = vand.u32 %v2882, 4294901760
    %2884 = vmatpush.msra.mxu0 %v2883
    %v2885 = vand.u32 %v2403, 4294901760
    %2886 = vmatmul.f32.gmra.mxu0 %v2885
    %v2887 = vpop.f32.mrf.mxu0
    %v2888 = vadd.f32 %v2859, %v2887
    %2889 = vdwg.mxu0
    %2890 = vmatpush.msra.mxu0 0.0
    %2891 = vmatpush.msra.mxu0 0.0
    %2892 = vmatpush.msra.mxu0 0.0
    %2893 = vmatpush.msra.mxu0 0.0
    %2894 = vmatpush.msra.mxu0 0.0
    %2895 = vmatpush.msra.mxu0 0.0
    %2896 = vmatpush.msra.mxu0 0.0
    %2897 = vmatpush.msra.mxu0 0.0
    %2898 = vmatpush.msra.mxu0 0.0
    %2899 = vmatpush.msra.mxu0 0.0
    %2900 = vmatpush.msra.mxu0 0.0
    %2901 = vmatpush.msra.mxu0 0.0
    %2902 = vmatpush.msra.mxu0 %v2579
    %2903 = vmatpush.msra.mxu0 %v2578
    %2904 = vmatpush.msra.mxu0 %v2577
    %2905 = vmatpush.msra.mxu0 %v2576
    %v2906 = vand.u32 %v2403, 4294901760
    %2907 = vmatmul.f32.gmra.mxu0 %v2906
    %v2908 = vpop.f32.mrf.mxu0
    %v2909 = vadd.f32 %v2888, %v2908
    %2910 = vdwg.mxu0
    %s2911 = scalar_lea.vmem %s12, 1
    %v2912 = vld [vmem:[%s2911] sm:$0x1]
    %v2914 = vperm.slane %v2912, 0
    %v2916 = vadd.f32 %v2909, %v2914
    %s2917 = scalar_lea.vmem %s10, 32
    %v2918 = vld [vmem:[%s2917] sm:$0xf]
    %v2919 = vld [vmem:[%s2917 + $0x4] sm:$0xf]
    %v2920 = vld [vmem:[%s2917 + $0x8] sm:$0xf]
    %v2921 = vld [vmem:[%s2917 + $0xc] sm:$0xf]
    %v2922 = vunpack.c.l.bf16 %v2918
    %v2923 = vunpack.c.l.bf16 %v2919
    %v2924 = vunpack.c.l.bf16 %v2920
    %v2925 = vunpack.c.l.bf16 %v2921
    %s2926 = scalar_lea.vmem %s11, 32
    %v2927 = vld [vmem:[%s2926] sm:$0xf]
    %v2928 = vld [vmem:[%s2926 + $0x4] sm:$0xf]
    %v2929 = vld [vmem:[%s2926 + $0x8] sm:$0xf]
    %v2930 = vld [vmem:[%s2926 + $0xc] sm:$0xf]
    %v2931 = vunpack.c.l.bf16 %v2927
    %v2932 = vunpack.c.l.bf16 %v2928
    %v2933 = vunpack.c.l.bf16 %v2929
    %v2934 = vunpack.c.l.bf16 %v2930
    %2935 = vmatpush.msra.mxu0 0.0
    %2936 = vmatpush.msra.mxu0 0.0
    %2937 = vmatpush.msra.mxu0 0.0
    %2938 = vmatpush.msra.mxu0 0.0
    %2939 = vmatpush.msra.mxu0 0.0
    %2940 = vmatpush.msra.mxu0 0.0
    %2941 = vmatpush.msra.mxu0 0.0
    %2942 = vmatpush.msra.mxu0 0.0
    %2943 = vmatpush.msra.mxu0 0.0
    %2944 = vmatpush.msra.mxu0 0.0
    %2945 = vmatpush.msra.mxu0 0.0
    %2946 = vmatpush.msra.mxu0 0.0
    %2947 = vmatpush.msra.mxu0 %v2934
    %2948 = vmatpush.msra.mxu0 %v2933
    %2949 = vmatpush.msra.mxu0 %v2932
    %2950 = vmatpush.msra.mxu0 %v2931
    %v2951 = vand.u32 %v2239, 4294901760
    %v2952 = vsub.f32 %v2239, %v2951
    %v2953 = vand.u32 %v2952, 4294901760
    %v2954 = vsub.f32 %v2952, %v2953
    %v2955 = vand.u32 %v2954, 4294901760
    %2956 = vmatmul.f32.gmra.mxu0 %v2955
    %v2957 = vpop.f32.mrf.mxu0
    %v2958 = vadd.f32 0.0, %v2957
    %2959 = vdwg.mxu0
    %2960 = vmatpush.msra.mxu0 0.0
    %2961 = vmatpush.msra.mxu0 0.0
    %2962 = vmatpush.msra.mxu0 0.0
    %2963 = vmatpush.msra.mxu0 0.0
    %2964 = vmatpush.msra.mxu0 0.0
    %2965 = vmatpush.msra.mxu0 0.0
    %2966 = vmatpush.msra.mxu0 0.0
    %2967 = vmatpush.msra.mxu0 0.0
    %2968 = vmatpush.msra.mxu0 0.0
    %2969 = vmatpush.msra.mxu0 0.0
    %2970 = vmatpush.msra.mxu0 0.0
    %2971 = vmatpush.msra.mxu0 0.0
    %v2972 = vsub.f32 %v2934, %v2934
    %v2973 = vand.u32 %v2972, 4294901760
    %v2974 = vsub.f32 %v2972, %v2973
    %v2975 = vand.u32 %v2974, 4294901760
    %2976 = vmatpush.msra.mxu0 %v2975
    %v2977 = vsub.f32 %v2933, %v2933
    %v2978 = vand.u32 %v2977, 4294901760
    %v2979 = vsub.f32 %v2977, %v2978
    %v2980 = vand.u32 %v2979, 4294901760
    %2981 = vmatpush.msra.mxu0 %v2980
    %v2982 = vsub.f32 %v2932, %v2932
    %v2983 = vand.u32 %v2982, 4294901760
    %v2984 = vsub.f32 %v2982, %v2983
    %v2985 = vand.u32 %v2984, 4294901760
    %2986 = vmatpush.msra.mxu0 %v2985
    %v2987 = vsub.f32 %v2931, %v2931
    %v2988 = vand.u32 %v2987, 4294901760
    %v2989 = vsub.f32 %v2987, %v2988
    %v2990 = vand.u32 %v2989, 4294901760
    %2991 = vmatpush.msra.mxu0 %v2990
    %v2992 = vand.u32 %v2239, 4294901760
    %2993 = vmatmul.f32.gmra.mxu0 %v2992
    %v2994 = vpop.f32.mrf.mxu0
    %v2995 = vadd.f32 %v2958, %v2994
    %2996 = vdwg.mxu0
    %2997 = vmatpush.msra.mxu0 0.0
    %2998 = vmatpush.msra.mxu0 0.0
    %2999 = vmatpush.msra.mxu0 0.0
    %3000 = vmatpush.msra.mxu0 0.0
    %3001 = vmatpush.msra.mxu0 0.0
    %3002 = vmatpush.msra.mxu0 0.0
    %3003 = vmatpush.msra.mxu0 0.0
    %3004 = vmatpush.msra.mxu0 0.0
    %3005 = vmatpush.msra.mxu0 0.0
    %3006 = vmatpush.msra.mxu0 0.0
    %3007 = vmatpush.msra.mxu0 0.0
    %3008 = vmatpush.msra.mxu0 0.0
    %v3009 = vsub.f32 %v2934, %v2934
    %3010 = vmatpush.msra.mxu0 %v3009
    %v3011 = vsub.f32 %v2933, %v2933
    %3012 = vmatpush.msra.mxu0 %v3011
    %v3013 = vsub.f32 %v2932, %v2932
    %3014 = vmatpush.msra.mxu0 %v3013
    %v3015 = vsub.f32 %v2931, %v2931
    %3016 = vmatpush.msra.mxu0 %v3015
    %v3017 = vand.u32 %v2239, 4294901760
    %v3018 = vsub.f32 %v2239, %v3017
    %3019 = vmatmul.f32.gmra.mxu0 %v3018
    %v3020 = vpop.f32.mrf.mxu0
    %v3021 = vadd.f32 %v2995, %v3020
    %3022 = vdwg.mxu0
    %3023 = vmatpush.msra.mxu0 0.0
    %3024 = vmatpush.msra.mxu0 0.0
    %3025 = vmatpush.msra.mxu0 0.0
    %3026 = vmatpush.msra.mxu0 0.0
    %3027 = vmatpush.msra.mxu0 0.0
    %3028 = vmatpush.msra.mxu0 0.0
    %3029 = vmatpush.msra.mxu0 0.0
    %3030 = vmatpush.msra.mxu0 0.0
    %3031 = vmatpush.msra.mxu0 0.0
    %3032 = vmatpush.msra.mxu0 0.0
    %3033 = vmatpush.msra.mxu0 0.0
    %3034 = vmatpush.msra.mxu0 0.0
    %3035 = vmatpush.msra.mxu0 %v2934
    %3036 = vmatpush.msra.mxu0 %v2933
    %3037 = vmatpush.msra.mxu0 %v2932
    %3038 = vmatpush.msra.mxu0 %v2931
    %v3039 = vand.u32 %v2239, 4294901760
    %v3040 = vsub.f32 %v2239, %v3039
    %v3041 = vand.u32 %v3040, 4294901760
    %3042 = vmatmul.f32.gmra.mxu0 %v3041
    %v3043 = vpop.f32.mrf.mxu0
    %v3044 = vadd.f32 %v3021, %v3043
    %3045 = vdwg.mxu0
    %3046 = vmatpush.msra.mxu0 0.0
    %3047 = vmatpush.msra.mxu0 0.0
    %3048 = vmatpush.msra.mxu0 0.0
    %3049 = vmatpush.msra.mxu0 0.0
    %3050 = vmatpush.msra.mxu0 0.0
    %3051 = vmatpush.msra.mxu0 0.0
    %3052 = vmatpush.msra.mxu0 0.0
    %3053 = vmatpush.msra.mxu0 0.0
    %3054 = vmatpush.msra.mxu0 0.0
    %3055 = vmatpush.msra.mxu0 0.0
    %3056 = vmatpush.msra.mxu0 0.0
    %3057 = vmatpush.msra.mxu0 0.0
    %v3058 = vsub.f32 %v2934, %v2934
    %v3059 = vand.u32 %v3058, 4294901760
    %3060 = vmatpush.msra.mxu0 %v3059
    %v3061 = vsub.f32 %v2933, %v2933
    %v3062 = vand.u32 %v3061, 4294901760
    %3063 = vmatpush.msra.mxu0 %v3062
    %v3064 = vsub.f32 %v2932, %v2932
    %v3065 = vand.u32 %v3064, 4294901760
    %3066 = vmatpush.msra.mxu0 %v3065
    %v3067 = vsub.f32 %v2931, %v2931
    %v3068 = vand.u32 %v3067, 4294901760
    %3069 = vmatpush.msra.mxu0 %v3068
    %v3070 = vand.u32 %v2239, 4294901760
    %3071 = vmatmul.f32.gmra.mxu0 %v3070
    %v3072 = vpop.f32.mrf.mxu0
    %v3073 = vadd.f32 %v3044, %v3072
    %3074 = vdwg.mxu0
    %3075 = vmatpush.msra.mxu0 0.0
    %3076 = vmatpush.msra.mxu0 0.0
    %3077 = vmatpush.msra.mxu0 0.0
    %3078 = vmatpush.msra.mxu0 0.0
    %3079 = vmatpush.msra.mxu0 0.0
    %3080 = vmatpush.msra.mxu0 0.0
    %3081 = vmatpush.msra.mxu0 0.0
    %3082 = vmatpush.msra.mxu0 0.0
    %3083 = vmatpush.msra.mxu0 0.0
    %3084 = vmatpush.msra.mxu0 0.0
    %3085 = vmatpush.msra.mxu0 0.0
    %3086 = vmatpush.msra.mxu0 0.0
    %3087 = vmatpush.msra.mxu0 %v2934
    %3088 = vmatpush.msra.mxu0 %v2933
    %3089 = vmatpush.msra.mxu0 %v2932
    %3090 = vmatpush.msra.mxu0 %v2931
    %v3091 = vand.u32 %v2239, 4294901760
    %3092 = vmatmul.f32.gmra.mxu0 %v3091
    %v3093 = vpop.f32.mrf.mxu0
    %v3094 = vadd.f32 %v3073, %v3093
    %3095 = vdwg.mxu0
    %3096 = vmatpush.msra.mxu0 0.0
    %3097 = vmatpush.msra.mxu0 0.0
    %3098 = vmatpush.msra.mxu0 0.0
    %3099 = vmatpush.msra.mxu0 0.0
    %3100 = vmatpush.msra.mxu0 0.0
    %3101 = vmatpush.msra.mxu0 0.0
    %3102 = vmatpush.msra.mxu0 0.0
    %3103 = vmatpush.msra.mxu0 0.0
    %3104 = vmatpush.msra.mxu0 0.0
    %3105 = vmatpush.msra.mxu0 0.0
    %3106 = vmatpush.msra.mxu0 0.0
    %3107 = vmatpush.msra.mxu0 0.0
    %3108 = vmatpush.msra.mxu0 %v2925
    %3109 = vmatpush.msra.mxu0 %v2924
    %3110 = vmatpush.msra.mxu0 %v2923
    %3111 = vmatpush.msra.mxu0 %v2922
    %v3112 = vand.u32 %v2403, 4294901760
    %v3113 = vsub.f32 %v2403, %v3112
    %v3114 = vand.u32 %v3113, 4294901760
    %v3115 = vsub.f32 %v3113, %v3114
    %v3116 = vand.u32 %v3115, 4294901760
    %3117 = vmatmul.f32.gmra.mxu0 %v3116
    %v3118 = vpop.f32.mrf.mxu0
    %v3119 = vadd.f32 %v3094, %v3118
    %3120 = vdwg.mxu0
    %3121 = vmatpush.msra.mxu0 0.0
    %3122 = vmatpush.msra.mxu0 0.0
    %3123 = vmatpush.msra.mxu0 0.0
    %3124 = vmatpush.msra.mxu0 0.0
    %3125 = vmatpush.msra.mxu0 0.0
    %3126 = vmatpush.msra.mxu0 0.0
    %3127 = vmatpush.msra.mxu0 0.0
    %3128 = vmatpush.msra.mxu0 0.0
    %3129 = vmatpush.msra.mxu0 0.0
    %3130 = vmatpush.msra.mxu0 0.0
    %3131 = vmatpush.msra.mxu0 0.0
    %3132 = vmatpush.msra.mxu0 0.0
    %v3133 = vsub.f32 %v2925, %v2925
    %v3134 = vand.u32 %v3133, 4294901760
    %v3135 = vsub.f32 %v3133, %v3134
    %v3136 = vand.u32 %v3135, 4294901760
    %3137 = vmatpush.msra.mxu0 %v3136
    %v3138 = vsub.f32 %v2924, %v2924
    %v3139 = vand.u32 %v3138, 4294901760
    %v3140 = vsub.f32 %v3138, %v3139
    %v3141 = vand.u32 %v3140, 4294901760
    %3142 = vmatpush.msra.mxu0 %v3141
    %v3143 = vsub.f32 %v2923, %v2923
    %v3144 = vand.u32 %v3143, 4294901760
    %v3145 = vsub.f32 %v3143, %v3144
    %v3146 = vand.u32 %v3145, 4294901760
    %3147 = vmatpush.msra.mxu0 %v3146
    %v3148 = vsub.f32 %v2922, %v2922
    %v3149 = vand.u32 %v3148, 4294901760
    %v3150 = vsub.f32 %v3148, %v3149
    %v3151 = vand.u32 %v3150, 4294901760
    %3152 = vmatpush.msra.mxu0 %v3151
    %v3153 = vand.u32 %v2403, 4294901760
    %3154 = vmatmul.f32.gmra.mxu0 %v3153
    %v3155 = vpop.f32.mrf.mxu0
    %v3156 = vadd.f32 %v3119, %v3155
    %3157 = vdwg.mxu0
    %3158 = vmatpush.msra.mxu0 0.0
    %3159 = vmatpush.msra.mxu0 0.0
    %3160 = vmatpush.msra.mxu0 0.0
    %3161 = vmatpush.msra.mxu0 0.0
    %3162 = vmatpush.msra.mxu0 0.0
    %3163 = vmatpush.msra.mxu0 0.0
    %3164 = vmatpush.msra.mxu0 0.0
    %3165 = vmatpush.msra.mxu0 0.0
    %3166 = vmatpush.msra.mxu0 0.0
    %3167 = vmatpush.msra.mxu0 0.0
    %3168 = vmatpush.msra.mxu0 0.0
    %3169 = vmatpush.msra.mxu0 0.0
    %v3170 = vsub.f32 %v2925, %v2925
    %3171 = vmatpush.msra.mxu0 %v3170
    %v3172 = vsub.f32 %v2924, %v2924
    %3173 = vmatpush.msra.mxu0 %v3172
    %v3174 = vsub.f32 %v2923, %v2923
    %3175 = vmatpush.msra.mxu0 %v3174
    %v3176 = vsub.f32 %v2922, %v2922
    %3177 = vmatpush.msra.mxu0 %v3176
    %v3178 = vand.u32 %v2403, 4294901760
    %v3179 = vsub.f32 %v2403, %v3178
    %3180 = vmatmul.f32.gmra.mxu0 %v3179
    %v3181 = vpop.f32.mrf.mxu0
    %v3182 = vadd.f32 %v3156, %v3181
    %3183 = vdwg.mxu0
    %3184 = vmatpush.msra.mxu0 0.0
    %3185 = vmatpush.msra.mxu0 0.0
    %3186 = vmatpush.msra.mxu0 0.0
    %3187 = vmatpush.msra.mxu0 0.0
    %3188 = vmatpush.msra.mxu0 0.0
    %3189 = vmatpush.msra.mxu0 0.0
    %3190 = vmatpush.msra.mxu0 0.0
    %3191 = vmatpush.msra.mxu0 0.0
    %3192 = vmatpush.msra.mxu0 0.0
    %3193 = vmatpush.msra.mxu0 0.0
    %3194 = vmatpush.msra.mxu0 0.0
    %3195 = vmatpush.msra.mxu0 0.0
    %3196 = vmatpush.msra.mxu0 %v2925
    %3197 = vmatpush.msra.mxu0 %v2924
    %3198 = vmatpush.msra.mxu0 %v2923
    %3199 = vmatpush.msra.mxu0 %v2922
    %v3200 = vand.u32 %v2403, 4294901760
    %v3201 = vsub.f32 %v2403, %v3200
    %v3202 = vand.u32 %v3201, 4294901760
    %3203 = vmatmul.f32.gmra.mxu0 %v3202
    %v3204 = vpop.f32.mrf.mxu0
    %v3205 = vadd.f32 %v3182, %v3204
    %3206 = vdwg.mxu0
    %3207 = vmatpush.msra.mxu0 0.0
    %3208 = vmatpush.msra.mxu0 0.0
    %3209 = vmatpush.msra.mxu0 0.0
    %3210 = vmatpush.msra.mxu0 0.0
    %3211 = vmatpush.msra.mxu0 0.0
    %3212 = vmatpush.msra.mxu0 0.0
    %3213 = vmatpush.msra.mxu0 0.0
    %3214 = vmatpush.msra.mxu0 0.0
    %3215 = vmatpush.msra.mxu0 0.0
    %3216 = vmatpush.msra.mxu0 0.0
    %3217 = vmatpush.msra.mxu0 0.0
    %3218 = vmatpush.msra.mxu0 0.0
    %v3219 = vsub.f32 %v2925, %v2925
    %v3220 = vand.u32 %v3219, 4294901760
    %3221 = vmatpush.msra.mxu0 %v3220
    %v3222 = vsub.f32 %v2924, %v2924
    %v3223 = vand.u32 %v3222, 4294901760
    %3224 = vmatpush.msra.mxu0 %v3223
    %v3225 = vsub.f32 %v2923, %v2923
    %v3226 = vand.u32 %v3225, 4294901760
    %3227 = vmatpush.msra.mxu0 %v3226
    %v3228 = vsub.f32 %v2922, %v2922
    %v3229 = vand.u32 %v3228, 4294901760
    %3230 = vmatpush.msra.mxu0 %v3229
    %v3231 = vand.u32 %v2403, 4294901760
    %3232 = vmatmul.f32.gmra.mxu0 %v3231
    %v3233 = vpop.f32.mrf.mxu0
    %v3234 = vadd.f32 %v3205, %v3233
    %3235 = vdwg.mxu0
    %3236 = vmatpush.msra.mxu0 0.0
    %3237 = vmatpush.msra.mxu0 0.0
    %3238 = vmatpush.msra.mxu0 0.0
    %3239 = vmatpush.msra.mxu0 0.0
    %3240 = vmatpush.msra.mxu0 0.0
    %3241 = vmatpush.msra.mxu0 0.0
    %3242 = vmatpush.msra.mxu0 0.0
    %3243 = vmatpush.msra.mxu0 0.0
    %3244 = vmatpush.msra.mxu0 0.0
    %3245 = vmatpush.msra.mxu0 0.0
    %3246 = vmatpush.msra.mxu0 0.0
    %3247 = vmatpush.msra.mxu0 0.0
    %3248 = vmatpush.msra.mxu0 %v2925
    %3249 = vmatpush.msra.mxu0 %v2924
    %3250 = vmatpush.msra.mxu0 %v2923
    %3251 = vmatpush.msra.mxu0 %v2922
    %v3252 = vand.u32 %v2403, 4294901760
    %3253 = vmatmul.f32.gmra.mxu0 %v3252
    %v3254 = vpop.f32.mrf.mxu0
    %v3255 = vadd.f32 %v3234, %v3254
    %3256 = vdwg.mxu0
    %s3257 = scalar_lea.vmem %s12, 2
    %v3258 = vld [vmem:[%s3257] sm:$0x1]
    %v3260 = vperm.slane %v3258, 0
    %v3262 = vadd.f32 %v3255, %v3260
    %s3263 = scalar_lea.vmem %s10, 48
    %v3264 = vld [vmem:[%s3263] sm:$0xf]
    %v3265 = vld [vmem:[%s3263 + $0x4] sm:$0xf]
    %v3266 = vld [vmem:[%s3263 + $0x8] sm:$0xf]
    %v3267 = vld [vmem:[%s3263 + $0xc] sm:$0xf]
    %v3268 = vunpack.c.l.bf16 %v3264
    %v3269 = vunpack.c.l.bf16 %v3265
    %v3270 = vunpack.c.l.bf16 %v3266
    %v3271 = vunpack.c.l.bf16 %v3267
    %s3272 = scalar_lea.vmem %s11, 48
    %v3273 = vld [vmem:[%s3272] sm:$0xf]
    %v3274 = vld [vmem:[%s3272 + $0x4] sm:$0xf]
    %v3275 = vld [vmem:[%s3272 + $0x8] sm:$0xf]
    %v3276 = vld [vmem:[%s3272 + $0xc] sm:$0xf]
    %v3277 = vunpack.c.l.bf16 %v3273
    %v3278 = vunpack.c.l.bf16 %v3274
    %v3279 = vunpack.c.l.bf16 %v3275
    %v3280 = vunpack.c.l.bf16 %v3276
    %3281 = vmatpush.msra.mxu0 0.0
    %3282 = vmatpush.msra.mxu0 0.0
    %3283 = vmatpush.msra.mxu0 0.0
    %3284 = vmatpush.msra.mxu0 0.0
    %3285 = vmatpush.msra.mxu0 0.0
    %3286 = vmatpush.msra.mxu0 0.0
    %3287 = vmatpush.msra.mxu0 0.0
    %3288 = vmatpush.msra.mxu0 0.0
    %3289 = vmatpush.msra.mxu0 0.0
    %3290 = vmatpush.msra.mxu0 0.0
    %3291 = vmatpush.msra.mxu0 0.0
    %3292 = vmatpush.msra.mxu0 0.0
    %3293 = vmatpush.msra.mxu0 %v3280
    %3294 = vmatpush.msra.mxu0 %v3279
    %3295 = vmatpush.msra.mxu0 %v3278
    %3296 = vmatpush.msra.mxu0 %v3277
    %v3297 = vand.u32 %v2239, 4294901760
    %v3298 = vsub.f32 %v2239, %v3297
    %v3299 = vand.u32 %v3298, 4294901760
    %v3300 = vsub.f32 %v3298, %v3299
    %v3301 = vand.u32 %v3300, 4294901760
    %3302 = vmatmul.f32.gmra.mxu0 %v3301
    %v3303 = vpop.f32.mrf.mxu0
    %v3304 = vadd.f32 0.0, %v3303
    %3305 = vdwg.mxu0
    %3306 = vmatpush.msra.mxu0 0.0
    %3307 = vmatpush.msra.mxu0 0.0
    %3308 = vmatpush.msra.mxu0 0.0
    %3309 = vmatpush.msra.mxu0 0.0
    %3310 = vmatpush.msra.mxu0 0.0
    %3311 = vmatpush.msra.mxu0 0.0
    %3312 = vmatpush.msra.mxu0 0.0
    %3313 = vmatpush.msra.mxu0 0.0
    %3314 = vmatpush.msra.mxu0 0.0
    %3315 = vmatpush.msra.mxu0 0.0
    %3316 = vmatpush.msra.mxu0 0.0
    %3317 = vmatpush.msra.mxu0 0.0
    %v3318 = vsub.f32 %v3280, %v3280
    %v3319 = vand.u32 %v3318, 4294901760
    %v3320 = vsub.f32 %v3318, %v3319
    %v3321 = vand.u32 %v3320, 4294901760
    %3322 = vmatpush.msra.mxu0 %v3321
    %v3323 = vsub.f32 %v3279, %v3279
    %v3324 = vand.u32 %v3323, 4294901760
    %v3325 = vsub.f32 %v3323, %v3324
    %v3326 = vand.u32 %v3325, 4294901760
    %3327 = vmatpush.msra.mxu0 %v3326
    %v3328 = vsub.f32 %v3278, %v3278
    %v3329 = vand.u32 %v3328, 4294901760
    %v3330 = vsub.f32 %v3328, %v3329
    %v3331 = vand.u32 %v3330, 4294901760
    %3332 = vmatpush.msra.mxu0 %v3331
    %v3333 = vsub.f32 %v3277, %v3277
    %v3334 = vand.u32 %v3333, 4294901760
    %v3335 = vsub.f32 %v3333, %v3334
    %v3336 = vand.u32 %v3335, 4294901760
    %3337 = vmatpush.msra.mxu0 %v3336
    %v3338 = vand.u32 %v2239, 4294901760
    %3339 = vmatmul.f32.gmra.mxu0 %v3338
    %v3340 = vpop.f32.mrf.mxu0
    %v3341 = vadd.f32 %v3304, %v3340
    %3342 = vdwg.mxu0
    %3343 = vmatpush.msra.mxu0 0.0
    %3344 = vmatpush.msra.mxu0 0.0
    %3345 = vmatpush.msra.mxu0 0.0
    %3346 = vmatpush.msra.mxu0 0.0
    %3347 = vmatpush.msra.mxu0 0.0
    %3348 = vmatpush.msra.mxu0 0.0
    %3349 = vmatpush.msra.mxu0 0.0
    %3350 = vmatpush.msra.mxu0 0.0
    %3351 = vmatpush.msra.mxu0 0.0
    %3352 = vmatpush.msra.mxu0 0.0
    %3353 = vmatpush.msra.mxu0 0.0
    %3354 = vmatpush.msra.mxu0 0.0
    %v3355 = vsub.f32 %v3280, %v3280
    %3356 = vmatpush.msra.mxu0 %v3355
    %v3357 = vsub.f32 %v3279, %v3279
    %3358 = vmatpush.msra.mxu0 %v3357
    %v3359 = vsub.f32 %v3278, %v3278
    %3360 = vmatpush.msra.mxu0 %v3359
    %v3361 = vsub.f32 %v3277, %v3277
    %3362 = vmatpush.msra.mxu0 %v3361
    %v3363 = vand.u32 %v2239, 4294901760
    %v3364 = vsub.f32 %v2239, %v3363
    %3365 = vmatmul.f32.gmra.mxu0 %v3364
    %v3366 = vpop.f32.mrf.mxu0
    %v3367 = vadd.f32 %v3341, %v3366
    %3368 = vdwg.mxu0
    %3369 = vmatpush.msra.mxu0 0.0
    %3370 = vmatpush.msra.mxu0 0.0
    %3371 = vmatpush.msra.mxu0 0.0
    %3372 = vmatpush.msra.mxu0 0.0
    %3373 = vmatpush.msra.mxu0 0.0
    %3374 = vmatpush.msra.mxu0 0.0
    %3375 = vmatpush.msra.mxu0 0.0
    %3376 = vmatpush.msra.mxu0 0.0
    %3377 = vmatpush.msra.mxu0 0.0
    %3378 = vmatpush.msra.mxu0 0.0
    %3379 = vmatpush.msra.mxu0 0.0
    %3380 = vmatpush.msra.mxu0 0.0
    %3381 = vmatpush.msra.mxu0 %v3280
    %3382 = vmatpush.msra.mxu0 %v3279
    %3383 = vmatpush.msra.mxu0 %v3278
    %3384 = vmatpush.msra.mxu0 %v3277
    %v3385 = vand.u32 %v2239, 4294901760
    %v3386 = vsub.f32 %v2239, %v3385
    %v3387 = vand.u32 %v3386, 4294901760
    %3388 = vmatmul.f32.gmra.mxu0 %v3387
    %v3389 = vpop.f32.mrf.mxu0
    %v3390 = vadd.f32 %v3367, %v3389
    %3391 = vdwg.mxu0
    %3392 = vmatpush.msra.mxu0 0.0
    %3393 = vmatpush.msra.mxu0 0.0
    %3394 = vmatpush.msra.mxu0 0.0
    %3395 = vmatpush.msra.mxu0 0.0
    %3396 = vmatpush.msra.mxu0 0.0
    %3397 = vmatpush.msra.mxu0 0.0
    %3398 = vmatpush.msra.mxu0 0.0
    %3399 = vmatpush.msra.mxu0 0.0
    %3400 = vmatpush.msra.mxu0 0.0
    %3401 = vmatpush.msra.mxu0 0.0
    %3402 = vmatpush.msra.mxu0 0.0
    %3403 = vmatpush.msra.mxu0 0.0
    %v3404 = vsub.f32 %v3280, %v3280
    %v3405 = vand.u32 %v3404, 4294901760
    %3406 = vmatpush.msra.mxu0 %v3405
    %v3407 = vsub.f32 %v3279, %v3279
    %v3408 = vand.u32 %v3407, 4294901760
    %3409 = vmatpush.msra.mxu0 %v3408
    %v3410 = vsub.f32 %v3278, %v3278
    %v3411 = vand.u32 %v3410, 4294901760
    %3412 = vmatpush.msra.mxu0 %v3411
    %v3413 = vsub.f32 %v3277, %v3277
    %v3414 = vand.u32 %v3413, 4294901760
    %3415 = vmatpush.msra.mxu0 %v3414
    %v3416 = vand.u32 %v2239, 4294901760
    %3417 = vmatmul.f32.gmra.mxu0 %v3416
    %v3418 = vpop.f32.mrf.mxu0
    %v3419 = vadd.f32 %v3390, %v3418
    %3420 = vdwg.mxu0
    %3421 = vmatpush.msra.mxu0 0.0
    %3422 = vmatpush.msra.mxu0 0.0
    %3423 = vmatpush.msra.mxu0 0.0
    %3424 = vmatpush.msra.mxu0 0.0
    %3425 = vmatpush.msra.mxu0 0.0
    %3426 = vmatpush.msra.mxu0 0.0
    %3427 = vmatpush.msra.mxu0 0.0
    %3428 = vmatpush.msra.mxu0 0.0
    %3429 = vmatpush.msra.mxu0 0.0
    %3430 = vmatpush.msra.mxu0 0.0
    %3431 = vmatpush.msra.mxu0 0.0
    %3432 = vmatpush.msra.mxu0 0.0
    %3433 = vmatpush.msra.mxu0 %v3280
    %3434 = vmatpush.msra.mxu0 %v3279
    %3435 = vmatpush.msra.mxu0 %v3278
    %3436 = vmatpush.msra.mxu0 %v3277
    %v3437 = vand.u32 %v2239, 4294901760
    %3438 = vmatmul.f32.gmra.mxu0 %v3437
    %v3439 = vpop.f32.mrf.mxu0
    %v3440 = vadd.f32 %v3419, %v3439
    %3441 = vdwg.mxu0
    %3442 = vmatpush.msra.mxu0 0.0
    %3443 = vmatpush.msra.mxu0 0.0
    %3444 = vmatpush.msra.mxu0 0.0
    %3445 = vmatpush.msra.mxu0 0.0
    %3446 = vmatpush.msra.mxu0 0.0
    %3447 = vmatpush.msra.mxu0 0.0
    %3448 = vmatpush.msra.mxu0 0.0
    %3449 = vmatpush.msra.mxu0 0.0
    %3450 = vmatpush.msra.mxu0 0.0
    %3451 = vmatpush.msra.mxu0 0.0
    %3452 = vmatpush.msra.mxu0 0.0
    %3453 = vmatpush.msra.mxu0 0.0
    %3454 = vmatpush.msra.mxu0 %v3271
    %3455 = vmatpush.msra.mxu0 %v3270
    %3456 = vmatpush.msra.mxu0 %v3269
    %3457 = vmatpush.msra.mxu0 %v3268
    %v3458 = vand.u32 %v2403, 4294901760
    %v3459 = vsub.f32 %v2403, %v3458
    %v3460 = vand.u32 %v3459, 4294901760
    %v3461 = vsub.f32 %v3459, %v3460
    %v3462 = vand.u32 %v3461, 4294901760
    %3463 = vmatmul.f32.gmra.mxu0 %v3462
    %v3464 = vpop.f32.mrf.mxu0
    %v3465 = vadd.f32 %v3440, %v3464
    %3466 = vdwg.mxu0
    %3467 = vmatpush.msra.mxu0 0.0
    %3468 = vmatpush.msra.mxu0 0.0
    %3469 = vmatpush.msra.mxu0 0.0
    %3470 = vmatpush.msra.mxu0 0.0
    %3471 = vmatpush.msra.mxu0 0.0
    %3472 = vmatpush.msra.mxu0 0.0
    %3473 = vmatpush.msra.mxu0 0.0
    %3474 = vmatpush.msra.mxu0 0.0
    %3475 = vmatpush.msra.mxu0 0.0
    %3476 = vmatpush.msra.mxu0 0.0
    %3477 = vmatpush.msra.mxu0 0.0
    %3478 = vmatpush.msra.mxu0 0.0
    %v3479 = vsub.f32 %v3271, %v3271
    %v3480 = vand.u32 %v3479, 4294901760
    %v3481 = vsub.f32 %v3479, %v3480
    %v3482 = vand.u32 %v3481, 4294901760
    %3483 = vmatpush.msra.mxu0 %v3482
    %v3484 = vsub.f32 %v3270, %v3270
    %v3485 = vand.u32 %v3484, 4294901760
    %v3486 = vsub.f32 %v3484, %v3485
    %v3487 = vand.u32 %v3486, 4294901760
    %3488 = vmatpush.msra.mxu0 %v3487
    %v3489 = vsub.f32 %v3269, %v3269
    %v3490 = vand.u32 %v3489, 4294901760
    %v3491 = vsub.f32 %v3489, %v3490
    %v3492 = vand.u32 %v3491, 4294901760
    %3493 = vmatpush.msra.mxu0 %v3492
    %v3494 = vsub.f32 %v3268, %v3268
    %v3495 = vand.u32 %v3494, 4294901760
    %v3496 = vsub.f32 %v3494, %v3495
    %v3497 = vand.u32 %v3496, 4294901760
    %3498 = vmatpush.msra.mxu0 %v3497
    %v3499 = vand.u32 %v2403, 4294901760
    %3500 = vmatmul.f32.gmra.mxu0 %v3499
    %v3501 = vpop.f32.mrf.mxu0
    %v3502 = vadd.f32 %v3465, %v3501
    %3503 = vdwg.mxu0
    %3504 = vmatpush.msra.mxu0 0.0
    %3505 = vmatpush.msra.mxu0 0.0
    %3506 = vmatpush.msra.mxu0 0.0
    %3507 = vmatpush.msra.mxu0 0.0
    %3508 = vmatpush.msra.mxu0 0.0
    %3509 = vmatpush.msra.mxu0 0.0
    %3510 = vmatpush.msra.mxu0 0.0
    %3511 = vmatpush.msra.mxu0 0.0
    %3512 = vmatpush.msra.mxu0 0.0
    %3513 = vmatpush.msra.mxu0 0.0
    %3514 = vmatpush.msra.mxu0 0.0
    %3515 = vmatpush.msra.mxu0 0.0
    %v3516 = vsub.f32 %v3271, %v3271
    %3517 = vmatpush.msra.mxu0 %v3516
    %v3518 = vsub.f32 %v3270, %v3270
    %3519 = vmatpush.msra.mxu0 %v3518
    %v3520 = vsub.f32 %v3269, %v3269
    %3521 = vmatpush.msra.mxu0 %v3520
    %v3522 = vsub.f32 %v3268, %v3268
    %3523 = vmatpush.msra.mxu0 %v3522
    %v3524 = vand.u32 %v2403, 4294901760
    %v3525 = vsub.f32 %v2403, %v3524
    %3526 = vmatmul.f32.gmra.mxu0 %v3525
    %v3527 = vpop.f32.mrf.mxu0
    %v3528 = vadd.f32 %v3502, %v3527
    %3529 = vdwg.mxu0
    %3530 = vmatpush.msra.mxu0 0.0
    %3531 = vmatpush.msra.mxu0 0.0
    %3532 = vmatpush.msra.mxu0 0.0
    %3533 = vmatpush.msra.mxu0 0.0
    %3534 = vmatpush.msra.mxu0 0.0
    %3535 = vmatpush.msra.mxu0 0.0
    %3536 = vmatpush.msra.mxu0 0.0
    %3537 = vmatpush.msra.mxu0 0.0
    %3538 = vmatpush.msra.mxu0 0.0
    %3539 = vmatpush.msra.mxu0 0.0
    %3540 = vmatpush.msra.mxu0 0.0
    %3541 = vmatpush.msra.mxu0 0.0
    %3542 = vmatpush.msra.mxu0 %v3271
    %3543 = vmatpush.msra.mxu0 %v3270
    %3544 = vmatpush.msra.mxu0 %v3269
    %3545 = vmatpush.msra.mxu0 %v3268
    %v3546 = vand.u32 %v2403, 4294901760
    %v3547 = vsub.f32 %v2403, %v3546
    %v3548 = vand.u32 %v3547, 4294901760
    %3549 = vmatmul.f32.gmra.mxu0 %v3548
    %v3550 = vpop.f32.mrf.mxu0
    %v3551 = vadd.f32 %v3528, %v3550
    %3552 = vdwg.mxu0
    %3553 = vmatpush.msra.mxu0 0.0
    %3554 = vmatpush.msra.mxu0 0.0
    %3555 = vmatpush.msra.mxu0 0.0
    %3556 = vmatpush.msra.mxu0 0.0
    %3557 = vmatpush.msra.mxu0 0.0
    %3558 = vmatpush.msra.mxu0 0.0
    %3559 = vmatpush.msra.mxu0 0.0
    %3560 = vmatpush.msra.mxu0 0.0
    %3561 = vmatpush.msra.mxu0 0.0
    %3562 = vmatpush.msra.mxu0 0.0
    %3563 = vmatpush.msra.mxu0 0.0
    %3564 = vmatpush.msra.mxu0 0.0
    %v3565 = vsub.f32 %v3271, %v3271
    %v3566 = vand.u32 %v3565, 4294901760
    %3567 = vmatpush.msra.mxu0 %v3566
    %v3568 = vsub.f32 %v3270, %v3270
    %v3569 = vand.u32 %v3568, 4294901760
    %3570 = vmatpush.msra.mxu0 %v3569
    %v3571 = vsub.f32 %v3269, %v3269
    %v3572 = vand.u32 %v3571, 4294901760
    %3573 = vmatpush.msra.mxu0 %v3572
    %v3574 = vsub.f32 %v3268, %v3268
    %v3575 = vand.u32 %v3574, 4294901760
    %3576 = vmatpush.msra.mxu0 %v3575
    %v3577 = vand.u32 %v2403, 4294901760
    %3578 = vmatmul.f32.gmra.mxu0 %v3577
    %v3579 = vpop.f32.mrf.mxu0
    %v3580 = vadd.f32 %v3551, %v3579
    %3581 = vdwg.mxu0
    %3582 = vmatpush.msra.mxu0 0.0
    %3583 = vmatpush.msra.mxu0 0.0
    %3584 = vmatpush.msra.mxu0 0.0
    %3585 = vmatpush.msra.mxu0 0.0
    %3586 = vmatpush.msra.mxu0 0.0
    %3587 = vmatpush.msra.mxu0 0.0
    %3588 = vmatpush.msra.mxu0 0.0
    %3589 = vmatpush.msra.mxu0 0.0
    %3590 = vmatpush.msra.mxu0 0.0
    %3591 = vmatpush.msra.mxu0 0.0
    %3592 = vmatpush.msra.mxu0 0.0
    %3593 = vmatpush.msra.mxu0 0.0
    %3594 = vmatpush.msra.mxu0 %v3271
    %3595 = vmatpush.msra.mxu0 %v3270
    %3596 = vmatpush.msra.mxu0 %v3269
    %3597 = vmatpush.msra.mxu0 %v3268
    %v3598 = vand.u32 %v2403, 4294901760
    %3599 = vmatmul.f32.gmra.mxu0 %v3598
    %v3600 = vpop.f32.mrf.mxu0
    %v3601 = vadd.f32 %v3580, %v3600
    %3602 = vdwg.mxu0
    %s3603 = scalar_lea.vmem %s12, 3
    %v3604 = vld [vmem:[%s3603] sm:$0x1]
    %v3606 = vperm.slane %v3604, 0
    %v3608 = vadd.f32 %v3601, %v3606
    %v3609 = vxor.u32 %v2570, 2147483648
    %v3610 = vmul.f32 %v3609, 1.442695
    %v3611 = vpow.pop %v3610
    %v3612 = vadd.f32 %v3611, 1.0
    %v3613 = vrcp.pop %v3612
    %v3614 = vmul.f32 %v3612, %v3613
    %v3615 = vsub.f32 1.0, %v3614
    %v3616 = vmul.f32 %v3613, %v3615
    %v3617 = vadd.f32 %v3613, %v3616
    %vm3618 = vweird.f32 %v3612
    %vm3619 = vweird.f32 %v3613
    %vm3620 = vmor %vm3618, %vm3619
    %v3621 = vsel %vm3620, %v3613, %v3617
    %v3622 = vand.u32 2147483647, %v3612
    %vm3623 = vcmp.eq.f32.partialorder %v3622, 8.507059e+37
    %v3624 = vand.u32 %v3612, 2147483648
    %v3625 = vor.u32 1.1754944e-38, %v3624
    %v3626 = vsel %vm3623, %v3625, %v3621
    %v3627 = vmul.f32 1.0, %v3626
    %v3628 = vxor.u32 %v2916, 2147483648
    %v3629 = vmul.f32 %v3628, 1.442695
    %v3630 = vpow.pop %v3629
    %v3631 = vadd.f32 %v3630, 1.0
    %v3632 = vrcp.pop %v3631
    %v3633 = vmul.f32 %v3631, %v3632
    %v3634 = vsub.f32 1.0, %v3633
    %v3635 = vmul.f32 %v3632, %v3634
    %v3636 = vadd.f32 %v3632, %v3635
    %vm3637 = vweird.f32 %v3631
    %vm3638 = vweird.f32 %v3632
    %vm3639 = vmor %vm3637, %vm3638
    %v3640 = vsel %vm3639, %v3632, %v3636
    %v3641 = vand.u32 2147483647, %v3631
    %vm3642 = vcmp.eq.f32.partialorder %v3641, 8.507059e+37
    %v3643 = vand.u32 %v3631, 2147483648
    %v3644 = vor.u32 1.1754944e-38, %v3643
    %v3645 = vsel %vm3642, %v3644, %v3640
    %v3646 = vmul.f32 1.0, %v3645
    %v3647 = vtanh.pop %v3262
    %v3648 = vxor.u32 %v3608, 2147483648
    %v3649 = vmul.f32 %v3648, 1.442695
    %v3650 = vpow.pop %v3649
    %v3651 = vadd.f32 %v3650, 1.0
    %v3652 = vrcp.pop %v3651
    %v3653 = vmul.f32 %v3651, %v3652
    %v3654 = vsub.f32 1.0, %v3653
    %v3655 = vmul.f32 %v3652, %v3654
    %v3656 = vadd.f32 %v3652, %v3655
    %vm3657 = vweird.f32 %v3651
    %vm3658 = vweird.f32 %v3652
    %vm3659 = vmor %vm3657, %vm3658
    %v3660 = vsel %vm3659, %v3652, %v3656
    %v3661 = vand.u32 2147483647, %v3651
    %vm3662 = vcmp.eq.f32.partialorder %v3661, 8.507059e+37
    %v3663 = vand.u32 %v3651, 2147483648
    %v3664 = vor.u32 1.1754944e-38, %v3663
    %v3665 = vsel %vm3662, %v3664, %v3660
    %v3666 = vmul.f32 1.0, %v3665
    %v3667 = vmul.f32 %v3646, %v2221
    %v3668 = vmul.f32 %v3627, %v3647
    %v3669 = vadd.f32 %v3667, %v3668
    %v3670 = vtanh.pop %v3669
    %v3671 = vmul.f32 %v3666, %v3670
    %3672 = vst.msk [vmem:[%s2218] sm:$0xff] %vm95, %v3671
    %3673 = vst.msk [vmem:[%s2220] sm:$0xff] %vm95, %v3669
    %v3674 = vld [vmem:[%s4] sm:$0xf]
    %v3675 = vld [vmem:[%s4 + $0x4] sm:$0xf]
    %v3676 = vld [vmem:[%s4 + $0x8] sm:$0xf]
    %v3677 = vld [vmem:[%s4 + $0xc] sm:$0xf]
    %v3678 = vld [vmem:[%s4 + $0x10] sm:$0xf]
    %v3679 = vld [vmem:[%s4 + $0x14] sm:$0xf]
    %v3680 = vld [vmem:[%s4 + $0x18] sm:$0xf]
    %v3681 = vld [vmem:[%s4 + $0x1c] sm:$0xf]
    %v3682 = vld [vmem:[%s4 + $0x20] sm:$0xf]
    %v3683 = vld [vmem:[%s4 + $0x24] sm:$0xf]
    %v3684 = vld [vmem:[%s4 + $0x28] sm:$0xf]
    %v3685 = vld [vmem:[%s4 + $0x2c] sm:$0xf]
    %v3686 = vld [vmem:[%s4 + $0x30] sm:$0xf]
    %v3687 = vld [vmem:[%s4 + $0x34] sm:$0xf]
    %v3688 = vld [vmem:[%s4 + $0x38] sm:$0xf]
    %v3689 = vld [vmem:[%s4 + $0x3c] sm:$0xf]
    %v3690 = vld [vmem:[%s4 + $0x40] sm:$0xf]
    %v3691 = vld [vmem:[%s4 + $0x44] sm:$0xf]
    %v3692 = vld [vmem:[%s4 + $0x48] sm:$0xf]
    %v3693 = vld [vmem:[%s4 + $0x4c] sm:$0xf]
    %v3694 = vld [vmem:[%s4 + $0x50] sm:$0xf]
    %v3695 = vld [vmem:[%s4 + $0x54] sm:$0xf]
    %v3696 = vld [vmem:[%s4 + $0x58] sm:$0xf]
    %v3697 = vld [vmem:[%s4 + $0x5c] sm:$0xf]
    %v3698 = vld [vmem:[%s4 + $0x60] sm:$0xf]
    %v3699 = vld [vmem:[%s4 + $0x64] sm:$0xf]
    %v3700 = vld [vmem:[%s4 + $0x68] sm:$0xf]
    %v3701 = vld [vmem:[%s4 + $0x6c] sm:$0xf]
    %v3702 = vld [vmem:[%s4 + $0x70] sm:$0xf]
    %v3703 = vld [vmem:[%s4 + $0x74] sm:$0xf]
    %v3704 = vld [vmem:[%s4 + $0x78] sm:$0xf]
    %v3705 = vld [vmem:[%s4 + $0x7c] sm:$0xf]
    %v3706 = vld [vmem:[%s4 + $0x80] sm:$0xf]
    %v3707 = vld [vmem:[%s4 + $0x84] sm:$0xf]
    %v3708 = vld [vmem:[%s4 + $0x88] sm:$0xf]
    %v3709 = vld [vmem:[%s4 + $0x8c] sm:$0xf]
    %v3710 = vld [vmem:[%s4 + $0x90] sm:$0xf]
    %v3711 = vld [vmem:[%s4 + $0x94] sm:$0xf]
    %v3712 = vld [vmem:[%s4 + $0x98] sm:$0xf]
    %v3713 = vld [vmem:[%s4 + $0x9c] sm:$0xf]
    %v3714 = vld [vmem:[%s4 + $0xa0] sm:$0xf]
    %v3715 = vld [vmem:[%s4 + $0xa4] sm:$0xf]
    %v3716 = vld [vmem:[%s4 + $0xa8] sm:$0xf]
    %v3717 = vld [vmem:[%s4 + $0xac] sm:$0xf]
    %v3718 = vld [vmem:[%s4 + $0xb0] sm:$0xf]
    %v3719 = vld [vmem:[%s4 + $0xb4] sm:$0xf]
    %v3720 = vld [vmem:[%s4 + $0xb8] sm:$0xf]
    %v3721 = vld [vmem:[%s4 + $0xbc] sm:$0xf]
    %v3722 = vld [vmem:[%s4 + $0xc0] sm:$0xf]
    %v3723 = vld [vmem:[%s4 + $0xc4] sm:$0xf]
    %v3724 = vld [vmem:[%s4 + $0xc8] sm:$0xf]
    %v3725 = vld [vmem:[%s4 + $0xcc] sm:$0xf]
    %v3726 = vld [vmem:[%s4 + $0xd0] sm:$0xf]
    %v3727 = vld [vmem:[%s4 + $0xd4] sm:$0xf]
    %v3728 = vld [vmem:[%s4 + $0xd8] sm:$0xf]
    %v3729 = vld [vmem:[%s4 + $0xdc] sm:$0xf]
    %v3730 = vld [vmem:[%s4 + $0xe0] sm:$0xf]
    %v3731 = vld [vmem:[%s4 + $0xe4] sm:$0xf]
    %v3732 = vld [vmem:[%s4 + $0xe8] sm:$0xf]
    %v3733 = vld [vmem:[%s4 + $0xec] sm:$0xf]
    %v3734 = vld [vmem:[%s4 + $0xf0] sm:$0xf]
    %v3735 = vld [vmem:[%s4 + $0xf4] sm:$0xf]
    %v3736 = vld [vmem:[%s4 + $0xf8] sm:$0xf]
    %v3737 = vld [vmem:[%s4 + $0xfc] sm:$0xf]
    %v3738 = vld [vmem:[%s4 + $0x100] sm:$0xf]
    %v3739 = vld [vmem:[%s4 + $0x104] sm:$0xf]
    %v3740 = vld [vmem:[%s4 + $0x108] sm:$0xf]
    %v3741 = vld [vmem:[%s4 + $0x10c] sm:$0xf]
    %v3742 = vld [vmem:[%s4 + $0x110] sm:$0xf]
    %v3743 = vld [vmem:[%s4 + $0x114] sm:$0xf]
    %v3744 = vld [vmem:[%s4 + $0x118] sm:$0xf]
    %v3745 = vld [vmem:[%s4 + $0x11c] sm:$0xf]
    %v3746 = vld [vmem:[%s4 + $0x120] sm:$0xf]
    %v3747 = vld [vmem:[%s4 + $0x124] sm:$0xf]
    %v3748 = vld [vmem:[%s4 + $0x128] sm:$0xf]
    %v3749 = vld [vmem:[%s4 + $0x12c] sm:$0xf]
    %v3750 = vld [vmem:[%s4 + $0x130] sm:$0xf]
    %v3751 = vld [vmem:[%s4 + $0x134] sm:$0xf]
    %v3752 = vld [vmem:[%s4 + $0x138] sm:$0xf]
    %v3753 = vld [vmem:[%s4 + $0x13c] sm:$0xf]
    %v3754 = vld [vmem:[%s4 + $0x140] sm:$0xf]
    %v3755 = vld [vmem:[%s4 + $0x144] sm:$0xf]
    %v3756 = vld [vmem:[%s4 + $0x148] sm:$0xf]
    %v3757 = vld [vmem:[%s4 + $0x14c] sm:$0xf]
    %v3758 = vld [vmem:[%s4 + $0x150] sm:$0xf]
    %v3759 = vld [vmem:[%s4 + $0x154] sm:$0xf]
    %v3760 = vld [vmem:[%s4 + $0x158] sm:$0xf]
    %v3761 = vld [vmem:[%s4 + $0x15c] sm:$0xf]
    %v3762 = vld [vmem:[%s4 + $0x160] sm:$0xf]
    %v3763 = vld [vmem:[%s4 + $0x164] sm:$0xf]
    %v3764 = vld [vmem:[%s4 + $0x168] sm:$0xf]
    %v3765 = vld [vmem:[%s4 + $0x16c] sm:$0xf]
    %v3766 = vld [vmem:[%s4 + $0x170] sm:$0xf]
    %v3767 = vld [vmem:[%s4 + $0x174] sm:$0xf]
    %v3768 = vld [vmem:[%s4 + $0x178] sm:$0xf]
    %v3769 = vld [vmem:[%s4 + $0x17c] sm:$0xf]
    %v3770 = vld [vmem:[%s4 + $0x180] sm:$0xf]
    %v3771 = vld [vmem:[%s4 + $0x184] sm:$0xf]
    %v3772 = vld [vmem:[%s4 + $0x188] sm:$0xf]
    %v3773 = vld [vmem:[%s4 + $0x18c] sm:$0xf]
    %v3774 = vld [vmem:[%s4 + $0x190] sm:$0xf]
    %v3775 = vld [vmem:[%s4 + $0x194] sm:$0xf]
    %v3776 = vld [vmem:[%s4 + $0x198] sm:$0xf]
    %v3777 = vld [vmem:[%s4 + $0x19c] sm:$0xf]
    %v3778 = vld [vmem:[%s4 + $0x1a0] sm:$0xf]
    %v3779 = vld [vmem:[%s4 + $0x1a4] sm:$0xf]
    %v3780 = vld [vmem:[%s4 + $0x1a8] sm:$0xf]
    %v3781 = vld [vmem:[%s4 + $0x1ac] sm:$0xf]
    %v3782 = vld [vmem:[%s4 + $0x1b0] sm:$0xf]
    %v3783 = vld [vmem:[%s4 + $0x1b4] sm:$0xf]
    %v3784 = vld [vmem:[%s4 + $0x1b8] sm:$0xf]
    %v3785 = vld [vmem:[%s4 + $0x1bc] sm:$0xf]
    %v3786 = vld [vmem:[%s4 + $0x1c0] sm:$0xf]
    %v3787 = vld [vmem:[%s4 + $0x1c4] sm:$0xf]
    %v3788 = vld [vmem:[%s4 + $0x1c8] sm:$0xf]
    %v3789 = vld [vmem:[%s4 + $0x1cc] sm:$0xf]
    %v3790 = vld [vmem:[%s4 + $0x1d0] sm:$0xf]
    %v3791 = vld [vmem:[%s4 + $0x1d4] sm:$0xf]
    %v3792 = vld [vmem:[%s4 + $0x1d8] sm:$0xf]
    %v3793 = vld [vmem:[%s4 + $0x1dc] sm:$0xf]
    %v3794 = vld [vmem:[%s4 + $0x1e0] sm:$0xf]
    %v3795 = vld [vmem:[%s4 + $0x1e4] sm:$0xf]
    %v3796 = vld [vmem:[%s4 + $0x1e8] sm:$0xf]
    %v3797 = vld [vmem:[%s4 + $0x1ec] sm:$0xf]
    %v3798 = vld [vmem:[%s4 + $0x1f0] sm:$0xf]
    %v3799 = vld [vmem:[%s4 + $0x1f4] sm:$0xf]
    %v3800 = vld [vmem:[%s4 + $0x1f8] sm:$0xf]
    %v3801 = vld [vmem:[%s4 + $0x1fc] sm:$0xf]
    %v3802 = vunpack.c.l.bf16 %v3674
    %v3803 = vunpack.c.l.bf16 %v3675
    %v3804 = vunpack.c.l.bf16 %v3676
    %v3805 = vunpack.c.l.bf16 %v3677
    %v3806 = vunpack.c.l.bf16 %v3678
    %v3807 = vunpack.c.l.bf16 %v3679
    %v3808 = vunpack.c.l.bf16 %v3680
    %v3809 = vunpack.c.l.bf16 %v3681
    %v3810 = vunpack.c.l.bf16 %v3682
    %v3811 = vunpack.c.l.bf16 %v3683
    %v3812 = vunpack.c.l.bf16 %v3684
    %v3813 = vunpack.c.l.bf16 %v3685
    %v3814 = vunpack.c.l.bf16 %v3686
    %v3815 = vunpack.c.l.bf16 %v3687
    %v3816 = vunpack.c.l.bf16 %v3688
    %v3817 = vunpack.c.l.bf16 %v3689
    %v3818 = vunpack.c.l.bf16 %v3690
    %v3819 = vunpack.c.l.bf16 %v3691
    %v3820 = vunpack.c.l.bf16 %v3692
    %v3821 = vunpack.c.l.bf16 %v3693
    %v3822 = vunpack.c.l.bf16 %v3694
    %v3823 = vunpack.c.l.bf16 %v3695
    %v3824 = vunpack.c.l.bf16 %v3696
    %v3825 = vunpack.c.l.bf16 %v3697
    %v3826 = vunpack.c.l.bf16 %v3698
    %v3827 = vunpack.c.l.bf16 %v3699
    %v3828 = vunpack.c.l.bf16 %v3700
    %v3829 = vunpack.c.l.bf16 %v3701
    %v3830 = vunpack.c.l.bf16 %v3702
    %v3831 = vunpack.c.l.bf16 %v3703
    %v3832 = vunpack.c.l.bf16 %v3704
    %v3833 = vunpack.c.l.bf16 %v3705
    %v3834 = vunpack.c.l.bf16 %v3706
    %v3835 = vunpack.c.l.bf16 %v3707
    %v3836 = vunpack.c.l.bf16 %v3708
    %v3837 = vunpack.c.l.bf16 %v3709
    %v3838 = vunpack.c.l.bf16 %v3710
    %v3839 = vunpack.c.l.bf16 %v3711
    %v3840 = vunpack.c.l.bf16 %v3712
    %v3841 = vunpack.c.l.bf16 %v3713
    %v3842 = vunpack.c.l.bf16 %v3714
    %v3843 = vunpack.c.l.bf16 %v3715
    %v3844 = vunpack.c.l.bf16 %v3716
    %v3845 = vunpack.c.l.bf16 %v3717
    %v3846 = vunpack.c.l.bf16 %v3718
    %v3847 = vunpack.c.l.bf16 %v3719
    %v3848 = vunpack.c.l.bf16 %v3720
    %v3849 = vunpack.c.l.bf16 %v3721
    %v3850 = vunpack.c.l.bf16 %v3722
    %v3851 = vunpack.c.l.bf16 %v3723
    %v3852 = vunpack.c.l.bf16 %v3724
    %v3853 = vunpack.c.l.bf16 %v3725
    %v3854 = vunpack.c.l.bf16 %v3726
    %v3855 = vunpack.c.l.bf16 %v3727
    %v3856 = vunpack.c.l.bf16 %v3728
    %v3857 = vunpack.c.l.bf16 %v3729
    %v3858 = vunpack.c.l.bf16 %v3730
    %v3859 = vunpack.c.l.bf16 %v3731
    %v3860 = vunpack.c.l.bf16 %v3732
    %v3861 = vunpack.c.l.bf16 %v3733
    %v3862 = vunpack.c.l.bf16 %v3734
    %v3863 = vunpack.c.l.bf16 %v3735
    %v3864 = vunpack.c.l.bf16 %v3736
    %v3865 = vunpack.c.l.bf16 %v3737
    %v3866 = vunpack.c.l.bf16 %v3738
    %v3867 = vunpack.c.l.bf16 %v3739
    %v3868 = vunpack.c.l.bf16 %v3740
    %v3869 = vunpack.c.l.bf16 %v3741
    %v3870 = vunpack.c.l.bf16 %v3742
    %v3871 = vunpack.c.l.bf16 %v3743
    %v3872 = vunpack.c.l.bf16 %v3744
    %v3873 = vunpack.c.l.bf16 %v3745
    %v3874 = vunpack.c.l.bf16 %v3746
    %v3875 = vunpack.c.l.bf16 %v3747
    %v3876 = vunpack.c.l.bf16 %v3748
    %v3877 = vunpack.c.l.bf16 %v3749
    %v3878 = vunpack.c.l.bf16 %v3750
    %v3879 = vunpack.c.l.bf16 %v3751
    %v3880 = vunpack.c.l.bf16 %v3752
    %v3881 = vunpack.c.l.bf16 %v3753
    %v3882 = vunpack.c.l.bf16 %v3754
    %v3883 = vunpack.c.l.bf16 %v3755
    %v3884 = vunpack.c.l.bf16 %v3756
    %v3885 = vunpack.c.l.bf16 %v3757
    %v3886 = vunpack.c.l.bf16 %v3758
    %v3887 = vunpack.c.l.bf16 %v3759
    %v3888 = vunpack.c.l.bf16 %v3760
    %v3889 = vunpack.c.l.bf16 %v3761
    %v3890 = vunpack.c.l.bf16 %v3762
    %v3891 = vunpack.c.l.bf16 %v3763
    %v3892 = vunpack.c.l.bf16 %v3764
    %v3893 = vunpack.c.l.bf16 %v3765
    %v3894 = vunpack.c.l.bf16 %v3766
    %v3895 = vunpack.c.l.bf16 %v3767
    %v3896 = vunpack.c.l.bf16 %v3768
    %v3897 = vunpack.c.l.bf16 %v3769
    %v3898 = vunpack.c.l.bf16 %v3770
    %v3899 = vunpack.c.l.bf16 %v3771
    %v3900 = vunpack.c.l.bf16 %v3772
    %v3901 = vunpack.c.l.bf16 %v3773
    %v3902 = vunpack.c.l.bf16 %v3774
    %v3903 = vunpack.c.l.bf16 %v3775
    %v3904 = vunpack.c.l.bf16 %v3776
    %v3905 = vunpack.c.l.bf16 %v3777
    %v3906 = vunpack.c.l.bf16 %v3778
    %v3907 = vunpack.c.l.bf16 %v3779
    %v3908 = vunpack.c.l.bf16 %v3780
    %v3909 = vunpack.c.l.bf16 %v3781
    %v3910 = vunpack.c.l.bf16 %v3782
    %v3911 = vunpack.c.l.bf16 %v3783
    %v3912 = vunpack.c.l.bf16 %v3784
    %v3913 = vunpack.c.l.bf16 %v3785
    %v3914 = vunpack.c.l.bf16 %v3786
    %v3915 = vunpack.c.l.bf16 %v3787
    %v3916 = vunpack.c.l.bf16 %v3788
    %v3917 = vunpack.c.l.bf16 %v3789
    %v3918 = vunpack.c.l.bf16 %v3790
    %v3919 = vunpack.c.l.bf16 %v3791
    %v3920 = vunpack.c.l.bf16 %v3792
    %v3921 = vunpack.c.l.bf16 %v3793
    %v3922 = vunpack.c.l.bf16 %v3794
    %v3923 = vunpack.c.l.bf16 %v3795
    %v3924 = vunpack.c.l.bf16 %v3796
    %v3925 = vunpack.c.l.bf16 %v3797
    %v3926 = vunpack.c.l.bf16 %v3798
    %v3927 = vunpack.c.l.bf16 %v3799
    %v3928 = vunpack.c.l.bf16 %v3800
    %v3929 = vunpack.c.l.bf16 %v3801
    %v3930 = vld [vmem:[%s5] sm:$0xff]
    %v3931 = vld [vmem:[%s13] sm:$0xf]
    %v3932 = vld [vmem:[%s13 + $0x4] sm:$0xf]
    %v3933 = vld [vmem:[%s13 + $0x8] sm:$0xf]
    %v3934 = vld [vmem:[%s13 + $0xc] sm:$0xf]
    %v3935 = vunpack.c.l.bf16 %v3931
    %v3936 = vunpack.c.l.bf16 %v3932
    %v3937 = vunpack.c.l.bf16 %v3933
    %v3938 = vunpack.c.l.bf16 %v3934
    %v3940 = vsel %vm95, %v3671, 0
    %3942 = vmatpush.msra.mxu0 0.0
    %3943 = vmatpush.msra.mxu0 0.0
    %3944 = vmatpush.msra.mxu0 0.0
    %3945 = vmatpush.msra.mxu0 0.0
    %3946 = vmatpush.msra.mxu0 0.0
    %3947 = vmatpush.msra.mxu0 0.0
    %3948 = vmatpush.msra.mxu0 0.0
    %3949 = vmatpush.msra.mxu0 0.0
    %3950 = vmatpush.msra.mxu0 0.0
    %3951 = vmatpush.msra.mxu0 0.0
    %3952 = vmatpush.msra.mxu0 0.0
    %3953 = vmatpush.msra.mxu0 0.0
    %3954 = vmatpush.msra.mxu0 %v3938
    %3955 = vmatpush.msra.mxu0 %v3937
    %3956 = vmatpush.msra.mxu0 %v3936
    %3957 = vmatpush.msra.mxu0 %v3935
    %v3958 = vand.u32 %v3940, 4294901760
    %v3959 = vsub.f32 %v3940, %v3958
    %v3960 = vand.u32 %v3959, 4294901760
    %v3961 = vsub.f32 %v3959, %v3960
    %v3962 = vand.u32 %v3961, 4294901760
    %3963 = vmatmul.f32.gmra.mxu0 %v3962
    %v3964 = vpop.f32.mrf.mxu0
    %v3965 = vadd.f32 0.0, %v3964
    %3966 = vdwg.mxu0
    %3967 = vmatpush.msra.mxu0 0.0
    %3968 = vmatpush.msra.mxu0 0.0
    %3969 = vmatpush.msra.mxu0 0.0
    %3970 = vmatpush.msra.mxu0 0.0
    %3971 = vmatpush.msra.mxu0 0.0
    %3972 = vmatpush.msra.mxu0 0.0
    %3973 = vmatpush.msra.mxu0 0.0
    %3974 = vmatpush.msra.mxu0 0.0
    %3975 = vmatpush.msra.mxu0 0.0
    %3976 = vmatpush.msra.mxu0 0.0
    %3977 = vmatpush.msra.mxu0 0.0
    %3978 = vmatpush.msra.mxu0 0.0
    %v3979 = vsub.f32 %v3938, %v3938
    %v3980 = vand.u32 %v3979, 4294901760
    %v3981 = vsub.f32 %v3979, %v3980
    %v3982 = vand.u32 %v3981, 4294901760
    %3983 = vmatpush.msra.mxu0 %v3982
    %v3984 = vsub.f32 %v3937, %v3937
    %v3985 = vand.u32 %v3984, 4294901760
    %v3986 = vsub.f32 %v3984, %v3985
    %v3987 = vand.u32 %v3986, 4294901760
    %3988 = vmatpush.msra.mxu0 %v3987
    %v3989 = vsub.f32 %v3936, %v3936
    %v3990 = vand.u32 %v3989, 4294901760
    %v3991 = vsub.f32 %v3989, %v3990
    %v3992 = vand.u32 %v3991, 4294901760
    %3993 = vmatpush.msra.mxu0 %v3992
    %v3994 = vsub.f32 %v3935, %v3935
    %v3995 = vand.u32 %v3994, 4294901760
    %v3996 = vsub.f32 %v3994, %v3995
    %v3997 = vand.u32 %v3996, 4294901760
    %3998 = vmatpush.msra.mxu0 %v3997
    %v3999 = vand.u32 %v3940, 4294901760
    %4000 = vmatmul.f32.gmra.mxu0 %v3999
    %v4001 = vpop.f32.mrf.mxu0
    %v4002 = vadd.f32 %v3965, %v4001
    %4003 = vdwg.mxu0
    %4004 = vmatpush.msra.mxu0 0.0
    %4005 = vmatpush.msra.mxu0 0.0
    %4006 = vmatpush.msra.mxu0 0.0
    %4007 = vmatpush.msra.mxu0 0.0
    %4008 = vmatpush.msra.mxu0 0.0
    %4009 = vmatpush.msra.mxu0 0.0
    %4010 = vmatpush.msra.mxu0 0.0
    %4011 = vmatpush.msra.mxu0 0.0
    %4012 = vmatpush.msra.mxu0 0.0
    %4013 = vmatpush.msra.mxu0 0.0
    %4014 = vmatpush.msra.mxu0 0.0
    %4015 = vmatpush.msra.mxu0 0.0
    %v4016 = vsub.f32 %v3938, %v3938
    %4017 = vmatpush.msra.mxu0 %v4016
    %v4018 = vsub.f32 %v3937, %v3937
    %4019 = vmatpush.msra.mxu0 %v4018
    %v4020 = vsub.f32 %v3936, %v3936
    %4021 = vmatpush.msra.mxu0 %v4020
    %v4022 = vsub.f32 %v3935, %v3935
    %4023 = vmatpush.msra.mxu0 %v4022
    %v4024 = vand.u32 %v3940, 4294901760
    %v4025 = vsub.f32 %v3940, %v4024
    %4026 = vmatmul.f32.gmra.mxu0 %v4025
    %v4027 = vpop.f32.mrf.mxu0
    %v4028 = vadd.f32 %v4002, %v4027
    %4029 = vdwg.mxu0
    %4030 = vmatpush.msra.mxu0 0.0
    %4031 = vmatpush.msra.mxu0 0.0
    %4032 = vmatpush.msra.mxu0 0.0
    %4033 = vmatpush.msra.mxu0 0.0
    %4034 = vmatpush.msra.mxu0 0.0
    %4035 = vmatpush.msra.mxu0 0.0
    %4036 = vmatpush.msra.mxu0 0.0
    %4037 = vmatpush.msra.mxu0 0.0
    %4038 = vmatpush.msra.mxu0 0.0
    %4039 = vmatpush.msra.mxu0 0.0
    %4040 = vmatpush.msra.mxu0 0.0
    %4041 = vmatpush.msra.mxu0 0.0
    %4042 = vmatpush.msra.mxu0 %v3938
    %4043 = vmatpush.msra.mxu0 %v3937
    %4044 = vmatpush.msra.mxu0 %v3936
    %4045 = vmatpush.msra.mxu0 %v3935
    %v4046 = vand.u32 %v3940, 4294901760
    %v4047 = vsub.f32 %v3940, %v4046
    %v4048 = vand.u32 %v4047, 4294901760
    %4049 = vmatmul.f32.gmra.mxu0 %v4048
    %v4050 = vpop.f32.mrf.mxu0
    %v4051 = vadd.f32 %v4028, %v4050
    %4052 = vdwg.mxu0
    %4053 = vmatpush.msra.mxu0 0.0
    %4054 = vmatpush.msra.mxu0 0.0
    %4055 = vmatpush.msra.mxu0 0.0
    %4056 = vmatpush.msra.mxu0 0.0
    %4057 = vmatpush.msra.mxu0 0.0
    %4058 = vmatpush.msra.mxu0 0.0
    %4059 = vmatpush.msra.mxu0 0.0
    %4060 = vmatpush.msra.mxu0 0.0
    %4061 = vmatpush.msra.mxu0 0.0
    %4062 = vmatpush.msra.mxu0 0.0
    %4063 = vmatpush.msra.mxu0 0.0
    %4064 = vmatpush.msra.mxu0 0.0
    %v4065 = vsub.f32 %v3938, %v3938
    %v4066 = vand.u32 %v4065, 4294901760
    %4067 = vmatpush.msra.mxu0 %v4066
    %v4068 = vsub.f32 %v3937, %v3937
    %v4069 = vand.u32 %v4068, 4294901760
    %4070 = vmatpush.msra.mxu0 %v4069
    %v4071 = vsub.f32 %v3936, %v3936
    %v4072 = vand.u32 %v4071, 4294901760
    %4073 = vmatpush.msra.mxu0 %v4072
    %v4074 = vsub.f32 %v3935, %v3935
    %v4075 = vand.u32 %v4074, 4294901760
    %4076 = vmatpush.msra.mxu0 %v4075
    %v4077 = vand.u32 %v3940, 4294901760
    %4078 = vmatmul.f32.gmra.mxu0 %v4077
    %v4079 = vpop.f32.mrf.mxu0
    %v4080 = vadd.f32 %v4051, %v4079
    %4081 = vdwg.mxu0
    %4082 = vmatpush.msra.mxu0 0.0
    %4083 = vmatpush.msra.mxu0 0.0
    %4084 = vmatpush.msra.mxu0 0.0
    %4085 = vmatpush.msra.mxu0 0.0
    %4086 = vmatpush.msra.mxu0 0.0
    %4087 = vmatpush.msra.mxu0 0.0
    %4088 = vmatpush.msra.mxu0 0.0
    %4089 = vmatpush.msra.mxu0 0.0
    %4090 = vmatpush.msra.mxu0 0.0
    %4091 = vmatpush.msra.mxu0 0.0
    %4092 = vmatpush.msra.mxu0 0.0
    %4093 = vmatpush.msra.mxu0 0.0
    %4094 = vmatpush.msra.mxu0 %v3938
    %4095 = vmatpush.msra.mxu0 %v3937
    %4096 = vmatpush.msra.mxu0 %v3936
    %4097 = vmatpush.msra.mxu0 %v3935
    %v4098 = vand.u32 %v3940, 4294901760
    %4099 = vmatmul.f32.gmra.mxu0 %v4098
    %v4100 = vpop.f32.mrf.mxu0
    %v4101 = vadd.f32 %v4080, %v4100
    %4102 = vdwg.mxu0
    %v4104 = vrot.slane %v4101, 1
    %v4105 = vrot.slane %v4101, 2
    %v4106 = vrot.slane %v4101, 3
    %v4107 = vrot.slane %v4101, 4
    %v4108 = vrot.slane %v4101, 5
    %v4109 = vrot.slane %v4101, 6
    %v4110 = vrot.slane %v4101, 7
    %v4111 = vperm.slane %v4101, 0
    %v4112 = vperm.slane %v4104, 0
    %v4113 = vperm.slane %v4105, 0
    %v4114 = vperm.slane %v4106, 0
    %v4115 = vperm.slane %v4107, 0
    %v4116 = vperm.slane %v4108, 0
    %v4117 = vperm.slane %v4109, 0
    %v4118 = vperm.slane %v4110, 0
    %v4127 = vmul.f32 %v4111, %v3802
    %v4128 = vmul.f32 %v4111, %v3803
    %v4129 = vmul.f32 %v4111, %v3804
    %v4130 = vmul.f32 %v4111, %v3805
    %v4131 = vmul.f32 %v4111, %v3806
    %v4132 = vmul.f32 %v4111, %v3807
    %v4133 = vmul.f32 %v4111, %v3808
    %v4134 = vmul.f32 %v4111, %v3809
    %v4135 = vmul.f32 %v4111, %v3810
    %v4136 = vmul.f32 %v4111, %v3811
    %v4137 = vmul.f32 %v4111, %v3812
    %v4138 = vmul.f32 %v4111, %v3813
    %v4139 = vmul.f32 %v4111, %v3814
    %v4140 = vmul.f32 %v4111, %v3815
    %v4141 = vmul.f32 %v4111, %v3816
    %v4142 = vmul.f32 %v4111, %v3817
    %v4143 = vmul.f32 %v4112, %v3818
    %v4144 = vmul.f32 %v4112, %v3819
    %v4145 = vmul.f32 %v4112, %v3820
    %v4146 = vmul.f32 %v4112, %v3821
    %v4147 = vmul.f32 %v4112, %v3822
    %v4148 = vmul.f32 %v4112, %v3823
    %v4149 = vmul.f32 %v4112, %v3824
    %v4150 = vmul.f32 %v4112, %v3825
    %v4151 = vmul.f32 %v4112, %v3826
    %v4152 = vmul.f32 %v4112, %v3827
    %v4153 = vmul.f32 %v4112, %v3828
    %v4154 = vmul.f32 %v4112, %v3829
    %v4155 = vmul.f32 %v4112, %v3830
    %v4156 = vmul.f32 %v4112, %v3831
    %v4157 = vmul.f32 %v4112, %v3832
    %v4158 = vmul.f32 %v4112, %v3833
    %v4159 = vmul.f32 %v4113, %v3834
    %v4160 = vmul.f32 %v4113, %v3835
    %v4161 = vmul.f32 %v4113, %v3836
    %v4162 = vmul.f32 %v4113, %v3837
    %v4163 = vmul.f32 %v4113, %v3838
    %v4164 = vmul.f32 %v4113, %v3839
    %v4165 = vmul.f32 %v4113, %v3840
    %v4166 = vmul.f32 %v4113, %v3841
    %v4167 = vmul.f32 %v4113, %v3842
    %v4168 = vmul.f32 %v4113, %v3843
    %v4169 = vmul.f32 %v4113, %v3844
    %v4170 = vmul.f32 %v4113, %v3845
    %v4171 = vmul.f32 %v4113, %v3846
    %v4172 = vmul.f32 %v4113, %v3847
    %v4173 = vmul.f32 %v4113, %v3848
    %v4174 = vmul.f32 %v4113, %v3849
    %v4175 = vmul.f32 %v4114, %v3850
    %v4176 = vmul.f32 %v4114, %v3851
    %v4177 = vmul.f32 %v4114, %v3852
    %v4178 = vmul.f32 %v4114, %v3853
    %v4179 = vmul.f32 %v4114, %v3854
    %v4180 = vmul.f32 %v4114, %v3855
    %v4181 = vmul.f32 %v4114, %v3856
    %v4182 = vmul.f32 %v4114, %v3857
    %v4183 = vmul.f32 %v4114, %v3858
    %v4184 = vmul.f32 %v4114, %v3859
    %v4185 = vmul.f32 %v4114, %v3860
    %v4186 = vmul.f32 %v4114, %v3861
    %v4187 = vmul.f32 %v4114, %v3862
    %v4188 = vmul.f32 %v4114, %v3863
    %v4189 = vmul.f32 %v4114, %v3864
    %v4190 = vmul.f32 %v4114, %v3865
    %v4191 = vmul.f32 %v4115, %v3866
    %v4192 = vmul.f32 %v4115, %v3867
    %v4193 = vmul.f32 %v4115, %v3868
    %v4194 = vmul.f32 %v4115, %v3869
    %v4195 = vmul.f32 %v4115, %v3870
    %v4196 = vmul.f32 %v4115, %v3871
    %v4197 = vmul.f32 %v4115, %v3872
    %v4198 = vmul.f32 %v4115, %v3873
    %v4199 = vmul.f32 %v4115, %v3874
    %v4200 = vmul.f32 %v4115, %v3875
    %v4201 = vmul.f32 %v4115, %v3876
    %v4202 = vmul.f32 %v4115, %v3877
    %v4203 = vmul.f32 %v4115, %v3878
    %v4204 = vmul.f32 %v4115, %v3879
    %v4205 = vmul.f32 %v4115, %v3880
    %v4206 = vmul.f32 %v4115, %v3881
    %v4207 = vmul.f32 %v4116, %v3882
    %v4208 = vmul.f32 %v4116, %v3883
    %v4209 = vmul.f32 %v4116, %v3884
    %v4210 = vmul.f32 %v4116, %v3885
    %v4211 = vmul.f32 %v4116, %v3886
    %v4212 = vmul.f32 %v4116, %v3887
    %v4213 = vmul.f32 %v4116, %v3888
    %v4214 = vmul.f32 %v4116, %v3889
    %v4215 = vmul.f32 %v4116, %v3890
    %v4216 = vmul.f32 %v4116, %v3891
    %v4217 = vmul.f32 %v4116, %v3892
    %v4218 = vmul.f32 %v4116, %v3893
    %v4219 = vmul.f32 %v4116, %v3894
    %v4220 = vmul.f32 %v4116, %v3895
    %v4221 = vmul.f32 %v4116, %v3896
    %v4222 = vmul.f32 %v4116, %v3897
    %v4223 = vmul.f32 %v4117, %v3898
    %v4224 = vmul.f32 %v4117, %v3899
    %v4225 = vmul.f32 %v4117, %v3900
    %v4226 = vmul.f32 %v4117, %v3901
    %v4227 = vmul.f32 %v4117, %v3902
    %v4228 = vmul.f32 %v4117, %v3903
    %v4229 = vmul.f32 %v4117, %v3904
    %v4230 = vmul.f32 %v4117, %v3905
    %v4231 = vmul.f32 %v4117, %v3906
    %v4232 = vmul.f32 %v4117, %v3907
    %v4233 = vmul.f32 %v4117, %v3908
    %v4234 = vmul.f32 %v4117, %v3909
    %v4235 = vmul.f32 %v4117, %v3910
    %v4236 = vmul.f32 %v4117, %v3911
    %v4237 = vmul.f32 %v4117, %v3912
    %v4238 = vmul.f32 %v4117, %v3913
    %v4239 = vmul.f32 %v4118, %v3914
    %v4240 = vmul.f32 %v4118, %v3915
    %v4241 = vmul.f32 %v4118, %v3916
    %v4242 = vmul.f32 %v4118, %v3917
    %v4243 = vmul.f32 %v4118, %v3918
    %v4244 = vmul.f32 %v4118, %v3919
    %v4245 = vmul.f32 %v4118, %v3920
    %v4246 = vmul.f32 %v4118, %v3921
    %v4247 = vmul.f32 %v4118, %v3922
    %v4248 = vmul.f32 %v4118, %v3923
    %v4249 = vmul.f32 %v4118, %v3924
    %v4250 = vmul.f32 %v4118, %v3925
    %v4251 = vmul.f32 %v4118, %v3926
    %v4252 = vmul.f32 %v4118, %v3927
    %v4253 = vmul.f32 %v4118, %v3928
    %v4254 = vmul.f32 %v4118, %v3929
    %v4255 = vsel %vm95, %v4127, 0.0
    %4256 = vadd.xlane.f32.xlu0 %v4255
    %v4257 = vpop.xlane.xlu0 %4256
    %v4258 = vsel %vm95, %v4128, 0.0
    %4259 = vadd.xlane.f32.xlu0 %v4258
    %v4260 = vpop.xlane.xlu0 %4259
    %v4261 = vsel %vm95, %v4129, 0.0
    %4262 = vadd.xlane.f32.xlu0 %v4261
    %v4263 = vpop.xlane.xlu0 %4262
    %v4264 = vsel %vm95, %v4130, 0.0
    %4265 = vadd.xlane.f32.xlu0 %v4264
    %v4266 = vpop.xlane.xlu0 %4265
    %v4267 = vsel %vm95, %v4131, 0.0
    %4268 = vadd.xlane.f32.xlu0 %v4267
    %v4269 = vpop.xlane.xlu0 %4268
    %v4270 = vsel %vm95, %v4132, 0.0
    %4271 = vadd.xlane.f32.xlu0 %v4270
    %v4272 = vpop.xlane.xlu0 %4271
    %v4273 = vsel %vm95, %v4133, 0.0
    %4274 = vadd.xlane.f32.xlu0 %v4273
    %v4275 = vpop.xlane.xlu0 %4274
    %v4276 = vsel %vm95, %v4134, 0.0
    %4277 = vadd.xlane.f32.xlu0 %v4276
    %v4278 = vpop.xlane.xlu0 %4277
    %v4279 = vsel %vm95, %v4135, 0.0
    %4280 = vadd.xlane.f32.xlu0 %v4279
    %v4281 = vpop.xlane.xlu0 %4280
    %v4282 = vsel %vm95, %v4136, 0.0
    %4283 = vadd.xlane.f32.xlu0 %v4282
    %v4284 = vpop.xlane.xlu0 %4283
    %v4285 = vsel %vm95, %v4137, 0.0
    %4286 = vadd.xlane.f32.xlu0 %v4285
    %v4287 = vpop.xlane.xlu0 %4286
    %v4288 = vsel %vm95, %v4138, 0.0
    %4289 = vadd.xlane.f32.xlu0 %v4288
    %v4290 = vpop.xlane.xlu0 %4289
    %v4291 = vsel %vm95, %v4139, 0.0
    %4292 = vadd.xlane.f32.xlu0 %v4291
    %v4293 = vpop.xlane.xlu0 %4292
    %v4294 = vsel %vm95, %v4140, 0.0
    %4295 = vadd.xlane.f32.xlu0 %v4294
    %v4296 = vpop.xlane.xlu0 %4295
    %v4297 = vsel %vm95, %v4141, 0.0
    %4298 = vadd.xlane.f32.xlu0 %v4297
    %v4299 = vpop.xlane.xlu0 %4298
    %v4300 = vsel %vm95, %v4142, 0.0
    %4301 = vadd.xlane.f32.xlu0 %v4300
    %v4302 = vpop.xlane.xlu0 %4301
    %v4303 = vsel %vm95, %v4143, 0.0
    %4304 = vadd.xlane.f32.xlu0 %v4303
    %v4305 = vpop.xlane.xlu0 %4304
    %v4306 = vsel %vm95, %v4144, 0.0
    %4307 = vadd.xlane.f32.xlu0 %v4306
    %v4308 = vpop.xlane.xlu0 %4307
    %v4309 = vsel %vm95, %v4145, 0.0
    %4310 = vadd.xlane.f32.xlu0 %v4309
    %v4311 = vpop.xlane.xlu0 %4310
    %v4312 = vsel %vm95, %v4146, 0.0
    %4313 = vadd.xlane.f32.xlu0 %v4312
    %v4314 = vpop.xlane.xlu0 %4313
    %v4315 = vsel %vm95, %v4147, 0.0
    %4316 = vadd.xlane.f32.xlu0 %v4315
    %v4317 = vpop.xlane.xlu0 %4316
    %v4318 = vsel %vm95, %v4148, 0.0
    %4319 = vadd.xlane.f32.xlu0 %v4318
    %v4320 = vpop.xlane.xlu0 %4319
    %v4321 = vsel %vm95, %v4149, 0.0
    %4322 = vadd.xlane.f32.xlu0 %v4321
    %v4323 = vpop.xlane.xlu0 %4322
    %v4324 = vsel %vm95, %v4150, 0.0
    %4325 = vadd.xlane.f32.xlu0 %v4324
    %v4326 = vpop.xlane.xlu0 %4325
    %v4327 = vsel %vm95, %v4151, 0.0
    %4328 = vadd.xlane.f32.xlu0 %v4327
    %v4329 = vpop.xlane.xlu0 %4328
    %v4330 = vsel %vm95, %v4152, 0.0
    %4331 = vadd.xlane.f32.xlu0 %v4330
    %v4332 = vpop.xlane.xlu0 %4331
    %v4333 = vsel %vm95, %v4153, 0.0
    %4334 = vadd.xlane.f32.xlu0 %v4333
    %v4335 = vpop.xlane.xlu0 %4334
    %v4336 = vsel %vm95, %v4154, 0.0
    %4337 = vadd.xlane.f32.xlu0 %v4336
    %v4338 = vpop.xlane.xlu0 %4337
    %v4339 = vsel %vm95, %v4155, 0.0
    %4340 = vadd.xlane.f32.xlu0 %v4339
    %v4341 = vpop.xlane.xlu0 %4340
    %v4342 = vsel %vm95, %v4156, 0.0
    %4343 = vadd.xlane.f32.xlu0 %v4342
    %v4344 = vpop.xlane.xlu0 %4343
    %v4345 = vsel %vm95, %v4157, 0.0
    %4346 = vadd.xlane.f32.xlu0 %v4345
    %v4347 = vpop.xlane.xlu0 %4346
    %v4348 = vsel %vm95, %v4158, 0.0
    %4349 = vadd.xlane.f32.xlu0 %v4348
    %v4350 = vpop.xlane.xlu0 %4349
    %v4351 = vsel %vm95, %v4159, 0.0
    %4352 = vadd.xlane.f32.xlu0 %v4351
    %v4353 = vpop.xlane.xlu0 %4352
    %v4354 = vsel %vm95, %v4160, 0.0
    %4355 = vadd.xlane.f32.xlu0 %v4354
    %v4356 = vpop.xlane.xlu0 %4355
    %v4357 = vsel %vm95, %v4161, 0.0
    %4358 = vadd.xlane.f32.xlu0 %v4357
    %v4359 = vpop.xlane.xlu0 %4358
    %v4360 = vsel %vm95, %v4162, 0.0
    %4361 = vadd.xlane.f32.xlu0 %v4360
    %v4362 = vpop.xlane.xlu0 %4361
    %v4363 = vsel %vm95, %v4163, 0.0
    %4364 = vadd.xlane.f32.xlu0 %v4363
    %v4365 = vpop.xlane.xlu0 %4364
    %v4366 = vsel %vm95, %v4164, 0.0
    %4367 = vadd.xlane.f32.xlu0 %v4366
    %v4368 = vpop.xlane.xlu0 %4367
    %v4369 = vsel %vm95, %v4165, 0.0
    %4370 = vadd.xlane.f32.xlu0 %v4369
    %v4371 = vpop.xlane.xlu0 %4370
    %v4372 = vsel %vm95, %v4166, 0.0
    %4373 = vadd.xlane.f32.xlu0 %v4372
    %v4374 = vpop.xlane.xlu0 %4373
    %v4375 = vsel %vm95, %v4167, 0.0
    %4376 = vadd.xlane.f32.xlu0 %v4375
    %v4377 = vpop.xlane.xlu0 %4376
    %v4378 = vsel %vm95, %v4168, 0.0
    %4379 = vadd.xlane.f32.xlu0 %v4378
    %v4380 = vpop.xlane.xlu0 %4379
    %v4381 = vsel %vm95, %v4169, 0.0
    %4382 = vadd.xlane.f32.xlu0 %v4381
    %v4383 = vpop.xlane.xlu0 %4382
    %v4384 = vsel %vm95, %v4170, 0.0
    %4385 = vadd.xlane.f32.xlu0 %v4384
    %v4386 = vpop.xlane.xlu0 %4385
    %v4387 = vsel %vm95, %v4171, 0.0
    %4388 = vadd.xlane.f32.xlu0 %v4387
    %v4389 = vpop.xlane.xlu0 %4388
    %v4390 = vsel %vm95, %v4172, 0.0
    %4391 = vadd.xlane.f32.xlu0 %v4390
    %v4392 = vpop.xlane.xlu0 %4391
    %v4393 = vsel %vm95, %v4173, 0.0
    %4394 = vadd.xlane.f32.xlu0 %v4393
    %v4395 = vpop.xlane.xlu0 %4394
    %v4396 = vsel %vm95, %v4174, 0.0
    %4397 = vadd.xlane.f32.xlu0 %v4396
    %v4398 = vpop.xlane.xlu0 %4397
    %v4399 = vsel %vm95, %v4175, 0.0
    %4400 = vadd.xlane.f32.xlu0 %v4399
    %v4401 = vpop.xlane.xlu0 %4400
    %v4402 = vsel %vm95, %v4176, 0.0
    %4403 = vadd.xlane.f32.xlu0 %v4402
    %v4404 = vpop.xlane.xlu0 %4403
    %v4405 = vsel %vm95, %v4177, 0.0
    %4406 = vadd.xlane.f32.xlu0 %v4405
    %v4407 = vpop.xlane.xlu0 %4406
    %v4408 = vsel %vm95, %v4178, 0.0
    %4409 = vadd.xlane.f32.xlu0 %v4408
    %v4410 = vpop.xlane.xlu0 %4409
    %v4411 = vsel %vm95, %v4179, 0.0
    %4412 = vadd.xlane.f32.xlu0 %v4411
    %v4413 = vpop.xlane.xlu0 %4412
    %v4414 = vsel %vm95, %v4180, 0.0
    %4415 = vadd.xlane.f32.xlu0 %v4414
    %v4416 = vpop.xlane.xlu0 %4415
    %v4417 = vsel %vm95, %v4181, 0.0
    %4418 = vadd.xlane.f32.xlu0 %v4417
    %v4419 = vpop.xlane.xlu0 %4418
    %v4420 = vsel %vm95, %v4182, 0.0
    %4421 = vadd.xlane.f32.xlu0 %v4420
    %v4422 = vpop.xlane.xlu0 %4421
    %v4423 = vsel %vm95, %v4183, 0.0
    %4424 = vadd.xlane.f32.xlu0 %v4423
    %v4425 = vpop.xlane.xlu0 %4424
    %v4426 = vsel %vm95, %v4184, 0.0
    %4427 = vadd.xlane.f32.xlu0 %v4426
    %v4428 = vpop.xlane.xlu0 %4427
    %v4429 = vsel %vm95, %v4185, 0.0
    %4430 = vadd.xlane.f32.xlu0 %v4429
    %v4431 = vpop.xlane.xlu0 %4430
    %v4432 = vsel %vm95, %v4186, 0.0
    %4433 = vadd.xlane.f32.xlu0 %v4432
    %v4434 = vpop.xlane.xlu0 %4433
    %v4435 = vsel %vm95, %v4187, 0.0
    %4436 = vadd.xlane.f32.xlu0 %v4435
    %v4437 = vpop.xlane.xlu0 %4436
    %v4438 = vsel %vm95, %v4188, 0.0
    %4439 = vadd.xlane.f32.xlu0 %v4438
    %v4440 = vpop.xlane.xlu0 %4439
    %v4441 = vsel %vm95, %v4189, 0.0
    %4442 = vadd.xlane.f32.xlu0 %v4441
    %v4443 = vpop.xlane.xlu0 %4442
    %v4444 = vsel %vm95, %v4190, 0.0
    %4445 = vadd.xlane.f32.xlu0 %v4444
    %v4446 = vpop.xlane.xlu0 %4445
    %v4447 = vsel %vm95, %v4191, 0.0
    %4448 = vadd.xlane.f32.xlu0 %v4447
    %v4449 = vpop.xlane.xlu0 %4448
    %v4450 = vsel %vm95, %v4192, 0.0
    %4451 = vadd.xlane.f32.xlu0 %v4450
    %v4452 = vpop.xlane.xlu0 %4451
    %v4453 = vsel %vm95, %v4193, 0.0
    %4454 = vadd.xlane.f32.xlu0 %v4453
    %v4455 = vpop.xlane.xlu0 %4454
    %v4456 = vsel %vm95, %v4194, 0.0
    %4457 = vadd.xlane.f32.xlu0 %v4456
    %v4458 = vpop.xlane.xlu0 %4457
    %v4459 = vsel %vm95, %v4195, 0.0
    %4460 = vadd.xlane.f32.xlu0 %v4459
    %v4461 = vpop.xlane.xlu0 %4460
    %v4462 = vsel %vm95, %v4196, 0.0
    %4463 = vadd.xlane.f32.xlu0 %v4462
    %v4464 = vpop.xlane.xlu0 %4463
    %v4465 = vsel %vm95, %v4197, 0.0
    %4466 = vadd.xlane.f32.xlu0 %v4465
    %v4467 = vpop.xlane.xlu0 %4466
    %v4468 = vsel %vm95, %v4198, 0.0
    %4469 = vadd.xlane.f32.xlu0 %v4468
    %v4470 = vpop.xlane.xlu0 %4469
    %v4471 = vsel %vm95, %v4199, 0.0
    %4472 = vadd.xlane.f32.xlu0 %v4471
    %v4473 = vpop.xlane.xlu0 %4472
    %v4474 = vsel %vm95, %v4200, 0.0
    %4475 = vadd.xlane.f32.xlu0 %v4474
    %v4476 = vpop.xlane.xlu0 %4475
    %v4477 = vsel %vm95, %v4201, 0.0
    %4478 = vadd.xlane.f32.xlu0 %v4477
    %v4479 = vpop.xlane.xlu0 %4478
    %v4480 = vsel %vm95, %v4202, 0.0
    %4481 = vadd.xlane.f32.xlu0 %v4480
    %v4482 = vpop.xlane.xlu0 %4481
    %v4483 = vsel %vm95, %v4203, 0.0
    %4484 = vadd.xlane.f32.xlu0 %v4483
    %v4485 = vpop.xlane.xlu0 %4484
    %v4486 = vsel %vm95, %v4204, 0.0
    %4487 = vadd.xlane.f32.xlu0 %v4486
    %v4488 = vpop.xlane.xlu0 %4487
    %v4489 = vsel %vm95, %v4205, 0.0
    %4490 = vadd.xlane.f32.xlu0 %v4489
    %v4491 = vpop.xlane.xlu0 %4490
    %v4492 = vsel %vm95, %v4206, 0.0
    %4493 = vadd.xlane.f32.xlu0 %v4492
    %v4494 = vpop.xlane.xlu0 %4493
    %v4495 = vsel %vm95, %v4207, 0.0
    %4496 = vadd.xlane.f32.xlu0 %v4495
    %v4497 = vpop.xlane.xlu0 %4496
    %v4498 = vsel %vm95, %v4208, 0.0
    %4499 = vadd.xlane.f32.xlu0 %v4498
    %v4500 = vpop.xlane.xlu0 %4499
    %v4501 = vsel %vm95, %v4209, 0.0
    %4502 = vadd.xlane.f32.xlu0 %v4501
    %v4503 = vpop.xlane.xlu0 %4502
    %v4504 = vsel %vm95, %v4210, 0.0
    %4505 = vadd.xlane.f32.xlu0 %v4504
    %v4506 = vpop.xlane.xlu0 %4505
    %v4507 = vsel %vm95, %v4211, 0.0
    %4508 = vadd.xlane.f32.xlu0 %v4507
    %v4509 = vpop.xlane.xlu0 %4508
    %v4510 = vsel %vm95, %v4212, 0.0
    %4511 = vadd.xlane.f32.xlu0 %v4510
    %v4512 = vpop.xlane.xlu0 %4511
    %v4513 = vsel %vm95, %v4213, 0.0
    %4514 = vadd.xlane.f32.xlu0 %v4513
    %v4515 = vpop.xlane.xlu0 %4514
    %v4516 = vsel %vm95, %v4214, 0.0
    %4517 = vadd.xlane.f32.xlu0 %v4516
    %v4518 = vpop.xlane.xlu0 %4517
    %v4519 = vsel %vm95, %v4215, 0.0
    %4520 = vadd.xlane.f32.xlu0 %v4519
    %v4521 = vpop.xlane.xlu0 %4520
    %v4522 = vsel %vm95, %v4216, 0.0
    %4523 = vadd.xlane.f32.xlu0 %v4522
    %v4524 = vpop.xlane.xlu0 %4523
    %v4525 = vsel %vm95, %v4217, 0.0
    %4526 = vadd.xlane.f32.xlu0 %v4525
    %v4527 = vpop.xlane.xlu0 %4526
    %v4528 = vsel %vm95, %v4218, 0.0
    %4529 = vadd.xlane.f32.xlu0 %v4528
    %v4530 = vpop.xlane.xlu0 %4529
    %v4531 = vsel %vm95, %v4219, 0.0
    %4532 = vadd.xlane.f32.xlu0 %v4531
    %v4533 = vpop.xlane.xlu0 %4532
    %v4534 = vsel %vm95, %v4220, 0.0
    %4535 = vadd.xlane.f32.xlu0 %v4534
    %v4536 = vpop.xlane.xlu0 %4535
    %v4537 = vsel %vm95, %v4221, 0.0
    %4538 = vadd.xlane.f32.xlu0 %v4537
    %v4539 = vpop.xlane.xlu0 %4538
    %v4540 = vsel %vm95, %v4222, 0.0
    %4541 = vadd.xlane.f32.xlu0 %v4540
    %v4542 = vpop.xlane.xlu0 %4541
    %v4543 = vsel %vm95, %v4223, 0.0
    %4544 = vadd.xlane.f32.xlu0 %v4543
    %v4545 = vpop.xlane.xlu0 %4544
    %v4546 = vsel %vm95, %v4224, 0.0
    %4547 = vadd.xlane.f32.xlu0 %v4546
    %v4548 = vpop.xlane.xlu0 %4547
    %v4549 = vsel %vm95, %v4225, 0.0
    %4550 = vadd.xlane.f32.xlu0 %v4549
    %v4551 = vpop.xlane.xlu0 %4550
    %v4552 = vsel %vm95, %v4226, 0.0
    %4553 = vadd.xlane.f32.xlu0 %v4552
    %v4554 = vpop.xlane.xlu0 %4553
    %v4555 = vsel %vm95, %v4227, 0.0
    %4556 = vadd.xlane.f32.xlu0 %v4555
    %v4557 = vpop.xlane.xlu0 %4556
    %v4558 = vsel %vm95, %v4228, 0.0
    %4559 = vadd.xlane.f32.xlu0 %v4558
    %v4560 = vpop.xlane.xlu0 %4559
    %v4561 = vsel %vm95, %v4229, 0.0
    %4562 = vadd.xlane.f32.xlu0 %v4561
    %v4563 = vpop.xlane.xlu0 %4562
    %v4564 = vsel %vm95, %v4230, 0.0
    %4565 = vadd.xlane.f32.xlu0 %v4564
    %v4566 = vpop.xlane.xlu0 %4565
    %v4567 = vsel %vm95, %v4231, 0.0
    %4568 = vadd.xlane.f32.xlu0 %v4567
    %v4569 = vpop.xlane.xlu0 %4568
    %v4570 = vsel %vm95, %v4232, 0.0
    %4571 = vadd.xlane.f32.xlu0 %v4570
    %v4572 = vpop.xlane.xlu0 %4571
    %v4573 = vsel %vm95, %v4233, 0.0
    %4574 = vadd.xlane.f32.xlu0 %v4573
    %v4575 = vpop.xlane.xlu0 %4574
    %v4576 = vsel %vm95, %v4234, 0.0
    %4577 = vadd.xlane.f32.xlu0 %v4576
    %v4578 = vpop.xlane.xlu0 %4577
    %v4579 = vsel %vm95, %v4235, 0.0
    %4580 = vadd.xlane.f32.xlu0 %v4579
    %v4581 = vpop.xlane.xlu0 %4580
    %v4582 = vsel %vm95, %v4236, 0.0
    %4583 = vadd.xlane.f32.xlu0 %v4582
    %v4584 = vpop.xlane.xlu0 %4583
    %v4585 = vsel %vm95, %v4237, 0.0
    %4586 = vadd.xlane.f32.xlu0 %v4585
    %v4587 = vpop.xlane.xlu0 %4586
    %v4588 = vsel %vm95, %v4238, 0.0
    %4589 = vadd.xlane.f32.xlu0 %v4588
    %v4590 = vpop.xlane.xlu0 %4589
    %v4591 = vsel %vm95, %v4239, 0.0
    %4592 = vadd.xlane.f32.xlu0 %v4591
    %v4593 = vpop.xlane.xlu0 %4592
    %v4594 = vsel %vm95, %v4240, 0.0
    %4595 = vadd.xlane.f32.xlu0 %v4594
    %v4596 = vpop.xlane.xlu0 %4595
    %v4597 = vsel %vm95, %v4241, 0.0
    %4598 = vadd.xlane.f32.xlu0 %v4597
    %v4599 = vpop.xlane.xlu0 %4598
    %v4600 = vsel %vm95, %v4242, 0.0
    %4601 = vadd.xlane.f32.xlu0 %v4600
    %v4602 = vpop.xlane.xlu0 %4601
    %v4603 = vsel %vm95, %v4243, 0.0
    %4604 = vadd.xlane.f32.xlu0 %v4603
    %v4605 = vpop.xlane.xlu0 %4604
    %v4606 = vsel %vm95, %v4244, 0.0
    %4607 = vadd.xlane.f32.xlu0 %v4606
    %v4608 = vpop.xlane.xlu0 %4607
    %v4609 = vsel %vm95, %v4245, 0.0
    %4610 = vadd.xlane.f32.xlu0 %v4609
    %v4611 = vpop.xlane.xlu0 %4610
    %v4612 = vsel %vm95, %v4246, 0.0
    %4613 = vadd.xlane.f32.xlu0 %v4612
    %v4614 = vpop.xlane.xlu0 %4613
    %v4615 = vsel %vm95, %v4247, 0.0
    %4616 = vadd.xlane.f32.xlu0 %v4615
    %v4617 = vpop.xlane.xlu0 %4616
    %v4618 = vsel %vm95, %v4248, 0.0
    %4619 = vadd.xlane.f32.xlu0 %v4618
    %v4620 = vpop.xlane.xlu0 %4619
    %v4621 = vsel %vm95, %v4249, 0.0
    %4622 = vadd.xlane.f32.xlu0 %v4621
    %v4623 = vpop.xlane.xlu0 %4622
    %v4624 = vsel %vm95, %v4250, 0.0
    %4625 = vadd.xlane.f32.xlu0 %v4624
    %v4626 = vpop.xlane.xlu0 %4625
    %v4627 = vsel %vm95, %v4251, 0.0
    %4628 = vadd.xlane.f32.xlu0 %v4627
    %v4629 = vpop.xlane.xlu0 %4628
    %v4630 = vsel %vm95, %v4252, 0.0
    %4631 = vadd.xlane.f32.xlu0 %v4630
    %v4632 = vpop.xlane.xlu0 %4631
    %v4633 = vsel %vm95, %v4253, 0.0
    %4634 = vadd.xlane.f32.xlu0 %v4633
    %v4635 = vpop.xlane.xlu0 %4634
    %v4636 = vsel %vm95, %v4254, 0.0
    %4637 = vadd.xlane.f32.xlu0 %v4636
    %v4638 = vpop.xlane.xlu0 %4637
    %v4767 = vlaneseq
    %v4768 = vand.u32 %v4767, 127
    %v4769 = vperm.slane %v4257, %v4768
    %v4770 = vadd.s32 %v4768, 4294967288
    %v4771 = vperm.slane %v4260, %v4770
    %vm4772 = vcmask 130112
    %v4773 = vsel %vm4772, %v4771, %v4769
    %v4774 = vadd.s32 %v4768, 4294967280
    %v4775 = vperm.slane %v4263, %v4774
    %vm4776 = vcmask 195712
    %v4777 = vsel %vm4776, %v4775, %v4773
    %v4778 = vadd.s32 %v4768, 4294967272
    %v4779 = vperm.slane %v4266, %v4778
    %vm4780 = vcmask 261312
    %v4781 = vsel %vm4780, %v4779, %v4777
    %v4782 = vadd.s32 %v4768, 4294967264
    %v4783 = vperm.slane %v4269, %v4782
    %vm4784 = vcmask 326912
    %v4785 = vsel %vm4784, %v4783, %v4781
    %v4786 = vadd.s32 %v4768, 4294967256
    %v4787 = vperm.slane %v4272, %v4786
    %vm4788 = vcmask 392512
    %v4789 = vsel %vm4788, %v4787, %v4785
    %v4790 = vadd.s32 %v4768, 4294967248
    %v4791 = vperm.slane %v4275, %v4790
    %vm4792 = vcmask 458112
    %v4793 = vsel %vm4792, %v4791, %v4789
    %v4794 = vadd.s32 %v4768, 4294967240
    %v4795 = vperm.slane %v4278, %v4794
    %vm4796 = vcmask 523712
    %v4797 = vsel %vm4796, %v4795, %v4793
    %v4798 = vadd.s32 %v4768, 4294967232
    %v4799 = vperm.slane %v4281, %v4798
    %vm4800 = vcmask 589312
    %v4801 = vsel %vm4800, %v4799, %v4797
    %v4802 = vadd.s32 %v4768, 4294967224
    %v4803 = vperm.slane %v4284, %v4802
    %vm4804 = vcmask 654912
    %v4805 = vsel %vm4804, %v4803, %v4801
    %v4806 = vadd.s32 %v4768, 4294967216
    %v4807 = vperm.slane %v4287, %v4806
    %vm4808 = vcmask 720512
    %v4809 = vsel %vm4808, %v4807, %v4805
    %v4810 = vadd.s32 %v4768, 4294967208
    %v4811 = vperm.slane %v4290, %v4810
    %vm4812 = vcmask 786112
    %v4813 = vsel %vm4812, %v4811, %v4809
    %v4814 = vadd.s32 %v4768, 4294967200
    %v4815 = vperm.slane %v4293, %v4814
    %vm4816 = vcmask 851712
    %v4817 = vsel %vm4816, %v4815, %v4813
    %v4818 = vadd.s32 %v4768, 4294967192
    %v4819 = vperm.slane %v4296, %v4818
    %vm4820 = vcmask 917312
    %v4821 = vsel %vm4820, %v4819, %v4817
    %v4822 = vadd.s32 %v4768, 4294967184
    %v4823 = vperm.slane %v4299, %v4822
    %vm4824 = vcmask 982912
    %v4825 = vsel %vm4824, %v4823, %v4821
    %v4826 = vadd.s32 %v4768, 4294967176
    %v4827 = vperm.slane %v4302, %v4826
    %vm4828 = vcmask 1048512
    %v4829 = vsel %vm4828, %v4827, %v4825
    %v4830 = vperm.slane %v4305, %v4768
    %v4831 = vperm.slane %v4308, %v4770
    %v4832 = vsel %vm4772, %v4831, %v4830
    %v4833 = vperm.slane %v4311, %v4774
    %v4834 = vsel %vm4776, %v4833, %v4832
    %v4835 = vperm.slane %v4314, %v4778
    %v4836 = vsel %vm4780, %v4835, %v4834
    %v4837 = vperm.slane %v4317, %v4782
    %v4838 = vsel %vm4784, %v4837, %v4836
    %v4839 = vperm.slane %v4320, %v4786
    %v4840 = vsel %vm4788, %v4839, %v4838
    %v4841 = vperm.slane %v4323, %v4790
    %v4842 = vsel %vm4792, %v4841, %v4840
    %v4843 = vperm.slane %v4326, %v4794
    %v4844 = vsel %vm4796, %v4843, %v4842
    %v4845 = vperm.slane %v4329, %v4798
    %v4846 = vsel %vm4800, %v4845, %v4844
    %v4847 = vperm.slane %v4332, %v4802
    %v4848 = vsel %vm4804, %v4847, %v4846
    %v4849 = vperm.slane %v4335, %v4806
    %v4850 = vsel %vm4808, %v4849, %v4848
    %v4851 = vperm.slane %v4338, %v4810
    %v4852 = vsel %vm4812, %v4851, %v4850
    %v4853 = vperm.slane %v4341, %v4814
    %v4854 = vsel %vm4816, %v4853, %v4852
    %v4855 = vperm.slane %v4344, %v4818
    %v4856 = vsel %vm4820, %v4855, %v4854
    %v4857 = vperm.slane %v4347, %v4822
    %v4858 = vsel %vm4824, %v4857, %v4856
    %v4859 = vperm.slane %v4350, %v4826
    %v4860 = vsel %vm4828, %v4859, %v4858
    %v4861 = vperm.slane %v4353, %v4768
    %v4862 = vperm.slane %v4356, %v4770
    %v4863 = vsel %vm4772, %v4862, %v4861
    %v4864 = vperm.slane %v4359, %v4774
    %v4865 = vsel %vm4776, %v4864, %v4863
    %v4866 = vperm.slane %v4362, %v4778
    %v4867 = vsel %vm4780, %v4866, %v4865
    %v4868 = vperm.slane %v4365, %v4782
    %v4869 = vsel %vm4784, %v4868, %v4867
    %v4870 = vperm.slane %v4368, %v4786
    %v4871 = vsel %vm4788, %v4870, %v4869
    %v4872 = vperm.slane %v4371, %v4790
    %v4873 = vsel %vm4792, %v4872, %v4871
    %v4874 = vperm.slane %v4374, %v4794
    %v4875 = vsel %vm4796, %v4874, %v4873
    %v4876 = vperm.slane %v4377, %v4798
    %v4877 = vsel %vm4800, %v4876, %v4875
    %v4878 = vperm.slane %v4380, %v4802
    %v4879 = vsel %vm4804, %v4878, %v4877
    %v4880 = vperm.slane %v4383, %v4806
    %v4881 = vsel %vm4808, %v4880, %v4879
    %v4882 = vperm.slane %v4386, %v4810
    %v4883 = vsel %vm4812, %v4882, %v4881
    %v4884 = vperm.slane %v4389, %v4814
    %v4885 = vsel %vm4816, %v4884, %v4883
    %v4886 = vperm.slane %v4392, %v4818
    %v4887 = vsel %vm4820, %v4886, %v4885
    %v4888 = vperm.slane %v4395, %v4822
    %v4889 = vsel %vm4824, %v4888, %v4887
    %v4890 = vperm.slane %v4398, %v4826
    %v4891 = vsel %vm4828, %v4890, %v4889
    %v4892 = vperm.slane %v4401, %v4768
    %v4893 = vperm.slane %v4404, %v4770
    %v4894 = vsel %vm4772, %v4893, %v4892
    %v4895 = vperm.slane %v4407, %v4774
    %v4896 = vsel %vm4776, %v4895, %v4894
    %v4897 = vperm.slane %v4410, %v4778
    %v4898 = vsel %vm4780, %v4897, %v4896
    %v4899 = vperm.slane %v4413, %v4782
    %v4900 = vsel %vm4784, %v4899, %v4898
    %v4901 = vperm.slane %v4416, %v4786
    %v4902 = vsel %vm4788, %v4901, %v4900
    %v4903 = vperm.slane %v4419, %v4790
    %v4904 = vsel %vm4792, %v4903, %v4902
    %v4905 = vperm.slane %v4422, %v4794
    %v4906 = vsel %vm4796, %v4905, %v4904
    %v4907 = vperm.slane %v4425, %v4798
    %v4908 = vsel %vm4800, %v4907, %v4906
    %v4909 = vperm.slane %v4428, %v4802
    %v4910 = vsel %vm4804, %v4909, %v4908
    %v4911 = vperm.slane %v4431, %v4806
    %v4912 = vsel %vm4808, %v4911, %v4910
    %v4913 = vperm.slane %v4434, %v4810
    %v4914 = vsel %vm4812, %v4913, %v4912
    %v4915 = vperm.slane %v4437, %v4814
    %v4916 = vsel %vm4816, %v4915, %v4914
    %v4917 = vperm.slane %v4440, %v4818
    %v4918 = vsel %vm4820, %v4917, %v4916
    %v4919 = vperm.slane %v4443, %v4822
    %v4920 = vsel %vm4824, %v4919, %v4918
    %v4921 = vperm.slane %v4446, %v4826
    %v4922 = vsel %vm4828, %v4921, %v4920
    %v4923 = vperm.slane %v4449, %v4768
    %v4924 = vperm.slane %v4452, %v4770
    %v4925 = vsel %vm4772, %v4924, %v4923
    %v4926 = vperm.slane %v4455, %v4774
    %v4927 = vsel %vm4776, %v4926, %v4925
    %v4928 = vperm.slane %v4458, %v4778
    %v4929 = vsel %vm4780, %v4928, %v4927
    %v4930 = vperm.slane %v4461, %v4782
    %v4931 = vsel %vm4784, %v4930, %v4929
    %v4932 = vperm.slane %v4464, %v4786
    %v4933 = vsel %vm4788, %v4932, %v4931
    %v4934 = vperm.slane %v4467, %v4790
    %v4935 = vsel %vm4792, %v4934, %v4933
    %v4936 = vperm.slane %v4470, %v4794
    %v4937 = vsel %vm4796, %v4936, %v4935
    %v4938 = vperm.slane %v4473, %v4798
    %v4939 = vsel %vm4800, %v4938, %v4937
    %v4940 = vperm.slane %v4476, %v4802
    %v4941 = vsel %vm4804, %v4940, %v4939
    %v4942 = vperm.slane %v4479, %v4806
    %v4943 = vsel %vm4808, %v4942, %v4941
    %v4944 = vperm.slane %v4482, %v4810
    %v4945 = vsel %vm4812, %v4944, %v4943
    %v4946 = vperm.slane %v4485, %v4814
    %v4947 = vsel %vm4816, %v4946, %v4945
    %v4948 = vperm.slane %v4488, %v4818
    %v4949 = vsel %vm4820, %v4948, %v4947
    %v4950 = vperm.slane %v4491, %v4822
    %v4951 = vsel %vm4824, %v4950, %v4949
    %v4952 = vperm.slane %v4494, %v4826
    %v4953 = vsel %vm4828, %v4952, %v4951
    %v4954 = vperm.slane %v4497, %v4768
    %v4955 = vperm.slane %v4500, %v4770
    %v4956 = vsel %vm4772, %v4955, %v4954
    %v4957 = vperm.slane %v4503, %v4774
    %v4958 = vsel %vm4776, %v4957, %v4956
    %v4959 = vperm.slane %v4506, %v4778
    %v4960 = vsel %vm4780, %v4959, %v4958
    %v4961 = vperm.slane %v4509, %v4782
    %v4962 = vsel %vm4784, %v4961, %v4960
    %v4963 = vperm.slane %v4512, %v4786
    %v4964 = vsel %vm4788, %v4963, %v4962
    %v4965 = vperm.slane %v4515, %v4790
    %v4966 = vsel %vm4792, %v4965, %v4964
    %v4967 = vperm.slane %v4518, %v4794
    %v4968 = vsel %vm4796, %v4967, %v4966
    %v4969 = vperm.slane %v4521, %v4798
    %v4970 = vsel %vm4800, %v4969, %v4968
    %v4971 = vperm.slane %v4524, %v4802
    %v4972 = vsel %vm4804, %v4971, %v4970
    %v4973 = vperm.slane %v4527, %v4806
    %v4974 = vsel %vm4808, %v4973, %v4972
    %v4975 = vperm.slane %v4530, %v4810
    %v4976 = vsel %vm4812, %v4975, %v4974
    %v4977 = vperm.slane %v4533, %v4814
    %v4978 = vsel %vm4816, %v4977, %v4976
    %v4979 = vperm.slane %v4536, %v4818
    %v4980 = vsel %vm4820, %v4979, %v4978
    %v4981 = vperm.slane %v4539, %v4822
    %v4982 = vsel %vm4824, %v4981, %v4980
    %v4983 = vperm.slane %v4542, %v4826
    %v4984 = vsel %vm4828, %v4983, %v4982
    %v4985 = vperm.slane %v4545, %v4768
    %v4986 = vperm.slane %v4548, %v4770
    %v4987 = vsel %vm4772, %v4986, %v4985
    %v4988 = vperm.slane %v4551, %v4774
    %v4989 = vsel %vm4776, %v4988, %v4987
    %v4990 = vperm.slane %v4554, %v4778
    %v4991 = vsel %vm4780, %v4990, %v4989
    %v4992 = vperm.slane %v4557, %v4782
    %v4993 = vsel %vm4784, %v4992, %v4991
    %v4994 = vperm.slane %v4560, %v4786
    %v4995 = vsel %vm4788, %v4994, %v4993
    %v4996 = vperm.slane %v4563, %v4790
    %v4997 = vsel %vm4792, %v4996, %v4995
    %v4998 = vperm.slane %v4566, %v4794
    %v4999 = vsel %vm4796, %v4998, %v4997
    %v5000 = vperm.slane %v4569, %v4798
    %v5001 = vsel %vm4800, %v5000, %v4999
    %v5002 = vperm.slane %v4572, %v4802
    %v5003 = vsel %vm4804, %v5002, %v5001
    %v5004 = vperm.slane %v4575, %v4806
    %v5005 = vsel %vm4808, %v5004, %v5003
    %v5006 = vperm.slane %v4578, %v4810
    %v5007 = vsel %vm4812, %v5006, %v5005
    %v5008 = vperm.slane %v4581, %v4814
    %v5009 = vsel %vm4816, %v5008, %v5007
    %v5010 = vperm.slane %v4584, %v4818
    %v5011 = vsel %vm4820, %v5010, %v5009
    %v5012 = vperm.slane %v4587, %v4822
    %v5013 = vsel %vm4824, %v5012, %v5011
    %v5014 = vperm.slane %v4590, %v4826
    %v5015 = vsel %vm4828, %v5014, %v5013
    %v5016 = vperm.slane %v4593, %v4768
    %v5017 = vperm.slane %v4596, %v4770
    %v5018 = vsel %vm4772, %v5017, %v5016
    %v5019 = vperm.slane %v4599, %v4774
    %v5020 = vsel %vm4776, %v5019, %v5018
    %v5021 = vperm.slane %v4602, %v4778
    %v5022 = vsel %vm4780, %v5021, %v5020
    %v5023 = vperm.slane %v4605, %v4782
    %v5024 = vsel %vm4784, %v5023, %v5022
    %v5025 = vperm.slane %v4608, %v4786
    %v5026 = vsel %vm4788, %v5025, %v5024
    %v5027 = vperm.slane %v4611, %v4790
    %v5028 = vsel %vm4792, %v5027, %v5026
    %v5029 = vperm.slane %v4614, %v4794
    %v5030 = vsel %vm4796, %v5029, %v5028
    %v5031 = vperm.slane %v4617, %v4798
    %v5032 = vsel %vm4800, %v5031, %v5030
    %v5033 = vperm.slane %v4620, %v4802
    %v5034 = vsel %vm4804, %v5033, %v5032
    %v5035 = vperm.slane %v4623, %v4806
    %v5036 = vsel %vm4808, %v5035, %v5034
    %v5037 = vperm.slane %v4626, %v4810
    %v5038 = vsel %vm4812, %v5037, %v5036
    %v5039 = vperm.slane %v4629, %v4814
    %v5040 = vsel %vm4816, %v5039, %v5038
    %v5041 = vperm.slane %v4632, %v4818
    %v5042 = vsel %vm4820, %v5041, %v5040
    %v5043 = vperm.slane %v4635, %v4822
    %v5044 = vsel %vm4824, %v5043, %v5042
    %v5045 = vperm.slane %v4638, %v4826
    %v5046 = vsel %vm4828, %v5045, %v5044
    %vm5047 = vcmask 1041409
    %v5048 = vsel %vm5047, %v4860, %v4829
    %vm5049 = vcmask 1042434
    %v5050 = vsel %vm5049, %v4891, %v5048
    %vm5051 = vcmask 1043459
    %v5052 = vsel %vm5051, %v4922, %v5050
    %vm5053 = vcmask 1044484
    %v5054 = vsel %vm5053, %v4953, %v5052
    %vm5055 = vcmask 1045509
    %v5056 = vsel %vm5055, %v4984, %v5054
    %vm5057 = vcmask 1046534
    %v5058 = vsel %vm5057, %v5015, %v5056
    %vm5059 = vcmask 1047559
    %v5060 = vsel %vm5059, %v5046, %v5058
    %v5062 = vmul.f32 %v3930, %v5060
    %vm5063 = vcmp.eq.f32.partialorder %v5062, 0.0
    %v5064 = vsel %vm5063, -1e+10, %v5062
    %5065 = vmax.xlane.f32.xlu0 %v5064
    %v5066 = vpop.xlane.xlu0 %5065
    %v5067 = vsub.f32 %v5064, %v5066
    %v5068 = vmul.f32 %v5067, 1.442695
    %v5069 = vpow.pop %v5068
    %5070 = vadd.xlane.f32.xlu0 %v5069
    %v5071 = vpop.xlane.xlu0 %5070
    %v5072 = vrcp.pop %v5071
    %v5073 = vmul.f32 %v5069, %v5072
    %v5074 = vperm.slane %v5073, 0
    %v5075 = vlaneseq
    %v5076 = vshrl.u32 %v5075, 7
    %5078 = vset.pattern.permute.xlu0 %v5076
    %5079 = vperm.xlu0 %5078, %v5074
    %v5080 = vpop.permute.xlu0 %5079
    %v5081 = vlaneseq
    %v5082 = vshrl.u32 %v5081, 7
    %v5083 = vadd.s32 %v5082, 8
    %5084 = vset.pattern.permute.xlu0 %v5083
    %5085 = vperm.xlu0 %5084, %v5074
    %v5086 = vpop.permute.xlu0 %5085
    %v5087 = vlaneseq
    %v5088 = vshrl.u32 %v5087, 7
    %v5089 = vadd.s32 %v5088, 16
    %5090 = vset.pattern.permute.xlu0 %v5089
    %5091 = vperm.xlu0 %5090, %v5074
    %v5092 = vpop.permute.xlu0 %5091
    %v5093 = vlaneseq
    %v5094 = vshrl.u32 %v5093, 7
    %v5095 = vadd.s32 %v5094, 24
    %5096 = vset.pattern.permute.xlu0 %v5095
    %5097 = vperm.xlu0 %5096, %v5074
    %v5098 = vpop.permute.xlu0 %5097
    %v5099 = vlaneseq
    %v5100 = vshrl.u32 %v5099, 7
    %v5101 = vadd.s32 %v5100, 32
    %5102 = vset.pattern.permute.xlu0 %v5101
    %5103 = vperm.xlu0 %5102, %v5074
    %v5104 = vpop.permute.xlu0 %5103
    %v5105 = vlaneseq
    %v5106 = vshrl.u32 %v5105, 7
    %v5107 = vadd.s32 %v5106, 40
    %5108 = vset.pattern.permute.xlu0 %v5107
    %5109 = vperm.xlu0 %5108, %v5074
    %v5110 = vpop.permute.xlu0 %5109
    %v5111 = vlaneseq
    %v5112 = vshrl.u32 %v5111, 7
    %v5113 = vadd.s32 %v5112, 48
    %5114 = vset.pattern.permute.xlu0 %v5113
    %5115 = vperm.xlu0 %5114, %v5074
    %v5116 = vpop.permute.xlu0 %5115
    %v5117 = vlaneseq
    %v5118 = vshrl.u32 %v5117, 7
    %v5119 = vadd.s32 %v5118, 56
    %5120 = vset.pattern.permute.xlu0 %v5119
    %5121 = vperm.xlu0 %5120, %v5074
    %v5122 = vpop.permute.xlu0 %5121
    %v5123 = vlaneseq
    %v5124 = vshrl.u32 %v5123, 7
    %v5125 = vadd.s32 %v5124, 64
    %5126 = vset.pattern.permute.xlu0 %v5125
    %5127 = vperm.xlu0 %5126, %v5074
    %v5128 = vpop.permute.xlu0 %5127
    %v5129 = vlaneseq
    %v5130 = vshrl.u32 %v5129, 7
    %v5131 = vadd.s32 %v5130, 72
    %5132 = vset.pattern.permute.xlu0 %v5131
    %5133 = vperm.xlu0 %5132, %v5074
    %v5134 = vpop.permute.xlu0 %5133
    %v5135 = vlaneseq
    %v5136 = vshrl.u32 %v5135, 7
    %v5137 = vadd.s32 %v5136, 80
    %5138 = vset.pattern.permute.xlu0 %v5137
    %5139 = vperm.xlu0 %5138, %v5074
    %v5140 = vpop.permute.xlu0 %5139
    %v5141 = vlaneseq
    %v5142 = vshrl.u32 %v5141, 7
    %v5143 = vadd.s32 %v5142, 88
    %5144 = vset.pattern.permute.xlu0 %v5143
    %5145 = vperm.xlu0 %5144, %v5074
    %v5146 = vpop.permute.xlu0 %5145
    %v5147 = vlaneseq
    %v5148 = vshrl.u32 %v5147, 7
    %v5149 = vadd.s32 %v5148, 96
    %5150 = vset.pattern.permute.xlu0 %v5149
    %5151 = vperm.xlu0 %5150, %v5074
    %v5152 = vpop.permute.xlu0 %5151
    %v5153 = vlaneseq
    %v5154 = vshrl.u32 %v5153, 7
    %v5155 = vadd.s32 %v5154, 104
    %5156 = vset.pattern.permute.xlu0 %v5155
    %5157 = vperm.xlu0 %5156, %v5074
    %v5158 = vpop.permute.xlu0 %5157
    %v5159 = vlaneseq
    %v5160 = vshrl.u32 %v5159, 7
    %v5161 = vadd.s32 %v5160, 112
    %5162 = vset.pattern.permute.xlu0 %v5161
    %5163 = vperm.xlu0 %5162, %v5074
    %v5164 = vpop.permute.xlu0 %5163
    %v5165 = vlaneseq
    %v5166 = vshrl.u32 %v5165, 7
    %v5167 = vadd.s32 %v5166, 120
    %5168 = vset.pattern.permute.xlu0 %v5167
    %5169 = vperm.xlu0 %5168, %v5074
    %v5170 = vpop.permute.xlu0 %5169
    %v5171 = vperm.slane %v5073, 1
    %v5172 = vlaneseq
    %v5173 = vshrl.u32 %v5172, 7
    %5175 = vset.pattern.permute.xlu0 %v5173
    %5176 = vperm.xlu0 %5175, %v5171
    %v5177 = vpop.permute.xlu0 %5176
    %v5178 = vlaneseq
    %v5179 = vshrl.u32 %v5178, 7
    %v5180 = vadd.s32 %v5179, 8
    %5181 = vset.pattern.permute.xlu0 %v5180
    %5182 = vperm.xlu0 %5181, %v5171
    %v5183 = vpop.permute.xlu0 %5182
    %v5184 = vlaneseq
    %v5185 = vshrl.u32 %v5184, 7
    %v5186 = vadd.s32 %v5185, 16
    %5187 = vset.pattern.permute.xlu0 %v5186
    %5188 = vperm.xlu0 %5187, %v5171
    %v5189 = vpop.permute.xlu0 %5188
    %v5190 = vlaneseq
    %v5191 = vshrl.u32 %v5190, 7
    %v5192 = vadd.s32 %v5191, 24
    %5193 = vset.pattern.permute.xlu0 %v5192
    %5194 = vperm.xlu0 %5193, %v5171
    %v5195 = vpop.permute.xlu0 %5194
    %v5196 = vlaneseq
    %v5197 = vshrl.u32 %v5196, 7
    %v5198 = vadd.s32 %v5197, 32
    %5199 = vset.pattern.permute.xlu0 %v5198
    %5200 = vperm.xlu0 %5199, %v5171
    %v5201 = vpop.permute.xlu0 %5200
    %v5202 = vlaneseq
    %v5203 = vshrl.u32 %v5202, 7
    %v5204 = vadd.s32 %v5203, 40
    %5205 = vset.pattern.permute.xlu0 %v5204
    %5206 = vperm.xlu0 %5205, %v5171
    %v5207 = vpop.permute.xlu0 %5206
    %v5208 = vlaneseq
    %v5209 = vshrl.u32 %v5208, 7
    %v5210 = vadd.s32 %v5209, 48
    %5211 = vset.pattern.permute.xlu0 %v5210
    %5212 = vperm.xlu0 %5211, %v5171
    %v5213 = vpop.permute.xlu0 %5212
    %v5214 = vlaneseq
    %v5215 = vshrl.u32 %v5214, 7
    %v5216 = vadd.s32 %v5215, 56
    %5217 = vset.pattern.permute.xlu0 %v5216
    %5218 = vperm.xlu0 %5217, %v5171
    %v5219 = vpop.permute.xlu0 %5218
    %v5220 = vlaneseq
    %v5221 = vshrl.u32 %v5220, 7
    %v5222 = vadd.s32 %v5221, 64
    %5223 = vset.pattern.permute.xlu0 %v5222
    %5224 = vperm.xlu0 %5223, %v5171
    %v5225 = vpop.permute.xlu0 %5224
    %v5226 = vlaneseq
    %v5227 = vshrl.u32 %v5226, 7
    %v5228 = vadd.s32 %v5227, 72
    %5229 = vset.pattern.permute.xlu0 %v5228
    %5230 = vperm.xlu0 %5229, %v5171
    %v5231 = vpop.permute.xlu0 %5230
    %v5232 = vlaneseq
    %v5233 = vshrl.u32 %v5232, 7
    %v5234 = vadd.s32 %v5233, 80
    %5235 = vset.pattern.permute.xlu0 %v5234
    %5236 = vperm.xlu0 %5235, %v5171
    %v5237 = vpop.permute.xlu0 %5236
    %v5238 = vlaneseq
    %v5239 = vshrl.u32 %v5238, 7
    %v5240 = vadd.s32 %v5239, 88
    %5241 = vset.pattern.permute.xlu0 %v5240
    %5242 = vperm.xlu0 %5241, %v5171
    %v5243 = vpop.permute.xlu0 %5242
    %v5244 = vlaneseq
    %v5245 = vshrl.u32 %v5244, 7
    %v5246 = vadd.s32 %v5245, 96
    %5247 = vset.pattern.permute.xlu0 %v5246
    %5248 = vperm.xlu0 %5247, %v5171
    %v5249 = vpop.permute.xlu0 %5248
    %v5250 = vlaneseq
    %v5251 = vshrl.u32 %v5250, 7
    %v5252 = vadd.s32 %v5251, 104
    %5253 = vset.pattern.permute.xlu0 %v5252
    %5254 = vperm.xlu0 %5253, %v5171
    %v5255 = vpop.permute.xlu0 %5254
    %v5256 = vlaneseq
    %v5257 = vshrl.u32 %v5256, 7
    %v5258 = vadd.s32 %v5257, 112
    %5259 = vset.pattern.permute.xlu0 %v5258
    %5260 = vperm.xlu0 %5259, %v5171
    %v5261 = vpop.permute.xlu0 %5260
    %v5262 = vlaneseq
    %v5263 = vshrl.u32 %v5262, 7
    %v5264 = vadd.s32 %v5263, 120
    %5265 = vset.pattern.permute.xlu0 %v5264
    %5266 = vperm.xlu0 %5265, %v5171
    %v5267 = vpop.permute.xlu0 %5266
    %v5268 = vperm.slane %v5073, 2
    %v5269 = vlaneseq
    %v5270 = vshrl.u32 %v5269, 7
    %5272 = vset.pattern.permute.xlu0 %v5270
    %5273 = vperm.xlu0 %5272, %v5268
    %v5274 = vpop.permute.xlu0 %5273
    %v5275 = vlaneseq
    %v5276 = vshrl.u32 %v5275, 7
    %v5277 = vadd.s32 %v5276, 8
    %5278 = vset.pattern.permute.xlu0 %v5277
    %5279 = vperm.xlu0 %5278, %v5268
    %v5280 = vpop.permute.xlu0 %5279
    %v5281 = vlaneseq
    %v5282 = vshrl.u32 %v5281, 7
    %v5283 = vadd.s32 %v5282, 16
    %5284 = vset.pattern.permute.xlu0 %v5283
    %5285 = vperm.xlu0 %5284, %v5268
    %v5286 = vpop.permute.xlu0 %5285
    %v5287 = vlaneseq
    %v5288 = vshrl.u32 %v5287, 7
    %v5289 = vadd.s32 %v5288, 24
    %5290 = vset.pattern.permute.xlu0 %v5289
    %5291 = vperm.xlu0 %5290, %v5268
    %v5292 = vpop.permute.xlu0 %5291
    %v5293 = vlaneseq
    %v5294 = vshrl.u32 %v5293, 7
    %v5295 = vadd.s32 %v5294, 32
    %5296 = vset.pattern.permute.xlu0 %v5295
    %5297 = vperm.xlu0 %5296, %v5268
    %v5298 = vpop.permute.xlu0 %5297
    %v5299 = vlaneseq
    %v5300 = vshrl.u32 %v5299, 7
    %v5301 = vadd.s32 %v5300, 40
    %5302 = vset.pattern.permute.xlu0 %v5301
    %5303 = vperm.xlu0 %5302, %v5268
    %v5304 = vpop.permute.xlu0 %5303
    %v5305 = vlaneseq
    %v5306 = vshrl.u32 %v5305, 7
    %v5307 = vadd.s32 %v5306, 48
    %5308 = vset.pattern.permute.xlu0 %v5307
    %5309 = vperm.xlu0 %5308, %v5268
    %v5310 = vpop.permute.xlu0 %5309
    %v5311 = vlaneseq
    %v5312 = vshrl.u32 %v5311, 7
    %v5313 = vadd.s32 %v5312, 56
    %5314 = vset.pattern.permute.xlu0 %v5313
    %5315 = vperm.xlu0 %5314, %v5268
    %v5316 = vpop.permute.xlu0 %5315
    %v5317 = vlaneseq
    %v5318 = vshrl.u32 %v5317, 7
    %v5319 = vadd.s32 %v5318, 64
    %5320 = vset.pattern.permute.xlu0 %v5319
    %5321 = vperm.xlu0 %5320, %v5268
    %v5322 = vpop.permute.xlu0 %5321
    %v5323 = vlaneseq
    %v5324 = vshrl.u32 %v5323, 7
    %v5325 = vadd.s32 %v5324, 72
    %5326 = vset.pattern.permute.xlu0 %v5325
    %5327 = vperm.xlu0 %5326, %v5268
    %v5328 = vpop.permute.xlu0 %5327
    %v5329 = vlaneseq
    %v5330 = vshrl.u32 %v5329, 7
    %v5331 = vadd.s32 %v5330, 80
    %5332 = vset.pattern.permute.xlu0 %v5331
    %5333 = vperm.xlu0 %5332, %v5268
    %v5334 = vpop.permute.xlu0 %5333
    %v5335 = vlaneseq
    %v5336 = vshrl.u32 %v5335, 7
    %v5337 = vadd.s32 %v5336, 88
    %5338 = vset.pattern.permute.xlu0 %v5337
    %5339 = vperm.xlu0 %5338, %v5268
    %v5340 = vpop.permute.xlu0 %5339
    %v5341 = vlaneseq
    %v5342 = vshrl.u32 %v5341, 7
    %v5343 = vadd.s32 %v5342, 96
    %5344 = vset.pattern.permute.xlu0 %v5343
    %5345 = vperm.xlu0 %5344, %v5268
    %v5346 = vpop.permute.xlu0 %5345
    %v5347 = vlaneseq
    %v5348 = vshrl.u32 %v5347, 7
    %v5349 = vadd.s32 %v5348, 104
    %5350 = vset.pattern.permute.xlu0 %v5349
    %5351 = vperm.xlu0 %5350, %v5268
    %v5352 = vpop.permute.xlu0 %5351
    %v5353 = vlaneseq
    %v5354 = vshrl.u32 %v5353, 7
    %v5355 = vadd.s32 %v5354, 112
    %5356 = vset.pattern.permute.xlu0 %v5355
    %5357 = vperm.xlu0 %5356, %v5268
    %v5358 = vpop.permute.xlu0 %5357
    %v5359 = vlaneseq
    %v5360 = vshrl.u32 %v5359, 7
    %v5361 = vadd.s32 %v5360, 120
    %5362 = vset.pattern.permute.xlu0 %v5361
    %5363 = vperm.xlu0 %5362, %v5268
    %v5364 = vpop.permute.xlu0 %5363
    %v5365 = vperm.slane %v5073, 3
    %v5366 = vlaneseq
    %v5367 = vshrl.u32 %v5366, 7
    %5369 = vset.pattern.permute.xlu0 %v5367
    %5370 = vperm.xlu0 %5369, %v5365
    %v5371 = vpop.permute.xlu0 %5370
    %v5372 = vlaneseq
    %v5373 = vshrl.u32 %v5372, 7
    %v5374 = vadd.s32 %v5373, 8
    %5375 = vset.pattern.permute.xlu0 %v5374
    %5376 = vperm.xlu0 %5375, %v5365
    %v5377 = vpop.permute.xlu0 %5376
    %v5378 = vlaneseq
    %v5379 = vshrl.u32 %v5378, 7
    %v5380 = vadd.s32 %v5379, 16
    %5381 = vset.pattern.permute.xlu0 %v5380
    %5382 = vperm.xlu0 %5381, %v5365
    %v5383 = vpop.permute.xlu0 %5382
    %v5384 = vlaneseq
    %v5385 = vshrl.u32 %v5384, 7
    %v5386 = vadd.s32 %v5385, 24
    %5387 = vset.pattern.permute.xlu0 %v5386
    %5388 = vperm.xlu0 %5387, %v5365
    %v5389 = vpop.permute.xlu0 %5388
    %v5390 = vlaneseq
    %v5391 = vshrl.u32 %v5390, 7
    %v5392 = vadd.s32 %v5391, 32
    %5393 = vset.pattern.permute.xlu0 %v5392
    %5394 = vperm.xlu0 %5393, %v5365
    %v5395 = vpop.permute.xlu0 %5394
    %v5396 = vlaneseq
    %v5397 = vshrl.u32 %v5396, 7
    %v5398 = vadd.s32 %v5397, 40
    %5399 = vset.pattern.permute.xlu0 %v5398
    %5400 = vperm.xlu0 %5399, %v5365
    %v5401 = vpop.permute.xlu0 %5400
    %v5402 = vlaneseq
    %v5403 = vshrl.u32 %v5402, 7
    %v5404 = vadd.s32 %v5403, 48
    %5405 = vset.pattern.permute.xlu0 %v5404
    %5406 = vperm.xlu0 %5405, %v5365
    %v5407 = vpop.permute.xlu0 %5406
    %v5408 = vlaneseq
    %v5409 = vshrl.u32 %v5408, 7
    %v5410 = vadd.s32 %v5409, 56
    %5411 = vset.pattern.permute.xlu0 %v5410
    %5412 = vperm.xlu0 %5411, %v5365
    %v5413 = vpop.permute.xlu0 %5412
    %v5414 = vlaneseq
    %v5415 = vshrl.u32 %v5414, 7
    %v5416 = vadd.s32 %v5415, 64
    %5417 = vset.pattern.permute.xlu0 %v5416
    %5418 = vperm.xlu0 %5417, %v5365
    %v5419 = vpop.permute.xlu0 %5418
    %v5420 = vlaneseq
    %v5421 = vshrl.u32 %v5420, 7
    %v5422 = vadd.s32 %v5421, 72
    %5423 = vset.pattern.permute.xlu0 %v5422
    %5424 = vperm.xlu0 %5423, %v5365
    %v5425 = vpop.permute.xlu0 %5424
    %v5426 = vlaneseq
    %v5427 = vshrl.u32 %v5426, 7
    %v5428 = vadd.s32 %v5427, 80
    %5429 = vset.pattern.permute.xlu0 %v5428
    %5430 = vperm.xlu0 %5429, %v5365
    %v5431 = vpop.permute.xlu0 %5430
    %v5432 = vlaneseq
    %v5433 = vshrl.u32 %v5432, 7
    %v5434 = vadd.s32 %v5433, 88
    %5435 = vset.pattern.permute.xlu0 %v5434
    %5436 = vperm.xlu0 %5435, %v5365
    %v5437 = vpop.permute.xlu0 %5436
    %v5438 = vlaneseq
    %v5439 = vshrl.u32 %v5438, 7
    %v5440 = vadd.s32 %v5439, 96
    %5441 = vset.pattern.permute.xlu0 %v5440
    %5442 = vperm.xlu0 %5441, %v5365
    %v5443 = vpop.permute.xlu0 %5442
    %v5444 = vlaneseq
    %v5445 = vshrl.u32 %v5444, 7
    %v5446 = vadd.s32 %v5445, 104
    %5447 = vset.pattern.permute.xlu0 %v5446
    %5448 = vperm.xlu0 %5447, %v5365
    %v5449 = vpop.permute.xlu0 %5448
    %v5450 = vlaneseq
    %v5451 = vshrl.u32 %v5450, 7
    %v5452 = vadd.s32 %v5451, 112
    %5453 = vset.pattern.permute.xlu0 %v5452
    %5454 = vperm.xlu0 %5453, %v5365
    %v5455 = vpop.permute.xlu0 %5454
    %v5456 = vlaneseq
    %v5457 = vshrl.u32 %v5456, 7
    %v5458 = vadd.s32 %v5457, 120
    %5459 = vset.pattern.permute.xlu0 %v5458
    %5460 = vperm.xlu0 %5459, %v5365
    %v5461 = vpop.permute.xlu0 %5460
    %v5462 = vperm.slane %v5073, 4
    %v5463 = vlaneseq
    %v5464 = vshrl.u32 %v5463, 7
    %5466 = vset.pattern.permute.xlu0 %v5464
    %5467 = vperm.xlu0 %5466, %v5462
    %v5468 = vpop.permute.xlu0 %5467
    %v5469 = vlaneseq
    %v5470 = vshrl.u32 %v5469, 7
    %v5471 = vadd.s32 %v5470, 8
    %5472 = vset.pattern.permute.xlu0 %v5471
    %5473 = vperm.xlu0 %5472, %v5462
    %v5474 = vpop.permute.xlu0 %5473
    %v5475 = vlaneseq
    %v5476 = vshrl.u32 %v5475, 7
    %v5477 = vadd.s32 %v5476, 16
    %5478 = vset.pattern.permute.xlu0 %v5477
    %5479 = vperm.xlu0 %5478, %v5462
    %v5480 = vpop.permute.xlu0 %5479
    %v5481 = vlaneseq
    %v5482 = vshrl.u32 %v5481, 7
    %v5483 = vadd.s32 %v5482, 24
    %5484 = vset.pattern.permute.xlu0 %v5483
    %5485 = vperm.xlu0 %5484, %v5462
    %v5486 = vpop.permute.xlu0 %5485
    %v5487 = vlaneseq
    %v5488 = vshrl.u32 %v5487, 7
    %v5489 = vadd.s32 %v5488, 32
    %5490 = vset.pattern.permute.xlu0 %v5489
    %5491 = vperm.xlu0 %5490, %v5462
    %v5492 = vpop.permute.xlu0 %5491
    %v5493 = vlaneseq
    %v5494 = vshrl.u32 %v5493, 7
    %v5495 = vadd.s32 %v5494, 40
    %5496 = vset.pattern.permute.xlu0 %v5495
    %5497 = vperm.xlu0 %5496, %v5462
    %v5498 = vpop.permute.xlu0 %5497
    %v5499 = vlaneseq
    %v5500 = vshrl.u32 %v5499, 7
    %v5501 = vadd.s32 %v5500, 48
    %5502 = vset.pattern.permute.xlu0 %v5501
    %5503 = vperm.xlu0 %5502, %v5462
    %v5504 = vpop.permute.xlu0 %5503
    %v5505 = vlaneseq
    %v5506 = vshrl.u32 %v5505, 7
    %v5507 = vadd.s32 %v5506, 56
    %5508 = vset.pattern.permute.xlu0 %v5507
    %5509 = vperm.xlu0 %5508, %v5462
    %v5510 = vpop.permute.xlu0 %5509
    %v5511 = vlaneseq
    %v5512 = vshrl.u32 %v5511, 7
    %v5513 = vadd.s32 %v5512, 64
    %5514 = vset.pattern.permute.xlu0 %v5513
    %5515 = vperm.xlu0 %5514, %v5462
    %v5516 = vpop.permute.xlu0 %5515
    %v5517 = vlaneseq
    %v5518 = vshrl.u32 %v5517, 7
    %v5519 = vadd.s32 %v5518, 72
    %5520 = vset.pattern.permute.xlu0 %v5519
    %5521 = vperm.xlu0 %5520, %v5462
    %v5522 = vpop.permute.xlu0 %5521
    %v5523 = vlaneseq
    %v5524 = vshrl.u32 %v5523, 7
    %v5525 = vadd.s32 %v5524, 80
    %5526 = vset.pattern.permute.xlu0 %v5525
    %5527 = vperm.xlu0 %5526, %v5462
    %v5528 = vpop.permute.xlu0 %5527
    %v5529 = vlaneseq
    %v5530 = vshrl.u32 %v5529, 7
    %v5531 = vadd.s32 %v5530, 88
    %5532 = vset.pattern.permute.xlu0 %v5531
    %5533 = vperm.xlu0 %5532, %v5462
    %v5534 = vpop.permute.xlu0 %5533
    %v5535 = vlaneseq
    %v5536 = vshrl.u32 %v5535, 7
    %v5537 = vadd.s32 %v5536, 96
    %5538 = vset.pattern.permute.xlu0 %v5537
    %5539 = vperm.xlu0 %5538, %v5462
    %v5540 = vpop.permute.xlu0 %5539
    %v5541 = vlaneseq
    %v5542 = vshrl.u32 %v5541, 7
    %v5543 = vadd.s32 %v5542, 104
    %5544 = vset.pattern.permute.xlu0 %v5543
    %5545 = vperm.xlu0 %5544, %v5462
    %v5546 = vpop.permute.xlu0 %5545
    %v5547 = vlaneseq
    %v5548 = vshrl.u32 %v5547, 7
    %v5549 = vadd.s32 %v5548, 112
    %5550 = vset.pattern.permute.xlu0 %v5549
    %5551 = vperm.xlu0 %5550, %v5462
    %v5552 = vpop.permute.xlu0 %5551
    %v5553 = vlaneseq
    %v5554 = vshrl.u32 %v5553, 7
    %v5555 = vadd.s32 %v5554, 120
    %5556 = vset.pattern.permute.xlu0 %v5555
    %5557 = vperm.xlu0 %5556, %v5462
    %v5558 = vpop.permute.xlu0 %5557
    %v5559 = vperm.slane %v5073, 5
    %v5560 = vlaneseq
    %v5561 = vshrl.u32 %v5560, 7
    %5563 = vset.pattern.permute.xlu0 %v5561
    %5564 = vperm.xlu0 %5563, %v5559
    %v5565 = vpop.permute.xlu0 %5564
    %v5566 = vlaneseq
    %v5567 = vshrl.u32 %v5566, 7
    %v5568 = vadd.s32 %v5567, 8
    %5569 = vset.pattern.permute.xlu0 %v5568
    %5570 = vperm.xlu0 %5569, %v5559
    %v5571 = vpop.permute.xlu0 %5570
    %v5572 = vlaneseq
    %v5573 = vshrl.u32 %v5572, 7
    %v5574 = vadd.s32 %v5573, 16
    %5575 = vset.pattern.permute.xlu0 %v5574
    %5576 = vperm.xlu0 %5575, %v5559
    %v5577 = vpop.permute.xlu0 %5576
    %v5578 = vlaneseq
    %v5579 = vshrl.u32 %v5578, 7
    %v5580 = vadd.s32 %v5579, 24
    %5581 = vset.pattern.permute.xlu0 %v5580
    %5582 = vperm.xlu0 %5581, %v5559
    %v5583 = vpop.permute.xlu0 %5582
    %v5584 = vlaneseq
    %v5585 = vshrl.u32 %v5584, 7
    %v5586 = vadd.s32 %v5585, 32
    %5587 = vset.pattern.permute.xlu0 %v5586
    %5588 = vperm.xlu0 %5587, %v5559
    %v5589 = vpop.permute.xlu0 %5588
    %v5590 = vlaneseq
    %v5591 = vshrl.u32 %v5590, 7
    %v5592 = vadd.s32 %v5591, 40
    %5593 = vset.pattern.permute.xlu0 %v5592
    %5594 = vperm.xlu0 %5593, %v5559
    %v5595 = vpop.permute.xlu0 %5594
    %v5596 = vlaneseq
    %v5597 = vshrl.u32 %v5596, 7
    %v5598 = vadd.s32 %v5597, 48
    %5599 = vset.pattern.permute.xlu0 %v5598
    %5600 = vperm.xlu0 %5599, %v5559
    %v5601 = vpop.permute.xlu0 %5600
    %v5602 = vlaneseq
    %v5603 = vshrl.u32 %v5602, 7
    %v5604 = vadd.s32 %v5603, 56
    %5605 = vset.pattern.permute.xlu0 %v5604
    %5606 = vperm.xlu0 %5605, %v5559
    %v5607 = vpop.permute.xlu0 %5606
    %v5608 = vlaneseq
    %v5609 = vshrl.u32 %v5608, 7
    %v5610 = vadd.s32 %v5609, 64
    %5611 = vset.pattern.permute.xlu0 %v5610
    %5612 = vperm.xlu0 %5611, %v5559
    %v5613 = vpop.permute.xlu0 %5612
    %v5614 = vlaneseq
    %v5615 = vshrl.u32 %v5614, 7
    %v5616 = vadd.s32 %v5615, 72
    %5617 = vset.pattern.permute.xlu0 %v5616
    %5618 = vperm.xlu0 %5617, %v5559
    %v5619 = vpop.permute.xlu0 %5618
    %v5620 = vlaneseq
    %v5621 = vshrl.u32 %v5620, 7
    %v5622 = vadd.s32 %v5621, 80
    %5623 = vset.pattern.permute.xlu0 %v5622
    %5624 = vperm.xlu0 %5623, %v5559
    %v5625 = vpop.permute.xlu0 %5624
    %v5626 = vlaneseq
    %v5627 = vshrl.u32 %v5626, 7
    %v5628 = vadd.s32 %v5627, 88
    %5629 = vset.pattern.permute.xlu0 %v5628
    %5630 = vperm.xlu0 %5629, %v5559
    %v5631 = vpop.permute.xlu0 %5630
    %v5632 = vlaneseq
    %v5633 = vshrl.u32 %v5632, 7
    %v5634 = vadd.s32 %v5633, 96
    %5635 = vset.pattern.permute.xlu0 %v5634
    %5636 = vperm.xlu0 %5635, %v5559
    %v5637 = vpop.permute.xlu0 %5636
    %v5638 = vlaneseq
    %v5639 = vshrl.u32 %v5638, 7
    %v5640 = vadd.s32 %v5639, 104
    %5641 = vset.pattern.permute.xlu0 %v5640
    %5642 = vperm.xlu0 %5641, %v5559
    %v5643 = vpop.permute.xlu0 %5642
    %v5644 = vlaneseq
    %v5645 = vshrl.u32 %v5644, 7
    %v5646 = vadd.s32 %v5645, 112
    %5647 = vset.pattern.permute.xlu0 %v5646
    %5648 = vperm.xlu0 %5647, %v5559
    %v5649 = vpop.permute.xlu0 %5648
    %v5650 = vlaneseq
    %v5651 = vshrl.u32 %v5650, 7
    %v5652 = vadd.s32 %v5651, 120
    %5653 = vset.pattern.permute.xlu0 %v5652
    %5654 = vperm.xlu0 %5653, %v5559
    %v5655 = vpop.permute.xlu0 %5654
    %v5656 = vperm.slane %v5073, 6
    %v5657 = vlaneseq
    %v5658 = vshrl.u32 %v5657, 7
    %5660 = vset.pattern.permute.xlu0 %v5658
    %5661 = vperm.xlu0 %5660, %v5656
    %v5662 = vpop.permute.xlu0 %5661
    %v5663 = vlaneseq
    %v5664 = vshrl.u32 %v5663, 7
    %v5665 = vadd.s32 %v5664, 8
    %5666 = vset.pattern.permute.xlu0 %v5665
    %5667 = vperm.xlu0 %5666, %v5656
    %v5668 = vpop.permute.xlu0 %5667
    %v5669 = vlaneseq
    %v5670 = vshrl.u32 %v5669, 7
    %v5671 = vadd.s32 %v5670, 16
    %5672 = vset.pattern.permute.xlu0 %v5671
    %5673 = vperm.xlu0 %5672, %v5656
    %v5674 = vpop.permute.xlu0 %5673
    %v5675 = vlaneseq
    %v5676 = vshrl.u32 %v5675, 7
    %v5677 = vadd.s32 %v5676, 24
    %5678 = vset.pattern.permute.xlu0 %v5677
    %5679 = vperm.xlu0 %5678, %v5656
    %v5680 = vpop.permute.xlu0 %5679
    %v5681 = vlaneseq
    %v5682 = vshrl.u32 %v5681, 7
    %v5683 = vadd.s32 %v5682, 32
    %5684 = vset.pattern.permute.xlu0 %v5683
    %5685 = vperm.xlu0 %5684, %v5656
    %v5686 = vpop.permute.xlu0 %5685
    %v5687 = vlaneseq
    %v5688 = vshrl.u32 %v5687, 7
    %v5689 = vadd.s32 %v5688, 40
    %5690 = vset.pattern.permute.xlu0 %v5689
    %5691 = vperm.xlu0 %5690, %v5656
    %v5692 = vpop.permute.xlu0 %5691
    %v5693 = vlaneseq
    %v5694 = vshrl.u32 %v5693, 7
    %v5695 = vadd.s32 %v5694, 48
    %5696 = vset.pattern.permute.xlu0 %v5695
    %5697 = vperm.xlu0 %5696, %v5656
    %v5698 = vpop.permute.xlu0 %5697
    %v5699 = vlaneseq
    %v5700 = vshrl.u32 %v5699, 7
    %v5701 = vadd.s32 %v5700, 56
    %5702 = vset.pattern.permute.xlu0 %v5701
    %5703 = vperm.xlu0 %5702, %v5656
    %v5704 = vpop.permute.xlu0 %5703
    %v5705 = vlaneseq
    %v5706 = vshrl.u32 %v5705, 7
    %v5707 = vadd.s32 %v5706, 64
    %5708 = vset.pattern.permute.xlu0 %v5707
    %5709 = vperm.xlu0 %5708, %v5656
    %v5710 = vpop.permute.xlu0 %5709
    %v5711 = vlaneseq
    %v5712 = vshrl.u32 %v5711, 7
    %v5713 = vadd.s32 %v5712, 72
    %5714 = vset.pattern.permute.xlu0 %v5713
    %5715 = vperm.xlu0 %5714, %v5656
    %v5716 = vpop.permute.xlu0 %5715
    %v5717 = vlaneseq
    %v5718 = vshrl.u32 %v5717, 7
    %v5719 = vadd.s32 %v5718, 80
    %5720 = vset.pattern.permute.xlu0 %v5719
    %5721 = vperm.xlu0 %5720, %v5656
    %v5722 = vpop.permute.xlu0 %5721
    %v5723 = vlaneseq
    %v5724 = vshrl.u32 %v5723, 7
    %v5725 = vadd.s32 %v5724, 88
    %5726 = vset.pattern.permute.xlu0 %v5725
    %5727 = vperm.xlu0 %5726, %v5656
    %v5728 = vpop.permute.xlu0 %5727
    %v5729 = vlaneseq
    %v5730 = vshrl.u32 %v5729, 7
    %v5731 = vadd.s32 %v5730, 96
    %5732 = vset.pattern.permute.xlu0 %v5731
    %5733 = vperm.xlu0 %5732, %v5656
    %v5734 = vpop.permute.xlu0 %5733
    %v5735 = vlaneseq
    %v5736 = vshrl.u32 %v5735, 7
    %v5737 = vadd.s32 %v5736, 104
    %5738 = vset.pattern.permute.xlu0 %v5737
    %5739 = vperm.xlu0 %5738, %v5656
    %v5740 = vpop.permute.xlu0 %5739
    %v5741 = vlaneseq
    %v5742 = vshrl.u32 %v5741, 7
    %v5743 = vadd.s32 %v5742, 112
    %5744 = vset.pattern.permute.xlu0 %v5743
    %5745 = vperm.xlu0 %5744, %v5656
    %v5746 = vpop.permute.xlu0 %5745
    %v5747 = vlaneseq
    %v5748 = vshrl.u32 %v5747, 7
    %v5749 = vadd.s32 %v5748, 120
    %5750 = vset.pattern.permute.xlu0 %v5749
    %5751 = vperm.xlu0 %5750, %v5656
    %v5752 = vpop.permute.xlu0 %5751
    %v5753 = vperm.slane %v5073, 7
    %v5754 = vlaneseq
    %v5755 = vshrl.u32 %v5754, 7
    %5757 = vset.pattern.permute.xlu0 %v5755
    %5758 = vperm.xlu0 %5757, %v5753
    %v5759 = vpop.permute.xlu0 %5758
    %v5760 = vlaneseq
    %v5761 = vshrl.u32 %v5760, 7
    %v5762 = vadd.s32 %v5761, 8
    %5763 = vset.pattern.permute.xlu0 %v5762
    %5764 = vperm.xlu0 %5763, %v5753
    %v5765 = vpop.permute.xlu0 %5764
    %v5766 = vlaneseq
    %v5767 = vshrl.u32 %v5766, 7
    %v5768 = vadd.s32 %v5767, 16
    %5769 = vset.pattern.permute.xlu0 %v5768
    %5770 = vperm.xlu0 %5769, %v5753
    %v5771 = vpop.permute.xlu0 %5770
    %v5772 = vlaneseq
    %v5773 = vshrl.u32 %v5772, 7
    %v5774 = vadd.s32 %v5773, 24
    %5775 = vset.pattern.permute.xlu0 %v5774
    %5776 = vperm.xlu0 %5775, %v5753
    %v5777 = vpop.permute.xlu0 %5776
    %v5778 = vlaneseq
    %v5779 = vshrl.u32 %v5778, 7
    %v5780 = vadd.s32 %v5779, 32
    %5781 = vset.pattern.permute.xlu0 %v5780
    %5782 = vperm.xlu0 %5781, %v5753
    %v5783 = vpop.permute.xlu0 %5782
    %v5784 = vlaneseq
    %v5785 = vshrl.u32 %v5784, 7
    %v5786 = vadd.s32 %v5785, 40
    %5787 = vset.pattern.permute.xlu0 %v5786
    %5788 = vperm.xlu0 %5787, %v5753
    %v5789 = vpop.permute.xlu0 %5788
    %v5790 = vlaneseq
    %v5791 = vshrl.u32 %v5790, 7
    %v5792 = vadd.s32 %v5791, 48
    %5793 = vset.pattern.permute.xlu0 %v5792
    %5794 = vperm.xlu0 %5793, %v5753
    %v5795 = vpop.permute.xlu0 %5794
    %v5796 = vlaneseq
    %v5797 = vshrl.u32 %v5796, 7
    %v5798 = vadd.s32 %v5797, 56
    %5799 = vset.pattern.permute.xlu0 %v5798
    %5800 = vperm.xlu0 %5799, %v5753
    %v5801 = vpop.permute.xlu0 %5800
    %v5802 = vlaneseq
    %v5803 = vshrl.u32 %v5802, 7
    %v5804 = vadd.s32 %v5803, 64
    %5805 = vset.pattern.permute.xlu0 %v5804
    %5806 = vperm.xlu0 %5805, %v5753
    %v5807 = vpop.permute.xlu0 %5806
    %v5808 = vlaneseq
    %v5809 = vshrl.u32 %v5808, 7
    %v5810 = vadd.s32 %v5809, 72
    %5811 = vset.pattern.permute.xlu0 %v5810
    %5812 = vperm.xlu0 %5811, %v5753
    %v5813 = vpop.permute.xlu0 %5812
    %v5814 = vlaneseq
    %v5815 = vshrl.u32 %v5814, 7
    %v5816 = vadd.s32 %v5815, 80
    %5817 = vset.pattern.permute.xlu0 %v5816
    %5818 = vperm.xlu0 %5817, %v5753
    %v5819 = vpop.permute.xlu0 %5818
    %v5820 = vlaneseq
    %v5821 = vshrl.u32 %v5820, 7
    %v5822 = vadd.s32 %v5821, 88
    %5823 = vset.pattern.permute.xlu0 %v5822
    %5824 = vperm.xlu0 %5823, %v5753
    %v5825 = vpop.permute.xlu0 %5824
    %v5826 = vlaneseq
    %v5827 = vshrl.u32 %v5826, 7
    %v5828 = vadd.s32 %v5827, 96
    %5829 = vset.pattern.permute.xlu0 %v5828
    %5830 = vperm.xlu0 %5829, %v5753
    %v5831 = vpop.permute.xlu0 %5830
    %v5832 = vlaneseq
    %v5833 = vshrl.u32 %v5832, 7
    %v5834 = vadd.s32 %v5833, 104
    %5835 = vset.pattern.permute.xlu0 %v5834
    %5836 = vperm.xlu0 %5835, %v5753
    %v5837 = vpop.permute.xlu0 %5836
    %v5838 = vlaneseq
    %v5839 = vshrl.u32 %v5838, 7
    %v5840 = vadd.s32 %v5839, 112
    %5841 = vset.pattern.permute.xlu0 %v5840
    %5842 = vperm.xlu0 %5841, %v5753
    %v5843 = vpop.permute.xlu0 %5842
    %v5844 = vlaneseq
    %v5845 = vshrl.u32 %v5844, 7
    %v5846 = vadd.s32 %v5845, 120
    %5847 = vset.pattern.permute.xlu0 %v5846
    %5848 = vperm.xlu0 %5847, %v5753
    %v5849 = vpop.permute.xlu0 %5848
    %v5850 = vmul.f32 %v5080, %v3802
    %v5851 = vmul.f32 %v5086, %v3803
    %v5852 = vmul.f32 %v5092, %v3804
    %v5853 = vmul.f32 %v5098, %v3805
    %v5854 = vmul.f32 %v5104, %v3806
    %v5855 = vmul.f32 %v5110, %v3807
    %v5856 = vmul.f32 %v5116, %v3808
    %v5857 = vmul.f32 %v5122, %v3809
    %v5858 = vmul.f32 %v5128, %v3810
    %v5859 = vmul.f32 %v5134, %v3811
    %v5860 = vmul.f32 %v5140, %v3812
    %v5861 = vmul.f32 %v5146, %v3813
    %v5862 = vmul.f32 %v5152, %v3814
    %v5863 = vmul.f32 %v5158, %v3815
    %v5864 = vmul.f32 %v5164, %v3816
    %v5865 = vmul.f32 %v5170, %v3817
    %v5866 = vmul.f32 %v5177, %v3818
    %v5867 = vmul.f32 %v5183, %v3819
    %v5868 = vmul.f32 %v5189, %v3820
    %v5869 = vmul.f32 %v5195, %v3821
    %v5870 = vmul.f32 %v5201, %v3822
    %v5871 = vmul.f32 %v5207, %v3823
    %v5872 = vmul.f32 %v5213, %v3824
    %v5873 = vmul.f32 %v5219, %v3825
    %v5874 = vmul.f32 %v5225, %v3826
    %v5875 = vmul.f32 %v5231, %v3827
    %v5876 = vmul.f32 %v5237, %v3828
    %v5877 = vmul.f32 %v5243, %v3829
    %v5878 = vmul.f32 %v5249, %v3830
    %v5879 = vmul.f32 %v5255, %v3831
    %v5880 = vmul.f32 %v5261, %v3832
    %v5881 = vmul.f32 %v5267, %v3833
    %v5882 = vmul.f32 %v5274, %v3834
    %v5883 = vmul.f32 %v5280, %v3835
    %v5884 = vmul.f32 %v5286, %v3836
    %v5885 = vmul.f32 %v5292, %v3837
    %v5886 = vmul.f32 %v5298, %v3838
    %v5887 = vmul.f32 %v5304, %v3839
    %v5888 = vmul.f32 %v5310, %v3840
    %v5889 = vmul.f32 %v5316, %v3841
    %v5890 = vmul.f32 %v5322, %v3842
    %v5891 = vmul.f32 %v5328, %v3843
    %v5892 = vmul.f32 %v5334, %v3844
    %v5893 = vmul.f32 %v5340, %v3845
    %v5894 = vmul.f32 %v5346, %v3846
    %v5895 = vmul.f32 %v5352, %v3847
    %v5896 = vmul.f32 %v5358, %v3848
    %v5897 = vmul.f32 %v5364, %v3849
    %v5898 = vmul.f32 %v5371, %v3850
    %v5899 = vmul.f32 %v5377, %v3851
    %v5900 = vmul.f32 %v5383, %v3852
    %v5901 = vmul.f32 %v5389, %v3853
    %v5902 = vmul.f32 %v5395, %v3854
    %v5903 = vmul.f32 %v5401, %v3855
    %v5904 = vmul.f32 %v5407, %v3856
    %v5905 = vmul.f32 %v5413, %v3857
    %v5906 = vmul.f32 %v5419, %v3858
    %v5907 = vmul.f32 %v5425, %v3859
    %v5908 = vmul.f32 %v5431, %v3860
    %v5909 = vmul.f32 %v5437, %v3861
    %v5910 = vmul.f32 %v5443, %v3862
    %v5911 = vmul.f32 %v5449, %v3863
    %v5912 = vmul.f32 %v5455, %v3864
    %v5913 = vmul.f32 %v5461, %v3865
    %v5914 = vmul.f32 %v5468, %v3866
    %v5915 = vmul.f32 %v5474, %v3867
    %v5916 = vmul.f32 %v5480, %v3868
    %v5917 = vmul.f32 %v5486, %v3869
    %v5918 = vmul.f32 %v5492, %v3870
    %v5919 = vmul.f32 %v5498, %v3871
    %v5920 = vmul.f32 %v5504, %v3872
    %v5921 = vmul.f32 %v5510, %v3873
    %v5922 = vmul.f32 %v5516, %v3874
    %v5923 = vmul.f32 %v5522, %v3875
    %v5924 = vmul.f32 %v5528, %v3876
    %v5925 = vmul.f32 %v5534, %v3877
    %v5926 = vmul.f32 %v5540, %v3878
    %v5927 = vmul.f32 %v5546, %v3879
    %v5928 = vmul.f32 %v5552, %v3880
    %v5929 = vmul.f32 %v5558, %v3881
    %v5930 = vmul.f32 %v5565, %v3882
    %v5931 = vmul.f32 %v5571, %v3883
    %v5932 = vmul.f32 %v5577, %v3884
    %v5933 = vmul.f32 %v5583, %v3885
    %v5934 = vmul.f32 %v5589, %v3886
    %v5935 = vmul.f32 %v5595, %v3887
    %v5936 = vmul.f32 %v5601, %v3888
    %v5937 = vmul.f32 %v5607, %v3889
    %v5938 = vmul.f32 %v5613, %v3890
    %v5939 = vmul.f32 %v5619, %v3891
    %v5940 = vmul.f32 %v5625, %v3892
    %v5941 = vmul.f32 %v5631, %v3893
    %v5942 = vmul.f32 %v5637, %v3894
    %v5943 = vmul.f32 %v5643, %v3895
    %v5944 = vmul.f32 %v5649, %v3896
    %v5945 = vmul.f32 %v5655, %v3897
    %v5946 = vmul.f32 %v5662, %v3898
    %v5947 = vmul.f32 %v5668, %v3899
    %v5948 = vmul.f32 %v5674, %v3900
    %v5949 = vmul.f32 %v5680, %v3901
    %v5950 = vmul.f32 %v5686, %v3902
    %v5951 = vmul.f32 %v5692, %v3903
    %v5952 = vmul.f32 %v5698, %v3904
    %v5953 = vmul.f32 %v5704, %v3905
    %v5954 = vmul.f32 %v5710, %v3906
    %v5955 = vmul.f32 %v5716, %v3907
    %v5956 = vmul.f32 %v5722, %v3908
    %v5957 = vmul.f32 %v5728, %v3909
    %v5958 = vmul.f32 %v5734, %v3910
    %v5959 = vmul.f32 %v5740, %v3911
    %v5960 = vmul.f32 %v5746, %v3912
    %v5961 = vmul.f32 %v5752, %v3913
    %v5962 = vmul.f32 %v5759, %v3914
    %v5963 = vmul.f32 %v5765, %v3915
    %v5964 = vmul.f32 %v5771, %v3916
    %v5965 = vmul.f32 %v5777, %v3917
    %v5966 = vmul.f32 %v5783, %v3918
    %v5967 = vmul.f32 %v5789, %v3919
    %v5968 = vmul.f32 %v5795, %v3920
    %v5969 = vmul.f32 %v5801, %v3921
    %v5970 = vmul.f32 %v5807, %v3922
    %v5971 = vmul.f32 %v5813, %v3923
    %v5972 = vmul.f32 %v5819, %v3924
    %v5973 = vmul.f32 %v5825, %v3925
    %v5974 = vmul.f32 %v5831, %v3926
    %v5975 = vmul.f32 %v5837, %v3927
    %v5976 = vmul.f32 %v5843, %v3928
    %v5977 = vmul.f32 %v5849, %v3929
    %v5978 = vsel %vm95, %v5850, 0.0
    %v5979 = vsel %vm95, %v5851, 0.0
    %v5980 = vadd.f32 %v5978, %v5979
    %v5981 = vsel %vm95, %v5852, 0.0
    %v5982 = vadd.f32 %v5980, %v5981
    %v5983 = vsel %vm95, %v5853, 0.0
    %v5984 = vadd.f32 %v5982, %v5983
    %v5985 = vsel %vm95, %v5854, 0.0
    %v5986 = vadd.f32 %v5984, %v5985
    %v5987 = vsel %vm95, %v5855, 0.0
    %v5988 = vadd.f32 %v5986, %v5987
    %v5989 = vsel %vm95, %v5856, 0.0
    %v5990 = vadd.f32 %v5988, %v5989
    %v5991 = vsel %vm95, %v5857, 0.0
    %v5992 = vadd.f32 %v5990, %v5991
    %v5993 = vsel %vm95, %v5858, 0.0
    %v5994 = vadd.f32 %v5992, %v5993
    %v5995 = vsel %vm95, %v5859, 0.0
    %v5996 = vadd.f32 %v5994, %v5995
    %v5997 = vsel %vm95, %v5860, 0.0
    %v5998 = vadd.f32 %v5996, %v5997
    %v5999 = vsel %vm95, %v5861, 0.0
    %v6000 = vadd.f32 %v5998, %v5999
    %v6001 = vsel %vm95, %v5862, 0.0
    %v6002 = vadd.f32 %v6000, %v6001
    %v6003 = vsel %vm95, %v5863, 0.0
    %v6004 = vadd.f32 %v6002, %v6003
    %v6005 = vsel %vm95, %v5864, 0.0
    %v6006 = vadd.f32 %v6004, %v6005
    %v6007 = vsel %vm95, %v5865, 0.0
    %v6008 = vadd.f32 %v6006, %v6007
    %v6009 = vrot.slane %v6008, 4
    %v6010 = vadd.f32 %v6008, %v6009
    %v6011 = vrot.slane %v6010, 2
    %v6012 = vadd.f32 %v6010, %v6011
    %v6013 = vrot.slane %v6012, 1
    %v6014 = vadd.f32 %v6012, %v6013
    %v6015 = vsel %vm95, %v5866, 0.0
    %v6016 = vsel %vm95, %v5867, 0.0
    %v6017 = vadd.f32 %v6015, %v6016
    %v6018 = vsel %vm95, %v5868, 0.0
    %v6019 = vadd.f32 %v6017, %v6018
    %v6020 = vsel %vm95, %v5869, 0.0
    %v6021 = vadd.f32 %v6019, %v6020
    %v6022 = vsel %vm95, %v5870, 0.0
    %v6023 = vadd.f32 %v6021, %v6022
    %v6024 = vsel %vm95, %v5871, 0.0
    %v6025 = vadd.f32 %v6023, %v6024
    %v6026 = vsel %vm95, %v5872, 0.0
    %v6027 = vadd.f32 %v6025, %v6026
    %v6028 = vsel %vm95, %v5873, 0.0
    %v6029 = vadd.f32 %v6027, %v6028
    %v6030 = vsel %vm95, %v5874, 0.0
    %v6031 = vadd.f32 %v6029, %v6030
    %v6032 = vsel %vm95, %v5875, 0.0
    %v6033 = vadd.f32 %v6031, %v6032
    %v6034 = vsel %vm95, %v5876, 0.0
    %v6035 = vadd.f32 %v6033, %v6034
    %v6036 = vsel %vm95, %v5877, 0.0
    %v6037 = vadd.f32 %v6035, %v6036
    %v6038 = vsel %vm95, %v5878, 0.0
    %v6039 = vadd.f32 %v6037, %v6038
    %v6040 = vsel %vm95, %v5879, 0.0
    %v6041 = vadd.f32 %v6039, %v6040
    %v6042 = vsel %vm95, %v5880, 0.0
    %v6043 = vadd.f32 %v6041, %v6042
    %v6044 = vsel %vm95, %v5881, 0.0
    %v6045 = vadd.f32 %v6043, %v6044
    %v6046 = vrot.slane %v6045, 4
    %v6047 = vadd.f32 %v6045, %v6046
    %v6048 = vrot.slane %v6047, 2
    %v6049 = vadd.f32 %v6047, %v6048
    %v6050 = vrot.slane %v6049, 1
    %v6051 = vadd.f32 %v6049, %v6050
    %v6052 = vsel %vm95, %v5882, 0.0
    %v6053 = vsel %vm95, %v5883, 0.0
    %v6054 = vadd.f32 %v6052, %v6053
    %v6055 = vsel %vm95, %v5884, 0.0
    %v6056 = vadd.f32 %v6054, %v6055
    %v6057 = vsel %vm95, %v5885, 0.0
    %v6058 = vadd.f32 %v6056, %v6057
    %v6059 = vsel %vm95, %v5886, 0.0
    %v6060 = vadd.f32 %v6058, %v6059
    %v6061 = vsel %vm95, %v5887, 0.0
    %v6062 = vadd.f32 %v6060, %v6061
    %v6063 = vsel %vm95, %v5888, 0.0
    %v6064 = vadd.f32 %v6062, %v6063
    %v6065 = vsel %vm95, %v5889, 0.0
    %v6066 = vadd.f32 %v6064, %v6065
    %v6067 = vsel %vm95, %v5890, 0.0
    %v6068 = vadd.f32 %v6066, %v6067
    %v6069 = vsel %vm95, %v5891, 0.0
    %v6070 = vadd.f32 %v6068, %v6069
    %v6071 = vsel %vm95, %v5892, 0.0
    %v6072 = vadd.f32 %v6070, %v6071
    %v6073 = vsel %vm95, %v5893, 0.0
    %v6074 = vadd.f32 %v6072, %v6073
    %v6075 = vsel %vm95, %v5894, 0.0
    %v6076 = vadd.f32 %v6074, %v6075
    %v6077 = vsel %vm95, %v5895, 0.0
    %v6078 = vadd.f32 %v6076, %v6077
    %v6079 = vsel %vm95, %v5896, 0.0
    %v6080 = vadd.f32 %v6078, %v6079
    %v6081 = vsel %vm95, %v5897, 0.0
    %v6082 = vadd.f32 %v6080, %v6081
    %v6083 = vrot.slane %v6082, 4
    %v6084 = vadd.f32 %v6082, %v6083
    %v6085 = vrot.slane %v6084, 2
    %v6086 = vadd.f32 %v6084, %v6085
    %v6087 = vrot.slane %v6086, 1
    %v6088 = vadd.f32 %v6086, %v6087
    %v6089 = vsel %vm95, %v5898, 0.0
    %v6090 = vsel %vm95, %v5899, 0.0
    %v6091 = vadd.f32 %v6089, %v6090
    %v6092 = vsel %vm95, %v5900, 0.0
    %v6093 = vadd.f32 %v6091, %v6092
    %v6094 = vsel %vm95, %v5901, 0.0
    %v6095 = vadd.f32 %v6093, %v6094
    %v6096 = vsel %vm95, %v5902, 0.0
    %v6097 = vadd.f32 %v6095, %v6096
    %v6098 = vsel %vm95, %v5903, 0.0
    %v6099 = vadd.f32 %v6097, %v6098
    %v6100 = vsel %vm95, %v5904, 0.0
    %v6101 = vadd.f32 %v6099, %v6100
    %v6102 = vsel %vm95, %v5905, 0.0
    %v6103 = vadd.f32 %v6101, %v6102
    %v6104 = vsel %vm95, %v5906, 0.0
    %v6105 = vadd.f32 %v6103, %v6104
    %v6106 = vsel %vm95, %v5907, 0.0
    %v6107 = vadd.f32 %v6105, %v6106
    %v6108 = vsel %vm95, %v5908, 0.0
    %v6109 = vadd.f32 %v6107, %v6108
    %v6110 = vsel %vm95, %v5909, 0.0
    %v6111 = vadd.f32 %v6109, %v6110
    %v6112 = vsel %vm95, %v5910, 0.0
    %v6113 = vadd.f32 %v6111, %v6112
    %v6114 = vsel %vm95, %v5911, 0.0
    %v6115 = vadd.f32 %v6113, %v6114
    %v6116 = vsel %vm95, %v5912, 0.0
    %v6117 = vadd.f32 %v6115, %v6116
    %v6118 = vsel %vm95, %v5913, 0.0
    %v6119 = vadd.f32 %v6117, %v6118
    %v6120 = vrot.slane %v6119, 4
    %v6121 = vadd.f32 %v6119, %v6120
    %v6122 = vrot.slane %v6121, 2
    %v6123 = vadd.f32 %v6121, %v6122
    %v6124 = vrot.slane %v6123, 1
    %v6125 = vadd.f32 %v6123, %v6124
    %v6126 = vsel %vm95, %v5914, 0.0
    %v6127 = vsel %vm95, %v5915, 0.0
    %v6128 = vadd.f32 %v6126, %v6127
    %v6129 = vsel %vm95, %v5916, 0.0
    %v6130 = vadd.f32 %v6128, %v6129
    %v6131 = vsel %vm95, %v5917, 0.0
    %v6132 = vadd.f32 %v6130, %v6131
    %v6133 = vsel %vm95, %v5918, 0.0
    %v6134 = vadd.f32 %v6132, %v6133
    %v6135 = vsel %vm95, %v5919, 0.0
    %v6136 = vadd.f32 %v6134, %v6135
    %v6137 = vsel %vm95, %v5920, 0.0
    %v6138 = vadd.f32 %v6136, %v6137
    %v6139 = vsel %vm95, %v5921, 0.0
    %v6140 = vadd.f32 %v6138, %v6139
    %v6141 = vsel %vm95, %v5922, 0.0
    %v6142 = vadd.f32 %v6140, %v6141
    %v6143 = vsel %vm95, %v5923, 0.0
    %v6144 = vadd.f32 %v6142, %v6143
    %v6145 = vsel %vm95, %v5924, 0.0
    %v6146 = vadd.f32 %v6144, %v6145
    %v6147 = vsel %vm95, %v5925, 0.0
    %v6148 = vadd.f32 %v6146, %v6147
    %v6149 = vsel %vm95, %v5926, 0.0
    %v6150 = vadd.f32 %v6148, %v6149
    %v6151 = vsel %vm95, %v5927, 0.0
    %v6152 = vadd.f32 %v6150, %v6151
    %v6153 = vsel %vm95, %v5928, 0.0
    %v6154 = vadd.f32 %v6152, %v6153
    %v6155 = vsel %vm95, %v5929, 0.0
    %v6156 = vadd.f32 %v6154, %v6155
    %v6157 = vrot.slane %v6156, 4
    %v6158 = vadd.f32 %v6156, %v6157
    %v6159 = vrot.slane %v6158, 2
    %v6160 = vadd.f32 %v6158, %v6159
    %v6161 = vrot.slane %v6160, 1
    %v6162 = vadd.f32 %v6160, %v6161
    %v6163 = vsel %vm95, %v5930, 0.0
    %v6164 = vsel %vm95, %v5931, 0.0
    %v6165 = vadd.f32 %v6163, %v6164
    %v6166 = vsel %vm95, %v5932, 0.0
    %v6167 = vadd.f32 %v6165, %v6166
    %v6168 = vsel %vm95, %v5933, 0.0
    %v6169 = vadd.f32 %v6167, %v6168
    %v6170 = vsel %vm95, %v5934, 0.0
    %v6171 = vadd.f32 %v6169, %v6170
    %v6172 = vsel %vm95, %v5935, 0.0
    %v6173 = vadd.f32 %v6171, %v6172
    %v6174 = vsel %vm95, %v5936, 0.0
    %v6175 = vadd.f32 %v6173, %v6174
    %v6176 = vsel %vm95, %v5937, 0.0
    %v6177 = vadd.f32 %v6175, %v6176
    %v6178 = vsel %vm95, %v5938, 0.0
    %v6179 = vadd.f32 %v6177, %v6178
    %v6180 = vsel %vm95, %v5939, 0.0
    %v6181 = vadd.f32 %v6179, %v6180
    %v6182 = vsel %vm95, %v5940, 0.0
    %v6183 = vadd.f32 %v6181, %v6182
    %v6184 = vsel %vm95, %v5941, 0.0
    %v6185 = vadd.f32 %v6183, %v6184
    %v6186 = vsel %vm95, %v5942, 0.0
    %v6187 = vadd.f32 %v6185, %v6186
    %v6188 = vsel %vm95, %v5943, 0.0
    %v6189 = vadd.f32 %v6187, %v6188
    %v6190 = vsel %vm95, %v5944, 0.0
    %v6191 = vadd.f32 %v6189, %v6190
    %v6192 = vsel %vm95, %v5945, 0.0
    %v6193 = vadd.f32 %v6191, %v6192
    %v6194 = vrot.slane %v6193, 4
    %v6195 = vadd.f32 %v6193, %v6194
    %v6196 = vrot.slane %v6195, 2
    %v6197 = vadd.f32 %v6195, %v6196
    %v6198 = vrot.slane %v6197, 1
    %v6199 = vadd.f32 %v6197, %v6198
    %v6200 = vsel %vm95, %v5946, 0.0
    %v6201 = vsel %vm95, %v5947, 0.0
    %v6202 = vadd.f32 %v6200, %v6201
    %v6203 = vsel %vm95, %v5948, 0.0
    %v6204 = vadd.f32 %v6202, %v6203
    %v6205 = vsel %vm95, %v5949, 0.0
    %v6206 = vadd.f32 %v6204, %v6205
    %v6207 = vsel %vm95, %v5950, 0.0
    %v6208 = vadd.f32 %v6206, %v6207
    %v6209 = vsel %vm95, %v5951, 0.0
    %v6210 = vadd.f32 %v6208, %v6209
    %v6211 = vsel %vm95, %v5952, 0.0
    %v6212 = vadd.f32 %v6210, %v6211
    %v6213 = vsel %vm95, %v5953, 0.0
    %v6214 = vadd.f32 %v6212, %v6213
    %v6215 = vsel %vm95, %v5954, 0.0
    %v6216 = vadd.f32 %v6214, %v6215
    %v6217 = vsel %vm95, %v5955, 0.0
    %v6218 = vadd.f32 %v6216, %v6217
    %v6219 = vsel %vm95, %v5956, 0.0
    %v6220 = vadd.f32 %v6218, %v6219
    %v6221 = vsel %vm95, %v5957, 0.0
    %v6222 = vadd.f32 %v6220, %v6221
    %v6223 = vsel %vm95, %v5958, 0.0
    %v6224 = vadd.f32 %v6222, %v6223
    %v6225 = vsel %vm95, %v5959, 0.0
    %v6226 = vadd.f32 %v6224, %v6225
    %v6227 = vsel %vm95, %v5960, 0.0
    %v6228 = vadd.f32 %v6226, %v6227
    %v6229 = vsel %vm95, %v5961, 0.0
    %v6230 = vadd.f32 %v6228, %v6229
    %v6231 = vrot.slane %v6230, 4
    %v6232 = vadd.f32 %v6230, %v6231
    %v6233 = vrot.slane %v6232, 2
    %v6234 = vadd.f32 %v6232, %v6233
    %v6235 = vrot.slane %v6234, 1
    %v6236 = vadd.f32 %v6234, %v6235
    %v6237 = vsel %vm95, %v5962, 0.0
    %v6238 = vsel %vm95, %v5963, 0.0
    %v6239 = vadd.f32 %v6237, %v6238
    %v6240 = vsel %vm95, %v5964, 0.0
    %v6241 = vadd.f32 %v6239, %v6240
    %v6242 = vsel %vm95, %v5965, 0.0
    %v6243 = vadd.f32 %v6241, %v6242
    %v6244 = vsel %vm95, %v5966, 0.0
    %v6245 = vadd.f32 %v6243, %v6244
    %v6246 = vsel %vm95, %v5967, 0.0
    %v6247 = vadd.f32 %v6245, %v6246
    %v6248 = vsel %vm95, %v5968, 0.0
    %v6249 = vadd.f32 %v6247, %v6248
    %v6250 = vsel %vm95, %v5969, 0.0
    %v6251 = vadd.f32 %v6249, %v6250
    %v6252 = vsel %vm95, %v5970, 0.0
    %v6253 = vadd.f32 %v6251, %v6252
    %v6254 = vsel %vm95, %v5971, 0.0
    %v6255 = vadd.f32 %v6253, %v6254
    %v6256 = vsel %vm95, %v5972, 0.0
    %v6257 = vadd.f32 %v6255, %v6256
    %v6258 = vsel %vm95, %v5973, 0.0
    %v6259 = vadd.f32 %v6257, %v6258
    %v6260 = vsel %vm95, %v5974, 0.0
    %v6261 = vadd.f32 %v6259, %v6260
    %v6262 = vsel %vm95, %v5975, 0.0
    %v6263 = vadd.f32 %v6261, %v6262
    %v6264 = vsel %vm95, %v5976, 0.0
    %v6265 = vadd.f32 %v6263, %v6264
    %v6266 = vsel %vm95, %v5977, 0.0
    %v6267 = vadd.f32 %v6265, %v6266
    %v6268 = vrot.slane %v6267, 4
    %v6269 = vadd.f32 %v6267, %v6268
    %v6270 = vrot.slane %v6269, 2
    %v6271 = vadd.f32 %v6269, %v6270
    %v6272 = vrot.slane %v6271, 1
    %v6273 = vadd.f32 %v6271, %v6272
    %v6274 = vld [vmem:[%s14] sm:$0xf]
    %v6275 = vld [vmem:[%s14 + $0x4] sm:$0xf]
    %v6276 = vld [vmem:[%s14 + $0x8] sm:$0xf]
    %v6277 = vld [vmem:[%s14 + $0xc] sm:$0xf]
    %v6278 = vunpack.c.l.bf16 %v6274
    %v6279 = vunpack.c.l.bf16 %v6275
    %v6280 = vunpack.c.l.bf16 %v6276
    %v6281 = vunpack.c.l.bf16 %v6277
    %v6282 = vld [vmem:[%s15] sm:$0xf]
    %v6283 = vld [vmem:[%s15 + $0x4] sm:$0xf]
    %v6284 = vld [vmem:[%s15 + $0x8] sm:$0xf]
    %v6285 = vld [vmem:[%s15 + $0xc] sm:$0xf]
    %v6286 = vunpack.c.l.bf16 %v6282
    %v6287 = vunpack.c.l.bf16 %v6283
    %v6288 = vunpack.c.l.bf16 %v6284
    %v6289 = vunpack.c.l.bf16 %v6285
    %6290 = vmatpush.msra.mxu0 0.0
    %6291 = vmatpush.msra.mxu0 0.0
    %6292 = vmatpush.msra.mxu0 0.0
    %6293 = vmatpush.msra.mxu0 0.0
    %6294 = vmatpush.msra.mxu0 0.0
    %6295 = vmatpush.msra.mxu0 0.0
    %6296 = vmatpush.msra.mxu0 0.0
    %6297 = vmatpush.msra.mxu0 0.0
    %6298 = vmatpush.msra.mxu0 0.0
    %6299 = vmatpush.msra.mxu0 0.0
    %6300 = vmatpush.msra.mxu0 0.0
    %6301 = vmatpush.msra.mxu0 0.0
    %6302 = vmatpush.msra.mxu0 %v6289
    %6303 = vmatpush.msra.mxu0 %v6288
    %6304 = vmatpush.msra.mxu0 %v6287
    %6305 = vmatpush.msra.mxu0 %v6286
    %v6306 = vand.u32 %v3940, 4294901760
    %v6307 = vsub.f32 %v3940, %v6306
    %v6308 = vand.u32 %v6307, 4294901760
    %v6309 = vsub.f32 %v6307, %v6308
    %v6310 = vand.u32 %v6309, 4294901760
    %6311 = vmatmul.f32.gmra.mxu0 %v6310
    %v6312 = vpop.f32.mrf.mxu0
    %v6313 = vadd.f32 0.0, %v6312
    %6314 = vdwg.mxu0
    %6315 = vmatpush.msra.mxu0 0.0
    %6316 = vmatpush.msra.mxu0 0.0
    %6317 = vmatpush.msra.mxu0 0.0
    %6318 = vmatpush.msra.mxu0 0.0
    %6319 = vmatpush.msra.mxu0 0.0
    %6320 = vmatpush.msra.mxu0 0.0
    %6321 = vmatpush.msra.mxu0 0.0
    %6322 = vmatpush.msra.mxu0 0.0
    %6323 = vmatpush.msra.mxu0 0.0
    %6324 = vmatpush.msra.mxu0 0.0
    %6325 = vmatpush.msra.mxu0 0.0
    %6326 = vmatpush.msra.mxu0 0.0
    %v6327 = vsub.f32 %v6289, %v6289
    %v6328 = vand.u32 %v6327, 4294901760
    %v6329 = vsub.f32 %v6327, %v6328
    %v6330 = vand.u32 %v6329, 4294901760
    %6331 = vmatpush.msra.mxu0 %v6330
    %v6332 = vsub.f32 %v6288, %v6288
    %v6333 = vand.u32 %v6332, 4294901760
    %v6334 = vsub.f32 %v6332, %v6333
    %v6335 = vand.u32 %v6334, 4294901760
    %6336 = vmatpush.msra.mxu0 %v6335
    %v6337 = vsub.f32 %v6287, %v6287
    %v6338 = vand.u32 %v6337, 4294901760
    %v6339 = vsub.f32 %v6337, %v6338
    %v6340 = vand.u32 %v6339, 4294901760
    %6341 = vmatpush.msra.mxu0 %v6340
    %v6342 = vsub.f32 %v6286, %v6286
    %v6343 = vand.u32 %v6342, 4294901760
    %v6344 = vsub.f32 %v6342, %v6343
    %v6345 = vand.u32 %v6344, 4294901760
    %6346 = vmatpush.msra.mxu0 %v6345
    %v6347 = vand.u32 %v3940, 4294901760
    %6348 = vmatmul.f32.gmra.mxu0 %v6347
    %v6349 = vpop.f32.mrf.mxu0
    %v6350 = vadd.f32 %v6313, %v6349
    %6351 = vdwg.mxu0
    %6352 = vmatpush.msra.mxu0 0.0
    %6353 = vmatpush.msra.mxu0 0.0
    %6354 = vmatpush.msra.mxu0 0.0
    %6355 = vmatpush.msra.mxu0 0.0
    %6356 = vmatpush.msra.mxu0 0.0
    %6357 = vmatpush.msra.mxu0 0.0
    %6358 = vmatpush.msra.mxu0 0.0
    %6359 = vmatpush.msra.mxu0 0.0
    %6360 = vmatpush.msra.mxu0 0.0
    %6361 = vmatpush.msra.mxu0 0.0
    %6362 = vmatpush.msra.mxu0 0.0
    %6363 = vmatpush.msra.mxu0 0.0
    %v6364 = vsub.f32 %v6289, %v6289
    %6365 = vmatpush.msra.mxu0 %v6364
    %v6366 = vsub.f32 %v6288, %v6288
    %6367 = vmatpush.msra.mxu0 %v6366
    %v6368 = vsub.f32 %v6287, %v6287
    %6369 = vmatpush.msra.mxu0 %v6368
    %v6370 = vsub.f32 %v6286, %v6286
    %6371 = vmatpush.msra.mxu0 %v6370
    %v6372 = vand.u32 %v3940, 4294901760
    %v6373 = vsub.f32 %v3940, %v6372
    %6374 = vmatmul.f32.gmra.mxu0 %v6373
    %v6375 = vpop.f32.mrf.mxu0
    %v6376 = vadd.f32 %v6350, %v6375
    %6377 = vdwg.mxu0
    %6378 = vmatpush.msra.mxu0 0.0
    %6379 = vmatpush.msra.mxu0 0.0
    %6380 = vmatpush.msra.mxu0 0.0
    %6381 = vmatpush.msra.mxu0 0.0
    %6382 = vmatpush.msra.mxu0 0.0
    %6383 = vmatpush.msra.mxu0 0.0
    %6384 = vmatpush.msra.mxu0 0.0
    %6385 = vmatpush.msra.mxu0 0.0
    %6386 = vmatpush.msra.mxu0 0.0
    %6387 = vmatpush.msra.mxu0 0.0
    %6388 = vmatpush.msra.mxu0 0.0
    %6389 = vmatpush.msra.mxu0 0.0
    %6390 = vmatpush.msra.mxu0 %v6289
    %6391 = vmatpush.msra.mxu0 %v6288
    %6392 = vmatpush.msra.mxu0 %v6287
    %6393 = vmatpush.msra.mxu0 %v6286
    %v6394 = vand.u32 %v3940, 4294901760
    %v6395 = vsub.f32 %v3940, %v6394
    %v6396 = vand.u32 %v6395, 4294901760
    %6397 = vmatmul.f32.gmra.mxu0 %v6396
    %v6398 = vpop.f32.mrf.mxu0
    %v6399 = vadd.f32 %v6376, %v6398
    %6400 = vdwg.mxu0
    %6401 = vmatpush.msra.mxu0 0.0
    %6402 = vmatpush.msra.mxu0 0.0
    %6403 = vmatpush.msra.mxu0 0.0
    %6404 = vmatpush.msra.mxu0 0.0
    %6405 = vmatpush.msra.mxu0 0.0
    %6406 = vmatpush.msra.mxu0 0.0
    %6407 = vmatpush.msra.mxu0 0.0
    %6408 = vmatpush.msra.mxu0 0.0
    %6409 = vmatpush.msra.mxu0 0.0
    %6410 = vmatpush.msra.mxu0 0.0
    %6411 = vmatpush.msra.mxu0 0.0
    %6412 = vmatpush.msra.mxu0 0.0
    %v6413 = vsub.f32 %v6289, %v6289
    %v6414 = vand.u32 %v6413, 4294901760
    %6415 = vmatpush.msra.mxu0 %v6414
    %v6416 = vsub.f32 %v6288, %v6288
    %v6417 = vand.u32 %v6416, 4294901760
    %6418 = vmatpush.msra.mxu0 %v6417
    %v6419 = vsub.f32 %v6287, %v6287
    %v6420 = vand.u32 %v6419, 4294901760
    %6421 = vmatpush.msra.mxu0 %v6420
    %v6422 = vsub.f32 %v6286, %v6286
    %v6423 = vand.u32 %v6422, 4294901760
    %6424 = vmatpush.msra.mxu0 %v6423
    %v6425 = vand.u32 %v3940, 4294901760
    %6426 = vmatmul.f32.gmra.mxu0 %v6425
    %v6427 = vpop.f32.mrf.mxu0
    %v6428 = vadd.f32 %v6399, %v6427
    %6429 = vdwg.mxu0
    %6430 = vmatpush.msra.mxu0 0.0
    %6431 = vmatpush.msra.mxu0 0.0
    %6432 = vmatpush.msra.mxu0 0.0
    %6433 = vmatpush.msra.mxu0 0.0
    %6434 = vmatpush.msra.mxu0 0.0
    %6435 = vmatpush.msra.mxu0 0.0
    %6436 = vmatpush.msra.mxu0 0.0
    %6437 = vmatpush.msra.mxu0 0.0
    %6438 = vmatpush.msra.mxu0 0.0
    %6439 = vmatpush.msra.mxu0 0.0
    %6440 = vmatpush.msra.mxu0 0.0
    %6441 = vmatpush.msra.mxu0 0.0
    %6442 = vmatpush.msra.mxu0 %v6289
    %6443 = vmatpush.msra.mxu0 %v6288
    %6444 = vmatpush.msra.mxu0 %v6287
    %6445 = vmatpush.msra.mxu0 %v6286
    %v6446 = vand.u32 %v3940, 4294901760
    %6447 = vmatmul.f32.gmra.mxu0 %v6446
    %v6448 = vpop.f32.mrf.mxu0
    %v6449 = vadd.f32 %v6428, %v6448
    %6450 = vdwg.mxu0
    %v6459 = vsel %vm5047, %v6051, %v6014
    %v6460 = vsel %vm5049, %v6088, %v6459
    %v6461 = vsel %vm5051, %v6125, %v6460
    %v6462 = vsel %vm5053, %v6162, %v6461
    %v6463 = vsel %vm5055, %v6199, %v6462
    %v6464 = vsel %vm5057, %v6236, %v6463
    %v6465 = vsel %vm5059, %v6273, %v6464
    %v6466 = vsel %vm95, %v6465, 0
    %6468 = vmatpush.msra.mxu0 0.0
    %6469 = vmatpush.msra.mxu0 0.0
    %6470 = vmatpush.msra.mxu0 0.0
    %6471 = vmatpush.msra.mxu0 0.0
    %6472 = vmatpush.msra.mxu0 0.0
    %6473 = vmatpush.msra.mxu0 0.0
    %6474 = vmatpush.msra.mxu0 0.0
    %6475 = vmatpush.msra.mxu0 0.0
    %6476 = vmatpush.msra.mxu0 0.0
    %6477 = vmatpush.msra.mxu0 0.0
    %6478 = vmatpush.msra.mxu0 0.0
    %6479 = vmatpush.msra.mxu0 0.0
    %6480 = vmatpush.msra.mxu0 %v6281
    %6481 = vmatpush.msra.mxu0 %v6280
    %6482 = vmatpush.msra.mxu0 %v6279
    %6483 = vmatpush.msra.mxu0 %v6278
    %v6484 = vand.u32 %v6466, 4294901760
    %v6485 = vsub.f32 %v6466, %v6484
    %v6486 = vand.u32 %v6485, 4294901760
    %v6487 = vsub.f32 %v6485, %v6486
    %v6488 = vand.u32 %v6487, 4294901760
    %6489 = vmatmul.f32.gmra.mxu0 %v6488
    %v6490 = vpop.f32.mrf.mxu0
    %v6491 = vadd.f32 %v6449, %v6490
    %6492 = vdwg.mxu0
    %6493 = vmatpush.msra.mxu0 0.0
    %6494 = vmatpush.msra.mxu0 0.0
    %6495 = vmatpush.msra.mxu0 0.0
    %6496 = vmatpush.msra.mxu0 0.0
    %6497 = vmatpush.msra.mxu0 0.0
    %6498 = vmatpush.msra.mxu0 0.0
    %6499 = vmatpush.msra.mxu0 0.0
    %6500 = vmatpush.msra.mxu0 0.0
    %6501 = vmatpush.msra.mxu0 0.0
    %6502 = vmatpush.msra.mxu0 0.0
    %6503 = vmatpush.msra.mxu0 0.0
    %6504 = vmatpush.msra.mxu0 0.0
    %v6505 = vsub.f32 %v6281, %v6281
    %v6506 = vand.u32 %v6505, 4294901760
    %v6507 = vsub.f32 %v6505, %v6506
    %v6508 = vand.u32 %v6507, 4294901760
    %6509 = vmatpush.msra.mxu0 %v6508
    %v6510 = vsub.f32 %v6280, %v6280
    %v6511 = vand.u32 %v6510, 4294901760
    %v6512 = vsub.f32 %v6510, %v6511
    %v6513 = vand.u32 %v6512, 4294901760
    %6514 = vmatpush.msra.mxu0 %v6513
    %v6515 = vsub.f32 %v6279, %v6279
    %v6516 = vand.u32 %v6515, 4294901760
    %v6517 = vsub.f32 %v6515, %v6516
    %v6518 = vand.u32 %v6517, 4294901760
    %6519 = vmatpush.msra.mxu0 %v6518
    %v6520 = vsub.f32 %v6278, %v6278
    %v6521 = vand.u32 %v6520, 4294901760
    %v6522 = vsub.f32 %v6520, %v6521
    %v6523 = vand.u32 %v6522, 4294901760
    %6524 = vmatpush.msra.mxu0 %v6523
    %v6525 = vand.u32 %v6466, 4294901760
    %6526 = vmatmul.f32.gmra.mxu0 %v6525
    %v6527 = vpop.f32.mrf.mxu0
    %v6528 = vadd.f32 %v6491, %v6527
    %6529 = vdwg.mxu0
    %6530 = vmatpush.msra.mxu0 0.0
    %6531 = vmatpush.msra.mxu0 0.0
    %6532 = vmatpush.msra.mxu0 0.0
    %6533 = vmatpush.msra.mxu0 0.0
    %6534 = vmatpush.msra.mxu0 0.0
    %6535 = vmatpush.msra.mxu0 0.0
    %6536 = vmatpush.msra.mxu0 0.0
    %6537 = vmatpush.msra.mxu0 0.0
    %6538 = vmatpush.msra.mxu0 0.0
    %6539 = vmatpush.msra.mxu0 0.0
    %6540 = vmatpush.msra.mxu0 0.0
    %6541 = vmatpush.msra.mxu0 0.0
    %v6542 = vsub.f32 %v6281, %v6281
    %6543 = vmatpush.msra.mxu0 %v6542
    %v6544 = vsub.f32 %v6280, %v6280
    %6545 = vmatpush.msra.mxu0 %v6544
    %v6546 = vsub.f32 %v6279, %v6279
    %6547 = vmatpush.msra.mxu0 %v6546
    %v6548 = vsub.f32 %v6278, %v6278
    %6549 = vmatpush.msra.mxu0 %v6548
    %v6550 = vand.u32 %v6466, 4294901760
    %v6551 = vsub.f32 %v6466, %v6550
    %6552 = vmatmul.f32.gmra.mxu0 %v6551
    %v6553 = vpop.f32.mrf.mxu0
    %v6554 = vadd.f32 %v6528, %v6553
    %6555 = vdwg.mxu0
    %6556 = vmatpush.msra.mxu0 0.0
    %6557 = vmatpush.msra.mxu0 0.0
    %6558 = vmatpush.msra.mxu0 0.0
    %6559 = vmatpush.msra.mxu0 0.0
    %6560 = vmatpush.msra.mxu0 0.0
    %6561 = vmatpush.msra.mxu0 0.0
    %6562 = vmatpush.msra.mxu0 0.0
    %6563 = vmatpush.msra.mxu0 0.0
    %6564 = vmatpush.msra.mxu0 0.0
    %6565 = vmatpush.msra.mxu0 0.0
    %6566 = vmatpush.msra.mxu0 0.0
    %6567 = vmatpush.msra.mxu0 0.0
    %6568 = vmatpush.msra.mxu0 %v6281
    %6569 = vmatpush.msra.mxu0 %v6280
    %6570 = vmatpush.msra.mxu0 %v6279
    %6571 = vmatpush.msra.mxu0 %v6278
    %v6572 = vand.u32 %v6466, 4294901760
    %v6573 = vsub.f32 %v6466, %v6572
    %v6574 = vand.u32 %v6573, 4294901760
    %6575 = vmatmul.f32.gmra.mxu0 %v6574
    %v6576 = vpop.f32.mrf.mxu0
    %v6577 = vadd.f32 %v6554, %v6576
    %6578 = vdwg.mxu0
    %6579 = vmatpush.msra.mxu0 0.0
    %6580 = vmatpush.msra.mxu0 0.0
    %6581 = vmatpush.msra.mxu0 0.0
    %6582 = vmatpush.msra.mxu0 0.0
    %6583 = vmatpush.msra.mxu0 0.0
    %6584 = vmatpush.msra.mxu0 0.0
    %6585 = vmatpush.msra.mxu0 0.0
    %6586 = vmatpush.msra.mxu0 0.0
    %6587 = vmatpush.msra.mxu0 0.0
    %6588 = vmatpush.msra.mxu0 0.0
    %6589 = vmatpush.msra.mxu0 0.0
    %6590 = vmatpush.msra.mxu0 0.0
    %v6591 = vsub.f32 %v6281, %v6281
    %v6592 = vand.u32 %v6591, 4294901760
    %6593 = vmatpush.msra.mxu0 %v6592
    %v6594 = vsub.f32 %v6280, %v6280
    %v6595 = vand.u32 %v6594, 4294901760
    %6596 = vmatpush.msra.mxu0 %v6595
    %v6597 = vsub.f32 %v6279, %v6279
    %v6598 = vand.u32 %v6597, 4294901760
    %6599 = vmatpush.msra.mxu0 %v6598
    %v6600 = vsub.f32 %v6278, %v6278
    %v6601 = vand.u32 %v6600, 4294901760
    %6602 = vmatpush.msra.mxu0 %v6601
    %v6603 = vand.u32 %v6466, 4294901760
    %6604 = vmatmul.f32.gmra.mxu0 %v6603
    %v6605 = vpop.f32.mrf.mxu0
    %v6606 = vadd.f32 %v6577, %v6605
    %6607 = vdwg.mxu0
    %6608 = vmatpush.msra.mxu0 0.0
    %6609 = vmatpush.msra.mxu0 0.0
    %6610 = vmatpush.msra.mxu0 0.0
    %6611 = vmatpush.msra.mxu0 0.0
    %6612 = vmatpush.msra.mxu0 0.0
    %6613 = vmatpush.msra.mxu0 0.0
    %6614 = vmatpush.msra.mxu0 0.0
    %6615 = vmatpush.msra.mxu0 0.0
    %6616 = vmatpush.msra.mxu0 0.0
    %6617 = vmatpush.msra.mxu0 0.0
    %6618 = vmatpush.msra.mxu0 0.0
    %6619 = vmatpush.msra.mxu0 0.0
    %6620 = vmatpush.msra.mxu0 %v6281
    %6621 = vmatpush.msra.mxu0 %v6280
    %6622 = vmatpush.msra.mxu0 %v6279
    %6623 = vmatpush.msra.mxu0 %v6278
    %v6624 = vand.u32 %v6466, 4294901760
    %6625 = vmatmul.f32.gmra.mxu0 %v6624
    %v6626 = vpop.f32.mrf.mxu0
    %v6627 = vadd.f32 %v6606, %v6626
    %6628 = vdwg.mxu0
    %v6629 = vtanh.pop %v6627
    %6630 = vst.msk [vmem:[#allocation4] sm:$0xff] %vm95, %v6629
    %6631 = vst.msk [vmem:[#allocation5] sm:$0xff] %vm95, %v6629
    %6632 = vst [vmem:[#allocation7] sm:$0xff] %v5073
    // Predicated region
    $region70: #{tpu_custom_call.1} parent=1 // pred_check
      %p6633 = pneg %p60
    $region71: #{tpu_custom_call.1} parent=1 // pred_check_branch
      %6635 = sbr.rel (%p6633) target = $region73
    $region72: #{tpu_custom_call.1} parent=1 // pred_region
      %v6636 = vld [vmem:[#allocation2] sm:$0xff]
      %v6637 = vld [vmem:[#allocation2 + $0x8] sm:$0xff]
      %6638 = vst.msk [vmem:[#allocation9] sm:$0xff] %vm95, %v6636
      %6639 = vst.msk [vmem:[#allocation9 + $0x8] sm:$0xff] %vm95, %v6637
      %v6640 = vld [vmem:[#allocation3] sm:$0xff]
      %v6641 = vld [vmem:[#allocation3 + $0x8] sm:$0xff]
      %6642 = vst.msk [vmem:[#allocation10] sm:$0xff] %vm95, %v6640
      %6643 = vst.msk [vmem:[#allocation10 + $0x8] sm:$0xff] %vm95, %v6641
    $region73: #{tpu_custom_call.1} parent=1 // pred_fallthru
      _
    // Predicated region
    $region74: #{tpu_custom_call.1} parent=1 // pred_check
      _
    $region75: #{tpu_custom_call.1} parent=1 // pred_check_branch
      %6645 = sbr.rel (0) target = $region77
    $region76: #{tpu_custom_call.1} parent=1 // pred_region
      %6647 = vsyncadd [#allocation6], 0
      %s6649 = sshll.u32 [#allocation5], 4
      %s6650 = int_to_ptr.vmem [resolvable:$true] %s6649
      %s6651 = sshll.u32 %s16, 4
      %s6652 = int_to_ptr.hbm [resolvable:$true] %s6651
      %6654 = dma.vmem_to_hbm [thread:$0]  %s6650, 128, %s6652, [#allocation6]
    $region77: #{tpu_custom_call.1} parent=1 // pred_fallthru
      _
    // Predicated region
    $region78: #{tpu_custom_call.1} parent=1 // pred_check
      _
    $region79: #{tpu_custom_call.1} parent=1 // pred_check_branch
      %6656 = sbr.rel (0) target = $region81
    $region80: #{tpu_custom_call.1} parent=1 // pred_region
      %6658 = vsyncadd [#allocation8], 0
      %s6660 = sshll.u32 [#allocation7], 4
      %s6661 = int_to_ptr.vmem [resolvable:$true] %s6660
      %s6662 = sshll.u32 %s17, 4
      %s6663 = int_to_ptr.hbm [resolvable:$true] %s6662
      %6665 = dma.vmem_to_hbm [thread:$0]  %s6661, 128, %s6663, [#allocation8]
    $region81: #{tpu_custom_call.1} parent=1 // pred_fallthru
      _
    // Predicated region
    $region82: #{tpu_custom_call.1} parent=1 // pred_check
      _
    $region83: #{tpu_custom_call.1} parent=1 // pred_check_branch
      %6667 = sbr.rel (0) target = $region85
    $region84: #{tpu_custom_call.1} parent=1 // pred_region
      %6669 = vsyncadd [#allocation8], 0
      %s6670 = sshll.u32 [#allocation9], 4
      %s6671 = int_to_ptr.vmem [resolvable:$true] %s6670
      %s6672 = sshll.u32 %s18, 4
      %s6673 = int_to_ptr.hbm [resolvable:$true] %s6672
      %6678 = dma.vmem_to_hbm [thread:$0]  %s6671, 256, %s6673, [#allocation8], 128, 128, 8
    $region85: #{tpu_custom_call.1} parent=1 // pred_fallthru
      _
    // Predicated region
    $region86: #{tpu_custom_call.1} parent=1 // pred_check
      _
    $region87: #{tpu_custom_call.1} parent=1 // pred_check_branch
      %6680 = sbr.rel (0) target = $region89
    $region88: #{tpu_custom_call.1} parent=1 // pred_region
      %6682 = vsyncadd [#allocation11], 0
      %s6683 = sshll.u32 [#allocation10], 4
      %s6684 = int_to_ptr.vmem [resolvable:$true] %s6683
      %s6685 = sshll.u32 %s19, 4
      %s6686 = int_to_ptr.hbm [resolvable:$true] %s6685
      %6691 = dma.vmem_to_hbm [thread:$0]  %s6684, 256, %s6686, [#allocation11], 128, 128, 8
    $region89: #{tpu_custom_call.1} parent=1 // pred_fallthru
      _
    // Predicated region
    $region90: #{tpu_custom_call.1} parent=1 // pred_check
      _
    $region91: #{tpu_custom_call.1} parent=1 // pred_check_branch
      %6693 = sbr.rel (0) target = $region93
    $region92: #{tpu_custom_call.1} parent=1 // pred_region
      %6695 = dma.done [#allocation6], 128
    $region93: #{tpu_custom_call.1} parent=1 // pred_fallthru
      _
    // Predicated region
    $region94: #{tpu_custom_call.1} parent=1 // pred_check
      _
    $region95: #{tpu_custom_call.1} parent=1 // pred_check_branch
      %6697 = sbr.rel (0) target = $region97
    $region96: #{tpu_custom_call.1} parent=1 // pred_region
      %6699 = dma.done [#allocation8], 128
    $region97: #{tpu_custom_call.1} parent=1 // pred_fallthru
      _
    // Predicated region
    $region98: #{tpu_custom_call.1} parent=1 // pred_check
      _
    $region99: #{tpu_custom_call.1} parent=1 // pred_check_branch
      %6701 = sbr.rel (0) target = $region101
    $region100: #{tpu_custom_call.1} parent=1 // pred_region
      %6703 = dma.done [#allocation8], 256
    $region101: #{tpu_custom_call.1} parent=1 // pred_fallthru
      _
    // Predicated region
    $region102: #{tpu_custom_call.1} parent=1 // pred_check
      _
    $region103: #{tpu_custom_call.1} parent=1 // pred_check_branch
      %6705 = sbr.rel (0) target = $region105
    $region104: #{tpu_custom_call.1} parent=1 // pred_region
      %6707 = dma.done [#allocation11], 256
    $region105: #{tpu_custom_call.1} parent=1 // pred_fallthru
      _
    %6708 = vsyncpa [#allocation6], 1
    %6709 = vsyncpa [#allocation8], 1
    %6710 = vsyncpa [#allocation11], 1

</llo_original>
